<compile_context>
chip_gen: v7x
topology: tpu7x:2x2x1
jax: 0.10.0
libtpu: 0.0.40
codegen_flags: <defaults>
</compile_context>

<pallas_src>
import jax
import jax.numpy as jnp
from jax.experimental import pallas as pl
from jax.experimental.pallas import tpu as pltpu

_NEG_SLOPE = 0.2
_DROP_P = 0.3
_INV_KEEP = 1.0 / (1.0 - _DROP_P)
_DROP_THRESHOLD = int(_DROP_P * (1 << 32))      # keep iff bits >= threshold
_BN_EPS = 1e-5
_VMEM_LIMIT = 32 * 1024 * 1024                  # well under v7x's 64 MiB / TC


def _make_layer_kernel(use_bn, use_lrelu, use_dropout):
    """Conv-as-matmul layer: accumulate over K tiles, epilogue on last tile."""

    def kernel(p_ref, w_ref, g_ref, b_ref, bits_ref, o_ref, acc_ref):
        k = pl.program_id(1)

        @pl.when(k == 0)
        def _():
            acc_ref[...] = jnp.zeros_like(acc_ref)

        # bf16 x bf16 -> f32 accumulate on the MXU.
        acc_ref[...] += jnp.dot(p_ref[...], w_ref[...],
                                preferred_element_type=jnp.float32)

        @pl.when(k == pl.num_programs(1) - 1)
        def _():
            y = acc_ref[...]                                   # (M, tn) f32
            if use_bn:
                # Training-mode BatchNorm: per-channel batch stats over the
                # full M = N*H*W axis (never tiled).  Single-pass mean/E[y^2],
                # fused into one FMA.
                inv_m = 1.0 / y.shape[0]
                mean = jnp.sum(y, axis=0, keepdims=True) * inv_m
                mean_sq = jnp.sum(y * y, axis=0, keepdims=True) * inv_m
                var = mean_sq - mean * mean                    # biased variance
                scale = g_ref[...] * jax.lax.rsqrt(var + _BN_EPS)
                shift = b_ref[...] - mean * scale
                if use_dropout:
                    # Fold the inverted-dropout 1/keep into the affine;
                    # LeakyReLU commutes with a positive scale.
                    scale = scale * _INV_KEEP
                    shift = shift * _INV_KEEP
                y = y * scale + shift
            elif use_dropout:
                y = y * _INV_KEEP
            if use_lrelu:
                y = jnp.where(y >= 0.0, y, _NEG_SLOPE * y)
            if use_dropout:
                keep = bits_ref[...] >= jnp.uint32(_DROP_THRESHOLD)
                y = jnp.where(keep, y, 0.0)
            o_ref[...] = y.astype(o_ref.dtype)

    return kernel


def _conv_layer(patches, w2d, gamma, beta, bits, *, use_bn, use_lrelu,
                use_dropout, out_dtype, tk, tn):
    """patches: (M, KKC) bf16, w2d: (KKC, Cout) bf16 -> (M, Cout) out_dtype."""
    M, KKC = patches.shape
    Cout = w2d.shape[1]
    assert KKC % tk == 0 and Cout % tn == 0
    n_k = KKC // tk
    n_c = Cout // tn
    kernel = _make_layer_kernel(use_bn, use_lrelu, use_dropout)
    return pl.pallas_call(
        kernel,
        out_shape=jax.ShapeDtypeStruct((M, Cout), out_dtype),
        grid=(n_c, n_k),
        in_specs=[
            pl.BlockSpec((M, tk), lambda j, k: (0, k)),     # im2col patches
            pl.BlockSpec((tk, tn), lambda j, k: (k, j)),    # weights
            pl.BlockSpec((1, tn), lambda j, k: (0, j)),     # bn gamma
            pl.BlockSpec((1, tn), lambda j, k: (0, j)),     # bn beta
            pl.BlockSpec((M, tn), lambda j, k: (0, j)),     # dropout bits
        ],
        out_specs=pl.BlockSpec((M, tn), lambda j, k: (0, j)),
        scratch_shapes=[pltpu.VMEM((M, tn), jnp.float32)],
        compiler_params=pltpu.CompilerParams(
            dimension_semantics=("parallel", "arbitrary"),
            vmem_limit_bytes=_VMEM_LIMIT),
    )(patches, w2d, gamma, beta, bits)


def _final_kernel(p_ref, w_ref, o_ref):
    # (N, KKC) * (1, KKC) -> reduce over KKC; VPU/XLU path (too small for MXU).
    p = p_ref[...].astype(jnp.float32)
    w = w_ref[...].astype(jnp.float32)
    y = jnp.sum(p * w, axis=1, keepdims=True)              # (N, 1) f32
    o_ref[...] = jax.nn.sigmoid(y)


def _final_layer(patches, w_row):
    N = patches.shape[0]
    return pl.pallas_call(
        _final_kernel,
        out_shape=jax.ShapeDtypeStruct((N, 1), jnp.float32),
        compiler_params=pltpu.CompilerParams(
            vmem_limit_bytes=_VMEM_LIMIT),
    )(patches, w_row)


def _im2col(x_nhwc, K, stride, pad):
    """Extract (kh, kw, cin)-ordered patches.  Pure data movement (glue)."""
    N, H, W, C = x_nhwc.shape
    xp = jnp.pad(x_nhwc, ((0, 0), (pad, pad), (pad, pad), (0, 0)))
    Hp, Wp = H + 2 * pad, W + 2 * pad
    Ho = (Hp - K) // stride + 1
    Wo = (Wp - K) // stride + 1
    cols = []
    for kh in range(K):
        for kw in range(K):
            cols.append(xp[:, kh:kh + stride * Ho:stride,
                           kw:kw + stride * Wo:stride, :])
    patches = jnp.concatenate(cols, axis=-1)                # (N, Ho, Wo, K*K*C)
    return patches.reshape(N * Ho * Wo, K * K * C), (N, Ho, Wo)


def _w_torch_to_2d(w_oihw):
    """(Cout, Cin, kh, kw) -> (kh*kw*Cin, Cout), matching im2col ordering."""
    Cout, Cin, kh, kw = w_oihw.shape
    return jnp.transpose(w_oihw, (2, 3, 1, 0)).reshape(kh * kw * Cin, Cout)


def init_params(key):
    ks = jax.random.split(key, 5)
    scale = 0.05
    return {
        # torch layout: (Cout, Cin, kh, kw), bias=False everywhere
        "w1": jax.random.normal(ks[0], (64, 1, 4, 4), jnp.float32) * scale,
        "w2": jax.random.normal(ks[1], (128, 64, 4, 4), jnp.float32) * scale,
        "w3": jax.random.normal(ks[2], (256, 128, 4, 4), jnp.float32) * scale,
        "w4": jax.random.normal(ks[3], (512, 256, 4, 4), jnp.float32) * scale,
        "w5": jax.random.normal(ks[4], (1, 512, 4, 4), jnp.float32) * scale,
        # BatchNorm2d default init: weight=1, bias=0
        "g2": jnp.ones((128,), jnp.float32), "b2": jnp.zeros((128,), jnp.float32),
        "g3": jnp.ones((256,), jnp.float32), "b3": jnp.zeros((256,), jnp.float32),
        "g4": jnp.ones((512,), jnp.float32), "b4": jnp.zeros((512,), jnp.float32),
    }


def discriminator_forward(params, x_nchw, dropout_key):
    """x_nchw: (N, 1, 64, 64) float32.  Returns flattened (N,) output."""
    x = jnp.transpose(x_nchw, (0, 2, 3, 1)).astype(jnp.bfloat16)   # NHWC bf16
    dkeys = jax.random.split(dropout_key, 4)

    def dropout_bits(k, m, c):
        return jax.random.bits(k, (m, c), jnp.uint32)

    def bn_params(name_g, name_b):
        return (params[name_g].reshape(1, -1).astype(jnp.float32),
                params[name_b].reshape(1, -1).astype(jnp.float32))

    # conv1 (1->64, k4 s2 p1) + leaky_relu + dropout.
    # Cout padded 64 -> 128 for lane-dense stores; padded channels are exact
    # zeros and sliced off below.
    p, (N, Ho, Wo) = _im2col(x, 4, 2, 1)                           # (2048, 16)
    w1 = jnp.pad(_w_torch_to_2d(params["w1"]), ((0, 0), (0, 64)))  # (16, 128)
    M = p.shape[0]
    g1 = jnp.ones((1, 128), jnp.float32)
    b1 = jnp.zeros((1, 128), jnp.float32)
    y = _conv_layer(p, w1.astype(jnp.bfloat16), g1, b1,
                    dropout_bits(dkeys[0], M, 128),
                    use_bn=False, use_lrelu=True, use_dropout=True,
                    out_dtype=jnp.bfloat16, tk=16, tn=128)
    x = y[:, :64].reshape(N, Ho, Wo, 64)

    # conv2 (64->128) + bn2 + leaky_relu + dropout
    p, (N, Ho, Wo) = _im2col(x, 4, 2, 1)                           # (512, 1024)
    g, b = bn_params("g2", "b2")
    y = _conv_layer(p, _w_torch_to_2d(params["w2"]).astype(jnp.bfloat16),
                    g, b, dropout_bits(dkeys[1], p.shape[0], 128),
                    use_bn=True, use_lrelu=True, use_dropout=True,
                    out_dtype=jnp.bfloat16, tk=1024, tn=128)
    x = y.reshape(N, Ho, Wo, 128)

    # conv3 (128->256) + bn3 + leaky_relu + dropout  (2 parallel Cout blocks)
    p, (N, Ho, Wo) = _im2col(x, 4, 2, 1)                           # (128, 2048)
    g, b = bn_params("g3", "b3")
    y = _conv_layer(p, _w_torch_to_2d(params["w3"]).astype(jnp.bfloat16),
                    g, b, dropout_bits(dkeys[2], p.shape[0], 256),
                    use_bn=True, use_lrelu=True, use_dropout=True,
                    out_dtype=jnp.bfloat16, tk=1024, tn=128)
    x = y.reshape(N, Ho, Wo, 256)

    # conv4 (256->512) + bn4 + leaky_relu + dropout  (2 parallel Cout blocks)
    p, (N, Ho, Wo) = _im2col(x, 4, 2, 1)                           # (32, 4096)
    g, b = bn_params("g4", "b4")
    y = _conv_layer(p, _w_torch_to_2d(params["w4"]).astype(jnp.bfloat16),
                    g, b, dropout_bits(dkeys[3], p.shape[0], 512),
                    use_bn=True, use_lrelu=True, use_dropout=True,
                    out_dtype=jnp.bfloat16, tk=1024, tn=256)
    x = y.reshape(N, Ho, Wo, 512)

    # conv5 (512->1, k4 s1 p0) + sigmoid, then flatten
    p, _ = _im2col(x, 4, 1, 0)                                     # (N, 8192)
    w5 = _w_torch_to_2d(params["w5"]).reshape(1, -1)               # (1, 8192)
    y = _final_layer(p, w5.astype(jnp.bfloat16))                   # (N, 1) f32
    return y.reshape(-1)


if __name__ == "__main__":
    key = jax.random.PRNGKey(0)
    pkey, xkey, dkey = jax.random.split(key, 3)
    params = init_params(pkey)

    # DCGAN discriminator requires 64x64 single-channel input (conv5 reduces
    # a 4x4 map to 1x1).  Small batch N=2.
    x = jax.random.normal(xkey, (2, 1, 64, 64), jnp.float32)

    out = discriminator_forward(params, x, dkey)
    out = jax.block_until_ready(out)

    assert out.shape == (2,), out.shape
    assert bool(jnp.all(jnp.isfinite(out))), out
    assert bool(jnp.all((out >= 0.0) & (out <= 1.0))), out
    print("KERNEL_OK")
</pallas_src>

<mosaic_0001>
module attributes {stable_mosaic.version = 11 : i64} {
  func.func @kernel(%arg0: i32, %arg1: i32, %arg2: memref<2048x16xbf16, #tpu.memory_space<vmem>>, %arg3: memref<16x128xbf16, #tpu.memory_space<vmem>>, %arg4: memref<1x128xf32, #tpu.memory_space<vmem>>, %arg5: memref<1x128xf32, #tpu.memory_space<vmem>>, %arg6: memref<2048x128xi32, #tpu.memory_space<vmem>>, %arg7: memref<2048x128xbf16, #tpu.memory_space<vmem>>, %arg8: memref<2048x128xf32, #tpu.memory_space<vmem>>) attributes {dimension_semantics = [#tpu.dimension_semantics<parallel>, #tpu.dimension_semantics<arbitrary>], iteration_bounds = array<i64: 1, 1>, scalar_prefetch = 0 : i64, scratch_operands = 1 : i64, tpu.core_type = #tpu.core_type<tc>, window_params = [{transform_indices = @transform_0, window_bounds = array<i64: 2048, 16>}, {transform_indices = @transform_1, window_bounds = array<i64: 16, 128>}, {transform_indices = @transform_2, window_bounds = array<i64: 1, 128>}, {transform_indices = @transform_3, window_bounds = array<i64: 1, 128>}, {transform_indices = @transform_4, window_bounds = array<i64: 2048, 128>}, {transform_indices = @transform_5, window_bounds = array<i64: 2048, 128>}]} {
    %c0_i32 = arith.constant 0 : i32
    %0 = arith.cmpi eq, %arg1, %c0_i32 : i32
    %1 = arith.extui %0 : i1 to i32
    %c0_i32_0 = arith.constant 0 : i32
    %2 = arith.cmpi ne, %1, %c0_i32_0 : i32
    scf.if %2 {
      %cst_10 = arith.constant 0.000000e+00 : f32
      %12 = vector.broadcast %cst_10 : f32 to vector<2048x128xf32>
      %c0_11 = arith.constant 0 : index
      %c0_12 = arith.constant 0 : index
      %13 = vector.load %arg8[%c0_11, %c0_12] : memref<2048x128xf32, #tpu.memory_space<vmem>>, vector<2048x128xf32>
      tpu.vector_store %arg8[%c0_11, %c0_12], %12 {strides = array<i32>} : memref<2048x128xf32, #tpu.memory_space<vmem>>, vector<2048x128xf32>,
    } else {
    }
    %c0 = arith.constant 0 : index
    %c0_1 = arith.constant 0 : index
    %3 = vector.load %arg8[%c0, %c0_1] : memref<2048x128xf32, #tpu.memory_space<vmem>>, vector<2048x128xf32>
    %c0_2 = arith.constant 0 : index
    %c0_3 = arith.constant 0 : index
    %4 = vector.load %arg2[%c0_2, %c0_3] : memref<2048x16xbf16, #tpu.memory_space<vmem>>, vector<2048x16xbf16>
    %c0_4 = arith.constant 0 : index
    %c0_5 = arith.constant 0 : index
    %5 = vector.load %arg3[%c0_4, %c0_5] : memref<16x128xbf16, #tpu.memory_space<vmem>>, vector<16x128xbf16>
    %cst = arith.constant dense<0.000000e+00> : vector<2048x128xf32>
    %6 = tpu.matmul %4, %5, %cst {dimension_numbers = #tpu.dot_dimension_numbers<[1], [0], [0], [1], [0, 0, 1, 1], [], []>} : vector<2048x16xbf16>, vector<16x128xbf16>, vector<2048x128xf32> -> vector<2048x128xf32>
    %7 = arith.addf %3, %6 : vector<2048x128xf32>
    %c0_6 = arith.constant 0 : index
    %c0_7 = arith.constant 0 : index
    %8 = vector.load %arg8[%c0_6, %c0_7] : memref<2048x128xf32, #tpu.memory_space<vmem>>, vector<2048x128xf32>
    tpu.vector_store %arg8[%c0_6, %c0_7], %7 {strides = array<i32>} : memref<2048x128xf32, #tpu.memory_space<vmem>>, vector<2048x128xf32>,
    %c0_i32_8 = arith.constant 0 : i32
    %9 = arith.cmpi eq, %arg1, %c0_i32_8 : i32
    %10 = arith.extui %9 : i1 to i32
    %c0_i32_9 = arith.constant 0 : i32
    %11 = arith.cmpi ne, %10, %c0_i32_9 : i32
    scf.if %11 {
      %c0_10 = arith.constant 0 : index
      %c0_11 = arith.constant 0 : index
      %12 = vector.load %arg8[%c0_10, %c0_11] : memref<2048x128xf32, #tpu.memory_space<vmem>>, vector<2048x128xf32>
      %cst_12 = arith.constant 1.42857146 : f32
      %13 = vector.broadcast %cst_12 : f32 to vector<2048x128xf32>
      %14 = arith.mulf %12, %13 : vector<2048x128xf32>
      %cst_13 = arith.constant 0.000000e+00 : f32
      %15 = vector.broadcast %cst_13 : f32 to vector<2048x128xf32>
      %16 = arith.cmpf oge, %14, %15 : vector<2048x128xf32>
      %cst_14 = arith.constant 2.000000e-01 : f32
      %17 = vector.broadcast %cst_14 : f32 to vector<2048x128xf32>
      %18 = arith.mulf %17, %14 : vector<2048x128xf32>
      %19 = arith.select %16, %14, %18 : vector<2048x128xi1>, vector<2048x128xf32>
      %c0_15 = arith.constant 0 : index
      %c0_16 = arith.constant 0 : index
      %20 = vector.load %arg6[%c0_15, %c0_16] : memref<2048x128xi32, #tpu.memory_space<vmem>>, vector<2048x128xi32>
      %c1288490188_i32 = arith.constant 1288490188 : i32
      %21 = vector.broadcast %c1288490188_i32 : i32 to vector<2048x128xi32>
      %22 = arith.cmpi uge, %20, %21 : vector<2048x128xi32>
      %cst_17 = arith.constant 0.000000e+00 : f32
      %23 = vector.broadcast %cst_17 : f32 to vector<2048x128xf32>
      %24 = arith.select %22, %19, %23 : vector<2048x128xi1>, vector<2048x128xf32>
      %25 = arith.truncf %24 : vector<2048x128xf32> to vector<2048x128xbf16>
      %c0_18 = arith.constant 0 : index
      %c0_19 = arith.constant 0 : index
      %26 = vector.load %arg7[%c0_18, %c0_19] : memref<2048x128xbf16, #tpu.memory_space<vmem>>, vector<2048x128xbf16>
      tpu.vector_store %arg7[%c0_18, %c0_19], %25 {strides = array<i32>} : memref<2048x128xbf16, #tpu.memory_space<vmem>>, vector<2048x128xbf16>,
    } else {
    }
    return
  }
  func.func @transform_0(%arg0: i32, %arg1: i32) -> (i32, i32) {
    %c0_i32 = arith.constant 0 : i32
    %c0_i32_0 = arith.constant 0 : i32
    return %c0_i32, %arg1 : i32, i32
  }
  func.func @transform_1(%arg0: i32, %arg1: i32) -> (i32, i32) {
    %c0_i32 = arith.constant 0 : i32
    return %arg1, %arg0 : i32, i32
  }
  func.func @transform_2(%arg0: i32, %arg1: i32) -> (i32, i32) {
    %c0_i32 = arith.constant 0 : i32
    %c0_i32_0 = arith.constant 0 : i32
    return %c0_i32, %arg0 : i32, i32
  }
  func.func @transform_3(%arg0: i32, %arg1: i32) -> (i32, i32) {
    %c0_i32 = arith.constant 0 : i32
    %c0_i32_0 = arith.constant 0 : i32
    return %c0_i32, %arg0 : i32, i32
  }
  func.func @transform_4(%arg0: i32, %arg1: i32) -> (i32, i32) {
    %c0_i32 = arith.constant 0 : i32
    %c0_i32_0 = arith.constant 0 : i32
    return %c0_i32, %arg0 : i32, i32
  }
  func.func @transform_5(%arg0: i32, %arg1: i32) -> (i32, i32) {
    %c0_i32 = arith.constant 0 : i32
    %c0_i32_0 = arith.constant 0 : i32
    return %c0_i32, %arg0 : i32, i32
  }
}

</mosaic_0001>

<llo_original>
// kernel: tpu_custom_call.1
$region0: #{tpu_custom_call.1}
  #allocation0 [shape = 'u32[]', space=smem, size = 0x4, offset = 0x4, fixed_abs, tag = 'smem constant byte address 0x4 - core index']
  #allocation1 [shape = 'u32[144,128]{1,0:T(1,128)}', space=vmem, size = 0x12000, scoped, tag = 'internal scratch']
  #allocation2 [shape = 'f32[2048,128]{1,0:T(8,128)}', space=vmem, size = 0x100000, scoped, tag = 'scratch operand']
  %s0 = inlined_call_operand.vmem [shape: bf16[2048,16], index: 0, kind: input, shape index: {}]
  %s1 = inlined_call_operand.vmem [shape: bf16[16,128], index: 1, kind: input, shape index: {}]
  %s2 = inlined_call_operand.vmem [shape: f32[1,128], index: 2, kind: input, shape index: {}]
  %s3 = inlined_call_operand.vmem [shape: f32[1,128], index: 3, kind: input, shape index: {}]
  %s4 = inlined_call_operand.hbm [shape: u32[2048,128], index: 4, kind: input, shape index: {}]
  %s5 = inlined_call_operand.hbm [shape: bf16[2048,128], index: 5, kind: output, shape index: {}]
  %s6 = sld [smem:[#allocation0]]
  $region42: #{tpu_custom_call.1} parent=0
    _
  %s8 = ssub.s32 1, %s6
  %s9 = scalar_select 0, %s8, %s6
  $region1: #{tpu_custom_call.1} parent=0
    #allocation3 [shape = 'u8[1048576]{0}', space=vmem, size = 0x100000, scoped, tag = 'input window, operand 4, single buffered']
    #allocation4 [shape = 's32[1]{0}', space=sflag, size = 0x4, scoped, tag = 'scoped memory for tpu_custom_call.1']
    #allocation5 [shape = 's32[1]{0}', space=sflag, size = 0x4, scoped, tag = 'scoped memory for tpu_custom_call.1']
    #allocation6 [shape = 'u8[524288]{0}', space=vmem, size = 0x80000, scoped, tag = 'output window, operand 0, single buffered']
    %10 = vsyncpa [#allocation4], 0
    %11 = vsyncpa [#allocation5], 0
    // Predicated region
    $region2: #{tpu_custom_call.1} parent=1 // pred_check
      _
    $region3: #{tpu_custom_call.1} parent=1 // pred_check_branch
      %13 = sbr.rel (0) target = $region5
    $region4: #{tpu_custom_call.1} parent=1 // pred_region
      _
    $region5: #{tpu_custom_call.1} parent=1 // pred_fallthru
      _
    // Predicated region
    $region6: #{tpu_custom_call.1} parent=1 // pred_check
      _
    $region7: #{tpu_custom_call.1} parent=1 // pred_check_branch
      %15 = sbr.rel (0) target = $region9
    $region8: #{tpu_custom_call.1} parent=1 // pred_region
      _
    $region9: #{tpu_custom_call.1} parent=1 // pred_fallthru
      _
    // Predicated region
    $region10: #{tpu_custom_call.1} parent=1 // pred_check
      _
    $region11: #{tpu_custom_call.1} parent=1 // pred_check_branch
      %17 = sbr.rel (0) target = $region13
    $region12: #{tpu_custom_call.1} parent=1 // pred_region
      _
    $region13: #{tpu_custom_call.1} parent=1 // pred_fallthru
      _
    // Predicated region
    $region14: #{tpu_custom_call.1} parent=1 // pred_check
      _
    $region15: #{tpu_custom_call.1} parent=1 // pred_check_branch
      %19 = sbr.rel (0) target = $region17
    $region16: #{tpu_custom_call.1} parent=1 // pred_region
      _
    $region17: #{tpu_custom_call.1} parent=1 // pred_fallthru
      _
    // Predicated region
    $region18: #{tpu_custom_call.1} parent=1 // pred_check
      _
    $region19: #{tpu_custom_call.1} parent=1 // pred_check_branch
      %21 = sbr.rel (0) target = $region21
    $region20: #{tpu_custom_call.1} parent=1 // pred_region
      %s23 = ssub.s32 32768, 32768
      %24 = vsyncadd [#allocation4], %s23
      %s25 = sshll.u32 [#allocation3], 4
      %s26 = int_to_ptr.vmem [resolvable:$true] %s25
      %31 = dma.hbm_to_vmem [thread:$0]  %s4, 32768, %s26, [#allocation4], 128, 128, 8
    $region21: #{tpu_custom_call.1} parent=1 // pred_fallthru
      _
    // Predicated region
    $region22: #{tpu_custom_call.1} parent=1 // pred_check
      _
    $region23: #{tpu_custom_call.1} parent=1 // pred_check_branch
      %33 = sbr.rel (0) target = $region25
    $region24: #{tpu_custom_call.1} parent=1 // pred_region
      %34 = dma.done [#allocation4], 32768
    $region25: #{tpu_custom_call.1} parent=1 // pred_fallthru
      _
    %p36 = scmp.eq.s32.totalorder 0, 0
    // Predicated region
    $region26: #{tpu_custom_call.1} parent=1 // pred_check
      %p37 = pneg %p36
    $region27: #{tpu_custom_call.1} parent=1 // pred_check_branch
      %39 = sbr.rel (%p37) target = $region29
    $region28: #{tpu_custom_call.1} parent=1 // pred_region
      %40 = vst [vmem:[#allocation2] sm:$0xff] 0.0
      %41 = vst [vmem:[#allocation2 + $0x8] sm:$0xff] 0.0
      %42 = vst [vmem:[#allocation2 + $0x10] sm:$0xff] 0.0
      %43 = vst [vmem:[#allocation2 + $0x18] sm:$0xff] 0.0
      %44 = vst [vmem:[#allocation2 + $0x20] sm:$0xff] 0.0
      %45 = vst [vmem:[#allocation2 + $0x28] sm:$0xff] 0.0
      %46 = vst [vmem:[#allocation2 + $0x30] sm:$0xff] 0.0
      %47 = vst [vmem:[#allocation2 + $0x38] sm:$0xff] 0.0
      %48 = vst [vmem:[#allocation2 + $0x40] sm:$0xff] 0.0
      %49 = vst [vmem:[#allocation2 + $0x48] sm:$0xff] 0.0
      %50 = vst [vmem:[#allocation2 + $0x50] sm:$0xff] 0.0
      %51 = vst [vmem:[#allocation2 + $0x58] sm:$0xff] 0.0
      %52 = vst [vmem:[#allocation2 + $0x60] sm:$0xff] 0.0
      %53 = vst [vmem:[#allocation2 + $0x68] sm:$0xff] 0.0
      %54 = vst [vmem:[#allocation2 + $0x70] sm:$0xff] 0.0
      %55 = vst [vmem:[#allocation2 + $0x78] sm:$0xff] 0.0
      %56 = vst [vmem:[#allocation2 + $0x80] sm:$0xff] 0.0
      %57 = vst [vmem:[#allocation2 + $0x88] sm:$0xff] 0.0
      %58 = vst [vmem:[#allocation2 + $0x90] sm:$0xff] 0.0
      %59 = vst [vmem:[#allocation2 + $0x98] sm:$0xff] 0.0
      %60 = vst [vmem:[#allocation2 + $0xa0] sm:$0xff] 0.0
      %61 = vst [vmem:[#allocation2 + $0xa8] sm:$0xff] 0.0
      %62 = vst [vmem:[#allocation2 + $0xb0] sm:$0xff] 0.0
      %63 = vst [vmem:[#allocation2 + $0xb8] sm:$0xff] 0.0
      %64 = vst [vmem:[#allocation2 + $0xc0] sm:$0xff] 0.0
      %65 = vst [vmem:[#allocation2 + $0xc8] sm:$0xff] 0.0
      %66 = vst [vmem:[#allocation2 + $0xd0] sm:$0xff] 0.0
      %67 = vst [vmem:[#allocation2 + $0xd8] sm:$0xff] 0.0
      %68 = vst [vmem:[#allocation2 + $0xe0] sm:$0xff] 0.0
      %69 = vst [vmem:[#allocation2 + $0xe8] sm:$0xff] 0.0
      %70 = vst [vmem:[#allocation2 + $0xf0] sm:$0xff] 0.0
      %71 = vst [vmem:[#allocation2 + $0xf8] sm:$0xff] 0.0
      %72 = vst [vmem:[#allocation2 + $0x100] sm:$0xff] 0.0
      %73 = vst [vmem:[#allocation2 + $0x108] sm:$0xff] 0.0
      %74 = vst [vmem:[#allocation2 + $0x110] sm:$0xff] 0.0
      %75 = vst [vmem:[#allocation2 + $0x118] sm:$0xff] 0.0
      %76 = vst [vmem:[#allocation2 + $0x120] sm:$0xff] 0.0
      %77 = vst [vmem:[#allocation2 + $0x128] sm:$0xff] 0.0
      %78 = vst [vmem:[#allocation2 + $0x130] sm:$0xff] 0.0
      %79 = vst [vmem:[#allocation2 + $0x138] sm:$0xff] 0.0
      %80 = vst [vmem:[#allocation2 + $0x140] sm:$0xff] 0.0
      %81 = vst [vmem:[#allocation2 + $0x148] sm:$0xff] 0.0
      %82 = vst [vmem:[#allocation2 + $0x150] sm:$0xff] 0.0
      %83 = vst [vmem:[#allocation2 + $0x158] sm:$0xff] 0.0
      %84 = vst [vmem:[#allocation2 + $0x160] sm:$0xff] 0.0
      %85 = vst [vmem:[#allocation2 + $0x168] sm:$0xff] 0.0
      %86 = vst [vmem:[#allocation2 + $0x170] sm:$0xff] 0.0
      %87 = vst [vmem:[#allocation2 + $0x178] sm:$0xff] 0.0
      %88 = vst [vmem:[#allocation2 + $0x180] sm:$0xff] 0.0
      %89 = vst [vmem:[#allocation2 + $0x188] sm:$0xff] 0.0
      %90 = vst [vmem:[#allocation2 + $0x190] sm:$0xff] 0.0
      %91 = vst [vmem:[#allocation2 + $0x198] sm:$0xff] 0.0
      %92 = vst [vmem:[#allocation2 + $0x1a0] sm:$0xff] 0.0
      %93 = vst [vmem:[#allocation2 + $0x1a8] sm:$0xff] 0.0
      %94 = vst [vmem:[#allocation2 + $0x1b0] sm:$0xff] 0.0
      %95 = vst [vmem:[#allocation2 + $0x1b8] sm:$0xff] 0.0
      %96 = vst [vmem:[#allocation2 + $0x1c0] sm:$0xff] 0.0
      %97 = vst [vmem:[#allocation2 + $0x1c8] sm:$0xff] 0.0
      %98 = vst [vmem:[#allocation2 + $0x1d0] sm:$0xff] 0.0
      %99 = vst [vmem:[#allocation2 + $0x1d8] sm:$0xff] 0.0
      %100 = vst [vmem:[#allocation2 + $0x1e0] sm:$0xff] 0.0
      %101 = vst [vmem:[#allocation2 + $0x1e8] sm:$0xff] 0.0
      %102 = vst [vmem:[#allocation2 + $0x1f0] sm:$0xff] 0.0
      %103 = vst [vmem:[#allocation2 + $0x1f8] sm:$0xff] 0.0
      %104 = vst [vmem:[#allocation2 + $0x200] sm:$0xff] 0.0
      %105 = vst [vmem:[#allocation2 + $0x208] sm:$0xff] 0.0
      %106 = vst [vmem:[#allocation2 + $0x210] sm:$0xff] 0.0
      %107 = vst [vmem:[#allocation2 + $0x218] sm:$0xff] 0.0
      %108 = vst [vmem:[#allocation2 + $0x220] sm:$0xff] 0.0
      %109 = vst [vmem:[#allocation2 + $0x228] sm:$0xff] 0.0
      %110 = vst [vmem:[#allocation2 + $0x230] sm:$0xff] 0.0
      %111 = vst [vmem:[#allocation2 + $0x238] sm:$0xff] 0.0
      %112 = vst [vmem:[#allocation2 + $0x240] sm:$0xff] 0.0
      %113 = vst [vmem:[#allocation2 + $0x248] sm:$0xff] 0.0
      %114 = vst [vmem:[#allocation2 + $0x250] sm:$0xff] 0.0
      %115 = vst [vmem:[#allocation2 + $0x258] sm:$0xff] 0.0
      %116 = vst [vmem:[#allocation2 + $0x260] sm:$0xff] 0.0
      %117 = vst [vmem:[#allocation2 + $0x268] sm:$0xff] 0.0
      %118 = vst [vmem:[#allocation2 + $0x270] sm:$0xff] 0.0
      %119 = vst [vmem:[#allocation2 + $0x278] sm:$0xff] 0.0
      %120 = vst [vmem:[#allocation2 + $0x280] sm:$0xff] 0.0
      %121 = vst [vmem:[#allocation2 + $0x288] sm:$0xff] 0.0
      %122 = vst [vmem:[#allocation2 + $0x290] sm:$0xff] 0.0
      %123 = vst [vmem:[#allocation2 + $0x298] sm:$0xff] 0.0
      %124 = vst [vmem:[#allocation2 + $0x2a0] sm:$0xff] 0.0
      %125 = vst [vmem:[#allocation2 + $0x2a8] sm:$0xff] 0.0
      %126 = vst [vmem:[#allocation2 + $0x2b0] sm:$0xff] 0.0
      %127 = vst [vmem:[#allocation2 + $0x2b8] sm:$0xff] 0.0
      %128 = vst [vmem:[#allocation2 + $0x2c0] sm:$0xff] 0.0
      %129 = vst [vmem:[#allocation2 + $0x2c8] sm:$0xff] 0.0
      %130 = vst [vmem:[#allocation2 + $0x2d0] sm:$0xff] 0.0
      %131 = vst [vmem:[#allocation2 + $0x2d8] sm:$0xff] 0.0
      %132 = vst [vmem:[#allocation2 + $0x2e0] sm:$0xff] 0.0
      %133 = vst [vmem:[#allocation2 + $0x2e8] sm:$0xff] 0.0
      %134 = vst [vmem:[#allocation2 + $0x2f0] sm:$0xff] 0.0
      %135 = vst [vmem:[#allocation2 + $0x2f8] sm:$0xff] 0.0
      %136 = vst [vmem:[#allocation2 + $0x300] sm:$0xff] 0.0
      %137 = vst [vmem:[#allocation2 + $0x308] sm:$0xff] 0.0
      %138 = vst [vmem:[#allocation2 + $0x310] sm:$0xff] 0.0
      %139 = vst [vmem:[#allocation2 + $0x318] sm:$0xff] 0.0
      %140 = vst [vmem:[#allocation2 + $0x320] sm:$0xff] 0.0
      %141 = vst [vmem:[#allocation2 + $0x328] sm:$0xff] 0.0
      %142 = vst [vmem:[#allocation2 + $0x330] sm:$0xff] 0.0
      %143 = vst [vmem:[#allocation2 + $0x338] sm:$0xff] 0.0
      %144 = vst [vmem:[#allocation2 + $0x340] sm:$0xff] 0.0
      %145 = vst [vmem:[#allocation2 + $0x348] sm:$0xff] 0.0
      %146 = vst [vmem:[#allocation2 + $0x350] sm:$0xff] 0.0
      %147 = vst [vmem:[#allocation2 + $0x358] sm:$0xff] 0.0
      %148 = vst [vmem:[#allocation2 + $0x360] sm:$0xff] 0.0
      %149 = vst [vmem:[#allocation2 + $0x368] sm:$0xff] 0.0
      %150 = vst [vmem:[#allocation2 + $0x370] sm:$0xff] 0.0
      %151 = vst [vmem:[#allocation2 + $0x378] sm:$0xff] 0.0
      %152 = vst [vmem:[#allocation2 + $0x380] sm:$0xff] 0.0
      %153 = vst [vmem:[#allocation2 + $0x388] sm:$0xff] 0.0
      %154 = vst [vmem:[#allocation2 + $0x390] sm:$0xff] 0.0
      %155 = vst [vmem:[#allocation2 + $0x398] sm:$0xff] 0.0
      %156 = vst [vmem:[#allocation2 + $0x3a0] sm:$0xff] 0.0
      %157 = vst [vmem:[#allocation2 + $0x3a8] sm:$0xff] 0.0
      %158 = vst [vmem:[#allocation2 + $0x3b0] sm:$0xff] 0.0
      %159 = vst [vmem:[#allocation2 + $0x3b8] sm:$0xff] 0.0
      %160 = vst [vmem:[#allocation2 + $0x3c0] sm:$0xff] 0.0
      %161 = vst [vmem:[#allocation2 + $0x3c8] sm:$0xff] 0.0
      %162 = vst [vmem:[#allocation2 + $0x3d0] sm:$0xff] 0.0
      %163 = vst [vmem:[#allocation2 + $0x3d8] sm:$0xff] 0.0
      %164 = vst [vmem:[#allocation2 + $0x3e0] sm:$0xff] 0.0
      %165 = vst [vmem:[#allocation2 + $0x3e8] sm:$0xff] 0.0
      %166 = vst [vmem:[#allocation2 + $0x3f0] sm:$0xff] 0.0
      %167 = vst [vmem:[#allocation2 + $0x3f8] sm:$0xff] 0.0
      %168 = vst [vmem:[#allocation2 + $0x400] sm:$0xff] 0.0
      %169 = vst [vmem:[#allocation2 + $0x408] sm:$0xff] 0.0
      %170 = vst [vmem:[#allocation2 + $0x410] sm:$0xff] 0.0
      %171 = vst [vmem:[#allocation2 + $0x418] sm:$0xff] 0.0
      %172 = vst [vmem:[#allocation2 + $0x420] sm:$0xff] 0.0
      %173 = vst [vmem:[#allocation2 + $0x428] sm:$0xff] 0.0
      %174 = vst [vmem:[#allocation2 + $0x430] sm:$0xff] 0.0
      %175 = vst [vmem:[#allocation2 + $0x438] sm:$0xff] 0.0
      %176 = vst [vmem:[#allocation2 + $0x440] sm:$0xff] 0.0
      %177 = vst [vmem:[#allocation2 + $0x448] sm:$0xff] 0.0
      %178 = vst [vmem:[#allocation2 + $0x450] sm:$0xff] 0.0
      %179 = vst [vmem:[#allocation2 + $0x458] sm:$0xff] 0.0
      %180 = vst [vmem:[#allocation2 + $0x460] sm:$0xff] 0.0
      %181 = vst [vmem:[#allocation2 + $0x468] sm:$0xff] 0.0
      %182 = vst [vmem:[#allocation2 + $0x470] sm:$0xff] 0.0
      %183 = vst [vmem:[#allocation2 + $0x478] sm:$0xff] 0.0
      %184 = vst [vmem:[#allocation2 + $0x480] sm:$0xff] 0.0
      %185 = vst [vmem:[#allocation2 + $0x488] sm:$0xff] 0.0
      %186 = vst [vmem:[#allocation2 + $0x490] sm:$0xff] 0.0
      %187 = vst [vmem:[#allocation2 + $0x498] sm:$0xff] 0.0
      %188 = vst [vmem:[#allocation2 + $0x4a0] sm:$0xff] 0.0
      %189 = vst [vmem:[#allocation2 + $0x4a8] sm:$0xff] 0.0
      %190 = vst [vmem:[#allocation2 + $0x4b0] sm:$0xff] 0.0
      %191 = vst [vmem:[#allocation2 + $0x4b8] sm:$0xff] 0.0
      %192 = vst [vmem:[#allocation2 + $0x4c0] sm:$0xff] 0.0
      %193 = vst [vmem:[#allocation2 + $0x4c8] sm:$0xff] 0.0
      %194 = vst [vmem:[#allocation2 + $0x4d0] sm:$0xff] 0.0
      %195 = vst [vmem:[#allocation2 + $0x4d8] sm:$0xff] 0.0
      %196 = vst [vmem:[#allocation2 + $0x4e0] sm:$0xff] 0.0
      %197 = vst [vmem:[#allocation2 + $0x4e8] sm:$0xff] 0.0
      %198 = vst [vmem:[#allocation2 + $0x4f0] sm:$0xff] 0.0
      %199 = vst [vmem:[#allocation2 + $0x4f8] sm:$0xff] 0.0
      %200 = vst [vmem:[#allocation2 + $0x500] sm:$0xff] 0.0
      %201 = vst [vmem:[#allocation2 + $0x508] sm:$0xff] 0.0
      %202 = vst [vmem:[#allocation2 + $0x510] sm:$0xff] 0.0
      %203 = vst [vmem:[#allocation2 + $0x518] sm:$0xff] 0.0
      %204 = vst [vmem:[#allocation2 + $0x520] sm:$0xff] 0.0
      %205 = vst [vmem:[#allocation2 + $0x528] sm:$0xff] 0.0
      %206 = vst [vmem:[#allocation2 + $0x530] sm:$0xff] 0.0
      %207 = vst [vmem:[#allocation2 + $0x538] sm:$0xff] 0.0
      %208 = vst [vmem:[#allocation2 + $0x540] sm:$0xff] 0.0
      %209 = vst [vmem:[#allocation2 + $0x548] sm:$0xff] 0.0
      %210 = vst [vmem:[#allocation2 + $0x550] sm:$0xff] 0.0
      %211 = vst [vmem:[#allocation2 + $0x558] sm:$0xff] 0.0
      %212 = vst [vmem:[#allocation2 + $0x560] sm:$0xff] 0.0
      %213 = vst [vmem:[#allocation2 + $0x568] sm:$0xff] 0.0
      %214 = vst [vmem:[#allocation2 + $0x570] sm:$0xff] 0.0
      %215 = vst [vmem:[#allocation2 + $0x578] sm:$0xff] 0.0
      %216 = vst [vmem:[#allocation2 + $0x580] sm:$0xff] 0.0
      %217 = vst [vmem:[#allocation2 + $0x588] sm:$0xff] 0.0
      %218 = vst [vmem:[#allocation2 + $0x590] sm:$0xff] 0.0
      %219 = vst [vmem:[#allocation2 + $0x598] sm:$0xff] 0.0
      %220 = vst [vmem:[#allocation2 + $0x5a0] sm:$0xff] 0.0
      %221 = vst [vmem:[#allocation2 + $0x5a8] sm:$0xff] 0.0
      %222 = vst [vmem:[#allocation2 + $0x5b0] sm:$0xff] 0.0
      %223 = vst [vmem:[#allocation2 + $0x5b8] sm:$0xff] 0.0
      %224 = vst [vmem:[#allocation2 + $0x5c0] sm:$0xff] 0.0
      %225 = vst [vmem:[#allocation2 + $0x5c8] sm:$0xff] 0.0
      %226 = vst [vmem:[#allocation2 + $0x5d0] sm:$0xff] 0.0
      %227 = vst [vmem:[#allocation2 + $0x5d8] sm:$0xff] 0.0
      %228 = vst [vmem:[#allocation2 + $0x5e0] sm:$0xff] 0.0
      %229 = vst [vmem:[#allocation2 + $0x5e8] sm:$0xff] 0.0
      %230 = vst [vmem:[#allocation2 + $0x5f0] sm:$0xff] 0.0
      %231 = vst [vmem:[#allocation2 + $0x5f8] sm:$0xff] 0.0
      %232 = vst [vmem:[#allocation2 + $0x600] sm:$0xff] 0.0
      %233 = vst [vmem:[#allocation2 + $0x608] sm:$0xff] 0.0
      %234 = vst [vmem:[#allocation2 + $0x610] sm:$0xff] 0.0
      %235 = vst [vmem:[#allocation2 + $0x618] sm:$0xff] 0.0
      %236 = vst [vmem:[#allocation2 + $0x620] sm:$0xff] 0.0
      %237 = vst [vmem:[#allocation2 + $0x628] sm:$0xff] 0.0
      %238 = vst [vmem:[#allocation2 + $0x630] sm:$0xff] 0.0
      %239 = vst [vmem:[#allocation2 + $0x638] sm:$0xff] 0.0
      %240 = vst [vmem:[#allocation2 + $0x640] sm:$0xff] 0.0
      %241 = vst [vmem:[#allocation2 + $0x648] sm:$0xff] 0.0
      %242 = vst [vmem:[#allocation2 + $0x650] sm:$0xff] 0.0
      %243 = vst [vmem:[#allocation2 + $0x658] sm:$0xff] 0.0
      %244 = vst [vmem:[#allocation2 + $0x660] sm:$0xff] 0.0
      %245 = vst [vmem:[#allocation2 + $0x668] sm:$0xff] 0.0
      %246 = vst [vmem:[#allocation2 + $0x670] sm:$0xff] 0.0
      %247 = vst [vmem:[#allocation2 + $0x678] sm:$0xff] 0.0
      %248 = vst [vmem:[#allocation2 + $0x680] sm:$0xff] 0.0
      %249 = vst [vmem:[#allocation2 + $0x688] sm:$0xff] 0.0
      %250 = vst [vmem:[#allocation2 + $0x690] sm:$0xff] 0.0
      %251 = vst [vmem:[#allocation2 + $0x698] sm:$0xff] 0.0
      %252 = vst [vmem:[#allocation2 + $0x6a0] sm:$0xff] 0.0
      %253 = vst [vmem:[#allocation2 + $0x6a8] sm:$0xff] 0.0
      %254 = vst [vmem:[#allocation2 + $0x6b0] sm:$0xff] 0.0
      %255 = vst [vmem:[#allocation2 + $0x6b8] sm:$0xff] 0.0
      %256 = vst [vmem:[#allocation2 + $0x6c0] sm:$0xff] 0.0
      %257 = vst [vmem:[#allocation2 + $0x6c8] sm:$0xff] 0.0
      %258 = vst [vmem:[#allocation2 + $0x6d0] sm:$0xff] 0.0
      %259 = vst [vmem:[#allocation2 + $0x6d8] sm:$0xff] 0.0
      %260 = vst [vmem:[#allocation2 + $0x6e0] sm:$0xff] 0.0
      %261 = vst [vmem:[#allocation2 + $0x6e8] sm:$0xff] 0.0
      %262 = vst [vmem:[#allocation2 + $0x6f0] sm:$0xff] 0.0
      %263 = vst [vmem:[#allocation2 + $0x6f8] sm:$0xff] 0.0
      %264 = vst [vmem:[#allocation2 + $0x700] sm:$0xff] 0.0
      %265 = vst [vmem:[#allocation2 + $0x708] sm:$0xff] 0.0
      %266 = vst [vmem:[#allocation2 + $0x710] sm:$0xff] 0.0
      %267 = vst [vmem:[#allocation2 + $0x718] sm:$0xff] 0.0
      %268 = vst [vmem:[#allocation2 + $0x720] sm:$0xff] 0.0
      %269 = vst [vmem:[#allocation2 + $0x728] sm:$0xff] 0.0
      %270 = vst [vmem:[#allocation2 + $0x730] sm:$0xff] 0.0
      %271 = vst [vmem:[#allocation2 + $0x738] sm:$0xff] 0.0
      %272 = vst [vmem:[#allocation2 + $0x740] sm:$0xff] 0.0
      %273 = vst [vmem:[#allocation2 + $0x748] sm:$0xff] 0.0
      %274 = vst [vmem:[#allocation2 + $0x750] sm:$0xff] 0.0
      %275 = vst [vmem:[#allocation2 + $0x758] sm:$0xff] 0.0
      %276 = vst [vmem:[#allocation2 + $0x760] sm:$0xff] 0.0
      %277 = vst [vmem:[#allocation2 + $0x768] sm:$0xff] 0.0
      %278 = vst [vmem:[#allocation2 + $0x770] sm:$0xff] 0.0
      %279 = vst [vmem:[#allocation2 + $0x778] sm:$0xff] 0.0
      %280 = vst [vmem:[#allocation2 + $0x780] sm:$0xff] 0.0
      %281 = vst [vmem:[#allocation2 + $0x788] sm:$0xff] 0.0
      %282 = vst [vmem:[#allocation2 + $0x790] sm:$0xff] 0.0
      %283 = vst [vmem:[#allocation2 + $0x798] sm:$0xff] 0.0
      %284 = vst [vmem:[#allocation2 + $0x7a0] sm:$0xff] 0.0
      %285 = vst [vmem:[#allocation2 + $0x7a8] sm:$0xff] 0.0
      %286 = vst [vmem:[#allocation2 + $0x7b0] sm:$0xff] 0.0
      %287 = vst [vmem:[#allocation2 + $0x7b8] sm:$0xff] 0.0
      %288 = vst [vmem:[#allocation2 + $0x7c0] sm:$0xff] 0.0
      %289 = vst [vmem:[#allocation2 + $0x7c8] sm:$0xff] 0.0
      %290 = vst [vmem:[#allocation2 + $0x7d0] sm:$0xff] 0.0
      %291 = vst [vmem:[#allocation2 + $0x7d8] sm:$0xff] 0.0
      %292 = vst [vmem:[#allocation2 + $0x7e0] sm:$0xff] 0.0
      %293 = vst [vmem:[#allocation2 + $0x7e8] sm:$0xff] 0.0
      %294 = vst [vmem:[#allocation2 + $0x7f0] sm:$0xff] 0.0
      %295 = vst [vmem:[#allocation2 + $0x7f8] sm:$0xff] 0.0
    $region29: #{tpu_custom_call.1} parent=1 // pred_fallthru
      _
    %v296 = vld [vmem:[#allocation2] sm:$0xff]
    %v297 = vld [vmem:[#allocation2 + $0x8] sm:$0xff]
    %v298 = vld [vmem:[#allocation2 + $0x10] sm:$0xff]
    %v299 = vld [vmem:[#allocation2 + $0x18] sm:$0xff]
    %v300 = vld [vmem:[#allocation2 + $0x20] sm:$0xff]
    %v301 = vld [vmem:[#allocation2 + $0x28] sm:$0xff]
    %v302 = vld [vmem:[#allocation2 + $0x30] sm:$0xff]
    %v303 = vld [vmem:[#allocation2 + $0x38] sm:$0xff]
    %v304 = vld [vmem:[#allocation2 + $0x40] sm:$0xff]
    %v305 = vld [vmem:[#allocation2 + $0x48] sm:$0xff]
    %v306 = vld [vmem:[#allocation2 + $0x50] sm:$0xff]
    %v307 = vld [vmem:[#allocation2 + $0x58] sm:$0xff]
    %v308 = vld [vmem:[#allocation2 + $0x60] sm:$0xff]
    %v309 = vld [vmem:[#allocation2 + $0x68] sm:$0xff]
    %v310 = vld [vmem:[#allocation2 + $0x70] sm:$0xff]
    %v311 = vld [vmem:[#allocation2 + $0x78] sm:$0xff]
    %v312 = vld [vmem:[#allocation2 + $0x80] sm:$0xff]
    %v313 = vld [vmem:[#allocation2 + $0x88] sm:$0xff]
    %v314 = vld [vmem:[#allocation2 + $0x90] sm:$0xff]
    %v315 = vld [vmem:[#allocation2 + $0x98] sm:$0xff]
    %v316 = vld [vmem:[#allocation2 + $0xa0] sm:$0xff]
    %v317 = vld [vmem:[#allocation2 + $0xa8] sm:$0xff]
    %v318 = vld [vmem:[#allocation2 + $0xb0] sm:$0xff]
    %v319 = vld [vmem:[#allocation2 + $0xb8] sm:$0xff]
    %v320 = vld [vmem:[#allocation2 + $0xc0] sm:$0xff]
    %v321 = vld [vmem:[#allocation2 + $0xc8] sm:$0xff]
    %v322 = vld [vmem:[#allocation2 + $0xd0] sm:$0xff]
    %v323 = vld [vmem:[#allocation2 + $0xd8] sm:$0xff]
    %v324 = vld [vmem:[#allocation2 + $0xe0] sm:$0xff]
    %v325 = vld [vmem:[#allocation2 + $0xe8] sm:$0xff]
    %v326 = vld [vmem:[#allocation2 + $0xf0] sm:$0xff]
    %v327 = vld [vmem:[#allocation2 + $0xf8] sm:$0xff]
    %v328 = vld [vmem:[#allocation2 + $0x100] sm:$0xff]
    %v329 = vld [vmem:[#allocation2 + $0x108] sm:$0xff]
    %v330 = vld [vmem:[#allocation2 + $0x110] sm:$0xff]
    %v331 = vld [vmem:[#allocation2 + $0x118] sm:$0xff]
    %v332 = vld [vmem:[#allocation2 + $0x120] sm:$0xff]
    %v333 = vld [vmem:[#allocation2 + $0x128] sm:$0xff]
    %v334 = vld [vmem:[#allocation2 + $0x130] sm:$0xff]
    %v335 = vld [vmem:[#allocation2 + $0x138] sm:$0xff]
    %v336 = vld [vmem:[#allocation2 + $0x140] sm:$0xff]
    %v337 = vld [vmem:[#allocation2 + $0x148] sm:$0xff]
    %v338 = vld [vmem:[#allocation2 + $0x150] sm:$0xff]
    %v339 = vld [vmem:[#allocation2 + $0x158] sm:$0xff]
    %v340 = vld [vmem:[#allocation2 + $0x160] sm:$0xff]
    %v341 = vld [vmem:[#allocation2 + $0x168] sm:$0xff]
    %v342 = vld [vmem:[#allocation2 + $0x170] sm:$0xff]
    %v343 = vld [vmem:[#allocation2 + $0x178] sm:$0xff]
    %v344 = vld [vmem:[#allocation2 + $0x180] sm:$0xff]
    %v345 = vld [vmem:[#allocation2 + $0x188] sm:$0xff]
    %v346 = vld [vmem:[#allocation2 + $0x190] sm:$0xff]
    %v347 = vld [vmem:[#allocation2 + $0x198] sm:$0xff]
    %v348 = vld [vmem:[#allocation2 + $0x1a0] sm:$0xff]
    %v349 = vld [vmem:[#allocation2 + $0x1a8] sm:$0xff]
    %v350 = vld [vmem:[#allocation2 + $0x1b0] sm:$0xff]
    %v351 = vld [vmem:[#allocation2 + $0x1b8] sm:$0xff]
    %v352 = vld [vmem:[#allocation2 + $0x1c0] sm:$0xff]
    %v353 = vld [vmem:[#allocation2 + $0x1c8] sm:$0xff]
    %v354 = vld [vmem:[#allocation2 + $0x1d0] sm:$0xff]
    %v355 = vld [vmem:[#allocation2 + $0x1d8] sm:$0xff]
    %v356 = vld [vmem:[#allocation2 + $0x1e0] sm:$0xff]
    %v357 = vld [vmem:[#allocation2 + $0x1e8] sm:$0xff]
    %v358 = vld [vmem:[#allocation2 + $0x1f0] sm:$0xff]
    %v359 = vld [vmem:[#allocation2 + $0x1f8] sm:$0xff]
    %v360 = vld [vmem:[#allocation2 + $0x200] sm:$0xff]
    %v361 = vld [vmem:[#allocation2 + $0x208] sm:$0xff]
    %v362 = vld [vmem:[#allocation2 + $0x210] sm:$0xff]
    %v363 = vld [vmem:[#allocation2 + $0x218] sm:$0xff]
    %v364 = vld [vmem:[#allocation2 + $0x220] sm:$0xff]
    %v365 = vld [vmem:[#allocation2 + $0x228] sm:$0xff]
    %v366 = vld [vmem:[#allocation2 + $0x230] sm:$0xff]
    %v367 = vld [vmem:[#allocation2 + $0x238] sm:$0xff]
    %v368 = vld [vmem:[#allocation2 + $0x240] sm:$0xff]
    %v369 = vld [vmem:[#allocation2 + $0x248] sm:$0xff]
    %v370 = vld [vmem:[#allocation2 + $0x250] sm:$0xff]
    %v371 = vld [vmem:[#allocation2 + $0x258] sm:$0xff]
    %v372 = vld [vmem:[#allocation2 + $0x260] sm:$0xff]
    %v373 = vld [vmem:[#allocation2 + $0x268] sm:$0xff]
    %v374 = vld [vmem:[#allocation2 + $0x270] sm:$0xff]
    %v375 = vld [vmem:[#allocation2 + $0x278] sm:$0xff]
    %v376 = vld [vmem:[#allocation2 + $0x280] sm:$0xff]
    %v377 = vld [vmem:[#allocation2 + $0x288] sm:$0xff]
    %v378 = vld [vmem:[#allocation2 + $0x290] sm:$0xff]
    %v379 = vld [vmem:[#allocation2 + $0x298] sm:$0xff]
    %v380 = vld [vmem:[#allocation2 + $0x2a0] sm:$0xff]
    %v381 = vld [vmem:[#allocation2 + $0x2a8] sm:$0xff]
    %v382 = vld [vmem:[#allocation2 + $0x2b0] sm:$0xff]
    %v383 = vld [vmem:[#allocation2 + $0x2b8] sm:$0xff]
    %v384 = vld [vmem:[#allocation2 + $0x2c0] sm:$0xff]
    %v385 = vld [vmem:[#allocation2 + $0x2c8] sm:$0xff]
    %v386 = vld [vmem:[#allocation2 + $0x2d0] sm:$0xff]
    %v387 = vld [vmem:[#allocation2 + $0x2d8] sm:$0xff]
    %v388 = vld [vmem:[#allocation2 + $0x2e0] sm:$0xff]
    %v389 = vld [vmem:[#allocation2 + $0x2e8] sm:$0xff]
    %v390 = vld [vmem:[#allocation2 + $0x2f0] sm:$0xff]
    %v391 = vld [vmem:[#allocation2 + $0x2f8] sm:$0xff]
    %v392 = vld [vmem:[#allocation2 + $0x300] sm:$0xff]
    %v393 = vld [vmem:[#allocation2 + $0x308] sm:$0xff]
    %v394 = vld [vmem:[#allocation2 + $0x310] sm:$0xff]
    %v395 = vld [vmem:[#allocation2 + $0x318] sm:$0xff]
    %v396 = vld [vmem:[#allocation2 + $0x320] sm:$0xff]
    %v397 = vld [vmem:[#allocation2 + $0x328] sm:$0xff]
    %v398 = vld [vmem:[#allocation2 + $0x330] sm:$0xff]
    %v399 = vld [vmem:[#allocation2 + $0x338] sm:$0xff]
    %v400 = vld [vmem:[#allocation2 + $0x340] sm:$0xff]
    %v401 = vld [vmem:[#allocation2 + $0x348] sm:$0xff]
    %v402 = vld [vmem:[#allocation2 + $0x350] sm:$0xff]
    %v403 = vld [vmem:[#allocation2 + $0x358] sm:$0xff]
    %v404 = vld [vmem:[#allocation2 + $0x360] sm:$0xff]
    %v405 = vld [vmem:[#allocation2 + $0x368] sm:$0xff]
    %v406 = vld [vmem:[#allocation2 + $0x370] sm:$0xff]
    %v407 = vld [vmem:[#allocation2 + $0x378] sm:$0xff]
    %v408 = vld [vmem:[#allocation2 + $0x380] sm:$0xff]
    %v409 = vld [vmem:[#allocation2 + $0x388] sm:$0xff]
    %v410 = vld [vmem:[#allocation2 + $0x390] sm:$0xff]
    %v411 = vld [vmem:[#allocation2 + $0x398] sm:$0xff]
    %v412 = vld [vmem:[#allocation2 + $0x3a0] sm:$0xff]
    %v413 = vld [vmem:[#allocation2 + $0x3a8] sm:$0xff]
    %v414 = vld [vmem:[#allocation2 + $0x3b0] sm:$0xff]
    %v415 = vld [vmem:[#allocation2 + $0x3b8] sm:$0xff]
    %v416 = vld [vmem:[#allocation2 + $0x3c0] sm:$0xff]
    %v417 = vld [vmem:[#allocation2 + $0x3c8] sm:$0xff]
    %v418 = vld [vmem:[#allocation2 + $0x3d0] sm:$0xff]
    %v419 = vld [vmem:[#allocation2 + $0x3d8] sm:$0xff]
    %v420 = vld [vmem:[#allocation2 + $0x3e0] sm:$0xff]
    %v421 = vld [vmem:[#allocation2 + $0x3e8] sm:$0xff]
    %v422 = vld [vmem:[#allocation2 + $0x3f0] sm:$0xff]
    %v423 = vld [vmem:[#allocation2 + $0x3f8] sm:$0xff]
    %v424 = vld [vmem:[#allocation2 + $0x400] sm:$0xff]
    %v425 = vld [vmem:[#allocation2 + $0x408] sm:$0xff]
    %v426 = vld [vmem:[#allocation2 + $0x410] sm:$0xff]
    %v427 = vld [vmem:[#allocation2 + $0x418] sm:$0xff]
    %v428 = vld [vmem:[#allocation2 + $0x420] sm:$0xff]
    %v429 = vld [vmem:[#allocation2 + $0x428] sm:$0xff]
    %v430 = vld [vmem:[#allocation2 + $0x430] sm:$0xff]
    %v431 = vld [vmem:[#allocation2 + $0x438] sm:$0xff]
    %v432 = vld [vmem:[#allocation2 + $0x440] sm:$0xff]
    %v433 = vld [vmem:[#allocation2 + $0x448] sm:$0xff]
    %v434 = vld [vmem:[#allocation2 + $0x450] sm:$0xff]
    %v435 = vld [vmem:[#allocation2 + $0x458] sm:$0xff]
    %v436 = vld [vmem:[#allocation2 + $0x460] sm:$0xff]
    %v437 = vld [vmem:[#allocation2 + $0x468] sm:$0xff]
    %v438 = vld [vmem:[#allocation2 + $0x470] sm:$0xff]
    %v439 = vld [vmem:[#allocation2 + $0x478] sm:$0xff]
    %v440 = vld [vmem:[#allocation2 + $0x480] sm:$0xff]
    %v441 = vld [vmem:[#allocation2 + $0x488] sm:$0xff]
    %v442 = vld [vmem:[#allocation2 + $0x490] sm:$0xff]
    %v443 = vld [vmem:[#allocation2 + $0x498] sm:$0xff]
    %v444 = vld [vmem:[#allocation2 + $0x4a0] sm:$0xff]
    %v445 = vld [vmem:[#allocation2 + $0x4a8] sm:$0xff]
    %v446 = vld [vmem:[#allocation2 + $0x4b0] sm:$0xff]
    %v447 = vld [vmem:[#allocation2 + $0x4b8] sm:$0xff]
    %v448 = vld [vmem:[#allocation2 + $0x4c0] sm:$0xff]
    %v449 = vld [vmem:[#allocation2 + $0x4c8] sm:$0xff]
    %v450 = vld [vmem:[#allocation2 + $0x4d0] sm:$0xff]
    %v451 = vld [vmem:[#allocation2 + $0x4d8] sm:$0xff]
    %v452 = vld [vmem:[#allocation2 + $0x4e0] sm:$0xff]
    %v453 = vld [vmem:[#allocation2 + $0x4e8] sm:$0xff]
    %v454 = vld [vmem:[#allocation2 + $0x4f0] sm:$0xff]
    %v455 = vld [vmem:[#allocation2 + $0x4f8] sm:$0xff]
    %v456 = vld [vmem:[#allocation2 + $0x500] sm:$0xff]
    %v457 = vld [vmem:[#allocation2 + $0x508] sm:$0xff]
    %v458 = vld [vmem:[#allocation2 + $0x510] sm:$0xff]
    %v459 = vld [vmem:[#allocation2 + $0x518] sm:$0xff]
    %v460 = vld [vmem:[#allocation2 + $0x520] sm:$0xff]
    %v461 = vld [vmem:[#allocation2 + $0x528] sm:$0xff]
    %v462 = vld [vmem:[#allocation2 + $0x530] sm:$0xff]
    %v463 = vld [vmem:[#allocation2 + $0x538] sm:$0xff]
    %v464 = vld [vmem:[#allocation2 + $0x540] sm:$0xff]
    %v465 = vld [vmem:[#allocation2 + $0x548] sm:$0xff]
    %v466 = vld [vmem:[#allocation2 + $0x550] sm:$0xff]
    %v467 = vld [vmem:[#allocation2 + $0x558] sm:$0xff]
    %v468 = vld [vmem:[#allocation2 + $0x560] sm:$0xff]
    %v469 = vld [vmem:[#allocation2 + $0x568] sm:$0xff]
    %v470 = vld [vmem:[#allocation2 + $0x570] sm:$0xff]
    %v471 = vld [vmem:[#allocation2 + $0x578] sm:$0xff]
    %v472 = vld [vmem:[#allocation2 + $0x580] sm:$0xff]
    %v473 = vld [vmem:[#allocation2 + $0x588] sm:$0xff]
    %v474 = vld [vmem:[#allocation2 + $0x590] sm:$0xff]
    %v475 = vld [vmem:[#allocation2 + $0x598] sm:$0xff]
    %v476 = vld [vmem:[#allocation2 + $0x5a0] sm:$0xff]
    %v477 = vld [vmem:[#allocation2 + $0x5a8] sm:$0xff]
    %v478 = vld [vmem:[#allocation2 + $0x5b0] sm:$0xff]
    %v479 = vld [vmem:[#allocation2 + $0x5b8] sm:$0xff]
    %v480 = vld [vmem:[#allocation2 + $0x5c0] sm:$0xff]
    %v481 = vld [vmem:[#allocation2 + $0x5c8] sm:$0xff]
    %v482 = vld [vmem:[#allocation2 + $0x5d0] sm:$0xff]
    %v483 = vld [vmem:[#allocation2 + $0x5d8] sm:$0xff]
    %v484 = vld [vmem:[#allocation2 + $0x5e0] sm:$0xff]
    %v485 = vld [vmem:[#allocation2 + $0x5e8] sm:$0xff]
    %v486 = vld [vmem:[#allocation2 + $0x5f0] sm:$0xff]
    %v487 = vld [vmem:[#allocation2 + $0x5f8] sm:$0xff]
    %v488 = vld [vmem:[#allocation2 + $0x600] sm:$0xff]
    %v489 = vld [vmem:[#allocation2 + $0x608] sm:$0xff]
    %v490 = vld [vmem:[#allocation2 + $0x610] sm:$0xff]
    %v491 = vld [vmem:[#allocation2 + $0x618] sm:$0xff]
    %v492 = vld [vmem:[#allocation2 + $0x620] sm:$0xff]
    %v493 = vld [vmem:[#allocation2 + $0x628] sm:$0xff]
    %v494 = vld [vmem:[#allocation2 + $0x630] sm:$0xff]
    %v495 = vld [vmem:[#allocation2 + $0x638] sm:$0xff]
    %v496 = vld [vmem:[#allocation2 + $0x640] sm:$0xff]
    %v497 = vld [vmem:[#allocation2 + $0x648] sm:$0xff]
    %v498 = vld [vmem:[#allocation2 + $0x650] sm:$0xff]
    %v499 = vld [vmem:[#allocation2 + $0x658] sm:$0xff]
    %v500 = vld [vmem:[#allocation2 + $0x660] sm:$0xff]
    %v501 = vld [vmem:[#allocation2 + $0x668] sm:$0xff]
    %v502 = vld [vmem:[#allocation2 + $0x670] sm:$0xff]
    %v503 = vld [vmem:[#allocation2 + $0x678] sm:$0xff]
    %v504 = vld [vmem:[#allocation2 + $0x680] sm:$0xff]
    %v505 = vld [vmem:[#allocation2 + $0x688] sm:$0xff]
    %v506 = vld [vmem:[#allocation2 + $0x690] sm:$0xff]
    %v507 = vld [vmem:[#allocation2 + $0x698] sm:$0xff]
    %v508 = vld [vmem:[#allocation2 + $0x6a0] sm:$0xff]
    %v509 = vld [vmem:[#allocation2 + $0x6a8] sm:$0xff]
    %v510 = vld [vmem:[#allocation2 + $0x6b0] sm:$0xff]
    %v511 = vld [vmem:[#allocation2 + $0x6b8] sm:$0xff]
    %v512 = vld [vmem:[#allocation2 + $0x6c0] sm:$0xff]
    %v513 = vld [vmem:[#allocation2 + $0x6c8] sm:$0xff]
    %v514 = vld [vmem:[#allocation2 + $0x6d0] sm:$0xff]
    %v515 = vld [vmem:[#allocation2 + $0x6d8] sm:$0xff]
    %v516 = vld [vmem:[#allocation2 + $0x6e0] sm:$0xff]
    %v517 = vld [vmem:[#allocation2 + $0x6e8] sm:$0xff]
    %v518 = vld [vmem:[#allocation2 + $0x6f0] sm:$0xff]
    %v519 = vld [vmem:[#allocation2 + $0x6f8] sm:$0xff]
    %v520 = vld [vmem:[#allocation2 + $0x700] sm:$0xff]
    %v521 = vld [vmem:[#allocation2 + $0x708] sm:$0xff]
    %v522 = vld [vmem:[#allocation2 + $0x710] sm:$0xff]
    %v523 = vld [vmem:[#allocation2 + $0x718] sm:$0xff]
    %v524 = vld [vmem:[#allocation2 + $0x720] sm:$0xff]
    %v525 = vld [vmem:[#allocation2 + $0x728] sm:$0xff]
    %v526 = vld [vmem:[#allocation2 + $0x730] sm:$0xff]
    %v527 = vld [vmem:[#allocation2 + $0x738] sm:$0xff]
    %v528 = vld [vmem:[#allocation2 + $0x740] sm:$0xff]
    %v529 = vld [vmem:[#allocation2 + $0x748] sm:$0xff]
    %v530 = vld [vmem:[#allocation2 + $0x750] sm:$0xff]
    %v531 = vld [vmem:[#allocation2 + $0x758] sm:$0xff]
    %v532 = vld [vmem:[#allocation2 + $0x760] sm:$0xff]
    %v533 = vld [vmem:[#allocation2 + $0x768] sm:$0xff]
    %v534 = vld [vmem:[#allocation2 + $0x770] sm:$0xff]
    %v535 = vld [vmem:[#allocation2 + $0x778] sm:$0xff]
    %v536 = vld [vmem:[#allocation2 + $0x780] sm:$0xff]
    %v537 = vld [vmem:[#allocation2 + $0x788] sm:$0xff]
    %v538 = vld [vmem:[#allocation2 + $0x790] sm:$0xff]
    %v539 = vld [vmem:[#allocation2 + $0x798] sm:$0xff]
    %v540 = vld [vmem:[#allocation2 + $0x7a0] sm:$0xff]
    %v541 = vld [vmem:[#allocation2 + $0x7a8] sm:$0xff]
    %v542 = vld [vmem:[#allocation2 + $0x7b0] sm:$0xff]
    %v543 = vld [vmem:[#allocation2 + $0x7b8] sm:$0xff]
    %v544 = vld [vmem:[#allocation2 + $0x7c0] sm:$0xff]
    %v545 = vld [vmem:[#allocation2 + $0x7c8] sm:$0xff]
    %v546 = vld [vmem:[#allocation2 + $0x7d0] sm:$0xff]
    %v547 = vld [vmem:[#allocation2 + $0x7d8] sm:$0xff]
    %v548 = vld [vmem:[#allocation2 + $0x7e0] sm:$0xff]
    %v549 = vld [vmem:[#allocation2 + $0x7e8] sm:$0xff]
    %v550 = vld [vmem:[#allocation2 + $0x7f0] sm:$0xff]
    %v551 = vld [vmem:[#allocation2 + $0x7f8] sm:$0xff]
    %v552 = vld [vmem:[%s0] sm:$0xf]
    %v553 = vld [vmem:[%s0 + $0x4] sm:$0xf]
    %v554 = vld [vmem:[%s0 + $0x8] sm:$0xf]
    %v555 = vld [vmem:[%s0 + $0xc] sm:$0xf]
    %v556 = vld [vmem:[%s0 + $0x10] sm:$0xf]
    %v557 = vld [vmem:[%s0 + $0x14] sm:$0xf]
    %v558 = vld [vmem:[%s0 + $0x18] sm:$0xf]
    %v559 = vld [vmem:[%s0 + $0x1c] sm:$0xf]
    %v560 = vld [vmem:[%s0 + $0x20] sm:$0xf]
    %v561 = vld [vmem:[%s0 + $0x24] sm:$0xf]
    %v562 = vld [vmem:[%s0 + $0x28] sm:$0xf]
    %v563 = vld [vmem:[%s0 + $0x2c] sm:$0xf]
    %v564 = vld [vmem:[%s0 + $0x30] sm:$0xf]
    %v565 = vld [vmem:[%s0 + $0x34] sm:$0xf]
    %v566 = vld [vmem:[%s0 + $0x38] sm:$0xf]
    %v567 = vld [vmem:[%s0 + $0x3c] sm:$0xf]
    %v568 = vld [vmem:[%s0 + $0x40] sm:$0xf]
    %v569 = vld [vmem:[%s0 + $0x44] sm:$0xf]
    %v570 = vld [vmem:[%s0 + $0x48] sm:$0xf]
    %v571 = vld [vmem:[%s0 + $0x4c] sm:$0xf]
    %v572 = vld [vmem:[%s0 + $0x50] sm:$0xf]
    %v573 = vld [vmem:[%s0 + $0x54] sm:$0xf]
    %v574 = vld [vmem:[%s0 + $0x58] sm:$0xf]
    %v575 = vld [vmem:[%s0 + $0x5c] sm:$0xf]
    %v576 = vld [vmem:[%s0 + $0x60] sm:$0xf]
    %v577 = vld [vmem:[%s0 + $0x64] sm:$0xf]
    %v578 = vld [vmem:[%s0 + $0x68] sm:$0xf]
    %v579 = vld [vmem:[%s0 + $0x6c] sm:$0xf]
    %v580 = vld [vmem:[%s0 + $0x70] sm:$0xf]
    %v581 = vld [vmem:[%s0 + $0x74] sm:$0xf]
    %v582 = vld [vmem:[%s0 + $0x78] sm:$0xf]
    %v583 = vld [vmem:[%s0 + $0x7c] sm:$0xf]
    %v584 = vld [vmem:[%s0 + $0x80] sm:$0xf]
    %v585 = vld [vmem:[%s0 + $0x84] sm:$0xf]
    %v586 = vld [vmem:[%s0 + $0x88] sm:$0xf]
    %v587 = vld [vmem:[%s0 + $0x8c] sm:$0xf]
    %v588 = vld [vmem:[%s0 + $0x90] sm:$0xf]
    %v589 = vld [vmem:[%s0 + $0x94] sm:$0xf]
    %v590 = vld [vmem:[%s0 + $0x98] sm:$0xf]
    %v591 = vld [vmem:[%s0 + $0x9c] sm:$0xf]
    %v592 = vld [vmem:[%s0 + $0xa0] sm:$0xf]
    %v593 = vld [vmem:[%s0 + $0xa4] sm:$0xf]
    %v594 = vld [vmem:[%s0 + $0xa8] sm:$0xf]
    %v595 = vld [vmem:[%s0 + $0xac] sm:$0xf]
    %v596 = vld [vmem:[%s0 + $0xb0] sm:$0xf]
    %v597 = vld [vmem:[%s0 + $0xb4] sm:$0xf]
    %v598 = vld [vmem:[%s0 + $0xb8] sm:$0xf]
    %v599 = vld [vmem:[%s0 + $0xbc] sm:$0xf]
    %v600 = vld [vmem:[%s0 + $0xc0] sm:$0xf]
    %v601 = vld [vmem:[%s0 + $0xc4] sm:$0xf]
    %v602 = vld [vmem:[%s0 + $0xc8] sm:$0xf]
    %v603 = vld [vmem:[%s0 + $0xcc] sm:$0xf]
    %v604 = vld [vmem:[%s0 + $0xd0] sm:$0xf]
    %v605 = vld [vmem:[%s0 + $0xd4] sm:$0xf]
    %v606 = vld [vmem:[%s0 + $0xd8] sm:$0xf]
    %v607 = vld [vmem:[%s0 + $0xdc] sm:$0xf]
    %v608 = vld [vmem:[%s0 + $0xe0] sm:$0xf]
    %v609 = vld [vmem:[%s0 + $0xe4] sm:$0xf]
    %v610 = vld [vmem:[%s0 + $0xe8] sm:$0xf]
    %v611 = vld [vmem:[%s0 + $0xec] sm:$0xf]
    %v612 = vld [vmem:[%s0 + $0xf0] sm:$0xf]
    %v613 = vld [vmem:[%s0 + $0xf4] sm:$0xf]
    %v614 = vld [vmem:[%s0 + $0xf8] sm:$0xf]
    %v615 = vld [vmem:[%s0 + $0xfc] sm:$0xf]
    %v616 = vld [vmem:[%s0 + $0x100] sm:$0xf]
    %v617 = vld [vmem:[%s0 + $0x104] sm:$0xf]
    %v618 = vld [vmem:[%s0 + $0x108] sm:$0xf]
    %v619 = vld [vmem:[%s0 + $0x10c] sm:$0xf]
    %v620 = vld [vmem:[%s0 + $0x110] sm:$0xf]
    %v621 = vld [vmem:[%s0 + $0x114] sm:$0xf]
    %v622 = vld [vmem:[%s0 + $0x118] sm:$0xf]
    %v623 = vld [vmem:[%s0 + $0x11c] sm:$0xf]
    %v624 = vld [vmem:[%s0 + $0x120] sm:$0xf]
    %v625 = vld [vmem:[%s0 + $0x124] sm:$0xf]
    %v626 = vld [vmem:[%s0 + $0x128] sm:$0xf]
    %v627 = vld [vmem:[%s0 + $0x12c] sm:$0xf]
    %v628 = vld [vmem:[%s0 + $0x130] sm:$0xf]
    %v629 = vld [vmem:[%s0 + $0x134] sm:$0xf]
    %v630 = vld [vmem:[%s0 + $0x138] sm:$0xf]
    %v631 = vld [vmem:[%s0 + $0x13c] sm:$0xf]
    %v632 = vld [vmem:[%s0 + $0x140] sm:$0xf]
    %v633 = vld [vmem:[%s0 + $0x144] sm:$0xf]
    %v634 = vld [vmem:[%s0 + $0x148] sm:$0xf]
    %v635 = vld [vmem:[%s0 + $0x14c] sm:$0xf]
    %v636 = vld [vmem:[%s0 + $0x150] sm:$0xf]
    %v637 = vld [vmem:[%s0 + $0x154] sm:$0xf]
    %v638 = vld [vmem:[%s0 + $0x158] sm:$0xf]
    %v639 = vld [vmem:[%s0 + $0x15c] sm:$0xf]
    %v640 = vld [vmem:[%s0 + $0x160] sm:$0xf]
    %v641 = vld [vmem:[%s0 + $0x164] sm:$0xf]
    %v642 = vld [vmem:[%s0 + $0x168] sm:$0xf]
    %v643 = vld [vmem:[%s0 + $0x16c] sm:$0xf]
    %v644 = vld [vmem:[%s0 + $0x170] sm:$0xf]
    %v645 = vld [vmem:[%s0 + $0x174] sm:$0xf]
    %v646 = vld [vmem:[%s0 + $0x178] sm:$0xf]
    %v647 = vld [vmem:[%s0 + $0x17c] sm:$0xf]
    %v648 = vld [vmem:[%s0 + $0x180] sm:$0xf]
    %v649 = vld [vmem:[%s0 + $0x184] sm:$0xf]
    %v650 = vld [vmem:[%s0 + $0x188] sm:$0xf]
    %v651 = vld [vmem:[%s0 + $0x18c] sm:$0xf]
    %v652 = vld [vmem:[%s0 + $0x190] sm:$0xf]
    %v653 = vld [vmem:[%s0 + $0x194] sm:$0xf]
    %v654 = vld [vmem:[%s0 + $0x198] sm:$0xf]
    %v655 = vld [vmem:[%s0 + $0x19c] sm:$0xf]
    %v656 = vld [vmem:[%s0 + $0x1a0] sm:$0xf]
    %v657 = vld [vmem:[%s0 + $0x1a4] sm:$0xf]
    %v658 = vld [vmem:[%s0 + $0x1a8] sm:$0xf]
    %v659 = vld [vmem:[%s0 + $0x1ac] sm:$0xf]
    %v660 = vld [vmem:[%s0 + $0x1b0] sm:$0xf]
    %v661 = vld [vmem:[%s0 + $0x1b4] sm:$0xf]
    %v662 = vld [vmem:[%s0 + $0x1b8] sm:$0xf]
    %v663 = vld [vmem:[%s0 + $0x1bc] sm:$0xf]
    %v664 = vld [vmem:[%s0 + $0x1c0] sm:$0xf]
    %v665 = vld [vmem:[%s0 + $0x1c4] sm:$0xf]
    %v666 = vld [vmem:[%s0 + $0x1c8] sm:$0xf]
    %v667 = vld [vmem:[%s0 + $0x1cc] sm:$0xf]
    %v668 = vld [vmem:[%s0 + $0x1d0] sm:$0xf]
    %v669 = vld [vmem:[%s0 + $0x1d4] sm:$0xf]
    %v670 = vld [vmem:[%s0 + $0x1d8] sm:$0xf]
    %v671 = vld [vmem:[%s0 + $0x1dc] sm:$0xf]
    %v672 = vld [vmem:[%s0 + $0x1e0] sm:$0xf]
    %v673 = vld [vmem:[%s0 + $0x1e4] sm:$0xf]
    %v674 = vld [vmem:[%s0 + $0x1e8] sm:$0xf]
    %v675 = vld [vmem:[%s0 + $0x1ec] sm:$0xf]
    %v676 = vld [vmem:[%s0 + $0x1f0] sm:$0xf]
    %v677 = vld [vmem:[%s0 + $0x1f4] sm:$0xf]
    %v678 = vld [vmem:[%s0 + $0x1f8] sm:$0xf]
    %v679 = vld [vmem:[%s0 + $0x1fc] sm:$0xf]
    %v680 = vld [vmem:[%s0 + $0x200] sm:$0xf]
    %v681 = vld [vmem:[%s0 + $0x204] sm:$0xf]
    %v682 = vld [vmem:[%s0 + $0x208] sm:$0xf]
    %v683 = vld [vmem:[%s0 + $0x20c] sm:$0xf]
    %v684 = vld [vmem:[%s0 + $0x210] sm:$0xf]
    %v685 = vld [vmem:[%s0 + $0x214] sm:$0xf]
    %v686 = vld [vmem:[%s0 + $0x218] sm:$0xf]
    %v687 = vld [vmem:[%s0 + $0x21c] sm:$0xf]
    %v688 = vld [vmem:[%s0 + $0x220] sm:$0xf]
    %v689 = vld [vmem:[%s0 + $0x224] sm:$0xf]
    %v690 = vld [vmem:[%s0 + $0x228] sm:$0xf]
    %v691 = vld [vmem:[%s0 + $0x22c] sm:$0xf]
    %v692 = vld [vmem:[%s0 + $0x230] sm:$0xf]
    %v693 = vld [vmem:[%s0 + $0x234] sm:$0xf]
    %v694 = vld [vmem:[%s0 + $0x238] sm:$0xf]
    %v695 = vld [vmem:[%s0 + $0x23c] sm:$0xf]
    %v696 = vld [vmem:[%s0 + $0x240] sm:$0xf]
    %v697 = vld [vmem:[%s0 + $0x244] sm:$0xf]
    %v698 = vld [vmem:[%s0 + $0x248] sm:$0xf]
    %v699 = vld [vmem:[%s0 + $0x24c] sm:$0xf]
    %v700 = vld [vmem:[%s0 + $0x250] sm:$0xf]
    %v701 = vld [vmem:[%s0 + $0x254] sm:$0xf]
    %v702 = vld [vmem:[%s0 + $0x258] sm:$0xf]
    %v703 = vld [vmem:[%s0 + $0x25c] sm:$0xf]
    %v704 = vld [vmem:[%s0 + $0x260] sm:$0xf]
    %v705 = vld [vmem:[%s0 + $0x264] sm:$0xf]
    %v706 = vld [vmem:[%s0 + $0x268] sm:$0xf]
    %v707 = vld [vmem:[%s0 + $0x26c] sm:$0xf]
    %v708 = vld [vmem:[%s0 + $0x270] sm:$0xf]
    %v709 = vld [vmem:[%s0 + $0x274] sm:$0xf]
    %v710 = vld [vmem:[%s0 + $0x278] sm:$0xf]
    %v711 = vld [vmem:[%s0 + $0x27c] sm:$0xf]
    %v712 = vld [vmem:[%s0 + $0x280] sm:$0xf]
    %v713 = vld [vmem:[%s0 + $0x284] sm:$0xf]
    %v714 = vld [vmem:[%s0 + $0x288] sm:$0xf]
    %v715 = vld [vmem:[%s0 + $0x28c] sm:$0xf]
    %v716 = vld [vmem:[%s0 + $0x290] sm:$0xf]
    %v717 = vld [vmem:[%s0 + $0x294] sm:$0xf]
    %v718 = vld [vmem:[%s0 + $0x298] sm:$0xf]
    %v719 = vld [vmem:[%s0 + $0x29c] sm:$0xf]
    %v720 = vld [vmem:[%s0 + $0x2a0] sm:$0xf]
    %v721 = vld [vmem:[%s0 + $0x2a4] sm:$0xf]
    %v722 = vld [vmem:[%s0 + $0x2a8] sm:$0xf]
    %v723 = vld [vmem:[%s0 + $0x2ac] sm:$0xf]
    %v724 = vld [vmem:[%s0 + $0x2b0] sm:$0xf]
    %v725 = vld [vmem:[%s0 + $0x2b4] sm:$0xf]
    %v726 = vld [vmem:[%s0 + $0x2b8] sm:$0xf]
    %v727 = vld [vmem:[%s0 + $0x2bc] sm:$0xf]
    %v728 = vld [vmem:[%s0 + $0x2c0] sm:$0xf]
    %v729 = vld [vmem:[%s0 + $0x2c4] sm:$0xf]
    %v730 = vld [vmem:[%s0 + $0x2c8] sm:$0xf]
    %v731 = vld [vmem:[%s0 + $0x2cc] sm:$0xf]
    %v732 = vld [vmem:[%s0 + $0x2d0] sm:$0xf]
    %v733 = vld [vmem:[%s0 + $0x2d4] sm:$0xf]
    %v734 = vld [vmem:[%s0 + $0x2d8] sm:$0xf]
    %v735 = vld [vmem:[%s0 + $0x2dc] sm:$0xf]
    %v736 = vld [vmem:[%s0 + $0x2e0] sm:$0xf]
    %v737 = vld [vmem:[%s0 + $0x2e4] sm:$0xf]
    %v738 = vld [vmem:[%s0 + $0x2e8] sm:$0xf]
    %v739 = vld [vmem:[%s0 + $0x2ec] sm:$0xf]
    %v740 = vld [vmem:[%s0 + $0x2f0] sm:$0xf]
    %v741 = vld [vmem:[%s0 + $0x2f4] sm:$0xf]
    %v742 = vld [vmem:[%s0 + $0x2f8] sm:$0xf]
    %v743 = vld [vmem:[%s0 + $0x2fc] sm:$0xf]
    %v744 = vld [vmem:[%s0 + $0x300] sm:$0xf]
    %v745 = vld [vmem:[%s0 + $0x304] sm:$0xf]
    %v746 = vld [vmem:[%s0 + $0x308] sm:$0xf]
    %v747 = vld [vmem:[%s0 + $0x30c] sm:$0xf]
    %v748 = vld [vmem:[%s0 + $0x310] sm:$0xf]
    %v749 = vld [vmem:[%s0 + $0x314] sm:$0xf]
    %v750 = vld [vmem:[%s0 + $0x318] sm:$0xf]
    %v751 = vld [vmem:[%s0 + $0x31c] sm:$0xf]
    %v752 = vld [vmem:[%s0 + $0x320] sm:$0xf]
    %v753 = vld [vmem:[%s0 + $0x324] sm:$0xf]
    %v754 = vld [vmem:[%s0 + $0x328] sm:$0xf]
    %v755 = vld [vmem:[%s0 + $0x32c] sm:$0xf]
    %v756 = vld [vmem:[%s0 + $0x330] sm:$0xf]
    %v757 = vld [vmem:[%s0 + $0x334] sm:$0xf]
    %v758 = vld [vmem:[%s0 + $0x338] sm:$0xf]
    %v759 = vld [vmem:[%s0 + $0x33c] sm:$0xf]
    %v760 = vld [vmem:[%s0 + $0x340] sm:$0xf]
    %v761 = vld [vmem:[%s0 + $0x344] sm:$0xf]
    %v762 = vld [vmem:[%s0 + $0x348] sm:$0xf]
    %v763 = vld [vmem:[%s0 + $0x34c] sm:$0xf]
    %v764 = vld [vmem:[%s0 + $0x350] sm:$0xf]
    %v765 = vld [vmem:[%s0 + $0x354] sm:$0xf]
    %v766 = vld [vmem:[%s0 + $0x358] sm:$0xf]
    %v767 = vld [vmem:[%s0 + $0x35c] sm:$0xf]
    %v768 = vld [vmem:[%s0 + $0x360] sm:$0xf]
    %v769 = vld [vmem:[%s0 + $0x364] sm:$0xf]
    %v770 = vld [vmem:[%s0 + $0x368] sm:$0xf]
    %v771 = vld [vmem:[%s0 + $0x36c] sm:$0xf]
    %v772 = vld [vmem:[%s0 + $0x370] sm:$0xf]
    %v773 = vld [vmem:[%s0 + $0x374] sm:$0xf]
    %v774 = vld [vmem:[%s0 + $0x378] sm:$0xf]
    %v775 = vld [vmem:[%s0 + $0x37c] sm:$0xf]
    %v776 = vld [vmem:[%s0 + $0x380] sm:$0xf]
    %v777 = vld [vmem:[%s0 + $0x384] sm:$0xf]
    %v778 = vld [vmem:[%s0 + $0x388] sm:$0xf]
    %v779 = vld [vmem:[%s0 + $0x38c] sm:$0xf]
    %v780 = vld [vmem:[%s0 + $0x390] sm:$0xf]
    %v781 = vld [vmem:[%s0 + $0x394] sm:$0xf]
    %v782 = vld [vmem:[%s0 + $0x398] sm:$0xf]
    %v783 = vld [vmem:[%s0 + $0x39c] sm:$0xf]
    %v784 = vld [vmem:[%s0 + $0x3a0] sm:$0xf]
    %v785 = vld [vmem:[%s0 + $0x3a4] sm:$0xf]
    %v786 = vld [vmem:[%s0 + $0x3a8] sm:$0xf]
    %v787 = vld [vmem:[%s0 + $0x3ac] sm:$0xf]
    %v788 = vld [vmem:[%s0 + $0x3b0] sm:$0xf]
    %v789 = vld [vmem:[%s0 + $0x3b4] sm:$0xf]
    %v790 = vld [vmem:[%s0 + $0x3b8] sm:$0xf]
    %v791 = vld [vmem:[%s0 + $0x3bc] sm:$0xf]
    %v792 = vld [vmem:[%s0 + $0x3c0] sm:$0xf]
    %v793 = vld [vmem:[%s0 + $0x3c4] sm:$0xf]
    %v794 = vld [vmem:[%s0 + $0x3c8] sm:$0xf]
    %v795 = vld [vmem:[%s0 + $0x3cc] sm:$0xf]
    %v796 = vld [vmem:[%s0 + $0x3d0] sm:$0xf]
    %v797 = vld [vmem:[%s0 + $0x3d4] sm:$0xf]
    %v798 = vld [vmem:[%s0 + $0x3d8] sm:$0xf]
    %v799 = vld [vmem:[%s0 + $0x3dc] sm:$0xf]
    %v800 = vld [vmem:[%s0 + $0x3e0] sm:$0xf]
    %v801 = vld [vmem:[%s0 + $0x3e4] sm:$0xf]
    %v802 = vld [vmem:[%s0 + $0x3e8] sm:$0xf]
    %v803 = vld [vmem:[%s0 + $0x3ec] sm:$0xf]
    %v804 = vld [vmem:[%s0 + $0x3f0] sm:$0xf]
    %v805 = vld [vmem:[%s0 + $0x3f4] sm:$0xf]
    %v806 = vld [vmem:[%s0 + $0x3f8] sm:$0xf]
    %v807 = vld [vmem:[%s0 + $0x3fc] sm:$0xf]
    %v808 = vld [vmem:[%s1] sm:$0xf]
    %v809 = vld [vmem:[%s1 + $0x4] sm:$0xf]
    %v1066 = vunpack.c.l.b16 %v552
    %v1067 = vunpack.c.l.b16 %v553
    %v1068 = vunpack.c.l.b16 %v554
    %v1069 = vunpack.c.l.b16 %v555
    %v1070 = vunpack.c.l.b16 %v556
    %v1071 = vunpack.c.l.b16 %v557
    %v1072 = vunpack.c.l.b16 %v558
    %v1073 = vunpack.c.l.b16 %v559
    %v1074 = vunpack.c.l.b16 %v560
    %v1075 = vunpack.c.l.b16 %v561
    %v1076 = vunpack.c.l.b16 %v562
    %v1077 = vunpack.c.l.b16 %v563
    %v1078 = vunpack.c.l.b16 %v564
    %v1079 = vunpack.c.l.b16 %v565
    %v1080 = vunpack.c.l.b16 %v566
    %v1081 = vunpack.c.l.b16 %v567
    %v1082 = vunpack.c.l.b16 %v568
    %v1083 = vunpack.c.l.b16 %v569
    %v1084 = vunpack.c.l.b16 %v570
    %v1085 = vunpack.c.l.b16 %v571
    %v1086 = vunpack.c.l.b16 %v572
    %v1087 = vunpack.c.l.b16 %v573
    %v1088 = vunpack.c.l.b16 %v574
    %v1089 = vunpack.c.l.b16 %v575
    %v1090 = vunpack.c.l.b16 %v576
    %v1091 = vunpack.c.l.b16 %v577
    %v1092 = vunpack.c.l.b16 %v578
    %v1093 = vunpack.c.l.b16 %v579
    %v1094 = vunpack.c.l.b16 %v580
    %v1095 = vunpack.c.l.b16 %v581
    %v1096 = vunpack.c.l.b16 %v582
    %v1097 = vunpack.c.l.b16 %v583
    %v1098 = vunpack.c.l.b16 %v584
    %v1099 = vunpack.c.l.b16 %v585
    %v1100 = vunpack.c.l.b16 %v586
    %v1101 = vunpack.c.l.b16 %v587
    %v1102 = vunpack.c.l.b16 %v588
    %v1103 = vunpack.c.l.b16 %v589
    %v1104 = vunpack.c.l.b16 %v590
    %v1105 = vunpack.c.l.b16 %v591
    %v1106 = vunpack.c.l.b16 %v592
    %v1107 = vunpack.c.l.b16 %v593
    %v1108 = vunpack.c.l.b16 %v594
    %v1109 = vunpack.c.l.b16 %v595
    %v1110 = vunpack.c.l.b16 %v596
    %v1111 = vunpack.c.l.b16 %v597
    %v1112 = vunpack.c.l.b16 %v598
    %v1113 = vunpack.c.l.b16 %v599
    %v1114 = vunpack.c.l.b16 %v600
    %v1115 = vunpack.c.l.b16 %v601
    %v1116 = vunpack.c.l.b16 %v602
    %v1117 = vunpack.c.l.b16 %v603
    %v1118 = vunpack.c.l.b16 %v604
    %v1119 = vunpack.c.l.b16 %v605
    %v1120 = vunpack.c.l.b16 %v606
    %v1121 = vunpack.c.l.b16 %v607
    %v1122 = vunpack.c.l.b16 %v608
    %v1123 = vunpack.c.l.b16 %v609
    %v1124 = vunpack.c.l.b16 %v610
    %v1125 = vunpack.c.l.b16 %v611
    %v1126 = vunpack.c.l.b16 %v612
    %v1127 = vunpack.c.l.b16 %v613
    %v1128 = vunpack.c.l.b16 %v614
    %v1129 = vunpack.c.l.b16 %v615
    %v1130 = vunpack.c.l.b16 %v616
    %v1131 = vunpack.c.l.b16 %v617
    %v1132 = vunpack.c.l.b16 %v618
    %v1133 = vunpack.c.l.b16 %v619
    %v1134 = vunpack.c.l.b16 %v620
    %v1135 = vunpack.c.l.b16 %v621
    %v1136 = vunpack.c.l.b16 %v622
    %v1137 = vunpack.c.l.b16 %v623
    %v1138 = vunpack.c.l.b16 %v624
    %v1139 = vunpack.c.l.b16 %v625
    %v1140 = vunpack.c.l.b16 %v626
    %v1141 = vunpack.c.l.b16 %v627
    %v1142 = vunpack.c.l.b16 %v628
    %v1143 = vunpack.c.l.b16 %v629
    %v1144 = vunpack.c.l.b16 %v630
    %v1145 = vunpack.c.l.b16 %v631
    %v1146 = vunpack.c.l.b16 %v632
    %v1147 = vunpack.c.l.b16 %v633
    %v1148 = vunpack.c.l.b16 %v634
    %v1149 = vunpack.c.l.b16 %v635
    %v1150 = vunpack.c.l.b16 %v636
    %v1151 = vunpack.c.l.b16 %v637
    %v1152 = vunpack.c.l.b16 %v638
    %v1153 = vunpack.c.l.b16 %v639
    %v1154 = vunpack.c.l.b16 %v640
    %v1155 = vunpack.c.l.b16 %v641
    %v1156 = vunpack.c.l.b16 %v642
    %v1157 = vunpack.c.l.b16 %v643
    %v1158 = vunpack.c.l.b16 %v644
    %v1159 = vunpack.c.l.b16 %v645
    %v1160 = vunpack.c.l.b16 %v646
    %v1161 = vunpack.c.l.b16 %v647
    %v1162 = vunpack.c.l.b16 %v648
    %v1163 = vunpack.c.l.b16 %v649
    %v1164 = vunpack.c.l.b16 %v650
    %v1165 = vunpack.c.l.b16 %v651
    %v1166 = vunpack.c.l.b16 %v652
    %v1167 = vunpack.c.l.b16 %v653
    %v1168 = vunpack.c.l.b16 %v654
    %v1169 = vunpack.c.l.b16 %v655
    %v1170 = vunpack.c.l.b16 %v656
    %v1171 = vunpack.c.l.b16 %v657
    %v1172 = vunpack.c.l.b16 %v658
    %v1173 = vunpack.c.l.b16 %v659
    %v1174 = vunpack.c.l.b16 %v660
    %v1175 = vunpack.c.l.b16 %v661
    %v1176 = vunpack.c.l.b16 %v662
    %v1177 = vunpack.c.l.b16 %v663
    %v1178 = vunpack.c.l.b16 %v664
    %v1179 = vunpack.c.l.b16 %v665
    %v1180 = vunpack.c.l.b16 %v666
    %v1181 = vunpack.c.l.b16 %v667
    %v1182 = vunpack.c.l.b16 %v668
    %v1183 = vunpack.c.l.b16 %v669
    %v1184 = vunpack.c.l.b16 %v670
    %v1185 = vunpack.c.l.b16 %v671
    %v1186 = vunpack.c.l.b16 %v672
    %v1187 = vunpack.c.l.b16 %v673
    %v1188 = vunpack.c.l.b16 %v674
    %v1189 = vunpack.c.l.b16 %v675
    %v1190 = vunpack.c.l.b16 %v676
    %v1191 = vunpack.c.l.b16 %v677
    %v1192 = vunpack.c.l.b16 %v678
    %v1193 = vunpack.c.l.b16 %v679
    %v1194 = vunpack.c.l.b16 %v680
    %v1195 = vunpack.c.l.b16 %v681
    %v1196 = vunpack.c.l.b16 %v682
    %v1197 = vunpack.c.l.b16 %v683
    %v1198 = vunpack.c.l.b16 %v684
    %v1199 = vunpack.c.l.b16 %v685
    %v1200 = vunpack.c.l.b16 %v686
    %v1201 = vunpack.c.l.b16 %v687
    %v1202 = vunpack.c.l.b16 %v688
    %v1203 = vunpack.c.l.b16 %v689
    %v1204 = vunpack.c.l.b16 %v690
    %v1205 = vunpack.c.l.b16 %v691
    %v1206 = vunpack.c.l.b16 %v692
    %v1207 = vunpack.c.l.b16 %v693
    %v1208 = vunpack.c.l.b16 %v694
    %v1209 = vunpack.c.l.b16 %v695
    %v1210 = vunpack.c.l.b16 %v696
    %v1211 = vunpack.c.l.b16 %v697
    %v1212 = vunpack.c.l.b16 %v698
    %v1213 = vunpack.c.l.b16 %v699
    %v1214 = vunpack.c.l.b16 %v700
    %v1215 = vunpack.c.l.b16 %v701
    %v1216 = vunpack.c.l.b16 %v702
    %v1217 = vunpack.c.l.b16 %v703
    %v1218 = vunpack.c.l.b16 %v704
    %v1219 = vunpack.c.l.b16 %v705
    %v1220 = vunpack.c.l.b16 %v706
    %v1221 = vunpack.c.l.b16 %v707
    %v1222 = vunpack.c.l.b16 %v708
    %v1223 = vunpack.c.l.b16 %v709
    %v1224 = vunpack.c.l.b16 %v710
    %v1225 = vunpack.c.l.b16 %v711
    %v1226 = vunpack.c.l.b16 %v712
    %v1227 = vunpack.c.l.b16 %v713
    %v1228 = vunpack.c.l.b16 %v714
    %v1229 = vunpack.c.l.b16 %v715
    %v1230 = vunpack.c.l.b16 %v716
    %v1231 = vunpack.c.l.b16 %v717
    %v1232 = vunpack.c.l.b16 %v718
    %v1233 = vunpack.c.l.b16 %v719
    %v1234 = vunpack.c.l.b16 %v720
    %v1235 = vunpack.c.l.b16 %v721
    %v1236 = vunpack.c.l.b16 %v722
    %v1237 = vunpack.c.l.b16 %v723
    %v1238 = vunpack.c.l.b16 %v724
    %v1239 = vunpack.c.l.b16 %v725
    %v1240 = vunpack.c.l.b16 %v726
    %v1241 = vunpack.c.l.b16 %v727
    %v1242 = vunpack.c.l.b16 %v728
    %v1243 = vunpack.c.l.b16 %v729
    %v1244 = vunpack.c.l.b16 %v730
    %v1245 = vunpack.c.l.b16 %v731
    %v1246 = vunpack.c.l.b16 %v732
    %v1247 = vunpack.c.l.b16 %v733
    %v1248 = vunpack.c.l.b16 %v734
    %v1249 = vunpack.c.l.b16 %v735
    %v1250 = vunpack.c.l.b16 %v736
    %v1251 = vunpack.c.l.b16 %v737
    %v1252 = vunpack.c.l.b16 %v738
    %v1253 = vunpack.c.l.b16 %v739
    %v1254 = vunpack.c.l.b16 %v740
    %v1255 = vunpack.c.l.b16 %v741
    %v1256 = vunpack.c.l.b16 %v742
    %v1257 = vunpack.c.l.b16 %v743
    %v1258 = vunpack.c.l.b16 %v744
    %v1259 = vunpack.c.l.b16 %v745
    %v1260 = vunpack.c.l.b16 %v746
    %v1261 = vunpack.c.l.b16 %v747
    %v1262 = vunpack.c.l.b16 %v748
    %v1263 = vunpack.c.l.b16 %v749
    %v1264 = vunpack.c.l.b16 %v750
    %v1265 = vunpack.c.l.b16 %v751
    %v1266 = vunpack.c.l.b16 %v752
    %v1267 = vunpack.c.l.b16 %v753
    %v1268 = vunpack.c.l.b16 %v754
    %v1269 = vunpack.c.l.b16 %v755
    %v1270 = vunpack.c.l.b16 %v756
    %v1271 = vunpack.c.l.b16 %v757
    %v1272 = vunpack.c.l.b16 %v758
    %v1273 = vunpack.c.l.b16 %v759
    %v1274 = vunpack.c.l.b16 %v760
    %v1275 = vunpack.c.l.b16 %v761
    %v1276 = vunpack.c.l.b16 %v762
    %v1277 = vunpack.c.l.b16 %v763
    %v1278 = vunpack.c.l.b16 %v764
    %v1279 = vunpack.c.l.b16 %v765
    %v1280 = vunpack.c.l.b16 %v766
    %v1281 = vunpack.c.l.b16 %v767
    %v1282 = vunpack.c.l.b16 %v768
    %v1283 = vunpack.c.l.b16 %v769
    %v1284 = vunpack.c.l.b16 %v770
    %v1285 = vunpack.c.l.b16 %v771
    %v1286 = vunpack.c.l.b16 %v772
    %v1287 = vunpack.c.l.b16 %v773
    %v1288 = vunpack.c.l.b16 %v774
    %v1289 = vunpack.c.l.b16 %v775
    %v1290 = vunpack.c.l.b16 %v776
    %v1291 = vunpack.c.l.b16 %v777
    %v1292 = vunpack.c.l.b16 %v778
    %v1293 = vunpack.c.l.b16 %v779
    %v1294 = vunpack.c.l.b16 %v780
    %v1295 = vunpack.c.l.b16 %v781
    %v1296 = vunpack.c.l.b16 %v782
    %v1297 = vunpack.c.l.b16 %v783
    %v1298 = vunpack.c.l.b16 %v784
    %v1299 = vunpack.c.l.b16 %v785
    %v1300 = vunpack.c.l.b16 %v786
    %v1301 = vunpack.c.l.b16 %v787
    %v1302 = vunpack.c.l.b16 %v788
    %v1303 = vunpack.c.l.b16 %v789
    %v1304 = vunpack.c.l.b16 %v790
    %v1305 = vunpack.c.l.b16 %v791
    %v1306 = vunpack.c.l.b16 %v792
    %v1307 = vunpack.c.l.b16 %v793
    %v1308 = vunpack.c.l.b16 %v794
    %v1309 = vunpack.c.l.b16 %v795
    %v1310 = vunpack.c.l.b16 %v796
    %v1311 = vunpack.c.l.b16 %v797
    %v1312 = vunpack.c.l.b16 %v798
    %v1313 = vunpack.c.l.b16 %v799
    %v1314 = vunpack.c.l.b16 %v800
    %v1315 = vunpack.c.l.b16 %v801
    %v1316 = vunpack.c.l.b16 %v802
    %v1317 = vunpack.c.l.b16 %v803
    %v1318 = vunpack.c.l.b16 %v804
    %v1319 = vunpack.c.l.b16 %v805
    %v1320 = vunpack.c.l.b16 %v806
    %v1321 = vunpack.c.l.b16 %v807
    %v1322 = vpack.c.b16 %v1067, %v1066
    %v1323 = vpack.c.b16 %v1069, %v1068
    %v1324 = vpack.c.b16 %v1071, %v1070
    %v1325 = vpack.c.b16 %v1073, %v1072
    %v1326 = vpack.c.b16 %v1075, %v1074
    %v1327 = vpack.c.b16 %v1077, %v1076
    %v1328 = vpack.c.b16 %v1079, %v1078
    %v1329 = vpack.c.b16 %v1081, %v1080
    %v1330 = vpack.c.b16 %v1083, %v1082
    %v1331 = vpack.c.b16 %v1085, %v1084
    %v1332 = vpack.c.b16 %v1087, %v1086
    %v1333 = vpack.c.b16 %v1089, %v1088
    %v1334 = vpack.c.b16 %v1091, %v1090
    %v1335 = vpack.c.b16 %v1093, %v1092
    %v1336 = vpack.c.b16 %v1095, %v1094
    %v1337 = vpack.c.b16 %v1097, %v1096
    %v1338 = vpack.c.b16 %v1099, %v1098
    %v1339 = vpack.c.b16 %v1101, %v1100
    %v1340 = vpack.c.b16 %v1103, %v1102
    %v1341 = vpack.c.b16 %v1105, %v1104
    %v1342 = vpack.c.b16 %v1107, %v1106
    %v1343 = vpack.c.b16 %v1109, %v1108
    %v1344 = vpack.c.b16 %v1111, %v1110
    %v1345 = vpack.c.b16 %v1113, %v1112
    %v1346 = vpack.c.b16 %v1115, %v1114
    %v1347 = vpack.c.b16 %v1117, %v1116
    %v1348 = vpack.c.b16 %v1119, %v1118
    %v1349 = vpack.c.b16 %v1121, %v1120
    %v1350 = vpack.c.b16 %v1123, %v1122
    %v1351 = vpack.c.b16 %v1125, %v1124
    %v1352 = vpack.c.b16 %v1127, %v1126
    %v1353 = vpack.c.b16 %v1129, %v1128
    %v1354 = vpack.c.b16 %v1131, %v1130
    %v1355 = vpack.c.b16 %v1133, %v1132
    %v1356 = vpack.c.b16 %v1135, %v1134
    %v1357 = vpack.c.b16 %v1137, %v1136
    %v1358 = vpack.c.b16 %v1139, %v1138
    %v1359 = vpack.c.b16 %v1141, %v1140
    %v1360 = vpack.c.b16 %v1143, %v1142
    %v1361 = vpack.c.b16 %v1145, %v1144
    %v1362 = vpack.c.b16 %v1147, %v1146
    %v1363 = vpack.c.b16 %v1149, %v1148
    %v1364 = vpack.c.b16 %v1151, %v1150
    %v1365 = vpack.c.b16 %v1153, %v1152
    %v1366 = vpack.c.b16 %v1155, %v1154
    %v1367 = vpack.c.b16 %v1157, %v1156
    %v1368 = vpack.c.b16 %v1159, %v1158
    %v1369 = vpack.c.b16 %v1161, %v1160
    %v1370 = vpack.c.b16 %v1163, %v1162
    %v1371 = vpack.c.b16 %v1165, %v1164
    %v1372 = vpack.c.b16 %v1167, %v1166
    %v1373 = vpack.c.b16 %v1169, %v1168
    %v1374 = vpack.c.b16 %v1171, %v1170
    %v1375 = vpack.c.b16 %v1173, %v1172
    %v1376 = vpack.c.b16 %v1175, %v1174
    %v1377 = vpack.c.b16 %v1177, %v1176
    %v1378 = vpack.c.b16 %v1179, %v1178
    %v1379 = vpack.c.b16 %v1181, %v1180
    %v1380 = vpack.c.b16 %v1183, %v1182
    %v1381 = vpack.c.b16 %v1185, %v1184
    %v1382 = vpack.c.b16 %v1187, %v1186
    %v1383 = vpack.c.b16 %v1189, %v1188
    %v1384 = vpack.c.b16 %v1191, %v1190
    %v1385 = vpack.c.b16 %v1193, %v1192
    %v1386 = vpack.c.b16 %v1195, %v1194
    %v1387 = vpack.c.b16 %v1197, %v1196
    %v1388 = vpack.c.b16 %v1199, %v1198
    %v1389 = vpack.c.b16 %v1201, %v1200
    %v1390 = vpack.c.b16 %v1203, %v1202
    %v1391 = vpack.c.b16 %v1205, %v1204
    %v1392 = vpack.c.b16 %v1207, %v1206
    %v1393 = vpack.c.b16 %v1209, %v1208
    %v1394 = vpack.c.b16 %v1211, %v1210
    %v1395 = vpack.c.b16 %v1213, %v1212
    %v1396 = vpack.c.b16 %v1215, %v1214
    %v1397 = vpack.c.b16 %v1217, %v1216
    %v1398 = vpack.c.b16 %v1219, %v1218
    %v1399 = vpack.c.b16 %v1221, %v1220
    %v1400 = vpack.c.b16 %v1223, %v1222
    %v1401 = vpack.c.b16 %v1225, %v1224
    %v1402 = vpack.c.b16 %v1227, %v1226
    %v1403 = vpack.c.b16 %v1229, %v1228
    %v1404 = vpack.c.b16 %v1231, %v1230
    %v1405 = vpack.c.b16 %v1233, %v1232
    %v1406 = vpack.c.b16 %v1235, %v1234
    %v1407 = vpack.c.b16 %v1237, %v1236
    %v1408 = vpack.c.b16 %v1239, %v1238
    %v1409 = vpack.c.b16 %v1241, %v1240
    %v1410 = vpack.c.b16 %v1243, %v1242
    %v1411 = vpack.c.b16 %v1245, %v1244
    %v1412 = vpack.c.b16 %v1247, %v1246
    %v1413 = vpack.c.b16 %v1249, %v1248
    %v1414 = vpack.c.b16 %v1251, %v1250
    %v1415 = vpack.c.b16 %v1253, %v1252
    %v1416 = vpack.c.b16 %v1255, %v1254
    %v1417 = vpack.c.b16 %v1257, %v1256
    %v1418 = vpack.c.b16 %v1259, %v1258
    %v1419 = vpack.c.b16 %v1261, %v1260
    %v1420 = vpack.c.b16 %v1263, %v1262
    %v1421 = vpack.c.b16 %v1265, %v1264
    %v1422 = vpack.c.b16 %v1267, %v1266
    %v1423 = vpack.c.b16 %v1269, %v1268
    %v1424 = vpack.c.b16 %v1271, %v1270
    %v1425 = vpack.c.b16 %v1273, %v1272
    %v1426 = vpack.c.b16 %v1275, %v1274
    %v1427 = vpack.c.b16 %v1277, %v1276
    %v1428 = vpack.c.b16 %v1279, %v1278
    %v1429 = vpack.c.b16 %v1281, %v1280
    %v1430 = vpack.c.b16 %v1283, %v1282
    %v1431 = vpack.c.b16 %v1285, %v1284
    %v1432 = vpack.c.b16 %v1287, %v1286
    %v1433 = vpack.c.b16 %v1289, %v1288
    %v1434 = vpack.c.b16 %v1291, %v1290
    %v1435 = vpack.c.b16 %v1293, %v1292
    %v1436 = vpack.c.b16 %v1295, %v1294
    %v1437 = vpack.c.b16 %v1297, %v1296
    %v1438 = vpack.c.b16 %v1299, %v1298
    %v1439 = vpack.c.b16 %v1301, %v1300
    %v1440 = vpack.c.b16 %v1303, %v1302
    %v1441 = vpack.c.b16 %v1305, %v1304
    %v1442 = vpack.c.b16 %v1307, %v1306
    %v1443 = vpack.c.b16 %v1309, %v1308
    %v1444 = vpack.c.b16 %v1311, %v1310
    %v1445 = vpack.c.b16 %v1313, %v1312
    %v1446 = vpack.c.b16 %v1315, %v1314
    %v1447 = vpack.c.b16 %v1317, %v1316
    %v1448 = vpack.c.b16 %v1319, %v1318
    %v1449 = vpack.c.b16 %v1321, %v1320
    %v1452 = vunpack.c.l.b16 %v808
    %v1453 = vunpack.c.l.b16 %v809
    %v1454 = vpack.c.b16 %v1453, %v1452
    %vm1456 = vcmask 130048
    %v1458 = vsel %vm1456, %v1322, 0
    %v1461 = vsel %vm1456, %v1323, 0
    %v1464 = vsel %vm1456, %v1324, 0
    %v1467 = vsel %vm1456, %v1325, 0
    %v1470 = vsel %vm1456, %v1326, 0
    %v1473 = vsel %vm1456, %v1327, 0
    %v1476 = vsel %vm1456, %v1328, 0
    %v1479 = vsel %vm1456, %v1329, 0
    %v1482 = vsel %vm1456, %v1330, 0
    %v1485 = vsel %vm1456, %v1331, 0
    %v1488 = vsel %vm1456, %v1332, 0
    %v1491 = vsel %vm1456, %v1333, 0
    %v1494 = vsel %vm1456, %v1334, 0
    %v1497 = vsel %vm1456, %v1335, 0
    %v1500 = vsel %vm1456, %v1336, 0
    %v1503 = vsel %vm1456, %v1337, 0
    %v1506 = vsel %vm1456, %v1338, 0
    %v1509 = vsel %vm1456, %v1339, 0
    %v1512 = vsel %vm1456, %v1340, 0
    %v1515 = vsel %vm1456, %v1341, 0
    %v1518 = vsel %vm1456, %v1342, 0
    %v1521 = vsel %vm1456, %v1343, 0
    %v1524 = vsel %vm1456, %v1344, 0
    %v1527 = vsel %vm1456, %v1345, 0
    %v1530 = vsel %vm1456, %v1346, 0
    %v1533 = vsel %vm1456, %v1347, 0
    %v1536 = vsel %vm1456, %v1348, 0
    %v1539 = vsel %vm1456, %v1349, 0
    %v1542 = vsel %vm1456, %v1350, 0
    %v1545 = vsel %vm1456, %v1351, 0
    %v1548 = vsel %vm1456, %v1352, 0
    %v1551 = vsel %vm1456, %v1353, 0
    %v1554 = vsel %vm1456, %v1354, 0
    %v1557 = vsel %vm1456, %v1355, 0
    %v1560 = vsel %vm1456, %v1356, 0
    %v1563 = vsel %vm1456, %v1357, 0
    %v1566 = vsel %vm1456, %v1358, 0
    %v1569 = vsel %vm1456, %v1359, 0
    %v1572 = vsel %vm1456, %v1360, 0
    %v1575 = vsel %vm1456, %v1361, 0
    %v1578 = vsel %vm1456, %v1362, 0
    %v1581 = vsel %vm1456, %v1363, 0
    %v1584 = vsel %vm1456, %v1364, 0
    %v1587 = vsel %vm1456, %v1365, 0
    %v1590 = vsel %vm1456, %v1366, 0
    %v1593 = vsel %vm1456, %v1367, 0
    %v1596 = vsel %vm1456, %v1368, 0
    %v1599 = vsel %vm1456, %v1369, 0
    %v1602 = vsel %vm1456, %v1370, 0
    %v1605 = vsel %vm1456, %v1371, 0
    %v1608 = vsel %vm1456, %v1372, 0
    %v1611 = vsel %vm1456, %v1373, 0
    %v1614 = vsel %vm1456, %v1374, 0
    %v1617 = vsel %vm1456, %v1375, 0
    %v1620 = vsel %vm1456, %v1376, 0
    %v1623 = vsel %vm1456, %v1377, 0
    %v1626 = vsel %vm1456, %v1378, 0
    %v1629 = vsel %vm1456, %v1379, 0
    %v1632 = vsel %vm1456, %v1380, 0
    %v1635 = vsel %vm1456, %v1381, 0
    %v1638 = vsel %vm1456, %v1382, 0
    %v1641 = vsel %vm1456, %v1383, 0
    %v1644 = vsel %vm1456, %v1384, 0
    %v1647 = vsel %vm1456, %v1385, 0
    %v1650 = vsel %vm1456, %v1386, 0
    %v1653 = vsel %vm1456, %v1387, 0
    %v1656 = vsel %vm1456, %v1388, 0
    %v1659 = vsel %vm1456, %v1389, 0
    %v1662 = vsel %vm1456, %v1390, 0
    %v1665 = vsel %vm1456, %v1391, 0
    %v1668 = vsel %vm1456, %v1392, 0
    %v1671 = vsel %vm1456, %v1393, 0
    %v1674 = vsel %vm1456, %v1394, 0
    %v1677 = vsel %vm1456, %v1395, 0
    %v1680 = vsel %vm1456, %v1396, 0
    %v1683 = vsel %vm1456, %v1397, 0
    %v1686 = vsel %vm1456, %v1398, 0
    %v1689 = vsel %vm1456, %v1399, 0
    %v1692 = vsel %vm1456, %v1400, 0
    %v1695 = vsel %vm1456, %v1401, 0
    %v1698 = vsel %vm1456, %v1402, 0
    %v1701 = vsel %vm1456, %v1403, 0
    %v1704 = vsel %vm1456, %v1404, 0
    %v1707 = vsel %vm1456, %v1405, 0
    %v1710 = vsel %vm1456, %v1406, 0
    %v1713 = vsel %vm1456, %v1407, 0
    %v1716 = vsel %vm1456, %v1408, 0
    %v1719 = vsel %vm1456, %v1409, 0
    %v1722 = vsel %vm1456, %v1410, 0
    %v1725 = vsel %vm1456, %v1411, 0
    %v1728 = vsel %vm1456, %v1412, 0
    %v1731 = vsel %vm1456, %v1413, 0
    %v1734 = vsel %vm1456, %v1414, 0
    %v1737 = vsel %vm1456, %v1415, 0
    %v1740 = vsel %vm1456, %v1416, 0
    %v1743 = vsel %vm1456, %v1417, 0
    %v1746 = vsel %vm1456, %v1418, 0
    %v1749 = vsel %vm1456, %v1419, 0
    %v1752 = vsel %vm1456, %v1420, 0
    %v1755 = vsel %vm1456, %v1421, 0
    %v1758 = vsel %vm1456, %v1422, 0
    %v1761 = vsel %vm1456, %v1423, 0
    %v1764 = vsel %vm1456, %v1424, 0
    %v1767 = vsel %vm1456, %v1425, 0
    %v1770 = vsel %vm1456, %v1426, 0
    %v1773 = vsel %vm1456, %v1427, 0
    %v1776 = vsel %vm1456, %v1428, 0
    %v1779 = vsel %vm1456, %v1429, 0
    %v1782 = vsel %vm1456, %v1430, 0
    %v1785 = vsel %vm1456, %v1431, 0
    %v1788 = vsel %vm1456, %v1432, 0
    %v1791 = vsel %vm1456, %v1433, 0
    %v1794 = vsel %vm1456, %v1434, 0
    %v1797 = vsel %vm1456, %v1435, 0
    %v1800 = vsel %vm1456, %v1436, 0
    %v1803 = vsel %vm1456, %v1437, 0
    %v1806 = vsel %vm1456, %v1438, 0
    %v1809 = vsel %vm1456, %v1439, 0
    %v1812 = vsel %vm1456, %v1440, 0
    %v1815 = vsel %vm1456, %v1441, 0
    %v1818 = vsel %vm1456, %v1442, 0
    %v1821 = vsel %vm1456, %v1443, 0
    %v1824 = vsel %vm1456, %v1444, 0
    %v1827 = vsel %vm1456, %v1445, 0
    %v1830 = vsel %vm1456, %v1446, 0
    %v1833 = vsel %vm1456, %v1447, 0
    %v1836 = vsel %vm1456, %v1448, 0
    %v1839 = vsel %vm1456, %v1449, 0
    %1841 = vmatprep.subr.bf16.mxu0 0
    %1842 = vmatpush1.bf16.msra.mxu0 %v1454
    %1843 = vmatprep.subr.bf16.mxu0 0
    %1844 = vmatpush1.bf16.msra.mxu0 0
    %1845 = vmatprep.subr.bf16.mxu0 0
    %1846 = vmatpush1.bf16.msra.mxu0 0
    %1847 = vmatprep.subr.bf16.mxu0 0
    %1848 = vmatpush1.bf16.msra.mxu0 0
    %1849 = vmatprep.subr.bf16.mxu0 0
    %1850 = vmatpush1.bf16.msra.mxu0 0
    %1851 = vmatprep.subr.bf16.mxu0 0
    %1852 = vmatpush1.bf16.msra.mxu0 0
    %1853 = vmatprep.subr.bf16.mxu0 0
    %1854 = vmatpush1.bf16.msra.mxu0 0
    %1855 = vmatprep.subr.bf16.mxu0 0
    %1856 = vmatpush1.bf16.msra.mxu0 0
    %1857 = vmatprep.subr.bf16.mxu0 0
    %1858 = vmatpush1.bf16.msra.mxu0 0
    %1859 = vmatprep.subr.bf16.mxu0 0
    %1860 = vmatpush1.bf16.msra.mxu0 0
    %1861 = vmatprep.subr.bf16.mxu0 0
    %1862 = vmatpush1.bf16.msra.mxu0 0
    %1863 = vmatprep.subr.bf16.mxu0 0
    %1864 = vmatpush1.bf16.msra.mxu0 0
    %1865 = vmatprep.subr.bf16.mxu0 0
    %1866 = vmatpush1.bf16.msra.mxu0 0
    %1867 = vmatprep.subr.bf16.mxu0 0
    %1868 = vmatpush1.bf16.msra.mxu0 0
    %1869 = vmatprep.subr.bf16.mxu0 0
    %1870 = vmatpush1.bf16.msra.mxu0 0
    %1871 = vmatprep.subr.bf16.mxu0 0
    %1872 = vmatpush1.bf16.msra.mxu0 0
    %1873 = vmatprep.mubr.bf16.mxu0 0
    %1874 = vmatmul.mubr.bf16.gmra.mrb[0].mxu0 %v1458
    %v1875 = vpop.f32.mrb[0].mxu0
    %v1876 = vadd.f32 0.0, %v1875
    %v1877 = vpop.f32.mrb[0].mxu0
    %v1878 = vpop.f32.mrb[0].mxu0
    %v1879 = vadd.f32 0.0, %v1878
    %v1880 = vpop.f32.mrb[0].mxu0
    %1881 = vmatprep.mubr.bf16.mxu0 0
    %1882 = vmatmul.mubr.bf16.gmra.mrb[0].mxu0 %v1461
    %v1883 = vpop.f32.mrb[0].mxu0
    %v1884 = vadd.f32 0.0, %v1883
    %v1885 = vpop.f32.mrb[0].mxu0
    %v1886 = vpop.f32.mrb[0].mxu0
    %v1887 = vadd.f32 0.0, %v1886
    %v1888 = vpop.f32.mrb[0].mxu0
    %1889 = vmatprep.mubr.bf16.mxu0 0
    %1890 = vmatmul.mubr.bf16.gmra.mrb[0].mxu0 %v1464
    %v1891 = vpop.f32.mrb[0].mxu0
    %v1892 = vadd.f32 0.0, %v1891
    %v1893 = vpop.f32.mrb[0].mxu0
    %v1894 = vpop.f32.mrb[0].mxu0
    %v1895 = vadd.f32 0.0, %v1894
    %v1896 = vpop.f32.mrb[0].mxu0
    %1897 = vmatprep.mubr.bf16.mxu0 0
    %1898 = vmatmul.mubr.bf16.gmra.mrb[0].mxu0 %v1467
    %v1899 = vpop.f32.mrb[0].mxu0
    %v1900 = vadd.f32 0.0, %v1899
    %v1901 = vpop.f32.mrb[0].mxu0
    %v1902 = vpop.f32.mrb[0].mxu0
    %v1903 = vadd.f32 0.0, %v1902
    %v1904 = vpop.f32.mrb[0].mxu0
    %1905 = vmatprep.mubr.bf16.mxu0 0
    %1906 = vmatmul.mubr.bf16.gmra.mrb[0].mxu0 %v1470
    %v1907 = vpop.f32.mrb[0].mxu0
    %v1908 = vadd.f32 0.0, %v1907
    %v1909 = vpop.f32.mrb[0].mxu0
    %v1910 = vpop.f32.mrb[0].mxu0
    %v1911 = vadd.f32 0.0, %v1910
    %v1912 = vpop.f32.mrb[0].mxu0
    %1913 = vmatprep.mubr.bf16.mxu0 0
    %1914 = vmatmul.mubr.bf16.gmra.mrb[0].mxu0 %v1473
    %v1915 = vpop.f32.mrb[0].mxu0
    %v1916 = vadd.f32 0.0, %v1915
    %v1917 = vpop.f32.mrb[0].mxu0
    %v1918 = vpop.f32.mrb[0].mxu0
    %v1919 = vadd.f32 0.0, %v1918
    %v1920 = vpop.f32.mrb[0].mxu0
    %1921 = vmatprep.mubr.bf16.mxu0 0
    %1922 = vmatmul.mubr.bf16.gmra.mrb[0].mxu0 %v1476
    %v1923 = vpop.f32.mrb[0].mxu0
    %v1924 = vadd.f32 0.0, %v1923
    %v1925 = vpop.f32.mrb[0].mxu0
    %v1926 = vpop.f32.mrb[0].mxu0
    %v1927 = vadd.f32 0.0, %v1926
    %v1928 = vpop.f32.mrb[0].mxu0
    %1929 = vmatprep.mubr.bf16.mxu0 0
    %1930 = vmatmul.mubr.bf16.gmra.mrb[0].mxu0 %v1479
    %v1931 = vpop.f32.mrb[0].mxu0
    %v1932 = vadd.f32 0.0, %v1931
    %v1933 = vpop.f32.mrb[0].mxu0
    %v1934 = vpop.f32.mrb[0].mxu0
    %v1935 = vadd.f32 0.0, %v1934
    %v1936 = vpop.f32.mrb[0].mxu0
    %1937 = vmatprep.mubr.bf16.mxu0 0
    %1938 = vmatmul.mubr.bf16.gmra.mrb[0].mxu0 %v1482
    %v1939 = vpop.f32.mrb[0].mxu0
    %v1940 = vadd.f32 0.0, %v1939
    %v1941 = vpop.f32.mrb[0].mxu0
    %v1942 = vpop.f32.mrb[0].mxu0
    %v1943 = vadd.f32 0.0, %v1942
    %v1944 = vpop.f32.mrb[0].mxu0
    %1945 = vmatprep.mubr.bf16.mxu0 0
    %1946 = vmatmul.mubr.bf16.gmra.mrb[0].mxu0 %v1485
    %v1947 = vpop.f32.mrb[0].mxu0
    %v1948 = vadd.f32 0.0, %v1947
    %v1949 = vpop.f32.mrb[0].mxu0
    %v1950 = vpop.f32.mrb[0].mxu0
    %v1951 = vadd.f32 0.0, %v1950
    %v1952 = vpop.f32.mrb[0].mxu0
    %1953 = vmatprep.mubr.bf16.mxu0 0
    %1954 = vmatmul.mubr.bf16.gmra.mrb[0].mxu0 %v1488
    %v1955 = vpop.f32.mrb[0].mxu0
    %v1956 = vadd.f32 0.0, %v1955
    %v1957 = vpop.f32.mrb[0].mxu0
    %v1958 = vpop.f32.mrb[0].mxu0
    %v1959 = vadd.f32 0.0, %v1958
    %v1960 = vpop.f32.mrb[0].mxu0
    %1961 = vmatprep.mubr.bf16.mxu0 0
    %1962 = vmatmul.mubr.bf16.gmra.mrb[0].mxu0 %v1491
    %v1963 = vpop.f32.mrb[0].mxu0
    %v1964 = vadd.f32 0.0, %v1963
    %v1965 = vpop.f32.mrb[0].mxu0
    %v1966 = vpop.f32.mrb[0].mxu0
    %v1967 = vadd.f32 0.0, %v1966
    %v1968 = vpop.f32.mrb[0].mxu0
    %1969 = vmatprep.mubr.bf16.mxu0 0
    %1970 = vmatmul.mubr.bf16.gmra.mrb[0].mxu0 %v1494
    %v1971 = vpop.f32.mrb[0].mxu0
    %v1972 = vadd.f32 0.0, %v1971
    %v1973 = vpop.f32.mrb[0].mxu0
    %v1974 = vpop.f32.mrb[0].mxu0
    %v1975 = vadd.f32 0.0, %v1974
    %v1976 = vpop.f32.mrb[0].mxu0
    %1977 = vmatprep.mubr.bf16.mxu0 0
    %1978 = vmatmul.mubr.bf16.gmra.mrb[0].mxu0 %v1497
    %v1979 = vpop.f32.mrb[0].mxu0
    %v1980 = vadd.f32 0.0, %v1979
    %v1981 = vpop.f32.mrb[0].mxu0
    %v1982 = vpop.f32.mrb[0].mxu0
    %v1983 = vadd.f32 0.0, %v1982
    %v1984 = vpop.f32.mrb[0].mxu0
    %1985 = vmatprep.mubr.bf16.mxu0 0
    %1986 = vmatmul.mubr.bf16.gmra.mrb[0].mxu0 %v1500
    %v1987 = vpop.f32.mrb[0].mxu0
    %v1988 = vadd.f32 0.0, %v1987
    %v1989 = vpop.f32.mrb[0].mxu0
    %v1990 = vpop.f32.mrb[0].mxu0
    %v1991 = vadd.f32 0.0, %v1990
    %v1992 = vpop.f32.mrb[0].mxu0
    %1993 = vmatprep.mubr.bf16.mxu0 0
    %1994 = vmatmul.mubr.bf16.gmra.mrb[0].mxu0 %v1503
    %v1995 = vpop.f32.mrb[0].mxu0
    %v1996 = vadd.f32 0.0, %v1995
    %v1997 = vpop.f32.mrb[0].mxu0
    %v1998 = vpop.f32.mrb[0].mxu0
    %v1999 = vadd.f32 0.0, %v1998
    %v2000 = vpop.f32.mrb[0].mxu0
    %2001 = vmatprep.mubr.bf16.mxu0 0
    %2002 = vmatmul.mubr.bf16.gmra.mrb[0].mxu0 %v1506
    %v2003 = vpop.f32.mrb[0].mxu0
    %v2004 = vadd.f32 0.0, %v2003
    %v2005 = vpop.f32.mrb[0].mxu0
    %v2006 = vpop.f32.mrb[0].mxu0
    %v2007 = vadd.f32 0.0, %v2006
    %v2008 = vpop.f32.mrb[0].mxu0
    %2009 = vmatprep.mubr.bf16.mxu0 0
    %2010 = vmatmul.mubr.bf16.gmra.mrb[0].mxu0 %v1509
    %v2011 = vpop.f32.mrb[0].mxu0
    %v2012 = vadd.f32 0.0, %v2011
    %v2013 = vpop.f32.mrb[0].mxu0
    %v2014 = vpop.f32.mrb[0].mxu0
    %v2015 = vadd.f32 0.0, %v2014
    %v2016 = vpop.f32.mrb[0].mxu0
    %2017 = vmatprep.mubr.bf16.mxu0 0
    %2018 = vmatmul.mubr.bf16.gmra.mrb[0].mxu0 %v1512
    %v2019 = vpop.f32.mrb[0].mxu0
    %v2020 = vadd.f32 0.0, %v2019
    %v2021 = vpop.f32.mrb[0].mxu0
    %v2022 = vpop.f32.mrb[0].mxu0
    %v2023 = vadd.f32 0.0, %v2022
    %v2024 = vpop.f32.mrb[0].mxu0
    %2025 = vmatprep.mubr.bf16.mxu0 0
    %2026 = vmatmul.mubr.bf16.gmra.mrb[0].mxu0 %v1515
    %v2027 = vpop.f32.mrb[0].mxu0
    %v2028 = vadd.f32 0.0, %v2027
    %v2029 = vpop.f32.mrb[0].mxu0
    %v2030 = vpop.f32.mrb[0].mxu0
    %v2031 = vadd.f32 0.0, %v2030
    %v2032 = vpop.f32.mrb[0].mxu0
    %2033 = vmatprep.mubr.bf16.mxu0 0
    %2034 = vmatmul.mubr.bf16.gmra.mrb[0].mxu0 %v1518
    %v2035 = vpop.f32.mrb[0].mxu0
    %v2036 = vadd.f32 0.0, %v2035
    %v2037 = vpop.f32.mrb[0].mxu0
    %v2038 = vpop.f32.mrb[0].mxu0
    %v2039 = vadd.f32 0.0, %v2038
    %v2040 = vpop.f32.mrb[0].mxu0
    %2041 = vmatprep.mubr.bf16.mxu0 0
    %2042 = vmatmul.mubr.bf16.gmra.mrb[0].mxu0 %v1521
    %v2043 = vpop.f32.mrb[0].mxu0
    %v2044 = vadd.f32 0.0, %v2043
    %v2045 = vpop.f32.mrb[0].mxu0
    %v2046 = vpop.f32.mrb[0].mxu0
    %v2047 = vadd.f32 0.0, %v2046
    %v2048 = vpop.f32.mrb[0].mxu0
    %2049 = vmatprep.mubr.bf16.mxu0 0
    %2050 = vmatmul.mubr.bf16.gmra.mrb[0].mxu0 %v1524
    %v2051 = vpop.f32.mrb[0].mxu0
    %v2052 = vadd.f32 0.0, %v2051
    %v2053 = vpop.f32.mrb[0].mxu0
    %v2054 = vpop.f32.mrb[0].mxu0
    %v2055 = vadd.f32 0.0, %v2054
    %v2056 = vpop.f32.mrb[0].mxu0
    %2057 = vmatprep.mubr.bf16.mxu0 0
    %2058 = vmatmul.mubr.bf16.gmra.mrb[0].mxu0 %v1527
    %v2059 = vpop.f32.mrb[0].mxu0
    %v2060 = vadd.f32 0.0, %v2059
    %v2061 = vpop.f32.mrb[0].mxu0
    %v2062 = vpop.f32.mrb[0].mxu0
    %v2063 = vadd.f32 0.0, %v2062
    %v2064 = vpop.f32.mrb[0].mxu0
    %2065 = vmatprep.mubr.bf16.mxu0 0
    %2066 = vmatmul.mubr.bf16.gmra.mrb[0].mxu0 %v1530
    %v2067 = vpop.f32.mrb[0].mxu0
    %v2068 = vadd.f32 0.0, %v2067
    %v2069 = vpop.f32.mrb[0].mxu0
    %v2070 = vpop.f32.mrb[0].mxu0
    %v2071 = vadd.f32 0.0, %v2070
    %v2072 = vpop.f32.mrb[0].mxu0
    %2073 = vmatprep.mubr.bf16.mxu0 0
    %2074 = vmatmul.mubr.bf16.gmra.mrb[0].mxu0 %v1533
    %v2075 = vpop.f32.mrb[0].mxu0
    %v2076 = vadd.f32 0.0, %v2075
    %v2077 = vpop.f32.mrb[0].mxu0
    %v2078 = vpop.f32.mrb[0].mxu0
    %v2079 = vadd.f32 0.0, %v2078
    %v2080 = vpop.f32.mrb[0].mxu0
    %2081 = vmatprep.mubr.bf16.mxu0 0
    %2082 = vmatmul.mubr.bf16.gmra.mrb[0].mxu0 %v1536
    %v2083 = vpop.f32.mrb[0].mxu0
    %v2084 = vadd.f32 0.0, %v2083
    %v2085 = vpop.f32.mrb[0].mxu0
    %v2086 = vpop.f32.mrb[0].mxu0
    %v2087 = vadd.f32 0.0, %v2086
    %v2088 = vpop.f32.mrb[0].mxu0
    %2089 = vmatprep.mubr.bf16.mxu0 0
    %2090 = vmatmul.mubr.bf16.gmra.mrb[0].mxu0 %v1539
    %v2091 = vpop.f32.mrb[0].mxu0
    %v2092 = vadd.f32 0.0, %v2091
    %v2093 = vpop.f32.mrb[0].mxu0
    %v2094 = vpop.f32.mrb[0].mxu0
    %v2095 = vadd.f32 0.0, %v2094
    %v2096 = vpop.f32.mrb[0].mxu0
    %2097 = vmatprep.mubr.bf16.mxu0 0
    %2098 = vmatmul.mubr.bf16.gmra.mrb[0].mxu0 %v1542
    %v2099 = vpop.f32.mrb[0].mxu0
    %v2100 = vadd.f32 0.0, %v2099
    %v2101 = vpop.f32.mrb[0].mxu0
    %v2102 = vpop.f32.mrb[0].mxu0
    %v2103 = vadd.f32 0.0, %v2102
    %v2104 = vpop.f32.mrb[0].mxu0
    %2105 = vmatprep.mubr.bf16.mxu0 0
    %2106 = vmatmul.mubr.bf16.gmra.mrb[0].mxu0 %v1545
    %v2107 = vpop.f32.mrb[0].mxu0
    %v2108 = vadd.f32 0.0, %v2107
    %v2109 = vpop.f32.mrb[0].mxu0
    %v2110 = vpop.f32.mrb[0].mxu0
    %v2111 = vadd.f32 0.0, %v2110
    %v2112 = vpop.f32.mrb[0].mxu0
    %2113 = vmatprep.mubr.bf16.mxu0 0
    %2114 = vmatmul.mubr.bf16.gmra.mrb[0].mxu0 %v1548
    %v2115 = vpop.f32.mrb[0].mxu0
    %v2116 = vadd.f32 0.0, %v2115
    %v2117 = vpop.f32.mrb[0].mxu0
    %v2118 = vpop.f32.mrb[0].mxu0
    %v2119 = vadd.f32 0.0, %v2118
    %v2120 = vpop.f32.mrb[0].mxu0
    %2121 = vmatprep.mubr.bf16.mxu0 0
    %2122 = vmatmul.mubr.bf16.gmra.mrb[0].mxu0 %v1551
    %v2123 = vpop.f32.mrb[0].mxu0
    %v2124 = vadd.f32 0.0, %v2123
    %v2125 = vpop.f32.mrb[0].mxu0
    %v2126 = vpop.f32.mrb[0].mxu0
    %v2127 = vadd.f32 0.0, %v2126
    %v2128 = vpop.f32.mrb[0].mxu0
    %2129 = vmatprep.mubr.bf16.mxu0 0
    %2130 = vmatmul.mubr.bf16.gmra.mrb[0].mxu0 %v1554
    %v2131 = vpop.f32.mrb[0].mxu0
    %v2132 = vadd.f32 0.0, %v2131
    %v2133 = vpop.f32.mrb[0].mxu0
    %v2134 = vpop.f32.mrb[0].mxu0
    %v2135 = vadd.f32 0.0, %v2134
    %v2136 = vpop.f32.mrb[0].mxu0
    %2137 = vmatprep.mubr.bf16.mxu0 0
    %2138 = vmatmul.mubr.bf16.gmra.mrb[0].mxu0 %v1557
    %v2139 = vpop.f32.mrb[0].mxu0
    %v2140 = vadd.f32 0.0, %v2139
    %v2141 = vpop.f32.mrb[0].mxu0
    %v2142 = vpop.f32.mrb[0].mxu0
    %v2143 = vadd.f32 0.0, %v2142
    %v2144 = vpop.f32.mrb[0].mxu0
    %2145 = vmatprep.mubr.bf16.mxu0 0
    %2146 = vmatmul.mubr.bf16.gmra.mrb[0].mxu0 %v1560
    %v2147 = vpop.f32.mrb[0].mxu0
    %v2148 = vadd.f32 0.0, %v2147
    %v2149 = vpop.f32.mrb[0].mxu0
    %v2150 = vpop.f32.mrb[0].mxu0
    %v2151 = vadd.f32 0.0, %v2150
    %v2152 = vpop.f32.mrb[0].mxu0
    %2153 = vmatprep.mubr.bf16.mxu0 0
    %2154 = vmatmul.mubr.bf16.gmra.mrb[0].mxu0 %v1563
    %v2155 = vpop.f32.mrb[0].mxu0
    %v2156 = vadd.f32 0.0, %v2155
    %v2157 = vpop.f32.mrb[0].mxu0
    %v2158 = vpop.f32.mrb[0].mxu0
    %v2159 = vadd.f32 0.0, %v2158
    %v2160 = vpop.f32.mrb[0].mxu0
    %2161 = vmatprep.mubr.bf16.mxu0 0
    %2162 = vmatmul.mubr.bf16.gmra.mrb[0].mxu0 %v1566
    %v2163 = vpop.f32.mrb[0].mxu0
    %v2164 = vadd.f32 0.0, %v2163
    %v2165 = vpop.f32.mrb[0].mxu0
    %v2166 = vpop.f32.mrb[0].mxu0
    %v2167 = vadd.f32 0.0, %v2166
    %v2168 = vpop.f32.mrb[0].mxu0
    %2169 = vmatprep.mubr.bf16.mxu0 0
    %2170 = vmatmul.mubr.bf16.gmra.mrb[0].mxu0 %v1569
    %v2171 = vpop.f32.mrb[0].mxu0
    %v2172 = vadd.f32 0.0, %v2171
    %v2173 = vpop.f32.mrb[0].mxu0
    %v2174 = vpop.f32.mrb[0].mxu0
    %v2175 = vadd.f32 0.0, %v2174
    %v2176 = vpop.f32.mrb[0].mxu0
    %2177 = vmatprep.mubr.bf16.mxu0 0
    %2178 = vmatmul.mubr.bf16.gmra.mrb[0].mxu0 %v1572
    %v2179 = vpop.f32.mrb[0].mxu0
    %v2180 = vadd.f32 0.0, %v2179
    %v2181 = vpop.f32.mrb[0].mxu0
    %v2182 = vpop.f32.mrb[0].mxu0
    %v2183 = vadd.f32 0.0, %v2182
    %v2184 = vpop.f32.mrb[0].mxu0
    %2185 = vmatprep.mubr.bf16.mxu0 0
    %2186 = vmatmul.mubr.bf16.gmra.mrb[0].mxu0 %v1575
    %v2187 = vpop.f32.mrb[0].mxu0
    %v2188 = vadd.f32 0.0, %v2187
    %v2189 = vpop.f32.mrb[0].mxu0
    %v2190 = vpop.f32.mrb[0].mxu0
    %v2191 = vadd.f32 0.0, %v2190
    %v2192 = vpop.f32.mrb[0].mxu0
    %2193 = vmatprep.mubr.bf16.mxu0 0
    %2194 = vmatmul.mubr.bf16.gmra.mrb[0].mxu0 %v1578
    %v2195 = vpop.f32.mrb[0].mxu0
    %v2196 = vadd.f32 0.0, %v2195
    %v2197 = vpop.f32.mrb[0].mxu0
    %v2198 = vpop.f32.mrb[0].mxu0
    %v2199 = vadd.f32 0.0, %v2198
    %v2200 = vpop.f32.mrb[0].mxu0
    %2201 = vmatprep.mubr.bf16.mxu0 0
    %2202 = vmatmul.mubr.bf16.gmra.mrb[0].mxu0 %v1581
    %v2203 = vpop.f32.mrb[0].mxu0
    %v2204 = vadd.f32 0.0, %v2203
    %v2205 = vpop.f32.mrb[0].mxu0
    %v2206 = vpop.f32.mrb[0].mxu0
    %v2207 = vadd.f32 0.0, %v2206
    %v2208 = vpop.f32.mrb[0].mxu0
    %2209 = vmatprep.mubr.bf16.mxu0 0
    %2210 = vmatmul.mubr.bf16.gmra.mrb[0].mxu0 %v1584
    %v2211 = vpop.f32.mrb[0].mxu0
    %v2212 = vadd.f32 0.0, %v2211
    %v2213 = vpop.f32.mrb[0].mxu0
    %v2214 = vpop.f32.mrb[0].mxu0
    %v2215 = vadd.f32 0.0, %v2214
    %v2216 = vpop.f32.mrb[0].mxu0
    %2217 = vmatprep.mubr.bf16.mxu0 0
    %2218 = vmatmul.mubr.bf16.gmra.mrb[0].mxu0 %v1587
    %v2219 = vpop.f32.mrb[0].mxu0
    %v2220 = vadd.f32 0.0, %v2219
    %v2221 = vpop.f32.mrb[0].mxu0
    %v2222 = vpop.f32.mrb[0].mxu0
    %v2223 = vadd.f32 0.0, %v2222
    %v2224 = vpop.f32.mrb[0].mxu0
    %2225 = vmatprep.mubr.bf16.mxu0 0
    %2226 = vmatmul.mubr.bf16.gmra.mrb[0].mxu0 %v1590
    %v2227 = vpop.f32.mrb[0].mxu0
    %v2228 = vadd.f32 0.0, %v2227
    %v2229 = vpop.f32.mrb[0].mxu0
    %v2230 = vpop.f32.mrb[0].mxu0
    %v2231 = vadd.f32 0.0, %v2230
    %v2232 = vpop.f32.mrb[0].mxu0
    %2233 = vmatprep.mubr.bf16.mxu0 0
    %2234 = vmatmul.mubr.bf16.gmra.mrb[0].mxu0 %v1593
    %v2235 = vpop.f32.mrb[0].mxu0
    %v2236 = vadd.f32 0.0, %v2235
    %v2237 = vpop.f32.mrb[0].mxu0
    %v2238 = vpop.f32.mrb[0].mxu0
    %v2239 = vadd.f32 0.0, %v2238
    %v2240 = vpop.f32.mrb[0].mxu0
    %2241 = vmatprep.mubr.bf16.mxu0 0
    %2242 = vmatmul.mubr.bf16.gmra.mrb[0].mxu0 %v1596
    %v2243 = vpop.f32.mrb[0].mxu0
    %v2244 = vadd.f32 0.0, %v2243
    %v2245 = vpop.f32.mrb[0].mxu0
    %v2246 = vpop.f32.mrb[0].mxu0
    %v2247 = vadd.f32 0.0, %v2246
    %v2248 = vpop.f32.mrb[0].mxu0
    %2249 = vmatprep.mubr.bf16.mxu0 0
    %2250 = vmatmul.mubr.bf16.gmra.mrb[0].mxu0 %v1599
    %v2251 = vpop.f32.mrb[0].mxu0
    %v2252 = vadd.f32 0.0, %v2251
    %v2253 = vpop.f32.mrb[0].mxu0
    %v2254 = vpop.f32.mrb[0].mxu0
    %v2255 = vadd.f32 0.0, %v2254
    %v2256 = vpop.f32.mrb[0].mxu0
    %2257 = vmatprep.mubr.bf16.mxu0 0
    %2258 = vmatmul.mubr.bf16.gmra.mrb[0].mxu0 %v1602
    %v2259 = vpop.f32.mrb[0].mxu0
    %v2260 = vadd.f32 0.0, %v2259
    %v2261 = vpop.f32.mrb[0].mxu0
    %v2262 = vpop.f32.mrb[0].mxu0
    %v2263 = vadd.f32 0.0, %v2262
    %v2264 = vpop.f32.mrb[0].mxu0
    %2265 = vmatprep.mubr.bf16.mxu0 0
    %2266 = vmatmul.mubr.bf16.gmra.mrb[0].mxu0 %v1605
    %v2267 = vpop.f32.mrb[0].mxu0
    %v2268 = vadd.f32 0.0, %v2267
    %v2269 = vpop.f32.mrb[0].mxu0
    %v2270 = vpop.f32.mrb[0].mxu0
    %v2271 = vadd.f32 0.0, %v2270
    %v2272 = vpop.f32.mrb[0].mxu0
    %2273 = vmatprep.mubr.bf16.mxu0 0
    %2274 = vmatmul.mubr.bf16.gmra.mrb[0].mxu0 %v1608
    %v2275 = vpop.f32.mrb[0].mxu0
    %v2276 = vadd.f32 0.0, %v2275
    %v2277 = vpop.f32.mrb[0].mxu0
    %v2278 = vpop.f32.mrb[0].mxu0
    %v2279 = vadd.f32 0.0, %v2278
    %v2280 = vpop.f32.mrb[0].mxu0
    %2281 = vmatprep.mubr.bf16.mxu0 0
    %2282 = vmatmul.mubr.bf16.gmra.mrb[0].mxu0 %v1611
    %v2283 = vpop.f32.mrb[0].mxu0
    %v2284 = vadd.f32 0.0, %v2283
    %v2285 = vpop.f32.mrb[0].mxu0
    %v2286 = vpop.f32.mrb[0].mxu0
    %v2287 = vadd.f32 0.0, %v2286
    %v2288 = vpop.f32.mrb[0].mxu0
    %2289 = vmatprep.mubr.bf16.mxu0 0
    %2290 = vmatmul.mubr.bf16.gmra.mrb[0].mxu0 %v1614
    %v2291 = vpop.f32.mrb[0].mxu0
    %v2292 = vadd.f32 0.0, %v2291
    %v2293 = vpop.f32.mrb[0].mxu0
    %v2294 = vpop.f32.mrb[0].mxu0
    %v2295 = vadd.f32 0.0, %v2294
    %v2296 = vpop.f32.mrb[0].mxu0
    %2297 = vmatprep.mubr.bf16.mxu0 0
    %2298 = vmatmul.mubr.bf16.gmra.mrb[0].mxu0 %v1617
    %v2299 = vpop.f32.mrb[0].mxu0
    %v2300 = vadd.f32 0.0, %v2299
    %v2301 = vpop.f32.mrb[0].mxu0
    %v2302 = vpop.f32.mrb[0].mxu0
    %v2303 = vadd.f32 0.0, %v2302
    %v2304 = vpop.f32.mrb[0].mxu0
    %2305 = vmatprep.mubr.bf16.mxu0 0
    %2306 = vmatmul.mubr.bf16.gmra.mrb[0].mxu0 %v1620
    %v2307 = vpop.f32.mrb[0].mxu0
    %v2308 = vadd.f32 0.0, %v2307
    %v2309 = vpop.f32.mrb[0].mxu0
    %v2310 = vpop.f32.mrb[0].mxu0
    %v2311 = vadd.f32 0.0, %v2310
    %v2312 = vpop.f32.mrb[0].mxu0
    %2313 = vmatprep.mubr.bf16.mxu0 0
    %2314 = vmatmul.mubr.bf16.gmra.mrb[0].mxu0 %v1623
    %v2315 = vpop.f32.mrb[0].mxu0
    %v2316 = vadd.f32 0.0, %v2315
    %v2317 = vpop.f32.mrb[0].mxu0
    %v2318 = vpop.f32.mrb[0].mxu0
    %v2319 = vadd.f32 0.0, %v2318
    %v2320 = vpop.f32.mrb[0].mxu0
    %2321 = vmatprep.mubr.bf16.mxu0 0
    %2322 = vmatmul.mubr.bf16.gmra.mrb[0].mxu0 %v1626
    %v2323 = vpop.f32.mrb[0].mxu0
    %v2324 = vadd.f32 0.0, %v2323
    %v2325 = vpop.f32.mrb[0].mxu0
    %v2326 = vpop.f32.mrb[0].mxu0
    %v2327 = vadd.f32 0.0, %v2326
    %v2328 = vpop.f32.mrb[0].mxu0
    %2329 = vmatprep.mubr.bf16.mxu0 0
    %2330 = vmatmul.mubr.bf16.gmra.mrb[0].mxu0 %v1629
    %v2331 = vpop.f32.mrb[0].mxu0
    %v2332 = vadd.f32 0.0, %v2331
    %v2333 = vpop.f32.mrb[0].mxu0
    %v2334 = vpop.f32.mrb[0].mxu0
    %v2335 = vadd.f32 0.0, %v2334
    %v2336 = vpop.f32.mrb[0].mxu0
    %2337 = vmatprep.mubr.bf16.mxu0 0
    %2338 = vmatmul.mubr.bf16.gmra.mrb[0].mxu0 %v1632
    %v2339 = vpop.f32.mrb[0].mxu0
    %v2340 = vadd.f32 0.0, %v2339
    %v2341 = vpop.f32.mrb[0].mxu0
    %v2342 = vpop.f32.mrb[0].mxu0
    %v2343 = vadd.f32 0.0, %v2342
    %v2344 = vpop.f32.mrb[0].mxu0
    %2345 = vmatprep.mubr.bf16.mxu0 0
    %2346 = vmatmul.mubr.bf16.gmra.mrb[0].mxu0 %v1635
    %v2347 = vpop.f32.mrb[0].mxu0
    %v2348 = vadd.f32 0.0, %v2347
    %v2349 = vpop.f32.mrb[0].mxu0
    %v2350 = vpop.f32.mrb[0].mxu0
    %v2351 = vadd.f32 0.0, %v2350
    %v2352 = vpop.f32.mrb[0].mxu0
    %2353 = vmatprep.mubr.bf16.mxu0 0
    %2354 = vmatmul.mubr.bf16.gmra.mrb[0].mxu0 %v1638
    %v2355 = vpop.f32.mrb[0].mxu0
    %v2356 = vadd.f32 0.0, %v2355
    %v2357 = vpop.f32.mrb[0].mxu0
    %v2358 = vpop.f32.mrb[0].mxu0
    %v2359 = vadd.f32 0.0, %v2358
    %v2360 = vpop.f32.mrb[0].mxu0
    %2361 = vmatprep.mubr.bf16.mxu0 0
    %2362 = vmatmul.mubr.bf16.gmra.mrb[0].mxu0 %v1641
    %v2363 = vpop.f32.mrb[0].mxu0
    %v2364 = vadd.f32 0.0, %v2363
    %v2365 = vpop.f32.mrb[0].mxu0
    %v2366 = vpop.f32.mrb[0].mxu0
    %v2367 = vadd.f32 0.0, %v2366
    %v2368 = vpop.f32.mrb[0].mxu0
    %2369 = vmatprep.mubr.bf16.mxu0 0
    %2370 = vmatmul.mubr.bf16.gmra.mrb[0].mxu0 %v1644
    %v2371 = vpop.f32.mrb[0].mxu0
    %v2372 = vadd.f32 0.0, %v2371
    %v2373 = vpop.f32.mrb[0].mxu0
    %v2374 = vpop.f32.mrb[0].mxu0
    %v2375 = vadd.f32 0.0, %v2374
    %v2376 = vpop.f32.mrb[0].mxu0
    %2377 = vmatprep.mubr.bf16.mxu0 0
    %2378 = vmatmul.mubr.bf16.gmra.mrb[0].mxu0 %v1647
    %v2379 = vpop.f32.mrb[0].mxu0
    %v2380 = vadd.f32 0.0, %v2379
    %v2381 = vpop.f32.mrb[0].mxu0
    %v2382 = vpop.f32.mrb[0].mxu0
    %v2383 = vadd.f32 0.0, %v2382
    %v2384 = vpop.f32.mrb[0].mxu0
    %2385 = vmatprep.mubr.bf16.mxu0 0
    %2386 = vmatmul.mubr.bf16.gmra.mrb[0].mxu0 %v1650
    %v2387 = vpop.f32.mrb[0].mxu0
    %v2388 = vadd.f32 0.0, %v2387
    %v2389 = vpop.f32.mrb[0].mxu0
    %v2390 = vpop.f32.mrb[0].mxu0
    %v2391 = vadd.f32 0.0, %v2390
    %v2392 = vpop.f32.mrb[0].mxu0
    %2393 = vmatprep.mubr.bf16.mxu0 0
    %2394 = vmatmul.mubr.bf16.gmra.mrb[0].mxu0 %v1653
    %v2395 = vpop.f32.mrb[0].mxu0
    %v2396 = vadd.f32 0.0, %v2395
    %v2397 = vpop.f32.mrb[0].mxu0
    %v2398 = vpop.f32.mrb[0].mxu0
    %v2399 = vadd.f32 0.0, %v2398
    %v2400 = vpop.f32.mrb[0].mxu0
    %2401 = vmatprep.mubr.bf16.mxu0 0
    %2402 = vmatmul.mubr.bf16.gmra.mrb[0].mxu0 %v1656
    %v2403 = vpop.f32.mrb[0].mxu0
    %v2404 = vadd.f32 0.0, %v2403
    %v2405 = vpop.f32.mrb[0].mxu0
    %v2406 = vpop.f32.mrb[0].mxu0
    %v2407 = vadd.f32 0.0, %v2406
    %v2408 = vpop.f32.mrb[0].mxu0
    %2409 = vmatprep.mubr.bf16.mxu0 0
    %2410 = vmatmul.mubr.bf16.gmra.mrb[0].mxu0 %v1659
    %v2411 = vpop.f32.mrb[0].mxu0
    %v2412 = vadd.f32 0.0, %v2411
    %v2413 = vpop.f32.mrb[0].mxu0
    %v2414 = vpop.f32.mrb[0].mxu0
    %v2415 = vadd.f32 0.0, %v2414
    %v2416 = vpop.f32.mrb[0].mxu0
    %2417 = vmatprep.mubr.bf16.mxu0 0
    %2418 = vmatmul.mubr.bf16.gmra.mrb[0].mxu0 %v1662
    %v2419 = vpop.f32.mrb[0].mxu0
    %v2420 = vadd.f32 0.0, %v2419
    %v2421 = vpop.f32.mrb[0].mxu0
    %v2422 = vpop.f32.mrb[0].mxu0
    %v2423 = vadd.f32 0.0, %v2422
    %v2424 = vpop.f32.mrb[0].mxu0
    %2425 = vmatprep.mubr.bf16.mxu0 0
    %2426 = vmatmul.mubr.bf16.gmra.mrb[0].mxu0 %v1665
    %v2427 = vpop.f32.mrb[0].mxu0
    %v2428 = vadd.f32 0.0, %v2427
    %v2429 = vpop.f32.mrb[0].mxu0
    %v2430 = vpop.f32.mrb[0].mxu0
    %v2431 = vadd.f32 0.0, %v2430
    %v2432 = vpop.f32.mrb[0].mxu0
    %2433 = vmatprep.mubr.bf16.mxu0 0
    %2434 = vmatmul.mubr.bf16.gmra.mrb[0].mxu0 %v1668
    %v2435 = vpop.f32.mrb[0].mxu0
    %v2436 = vadd.f32 0.0, %v2435
    %v2437 = vpop.f32.mrb[0].mxu0
    %v2438 = vpop.f32.mrb[0].mxu0
    %v2439 = vadd.f32 0.0, %v2438
    %v2440 = vpop.f32.mrb[0].mxu0
    %2441 = vmatprep.mubr.bf16.mxu0 0
    %2442 = vmatmul.mubr.bf16.gmra.mrb[0].mxu0 %v1671
    %v2443 = vpop.f32.mrb[0].mxu0
    %v2444 = vadd.f32 0.0, %v2443
    %v2445 = vpop.f32.mrb[0].mxu0
    %v2446 = vpop.f32.mrb[0].mxu0
    %v2447 = vadd.f32 0.0, %v2446
    %v2448 = vpop.f32.mrb[0].mxu0
    %2449 = vmatprep.mubr.bf16.mxu0 0
    %2450 = vmatmul.mubr.bf16.gmra.mrb[0].mxu0 %v1674
    %v2451 = vpop.f32.mrb[0].mxu0
    %v2452 = vadd.f32 0.0, %v2451
    %v2453 = vpop.f32.mrb[0].mxu0
    %v2454 = vpop.f32.mrb[0].mxu0
    %v2455 = vadd.f32 0.0, %v2454
    %v2456 = vpop.f32.mrb[0].mxu0
    %2457 = vmatprep.mubr.bf16.mxu0 0
    %2458 = vmatmul.mubr.bf16.gmra.mrb[0].mxu0 %v1677
    %v2459 = vpop.f32.mrb[0].mxu0
    %v2460 = vadd.f32 0.0, %v2459
    %v2461 = vpop.f32.mrb[0].mxu0
    %v2462 = vpop.f32.mrb[0].mxu0
    %v2463 = vadd.f32 0.0, %v2462
    %v2464 = vpop.f32.mrb[0].mxu0
    %2465 = vmatprep.mubr.bf16.mxu0 0
    %2466 = vmatmul.mubr.bf16.gmra.mrb[0].mxu0 %v1680
    %v2467 = vpop.f32.mrb[0].mxu0
    %v2468 = vadd.f32 0.0, %v2467
    %v2469 = vpop.f32.mrb[0].mxu0
    %v2470 = vpop.f32.mrb[0].mxu0
    %v2471 = vadd.f32 0.0, %v2470
    %v2472 = vpop.f32.mrb[0].mxu0
    %2473 = vmatprep.mubr.bf16.mxu0 0
    %2474 = vmatmul.mubr.bf16.gmra.mrb[0].mxu0 %v1683
    %v2475 = vpop.f32.mrb[0].mxu0
    %v2476 = vadd.f32 0.0, %v2475
    %v2477 = vpop.f32.mrb[0].mxu0
    %v2478 = vpop.f32.mrb[0].mxu0
    %v2479 = vadd.f32 0.0, %v2478
    %v2480 = vpop.f32.mrb[0].mxu0
    %2481 = vmatprep.mubr.bf16.mxu0 0
    %2482 = vmatmul.mubr.bf16.gmra.mrb[0].mxu0 %v1686
    %v2483 = vpop.f32.mrb[0].mxu0
    %v2484 = vadd.f32 0.0, %v2483
    %v2485 = vpop.f32.mrb[0].mxu0
    %v2486 = vpop.f32.mrb[0].mxu0
    %v2487 = vadd.f32 0.0, %v2486
    %v2488 = vpop.f32.mrb[0].mxu0
    %2489 = vmatprep.mubr.bf16.mxu0 0
    %2490 = vmatmul.mubr.bf16.gmra.mrb[0].mxu0 %v1689
    %v2491 = vpop.f32.mrb[0].mxu0
    %v2492 = vadd.f32 0.0, %v2491
    %v2493 = vpop.f32.mrb[0].mxu0
    %v2494 = vpop.f32.mrb[0].mxu0
    %v2495 = vadd.f32 0.0, %v2494
    %v2496 = vpop.f32.mrb[0].mxu0
    %2497 = vmatprep.mubr.bf16.mxu0 0
    %2498 = vmatmul.mubr.bf16.gmra.mrb[0].mxu0 %v1692
    %v2499 = vpop.f32.mrb[0].mxu0
    %v2500 = vadd.f32 0.0, %v2499
    %v2501 = vpop.f32.mrb[0].mxu0
    %v2502 = vpop.f32.mrb[0].mxu0
    %v2503 = vadd.f32 0.0, %v2502
    %v2504 = vpop.f32.mrb[0].mxu0
    %2505 = vmatprep.mubr.bf16.mxu0 0
    %2506 = vmatmul.mubr.bf16.gmra.mrb[0].mxu0 %v1695
    %v2507 = vpop.f32.mrb[0].mxu0
    %v2508 = vadd.f32 0.0, %v2507
    %v2509 = vpop.f32.mrb[0].mxu0
    %v2510 = vpop.f32.mrb[0].mxu0
    %v2511 = vadd.f32 0.0, %v2510
    %v2512 = vpop.f32.mrb[0].mxu0
    %2513 = vmatprep.mubr.bf16.mxu0 0
    %2514 = vmatmul.mubr.bf16.gmra.mrb[0].mxu0 %v1698
    %v2515 = vpop.f32.mrb[0].mxu0
    %v2516 = vadd.f32 0.0, %v2515
    %v2517 = vpop.f32.mrb[0].mxu0
    %v2518 = vpop.f32.mrb[0].mxu0
    %v2519 = vadd.f32 0.0, %v2518
    %v2520 = vpop.f32.mrb[0].mxu0
    %2521 = vmatprep.mubr.bf16.mxu0 0
    %2522 = vmatmul.mubr.bf16.gmra.mrb[0].mxu0 %v1701
    %v2523 = vpop.f32.mrb[0].mxu0
    %v2524 = vadd.f32 0.0, %v2523
    %v2525 = vpop.f32.mrb[0].mxu0
    %v2526 = vpop.f32.mrb[0].mxu0
    %v2527 = vadd.f32 0.0, %v2526
    %v2528 = vpop.f32.mrb[0].mxu0
    %2529 = vmatprep.mubr.bf16.mxu0 0
    %2530 = vmatmul.mubr.bf16.gmra.mrb[0].mxu0 %v1704
    %v2531 = vpop.f32.mrb[0].mxu0
    %v2532 = vadd.f32 0.0, %v2531
    %v2533 = vpop.f32.mrb[0].mxu0
    %v2534 = vpop.f32.mrb[0].mxu0
    %v2535 = vadd.f32 0.0, %v2534
    %v2536 = vpop.f32.mrb[0].mxu0
    %2537 = vmatprep.mubr.bf16.mxu0 0
    %2538 = vmatmul.mubr.bf16.gmra.mrb[0].mxu0 %v1707
    %v2539 = vpop.f32.mrb[0].mxu0
    %v2540 = vadd.f32 0.0, %v2539
    %v2541 = vpop.f32.mrb[0].mxu0
    %v2542 = vpop.f32.mrb[0].mxu0
    %v2543 = vadd.f32 0.0, %v2542
    %v2544 = vpop.f32.mrb[0].mxu0
    %2545 = vmatprep.mubr.bf16.mxu0 0
    %2546 = vmatmul.mubr.bf16.gmra.mrb[0].mxu0 %v1710
    %v2547 = vpop.f32.mrb[0].mxu0
    %v2548 = vadd.f32 0.0, %v2547
    %v2549 = vpop.f32.mrb[0].mxu0
    %v2550 = vpop.f32.mrb[0].mxu0
    %v2551 = vadd.f32 0.0, %v2550
    %v2552 = vpop.f32.mrb[0].mxu0
    %2553 = vmatprep.mubr.bf16.mxu0 0
    %2554 = vmatmul.mubr.bf16.gmra.mrb[0].mxu0 %v1713
    %v2555 = vpop.f32.mrb[0].mxu0
    %v2556 = vadd.f32 0.0, %v2555
    %v2557 = vpop.f32.mrb[0].mxu0
    %v2558 = vpop.f32.mrb[0].mxu0
    %v2559 = vadd.f32 0.0, %v2558
    %v2560 = vpop.f32.mrb[0].mxu0
    %2561 = vmatprep.mubr.bf16.mxu0 0
    %2562 = vmatmul.mubr.bf16.gmra.mrb[0].mxu0 %v1716
    %v2563 = vpop.f32.mrb[0].mxu0
    %v2564 = vadd.f32 0.0, %v2563
    %v2565 = vpop.f32.mrb[0].mxu0
    %v2566 = vpop.f32.mrb[0].mxu0
    %v2567 = vadd.f32 0.0, %v2566
    %v2568 = vpop.f32.mrb[0].mxu0
    %2569 = vmatprep.mubr.bf16.mxu0 0
    %2570 = vmatmul.mubr.bf16.gmra.mrb[0].mxu0 %v1719
    %v2571 = vpop.f32.mrb[0].mxu0
    %v2572 = vadd.f32 0.0, %v2571
    %v2573 = vpop.f32.mrb[0].mxu0
    %v2574 = vpop.f32.mrb[0].mxu0
    %v2575 = vadd.f32 0.0, %v2574
    %v2576 = vpop.f32.mrb[0].mxu0
    %2577 = vmatprep.mubr.bf16.mxu0 0
    %2578 = vmatmul.mubr.bf16.gmra.mrb[0].mxu0 %v1722
    %v2579 = vpop.f32.mrb[0].mxu0
    %v2580 = vadd.f32 0.0, %v2579
    %v2581 = vpop.f32.mrb[0].mxu0
    %v2582 = vpop.f32.mrb[0].mxu0
    %v2583 = vadd.f32 0.0, %v2582
    %v2584 = vpop.f32.mrb[0].mxu0
    %2585 = vmatprep.mubr.bf16.mxu0 0
    %2586 = vmatmul.mubr.bf16.gmra.mrb[0].mxu0 %v1725
    %v2587 = vpop.f32.mrb[0].mxu0
    %v2588 = vadd.f32 0.0, %v2587
    %v2589 = vpop.f32.mrb[0].mxu0
    %v2590 = vpop.f32.mrb[0].mxu0
    %v2591 = vadd.f32 0.0, %v2590
    %v2592 = vpop.f32.mrb[0].mxu0
    %2593 = vmatprep.mubr.bf16.mxu0 0
    %2594 = vmatmul.mubr.bf16.gmra.mrb[0].mxu0 %v1728
    %v2595 = vpop.f32.mrb[0].mxu0
    %v2596 = vadd.f32 0.0, %v2595
    %v2597 = vpop.f32.mrb[0].mxu0
    %v2598 = vpop.f32.mrb[0].mxu0
    %v2599 = vadd.f32 0.0, %v2598
    %v2600 = vpop.f32.mrb[0].mxu0
    %2601 = vmatprep.mubr.bf16.mxu0 0
    %2602 = vmatmul.mubr.bf16.gmra.mrb[0].mxu0 %v1731
    %v2603 = vpop.f32.mrb[0].mxu0
    %v2604 = vadd.f32 0.0, %v2603
    %v2605 = vpop.f32.mrb[0].mxu0
    %v2606 = vpop.f32.mrb[0].mxu0
    %v2607 = vadd.f32 0.0, %v2606
    %v2608 = vpop.f32.mrb[0].mxu0
    %2609 = vmatprep.mubr.bf16.mxu0 0
    %2610 = vmatmul.mubr.bf16.gmra.mrb[0].mxu0 %v1734
    %v2611 = vpop.f32.mrb[0].mxu0
    %v2612 = vadd.f32 0.0, %v2611
    %v2613 = vpop.f32.mrb[0].mxu0
    %v2614 = vpop.f32.mrb[0].mxu0
    %v2615 = vadd.f32 0.0, %v2614
    %v2616 = vpop.f32.mrb[0].mxu0
    %2617 = vmatprep.mubr.bf16.mxu0 0
    %2618 = vmatmul.mubr.bf16.gmra.mrb[0].mxu0 %v1737
    %v2619 = vpop.f32.mrb[0].mxu0
    %v2620 = vadd.f32 0.0, %v2619
    %v2621 = vpop.f32.mrb[0].mxu0
    %v2622 = vpop.f32.mrb[0].mxu0
    %v2623 = vadd.f32 0.0, %v2622
    %v2624 = vpop.f32.mrb[0].mxu0
    %2625 = vmatprep.mubr.bf16.mxu0 0
    %2626 = vmatmul.mubr.bf16.gmra.mrb[0].mxu0 %v1740
    %v2627 = vpop.f32.mrb[0].mxu0
    %v2628 = vadd.f32 0.0, %v2627
    %v2629 = vpop.f32.mrb[0].mxu0
    %v2630 = vpop.f32.mrb[0].mxu0
    %v2631 = vadd.f32 0.0, %v2630
    %v2632 = vpop.f32.mrb[0].mxu0
    %2633 = vmatprep.mubr.bf16.mxu0 0
    %2634 = vmatmul.mubr.bf16.gmra.mrb[0].mxu0 %v1743
    %v2635 = vpop.f32.mrb[0].mxu0
    %v2636 = vadd.f32 0.0, %v2635
    %v2637 = vpop.f32.mrb[0].mxu0
    %v2638 = vpop.f32.mrb[0].mxu0
    %v2639 = vadd.f32 0.0, %v2638
    %v2640 = vpop.f32.mrb[0].mxu0
    %2641 = vmatprep.mubr.bf16.mxu0 0
    %2642 = vmatmul.mubr.bf16.gmra.mrb[0].mxu0 %v1746
    %v2643 = vpop.f32.mrb[0].mxu0
    %v2644 = vadd.f32 0.0, %v2643
    %v2645 = vpop.f32.mrb[0].mxu0
    %v2646 = vpop.f32.mrb[0].mxu0
    %v2647 = vadd.f32 0.0, %v2646
    %v2648 = vpop.f32.mrb[0].mxu0
    %2649 = vmatprep.mubr.bf16.mxu0 0
    %2650 = vmatmul.mubr.bf16.gmra.mrb[0].mxu0 %v1749
    %v2651 = vpop.f32.mrb[0].mxu0
    %v2652 = vadd.f32 0.0, %v2651
    %v2653 = vpop.f32.mrb[0].mxu0
    %v2654 = vpop.f32.mrb[0].mxu0
    %v2655 = vadd.f32 0.0, %v2654
    %v2656 = vpop.f32.mrb[0].mxu0
    %2657 = vmatprep.mubr.bf16.mxu0 0
    %2658 = vmatmul.mubr.bf16.gmra.mrb[0].mxu0 %v1752
    %v2659 = vpop.f32.mrb[0].mxu0
    %v2660 = vadd.f32 0.0, %v2659
    %v2661 = vpop.f32.mrb[0].mxu0
    %v2662 = vpop.f32.mrb[0].mxu0
    %v2663 = vadd.f32 0.0, %v2662
    %v2664 = vpop.f32.mrb[0].mxu0
    %2665 = vmatprep.mubr.bf16.mxu0 0
    %2666 = vmatmul.mubr.bf16.gmra.mrb[0].mxu0 %v1755
    %v2667 = vpop.f32.mrb[0].mxu0
    %v2668 = vadd.f32 0.0, %v2667
    %v2669 = vpop.f32.mrb[0].mxu0
    %v2670 = vpop.f32.mrb[0].mxu0
    %v2671 = vadd.f32 0.0, %v2670
    %v2672 = vpop.f32.mrb[0].mxu0
    %2673 = vmatprep.mubr.bf16.mxu0 0
    %2674 = vmatmul.mubr.bf16.gmra.mrb[0].mxu0 %v1758
    %v2675 = vpop.f32.mrb[0].mxu0
    %v2676 = vadd.f32 0.0, %v2675
    %v2677 = vpop.f32.mrb[0].mxu0
    %v2678 = vpop.f32.mrb[0].mxu0
    %v2679 = vadd.f32 0.0, %v2678
    %v2680 = vpop.f32.mrb[0].mxu0
    %2681 = vmatprep.mubr.bf16.mxu0 0
    %2682 = vmatmul.mubr.bf16.gmra.mrb[0].mxu0 %v1761
    %v2683 = vpop.f32.mrb[0].mxu0
    %v2684 = vadd.f32 0.0, %v2683
    %v2685 = vpop.f32.mrb[0].mxu0
    %v2686 = vpop.f32.mrb[0].mxu0
    %v2687 = vadd.f32 0.0, %v2686
    %v2688 = vpop.f32.mrb[0].mxu0
    %2689 = vmatprep.mubr.bf16.mxu0 0
    %2690 = vmatmul.mubr.bf16.gmra.mrb[0].mxu0 %v1764
    %v2691 = vpop.f32.mrb[0].mxu0
    %v2692 = vadd.f32 0.0, %v2691
    %v2693 = vpop.f32.mrb[0].mxu0
    %v2694 = vpop.f32.mrb[0].mxu0
    %v2695 = vadd.f32 0.0, %v2694
    %v2696 = vpop.f32.mrb[0].mxu0
    %2697 = vmatprep.mubr.bf16.mxu0 0
    %2698 = vmatmul.mubr.bf16.gmra.mrb[0].mxu0 %v1767
    %v2699 = vpop.f32.mrb[0].mxu0
    %v2700 = vadd.f32 0.0, %v2699
    %v2701 = vpop.f32.mrb[0].mxu0
    %v2702 = vpop.f32.mrb[0].mxu0
    %v2703 = vadd.f32 0.0, %v2702
    %v2704 = vpop.f32.mrb[0].mxu0
    %2705 = vmatprep.mubr.bf16.mxu0 0
    %2706 = vmatmul.mubr.bf16.gmra.mrb[0].mxu0 %v1770
    %v2707 = vpop.f32.mrb[0].mxu0
    %v2708 = vadd.f32 0.0, %v2707
    %v2709 = vpop.f32.mrb[0].mxu0
    %v2710 = vpop.f32.mrb[0].mxu0
    %v2711 = vadd.f32 0.0, %v2710
    %v2712 = vpop.f32.mrb[0].mxu0
    %2713 = vmatprep.mubr.bf16.mxu0 0
    %2714 = vmatmul.mubr.bf16.gmra.mrb[0].mxu0 %v1773
    %v2715 = vpop.f32.mrb[0].mxu0
    %v2716 = vadd.f32 0.0, %v2715
    %v2717 = vpop.f32.mrb[0].mxu0
    %v2718 = vpop.f32.mrb[0].mxu0
    %v2719 = vadd.f32 0.0, %v2718
    %v2720 = vpop.f32.mrb[0].mxu0
    %2721 = vmatprep.mubr.bf16.mxu0 0
    %2722 = vmatmul.mubr.bf16.gmra.mrb[0].mxu0 %v1776
    %v2723 = vpop.f32.mrb[0].mxu0
    %v2724 = vadd.f32 0.0, %v2723
    %v2725 = vpop.f32.mrb[0].mxu0
    %v2726 = vpop.f32.mrb[0].mxu0
    %v2727 = vadd.f32 0.0, %v2726
    %v2728 = vpop.f32.mrb[0].mxu0
    %2729 = vmatprep.mubr.bf16.mxu0 0
    %2730 = vmatmul.mubr.bf16.gmra.mrb[0].mxu0 %v1779
    %v2731 = vpop.f32.mrb[0].mxu0
    %v2732 = vadd.f32 0.0, %v2731
    %v2733 = vpop.f32.mrb[0].mxu0
    %v2734 = vpop.f32.mrb[0].mxu0
    %v2735 = vadd.f32 0.0, %v2734
    %v2736 = vpop.f32.mrb[0].mxu0
    %2737 = vmatprep.mubr.bf16.mxu0 0
    %2738 = vmatmul.mubr.bf16.gmra.mrb[0].mxu0 %v1782
    %v2739 = vpop.f32.mrb[0].mxu0
    %v2740 = vadd.f32 0.0, %v2739
    %v2741 = vpop.f32.mrb[0].mxu0
    %v2742 = vpop.f32.mrb[0].mxu0
    %v2743 = vadd.f32 0.0, %v2742
    %v2744 = vpop.f32.mrb[0].mxu0
    %2745 = vmatprep.mubr.bf16.mxu0 0
    %2746 = vmatmul.mubr.bf16.gmra.mrb[0].mxu0 %v1785
    %v2747 = vpop.f32.mrb[0].mxu0
    %v2748 = vadd.f32 0.0, %v2747
    %v2749 = vpop.f32.mrb[0].mxu0
    %v2750 = vpop.f32.mrb[0].mxu0
    %v2751 = vadd.f32 0.0, %v2750
    %v2752 = vpop.f32.mrb[0].mxu0
    %2753 = vmatprep.mubr.bf16.mxu0 0
    %2754 = vmatmul.mubr.bf16.gmra.mrb[0].mxu0 %v1788
    %v2755 = vpop.f32.mrb[0].mxu0
    %v2756 = vadd.f32 0.0, %v2755
    %v2757 = vpop.f32.mrb[0].mxu0
    %v2758 = vpop.f32.mrb[0].mxu0
    %v2759 = vadd.f32 0.0, %v2758
    %v2760 = vpop.f32.mrb[0].mxu0
    %2761 = vmatprep.mubr.bf16.mxu0 0
    %2762 = vmatmul.mubr.bf16.gmra.mrb[0].mxu0 %v1791
    %v2763 = vpop.f32.mrb[0].mxu0
    %v2764 = vadd.f32 0.0, %v2763
    %v2765 = vpop.f32.mrb[0].mxu0
    %v2766 = vpop.f32.mrb[0].mxu0
    %v2767 = vadd.f32 0.0, %v2766
    %v2768 = vpop.f32.mrb[0].mxu0
    %2769 = vmatprep.mubr.bf16.mxu0 0
    %2770 = vmatmul.mubr.bf16.gmra.mrb[0].mxu0 %v1794
    %v2771 = vpop.f32.mrb[0].mxu0
    %v2772 = vadd.f32 0.0, %v2771
    %v2773 = vpop.f32.mrb[0].mxu0
    %v2774 = vpop.f32.mrb[0].mxu0
    %v2775 = vadd.f32 0.0, %v2774
    %v2776 = vpop.f32.mrb[0].mxu0
    %2777 = vmatprep.mubr.bf16.mxu0 0
    %2778 = vmatmul.mubr.bf16.gmra.mrb[0].mxu0 %v1797
    %v2779 = vpop.f32.mrb[0].mxu0
    %v2780 = vadd.f32 0.0, %v2779
    %v2781 = vpop.f32.mrb[0].mxu0
    %v2782 = vpop.f32.mrb[0].mxu0
    %v2783 = vadd.f32 0.0, %v2782
    %v2784 = vpop.f32.mrb[0].mxu0
    %2785 = vmatprep.mubr.bf16.mxu0 0
    %2786 = vmatmul.mubr.bf16.gmra.mrb[0].mxu0 %v1800
    %v2787 = vpop.f32.mrb[0].mxu0
    %v2788 = vadd.f32 0.0, %v2787
    %v2789 = vpop.f32.mrb[0].mxu0
    %v2790 = vpop.f32.mrb[0].mxu0
    %v2791 = vadd.f32 0.0, %v2790
    %v2792 = vpop.f32.mrb[0].mxu0
    %2793 = vmatprep.mubr.bf16.mxu0 0
    %2794 = vmatmul.mubr.bf16.gmra.mrb[0].mxu0 %v1803
    %v2795 = vpop.f32.mrb[0].mxu0
    %v2796 = vadd.f32 0.0, %v2795
    %v2797 = vpop.f32.mrb[0].mxu0
    %v2798 = vpop.f32.mrb[0].mxu0
    %v2799 = vadd.f32 0.0, %v2798
    %v2800 = vpop.f32.mrb[0].mxu0
    %2801 = vmatprep.mubr.bf16.mxu0 0
    %2802 = vmatmul.mubr.bf16.gmra.mrb[0].mxu0 %v1806
    %v2803 = vpop.f32.mrb[0].mxu0
    %v2804 = vadd.f32 0.0, %v2803
    %v2805 = vpop.f32.mrb[0].mxu0
    %v2806 = vpop.f32.mrb[0].mxu0
    %v2807 = vadd.f32 0.0, %v2806
    %v2808 = vpop.f32.mrb[0].mxu0
    %2809 = vmatprep.mubr.bf16.mxu0 0
    %2810 = vmatmul.mubr.bf16.gmra.mrb[0].mxu0 %v1809
    %v2811 = vpop.f32.mrb[0].mxu0
    %v2812 = vadd.f32 0.0, %v2811
    %v2813 = vpop.f32.mrb[0].mxu0
    %v2814 = vpop.f32.mrb[0].mxu0
    %v2815 = vadd.f32 0.0, %v2814
    %v2816 = vpop.f32.mrb[0].mxu0
    %2817 = vmatprep.mubr.bf16.mxu0 0
    %2818 = vmatmul.mubr.bf16.gmra.mrb[0].mxu0 %v1812
    %v2819 = vpop.f32.mrb[0].mxu0
    %v2820 = vadd.f32 0.0, %v2819
    %v2821 = vpop.f32.mrb[0].mxu0
    %v2822 = vpop.f32.mrb[0].mxu0
    %v2823 = vadd.f32 0.0, %v2822
    %v2824 = vpop.f32.mrb[0].mxu0
    %2825 = vmatprep.mubr.bf16.mxu0 0
    %2826 = vmatmul.mubr.bf16.gmra.mrb[0].mxu0 %v1815
    %v2827 = vpop.f32.mrb[0].mxu0
    %v2828 = vadd.f32 0.0, %v2827
    %v2829 = vpop.f32.mrb[0].mxu0
    %v2830 = vpop.f32.mrb[0].mxu0
    %v2831 = vadd.f32 0.0, %v2830
    %v2832 = vpop.f32.mrb[0].mxu0
    %2833 = vmatprep.mubr.bf16.mxu0 0
    %2834 = vmatmul.mubr.bf16.gmra.mrb[0].mxu0 %v1818
    %v2835 = vpop.f32.mrb[0].mxu0
    %v2836 = vadd.f32 0.0, %v2835
    %v2837 = vpop.f32.mrb[0].mxu0
    %v2838 = vpop.f32.mrb[0].mxu0
    %v2839 = vadd.f32 0.0, %v2838
    %v2840 = vpop.f32.mrb[0].mxu0
    %2841 = vmatprep.mubr.bf16.mxu0 0
    %2842 = vmatmul.mubr.bf16.gmra.mrb[0].mxu0 %v1821
    %v2843 = vpop.f32.mrb[0].mxu0
    %v2844 = vadd.f32 0.0, %v2843
    %v2845 = vpop.f32.mrb[0].mxu0
    %v2846 = vpop.f32.mrb[0].mxu0
    %v2847 = vadd.f32 0.0, %v2846
    %v2848 = vpop.f32.mrb[0].mxu0
    %2849 = vmatprep.mubr.bf16.mxu0 0
    %2850 = vmatmul.mubr.bf16.gmra.mrb[0].mxu0 %v1824
    %v2851 = vpop.f32.mrb[0].mxu0
    %v2852 = vadd.f32 0.0, %v2851
    %v2853 = vpop.f32.mrb[0].mxu0
    %v2854 = vpop.f32.mrb[0].mxu0
    %v2855 = vadd.f32 0.0, %v2854
    %v2856 = vpop.f32.mrb[0].mxu0
    %2857 = vmatprep.mubr.bf16.mxu0 0
    %2858 = vmatmul.mubr.bf16.gmra.mrb[0].mxu0 %v1827
    %v2859 = vpop.f32.mrb[0].mxu0
    %v2860 = vadd.f32 0.0, %v2859
    %v2861 = vpop.f32.mrb[0].mxu0
    %v2862 = vpop.f32.mrb[0].mxu0
    %v2863 = vadd.f32 0.0, %v2862
    %v2864 = vpop.f32.mrb[0].mxu0
    %2865 = vmatprep.mubr.bf16.mxu0 0
    %2866 = vmatmul.mubr.bf16.gmra.mrb[0].mxu0 %v1830
    %v2867 = vpop.f32.mrb[0].mxu0
    %v2868 = vadd.f32 0.0, %v2867
    %v2869 = vpop.f32.mrb[0].mxu0
    %v2870 = vpop.f32.mrb[0].mxu0
    %v2871 = vadd.f32 0.0, %v2870
    %v2872 = vpop.f32.mrb[0].mxu0
    %2873 = vmatprep.mubr.bf16.mxu0 0
    %2874 = vmatmul.mubr.bf16.gmra.mrb[0].mxu0 %v1833
    %v2875 = vpop.f32.mrb[0].mxu0
    %v2876 = vadd.f32 0.0, %v2875
    %v2877 = vpop.f32.mrb[0].mxu0
    %v2878 = vpop.f32.mrb[0].mxu0
    %v2879 = vadd.f32 0.0, %v2878
    %v2880 = vpop.f32.mrb[0].mxu0
    %2881 = vmatprep.mubr.bf16.mxu0 0
    %2882 = vmatmul.mubr.bf16.gmra.mrb[0].mxu0 %v1836
    %v2883 = vpop.f32.mrb[0].mxu0
    %v2884 = vadd.f32 0.0, %v2883
    %v2885 = vpop.f32.mrb[0].mxu0
    %v2886 = vpop.f32.mrb[0].mxu0
    %v2887 = vadd.f32 0.0, %v2886
    %v2888 = vpop.f32.mrb[0].mxu0
    %2889 = vmatprep.mubr.bf16.mxu0 0
    %2890 = vmatmul.mubr.bf16.gmra.mrb[0].mxu0 %v1839
    %v2891 = vpop.f32.mrb[0].mxu0
    %v2892 = vadd.f32 0.0, %v2891
    %v2893 = vpop.f32.mrb[0].mxu0
    %v2894 = vpop.f32.mrb[0].mxu0
    %v2895 = vadd.f32 0.0, %v2894
    %v2896 = vpop.f32.mrb[0].mxu0
    %2897 = vdwg.mxu0
    %v2898 = vadd.f32 %v296, %v1876
    %v2899 = vadd.f32 %v297, %v1879
    %v2900 = vadd.f32 %v298, %v1884
    %v2901 = vadd.f32 %v299, %v1887
    %v2902 = vadd.f32 %v300, %v1892
    %v2903 = vadd.f32 %v301, %v1895
    %v2904 = vadd.f32 %v302, %v1900
    %v2905 = vadd.f32 %v303, %v1903
    %v2906 = vadd.f32 %v304, %v1908
    %v2907 = vadd.f32 %v305, %v1911
    %v2908 = vadd.f32 %v306, %v1916
    %v2909 = vadd.f32 %v307, %v1919
    %v2910 = vadd.f32 %v308, %v1924
    %v2911 = vadd.f32 %v309, %v1927
    %v2912 = vadd.f32 %v310, %v1932
    %v2913 = vadd.f32 %v311, %v1935
    %v2914 = vadd.f32 %v312, %v1940
    %v2915 = vadd.f32 %v313, %v1943
    %v2916 = vadd.f32 %v314, %v1948
    %v2917 = vadd.f32 %v315, %v1951
    %v2918 = vadd.f32 %v316, %v1956
    %v2919 = vadd.f32 %v317, %v1959
    %v2920 = vadd.f32 %v318, %v1964
    %v2921 = vadd.f32 %v319, %v1967
    %v2922 = vadd.f32 %v320, %v1972
    %v2923 = vadd.f32 %v321, %v1975
    %v2924 = vadd.f32 %v322, %v1980
    %v2925 = vadd.f32 %v323, %v1983
    %v2926 = vadd.f32 %v324, %v1988
    %v2927 = vadd.f32 %v325, %v1991
    %v2928 = vadd.f32 %v326, %v1996
    %v2929 = vadd.f32 %v327, %v1999
    %v2930 = vadd.f32 %v328, %v2004
    %v2931 = vadd.f32 %v329, %v2007
    %v2932 = vadd.f32 %v330, %v2012
    %v2933 = vadd.f32 %v331, %v2015
    %v2934 = vadd.f32 %v332, %v2020
    %v2935 = vadd.f32 %v333, %v2023
    %v2936 = vadd.f32 %v334, %v2028
    %v2937 = vadd.f32 %v335, %v2031
    %v2938 = vadd.f32 %v336, %v2036
    %v2939 = vadd.f32 %v337, %v2039
    %v2940 = vadd.f32 %v338, %v2044
    %v2941 = vadd.f32 %v339, %v2047
    %v2942 = vadd.f32 %v340, %v2052
    %v2943 = vadd.f32 %v341, %v2055
    %v2944 = vadd.f32 %v342, %v2060
    %v2945 = vadd.f32 %v343, %v2063
    %v2946 = vadd.f32 %v344, %v2068
    %v2947 = vadd.f32 %v345, %v2071
    %v2948 = vadd.f32 %v346, %v2076
    %v2949 = vadd.f32 %v347, %v2079
    %v2950 = vadd.f32 %v348, %v2084
    %v2951 = vadd.f32 %v349, %v2087
    %v2952 = vadd.f32 %v350, %v2092
    %v2953 = vadd.f32 %v351, %v2095
    %v2954 = vadd.f32 %v352, %v2100
    %v2955 = vadd.f32 %v353, %v2103
    %v2956 = vadd.f32 %v354, %v2108
    %v2957 = vadd.f32 %v355, %v2111
    %v2958 = vadd.f32 %v356, %v2116
    %v2959 = vadd.f32 %v357, %v2119
    %v2960 = vadd.f32 %v358, %v2124
    %v2961 = vadd.f32 %v359, %v2127
    %v2962 = vadd.f32 %v360, %v2132
    %v2963 = vadd.f32 %v361, %v2135
    %v2964 = vadd.f32 %v362, %v2140
    %v2965 = vadd.f32 %v363, %v2143
    %v2966 = vadd.f32 %v364, %v2148
    %v2967 = vadd.f32 %v365, %v2151
    %v2968 = vadd.f32 %v366, %v2156
    %v2969 = vadd.f32 %v367, %v2159
    %v2970 = vadd.f32 %v368, %v2164
    %v2971 = vadd.f32 %v369, %v2167
    %v2972 = vadd.f32 %v370, %v2172
    %v2973 = vadd.f32 %v371, %v2175
    %v2974 = vadd.f32 %v372, %v2180
    %v2975 = vadd.f32 %v373, %v2183
    %v2976 = vadd.f32 %v374, %v2188
    %v2977 = vadd.f32 %v375, %v2191
    %v2978 = vadd.f32 %v376, %v2196
    %v2979 = vadd.f32 %v377, %v2199
    %v2980 = vadd.f32 %v378, %v2204
    %v2981 = vadd.f32 %v379, %v2207
    %v2982 = vadd.f32 %v380, %v2212
    %v2983 = vadd.f32 %v381, %v2215
    %v2984 = vadd.f32 %v382, %v2220
    %v2985 = vadd.f32 %v383, %v2223
    %v2986 = vadd.f32 %v384, %v2228
    %v2987 = vadd.f32 %v385, %v2231
    %v2988 = vadd.f32 %v386, %v2236
    %v2989 = vadd.f32 %v387, %v2239
    %v2990 = vadd.f32 %v388, %v2244
    %v2991 = vadd.f32 %v389, %v2247
    %v2992 = vadd.f32 %v390, %v2252
    %v2993 = vadd.f32 %v391, %v2255
    %v2994 = vadd.f32 %v392, %v2260
    %v2995 = vadd.f32 %v393, %v2263
    %v2996 = vadd.f32 %v394, %v2268
    %v2997 = vadd.f32 %v395, %v2271
    %v2998 = vadd.f32 %v396, %v2276
    %v2999 = vadd.f32 %v397, %v2279
    %v3000 = vadd.f32 %v398, %v2284
    %v3001 = vadd.f32 %v399, %v2287
    %v3002 = vadd.f32 %v400, %v2292
    %v3003 = vadd.f32 %v401, %v2295
    %v3004 = vadd.f32 %v402, %v2300
    %v3005 = vadd.f32 %v403, %v2303
    %v3006 = vadd.f32 %v404, %v2308
    %v3007 = vadd.f32 %v405, %v2311
    %v3008 = vadd.f32 %v406, %v2316
    %v3009 = vadd.f32 %v407, %v2319
    %v3010 = vadd.f32 %v408, %v2324
    %v3011 = vadd.f32 %v409, %v2327
    %v3012 = vadd.f32 %v410, %v2332
    %v3013 = vadd.f32 %v411, %v2335
    %v3014 = vadd.f32 %v412, %v2340
    %v3015 = vadd.f32 %v413, %v2343
    %v3016 = vadd.f32 %v414, %v2348
    %v3017 = vadd.f32 %v415, %v2351
    %v3018 = vadd.f32 %v416, %v2356
    %v3019 = vadd.f32 %v417, %v2359
    %v3020 = vadd.f32 %v418, %v2364
    %v3021 = vadd.f32 %v419, %v2367
    %v3022 = vadd.f32 %v420, %v2372
    %v3023 = vadd.f32 %v421, %v2375
    %v3024 = vadd.f32 %v422, %v2380
    %v3025 = vadd.f32 %v423, %v2383
    %v3026 = vadd.f32 %v424, %v2388
    %v3027 = vadd.f32 %v425, %v2391
    %v3028 = vadd.f32 %v426, %v2396
    %v3029 = vadd.f32 %v427, %v2399
    %v3030 = vadd.f32 %v428, %v2404
    %v3031 = vadd.f32 %v429, %v2407
    %v3032 = vadd.f32 %v430, %v2412
    %v3033 = vadd.f32 %v431, %v2415
    %v3034 = vadd.f32 %v432, %v2420
    %v3035 = vadd.f32 %v433, %v2423
    %v3036 = vadd.f32 %v434, %v2428
    %v3037 = vadd.f32 %v435, %v2431
    %v3038 = vadd.f32 %v436, %v2436
    %v3039 = vadd.f32 %v437, %v2439
    %v3040 = vadd.f32 %v438, %v2444
    %v3041 = vadd.f32 %v439, %v2447
    %v3042 = vadd.f32 %v440, %v2452
    %v3043 = vadd.f32 %v441, %v2455
    %v3044 = vadd.f32 %v442, %v2460
    %v3045 = vadd.f32 %v443, %v2463
    %v3046 = vadd.f32 %v444, %v2468
    %v3047 = vadd.f32 %v445, %v2471
    %v3048 = vadd.f32 %v446, %v2476
    %v3049 = vadd.f32 %v447, %v2479
    %v3050 = vadd.f32 %v448, %v2484
    %v3051 = vadd.f32 %v449, %v2487
    %v3052 = vadd.f32 %v450, %v2492
    %v3053 = vadd.f32 %v451, %v2495
    %v3054 = vadd.f32 %v452, %v2500
    %v3055 = vadd.f32 %v453, %v2503
    %v3056 = vadd.f32 %v454, %v2508
    %v3057 = vadd.f32 %v455, %v2511
    %v3058 = vadd.f32 %v456, %v2516
    %v3059 = vadd.f32 %v457, %v2519
    %v3060 = vadd.f32 %v458, %v2524
    %v3061 = vadd.f32 %v459, %v2527
    %v3062 = vadd.f32 %v460, %v2532
    %v3063 = vadd.f32 %v461, %v2535
    %v3064 = vadd.f32 %v462, %v2540
    %v3065 = vadd.f32 %v463, %v2543
    %v3066 = vadd.f32 %v464, %v2548
    %v3067 = vadd.f32 %v465, %v2551
    %v3068 = vadd.f32 %v466, %v2556
    %v3069 = vadd.f32 %v467, %v2559
    %v3070 = vadd.f32 %v468, %v2564
    %v3071 = vadd.f32 %v469, %v2567
    %v3072 = vadd.f32 %v470, %v2572
    %v3073 = vadd.f32 %v471, %v2575
    %v3074 = vadd.f32 %v472, %v2580
    %v3075 = vadd.f32 %v473, %v2583
    %v3076 = vadd.f32 %v474, %v2588
    %v3077 = vadd.f32 %v475, %v2591
    %v3078 = vadd.f32 %v476, %v2596
    %v3079 = vadd.f32 %v477, %v2599
    %v3080 = vadd.f32 %v478, %v2604
    %v3081 = vadd.f32 %v479, %v2607
    %v3082 = vadd.f32 %v480, %v2612
    %v3083 = vadd.f32 %v481, %v2615
    %v3084 = vadd.f32 %v482, %v2620
    %v3085 = vadd.f32 %v483, %v2623
    %v3086 = vadd.f32 %v484, %v2628
    %v3087 = vadd.f32 %v485, %v2631
    %v3088 = vadd.f32 %v486, %v2636
    %v3089 = vadd.f32 %v487, %v2639
    %v3090 = vadd.f32 %v488, %v2644
    %v3091 = vadd.f32 %v489, %v2647
    %v3092 = vadd.f32 %v490, %v2652
    %v3093 = vadd.f32 %v491, %v2655
    %v3094 = vadd.f32 %v492, %v2660
    %v3095 = vadd.f32 %v493, %v2663
    %v3096 = vadd.f32 %v494, %v2668
    %v3097 = vadd.f32 %v495, %v2671
    %v3098 = vadd.f32 %v496, %v2676
    %v3099 = vadd.f32 %v497, %v2679
    %v3100 = vadd.f32 %v498, %v2684
    %v3101 = vadd.f32 %v499, %v2687
    %v3102 = vadd.f32 %v500, %v2692
    %v3103 = vadd.f32 %v501, %v2695
    %v3104 = vadd.f32 %v502, %v2700
    %v3105 = vadd.f32 %v503, %v2703
    %v3106 = vadd.f32 %v504, %v2708
    %v3107 = vadd.f32 %v505, %v2711
    %v3108 = vadd.f32 %v506, %v2716
    %v3109 = vadd.f32 %v507, %v2719
    %v3110 = vadd.f32 %v508, %v2724
    %v3111 = vadd.f32 %v509, %v2727
    %v3112 = vadd.f32 %v510, %v2732
    %v3113 = vadd.f32 %v511, %v2735
    %v3114 = vadd.f32 %v512, %v2740
    %v3115 = vadd.f32 %v513, %v2743
    %v3116 = vadd.f32 %v514, %v2748
    %v3117 = vadd.f32 %v515, %v2751
    %v3118 = vadd.f32 %v516, %v2756
    %v3119 = vadd.f32 %v517, %v2759
    %v3120 = vadd.f32 %v518, %v2764
    %v3121 = vadd.f32 %v519, %v2767
    %v3122 = vadd.f32 %v520, %v2772
    %v3123 = vadd.f32 %v521, %v2775
    %v3124 = vadd.f32 %v522, %v2780
    %v3125 = vadd.f32 %v523, %v2783
    %v3126 = vadd.f32 %v524, %v2788
    %v3127 = vadd.f32 %v525, %v2791
    %v3128 = vadd.f32 %v526, %v2796
    %v3129 = vadd.f32 %v527, %v2799
    %v3130 = vadd.f32 %v528, %v2804
    %v3131 = vadd.f32 %v529, %v2807
    %v3132 = vadd.f32 %v530, %v2812
    %v3133 = vadd.f32 %v531, %v2815
    %v3134 = vadd.f32 %v532, %v2820
    %v3135 = vadd.f32 %v533, %v2823
    %v3136 = vadd.f32 %v534, %v2828
    %v3137 = vadd.f32 %v535, %v2831
    %v3138 = vadd.f32 %v536, %v2836
    %v3139 = vadd.f32 %v537, %v2839
    %v3140 = vadd.f32 %v538, %v2844
    %v3141 = vadd.f32 %v539, %v2847
    %v3142 = vadd.f32 %v540, %v2852
    %v3143 = vadd.f32 %v541, %v2855
    %v3144 = vadd.f32 %v542, %v2860
    %v3145 = vadd.f32 %v543, %v2863
    %v3146 = vadd.f32 %v544, %v2868
    %v3147 = vadd.f32 %v545, %v2871
    %v3148 = vadd.f32 %v546, %v2876
    %v3149 = vadd.f32 %v547, %v2879
    %v3150 = vadd.f32 %v548, %v2884
    %v3151 = vadd.f32 %v549, %v2887
    %v3152 = vadd.f32 %v550, %v2892
    %v3153 = vadd.f32 %v551, %v2895
    %3154 = vst [vmem:[#allocation2] sm:$0xff] %v2898
    %3155 = vst [vmem:[#allocation2 + $0x8] sm:$0xff] %v2899
    %3156 = vst [vmem:[#allocation2 + $0x10] sm:$0xff] %v2900
    %3157 = vst [vmem:[#allocation2 + $0x18] sm:$0xff] %v2901
    %3158 = vst [vmem:[#allocation2 + $0x20] sm:$0xff] %v2902
    %3159 = vst [vmem:[#allocation2 + $0x28] sm:$0xff] %v2903
    %3160 = vst [vmem:[#allocation2 + $0x30] sm:$0xff] %v2904
    %3161 = vst [vmem:[#allocation2 + $0x38] sm:$0xff] %v2905
    %3162 = vst [vmem:[#allocation2 + $0x40] sm:$0xff] %v2906
    %3163 = vst [vmem:[#allocation2 + $0x48] sm:$0xff] %v2907
    %3164 = vst [vmem:[#allocation2 + $0x50] sm:$0xff] %v2908
    %3165 = vst [vmem:[#allocation2 + $0x58] sm:$0xff] %v2909
    %3166 = vst [vmem:[#allocation2 + $0x60] sm:$0xff] %v2910
    %3167 = vst [vmem:[#allocation2 + $0x68] sm:$0xff] %v2911
    %3168 = vst [vmem:[#allocation2 + $0x70] sm:$0xff] %v2912
    %3169 = vst [vmem:[#allocation2 + $0x78] sm:$0xff] %v2913
    %3170 = vst [vmem:[#allocation2 + $0x80] sm:$0xff] %v2914
    %3171 = vst [vmem:[#allocation2 + $0x88] sm:$0xff] %v2915
    %3172 = vst [vmem:[#allocation2 + $0x90] sm:$0xff] %v2916
    %3173 = vst [vmem:[#allocation2 + $0x98] sm:$0xff] %v2917
    %3174 = vst [vmem:[#allocation2 + $0xa0] sm:$0xff] %v2918
    %3175 = vst [vmem:[#allocation2 + $0xa8] sm:$0xff] %v2919
    %3176 = vst [vmem:[#allocation2 + $0xb0] sm:$0xff] %v2920
    %3177 = vst [vmem:[#allocation2 + $0xb8] sm:$0xff] %v2921
    %3178 = vst [vmem:[#allocation2 + $0xc0] sm:$0xff] %v2922
    %3179 = vst [vmem:[#allocation2 + $0xc8] sm:$0xff] %v2923
    %3180 = vst [vmem:[#allocation2 + $0xd0] sm:$0xff] %v2924
    %3181 = vst [vmem:[#allocation2 + $0xd8] sm:$0xff] %v2925
    %3182 = vst [vmem:[#allocation2 + $0xe0] sm:$0xff] %v2926
    %3183 = vst [vmem:[#allocation2 + $0xe8] sm:$0xff] %v2927
    %3184 = vst [vmem:[#allocation2 + $0xf0] sm:$0xff] %v2928
    %3185 = vst [vmem:[#allocation2 + $0xf8] sm:$0xff] %v2929
    %3186 = vst [vmem:[#allocation2 + $0x100] sm:$0xff] %v2930
    %3187 = vst [vmem:[#allocation2 + $0x108] sm:$0xff] %v2931
    %3188 = vst [vmem:[#allocation2 + $0x110] sm:$0xff] %v2932
    %3189 = vst [vmem:[#allocation2 + $0x118] sm:$0xff] %v2933
    %3190 = vst [vmem:[#allocation2 + $0x120] sm:$0xff] %v2934
    %3191 = vst [vmem:[#allocation2 + $0x128] sm:$0xff] %v2935
    %3192 = vst [vmem:[#allocation2 + $0x130] sm:$0xff] %v2936
    %3193 = vst [vmem:[#allocation2 + $0x138] sm:$0xff] %v2937
    %3194 = vst [vmem:[#allocation2 + $0x140] sm:$0xff] %v2938
    %3195 = vst [vmem:[#allocation2 + $0x148] sm:$0xff] %v2939
    %3196 = vst [vmem:[#allocation2 + $0x150] sm:$0xff] %v2940
    %3197 = vst [vmem:[#allocation2 + $0x158] sm:$0xff] %v2941
    %3198 = vst [vmem:[#allocation2 + $0x160] sm:$0xff] %v2942
    %3199 = vst [vmem:[#allocation2 + $0x168] sm:$0xff] %v2943
    %3200 = vst [vmem:[#allocation2 + $0x170] sm:$0xff] %v2944
    %3201 = vst [vmem:[#allocation2 + $0x178] sm:$0xff] %v2945
    %3202 = vst [vmem:[#allocation2 + $0x180] sm:$0xff] %v2946
    %3203 = vst [vmem:[#allocation2 + $0x188] sm:$0xff] %v2947
    %3204 = vst [vmem:[#allocation2 + $0x190] sm:$0xff] %v2948
    %3205 = vst [vmem:[#allocation2 + $0x198] sm:$0xff] %v2949
    %3206 = vst [vmem:[#allocation2 + $0x1a0] sm:$0xff] %v2950
    %3207 = vst [vmem:[#allocation2 + $0x1a8] sm:$0xff] %v2951
    %3208 = vst [vmem:[#allocation2 + $0x1b0] sm:$0xff] %v2952
    %3209 = vst [vmem:[#allocation2 + $0x1b8] sm:$0xff] %v2953
    %3210 = vst [vmem:[#allocation2 + $0x1c0] sm:$0xff] %v2954
    %3211 = vst [vmem:[#allocation2 + $0x1c8] sm:$0xff] %v2955
    %3212 = vst [vmem:[#allocation2 + $0x1d0] sm:$0xff] %v2956
    %3213 = vst [vmem:[#allocation2 + $0x1d8] sm:$0xff] %v2957
    %3214 = vst [vmem:[#allocation2 + $0x1e0] sm:$0xff] %v2958
    %3215 = vst [vmem:[#allocation2 + $0x1e8] sm:$0xff] %v2959
    %3216 = vst [vmem:[#allocation2 + $0x1f0] sm:$0xff] %v2960
    %3217 = vst [vmem:[#allocation2 + $0x1f8] sm:$0xff] %v2961
    %3218 = vst [vmem:[#allocation2 + $0x200] sm:$0xff] %v2962
    %3219 = vst [vmem:[#allocation2 + $0x208] sm:$0xff] %v2963
    %3220 = vst [vmem:[#allocation2 + $0x210] sm:$0xff] %v2964
    %3221 = vst [vmem:[#allocation2 + $0x218] sm:$0xff] %v2965
    %3222 = vst [vmem:[#allocation2 + $0x220] sm:$0xff] %v2966
    %3223 = vst [vmem:[#allocation2 + $0x228] sm:$0xff] %v2967
    %3224 = vst [vmem:[#allocation2 + $0x230] sm:$0xff] %v2968
    %3225 = vst [vmem:[#allocation2 + $0x238] sm:$0xff] %v2969
    %3226 = vst [vmem:[#allocation2 + $0x240] sm:$0xff] %v2970
    %3227 = vst [vmem:[#allocation2 + $0x248] sm:$0xff] %v2971
    %3228 = vst [vmem:[#allocation2 + $0x250] sm:$0xff] %v2972
    %3229 = vst [vmem:[#allocation2 + $0x258] sm:$0xff] %v2973
    %3230 = vst [vmem:[#allocation2 + $0x260] sm:$0xff] %v2974
    %3231 = vst [vmem:[#allocation2 + $0x268] sm:$0xff] %v2975
    %3232 = vst [vmem:[#allocation2 + $0x270] sm:$0xff] %v2976
    %3233 = vst [vmem:[#allocation2 + $0x278] sm:$0xff] %v2977
    %3234 = vst [vmem:[#allocation2 + $0x280] sm:$0xff] %v2978
    %3235 = vst [vmem:[#allocation2 + $0x288] sm:$0xff] %v2979
    %3236 = vst [vmem:[#allocation2 + $0x290] sm:$0xff] %v2980
    %3237 = vst [vmem:[#allocation2 + $0x298] sm:$0xff] %v2981
    %3238 = vst [vmem:[#allocation2 + $0x2a0] sm:$0xff] %v2982
    %3239 = vst [vmem:[#allocation2 + $0x2a8] sm:$0xff] %v2983
    %3240 = vst [vmem:[#allocation2 + $0x2b0] sm:$0xff] %v2984
    %3241 = vst [vmem:[#allocation2 + $0x2b8] sm:$0xff] %v2985
    %3242 = vst [vmem:[#allocation2 + $0x2c0] sm:$0xff] %v2986
    %3243 = vst [vmem:[#allocation2 + $0x2c8] sm:$0xff] %v2987
    %3244 = vst [vmem:[#allocation2 + $0x2d0] sm:$0xff] %v2988
    %3245 = vst [vmem:[#allocation2 + $0x2d8] sm:$0xff] %v2989
    %3246 = vst [vmem:[#allocation2 + $0x2e0] sm:$0xff] %v2990
    %3247 = vst [vmem:[#allocation2 + $0x2e8] sm:$0xff] %v2991
    %3248 = vst [vmem:[#allocation2 + $0x2f0] sm:$0xff] %v2992
    %3249 = vst [vmem:[#allocation2 + $0x2f8] sm:$0xff] %v2993
    %3250 = vst [vmem:[#allocation2 + $0x300] sm:$0xff] %v2994
    %3251 = vst [vmem:[#allocation2 + $0x308] sm:$0xff] %v2995
    %3252 = vst [vmem:[#allocation2 + $0x310] sm:$0xff] %v2996
    %3253 = vst [vmem:[#allocation2 + $0x318] sm:$0xff] %v2997
    %3254 = vst [vmem:[#allocation2 + $0x320] sm:$0xff] %v2998
    %3255 = vst [vmem:[#allocation2 + $0x328] sm:$0xff] %v2999
    %3256 = vst [vmem:[#allocation2 + $0x330] sm:$0xff] %v3000
    %3257 = vst [vmem:[#allocation2 + $0x338] sm:$0xff] %v3001
    %3258 = vst [vmem:[#allocation2 + $0x340] sm:$0xff] %v3002
    %3259 = vst [vmem:[#allocation2 + $0x348] sm:$0xff] %v3003
    %3260 = vst [vmem:[#allocation2 + $0x350] sm:$0xff] %v3004
    %3261 = vst [vmem:[#allocation2 + $0x358] sm:$0xff] %v3005
    %3262 = vst [vmem:[#allocation2 + $0x360] sm:$0xff] %v3006
    %3263 = vst [vmem:[#allocation2 + $0x368] sm:$0xff] %v3007
    %3264 = vst [vmem:[#allocation2 + $0x370] sm:$0xff] %v3008
    %3265 = vst [vmem:[#allocation2 + $0x378] sm:$0xff] %v3009
    %3266 = vst [vmem:[#allocation2 + $0x380] sm:$0xff] %v3010
    %3267 = vst [vmem:[#allocation2 + $0x388] sm:$0xff] %v3011
    %3268 = vst [vmem:[#allocation2 + $0x390] sm:$0xff] %v3012
    %3269 = vst [vmem:[#allocation2 + $0x398] sm:$0xff] %v3013
    %3270 = vst [vmem:[#allocation2 + $0x3a0] sm:$0xff] %v3014
    %3271 = vst [vmem:[#allocation2 + $0x3a8] sm:$0xff] %v3015
    %3272 = vst [vmem:[#allocation2 + $0x3b0] sm:$0xff] %v3016
    %3273 = vst [vmem:[#allocation2 + $0x3b8] sm:$0xff] %v3017
    %3274 = vst [vmem:[#allocation2 + $0x3c0] sm:$0xff] %v3018
    %3275 = vst [vmem:[#allocation2 + $0x3c8] sm:$0xff] %v3019
    %3276 = vst [vmem:[#allocation2 + $0x3d0] sm:$0xff] %v3020
    %3277 = vst [vmem:[#allocation2 + $0x3d8] sm:$0xff] %v3021
    %3278 = vst [vmem:[#allocation2 + $0x3e0] sm:$0xff] %v3022
    %3279 = vst [vmem:[#allocation2 + $0x3e8] sm:$0xff] %v3023
    %3280 = vst [vmem:[#allocation2 + $0x3f0] sm:$0xff] %v3024
    %3281 = vst [vmem:[#allocation2 + $0x3f8] sm:$0xff] %v3025
    %3282 = vst [vmem:[#allocation2 + $0x400] sm:$0xff] %v3026
    %3283 = vst [vmem:[#allocation2 + $0x408] sm:$0xff] %v3027
    %3284 = vst [vmem:[#allocation2 + $0x410] sm:$0xff] %v3028
    %3285 = vst [vmem:[#allocation2 + $0x418] sm:$0xff] %v3029
    %3286 = vst [vmem:[#allocation2 + $0x420] sm:$0xff] %v3030
    %3287 = vst [vmem:[#allocation2 + $0x428] sm:$0xff] %v3031
    %3288 = vst [vmem:[#allocation2 + $0x430] sm:$0xff] %v3032
    %3289 = vst [vmem:[#allocation2 + $0x438] sm:$0xff] %v3033
    %3290 = vst [vmem:[#allocation2 + $0x440] sm:$0xff] %v3034
    %3291 = vst [vmem:[#allocation2 + $0x448] sm:$0xff] %v3035
    %3292 = vst [vmem:[#allocation2 + $0x450] sm:$0xff] %v3036
    %3293 = vst [vmem:[#allocation2 + $0x458] sm:$0xff] %v3037
    %3294 = vst [vmem:[#allocation2 + $0x460] sm:$0xff] %v3038
    %3295 = vst [vmem:[#allocation2 + $0x468] sm:$0xff] %v3039
    %3296 = vst [vmem:[#allocation2 + $0x470] sm:$0xff] %v3040
    %3297 = vst [vmem:[#allocation2 + $0x478] sm:$0xff] %v3041
    %3298 = vst [vmem:[#allocation2 + $0x480] sm:$0xff] %v3042
    %3299 = vst [vmem:[#allocation2 + $0x488] sm:$0xff] %v3043
    %3300 = vst [vmem:[#allocation2 + $0x490] sm:$0xff] %v3044
    %3301 = vst [vmem:[#allocation2 + $0x498] sm:$0xff] %v3045
    %3302 = vst [vmem:[#allocation2 + $0x4a0] sm:$0xff] %v3046
    %3303 = vst [vmem:[#allocation2 + $0x4a8] sm:$0xff] %v3047
    %3304 = vst [vmem:[#allocation2 + $0x4b0] sm:$0xff] %v3048
    %3305 = vst [vmem:[#allocation2 + $0x4b8] sm:$0xff] %v3049
    %3306 = vst [vmem:[#allocation2 + $0x4c0] sm:$0xff] %v3050
    %3307 = vst [vmem:[#allocation2 + $0x4c8] sm:$0xff] %v3051
    %3308 = vst [vmem:[#allocation2 + $0x4d0] sm:$0xff] %v3052
    %3309 = vst [vmem:[#allocation2 + $0x4d8] sm:$0xff] %v3053
    %3310 = vst [vmem:[#allocation2 + $0x4e0] sm:$0xff] %v3054
    %3311 = vst [vmem:[#allocation2 + $0x4e8] sm:$0xff] %v3055
    %3312 = vst [vmem:[#allocation2 + $0x4f0] sm:$0xff] %v3056
    %3313 = vst [vmem:[#allocation2 + $0x4f8] sm:$0xff] %v3057
    %3314 = vst [vmem:[#allocation2 + $0x500] sm:$0xff] %v3058
    %3315 = vst [vmem:[#allocation2 + $0x508] sm:$0xff] %v3059
    %3316 = vst [vmem:[#allocation2 + $0x510] sm:$0xff] %v3060
    %3317 = vst [vmem:[#allocation2 + $0x518] sm:$0xff] %v3061
    %3318 = vst [vmem:[#allocation2 + $0x520] sm:$0xff] %v3062
    %3319 = vst [vmem:[#allocation2 + $0x528] sm:$0xff] %v3063
    %3320 = vst [vmem:[#allocation2 + $0x530] sm:$0xff] %v3064
    %3321 = vst [vmem:[#allocation2 + $0x538] sm:$0xff] %v3065
    %3322 = vst [vmem:[#allocation2 + $0x540] sm:$0xff] %v3066
    %3323 = vst [vmem:[#allocation2 + $0x548] sm:$0xff] %v3067
    %3324 = vst [vmem:[#allocation2 + $0x550] sm:$0xff] %v3068
    %3325 = vst [vmem:[#allocation2 + $0x558] sm:$0xff] %v3069
    %3326 = vst [vmem:[#allocation2 + $0x560] sm:$0xff] %v3070
    %3327 = vst [vmem:[#allocation2 + $0x568] sm:$0xff] %v3071
    %3328 = vst [vmem:[#allocation2 + $0x570] sm:$0xff] %v3072
    %3329 = vst [vmem:[#allocation2 + $0x578] sm:$0xff] %v3073
    %3330 = vst [vmem:[#allocation2 + $0x580] sm:$0xff] %v3074
    %3331 = vst [vmem:[#allocation2 + $0x588] sm:$0xff] %v3075
    %3332 = vst [vmem:[#allocation2 + $0x590] sm:$0xff] %v3076
    %3333 = vst [vmem:[#allocation2 + $0x598] sm:$0xff] %v3077
    %3334 = vst [vmem:[#allocation2 + $0x5a0] sm:$0xff] %v3078
    %3335 = vst [vmem:[#allocation2 + $0x5a8] sm:$0xff] %v3079
    %3336 = vst [vmem:[#allocation2 + $0x5b0] sm:$0xff] %v3080
    %3337 = vst [vmem:[#allocation2 + $0x5b8] sm:$0xff] %v3081
    %3338 = vst [vmem:[#allocation2 + $0x5c0] sm:$0xff] %v3082
    %3339 = vst [vmem:[#allocation2 + $0x5c8] sm:$0xff] %v3083
    %3340 = vst [vmem:[#allocation2 + $0x5d0] sm:$0xff] %v3084
    %3341 = vst [vmem:[#allocation2 + $0x5d8] sm:$0xff] %v3085
    %3342 = vst [vmem:[#allocation2 + $0x5e0] sm:$0xff] %v3086
    %3343 = vst [vmem:[#allocation2 + $0x5e8] sm:$0xff] %v3087
    %3344 = vst [vmem:[#allocation2 + $0x5f0] sm:$0xff] %v3088
    %3345 = vst [vmem:[#allocation2 + $0x5f8] sm:$0xff] %v3089
    %3346 = vst [vmem:[#allocation2 + $0x600] sm:$0xff] %v3090
    %3347 = vst [vmem:[#allocation2 + $0x608] sm:$0xff] %v3091
    %3348 = vst [vmem:[#allocation2 + $0x610] sm:$0xff] %v3092
    %3349 = vst [vmem:[#allocation2 + $0x618] sm:$0xff] %v3093
    %3350 = vst [vmem:[#allocation2 + $0x620] sm:$0xff] %v3094
    %3351 = vst [vmem:[#allocation2 + $0x628] sm:$0xff] %v3095
    %3352 = vst [vmem:[#allocation2 + $0x630] sm:$0xff] %v3096
    %3353 = vst [vmem:[#allocation2 + $0x638] sm:$0xff] %v3097
    %3354 = vst [vmem:[#allocation2 + $0x640] sm:$0xff] %v3098
    %3355 = vst [vmem:[#allocation2 + $0x648] sm:$0xff] %v3099
    %3356 = vst [vmem:[#allocation2 + $0x650] sm:$0xff] %v3100
    %3357 = vst [vmem:[#allocation2 + $0x658] sm:$0xff] %v3101
    %3358 = vst [vmem:[#allocation2 + $0x660] sm:$0xff] %v3102
    %3359 = vst [vmem:[#allocation2 + $0x668] sm:$0xff] %v3103
    %3360 = vst [vmem:[#allocation2 + $0x670] sm:$0xff] %v3104
    %3361 = vst [vmem:[#allocation2 + $0x678] sm:$0xff] %v3105
    %3362 = vst [vmem:[#allocation2 + $0x680] sm:$0xff] %v3106
    %3363 = vst [vmem:[#allocation2 + $0x688] sm:$0xff] %v3107
    %3364 = vst [vmem:[#allocation2 + $0x690] sm:$0xff] %v3108
    %3365 = vst [vmem:[#allocation2 + $0x698] sm:$0xff] %v3109
    %3366 = vst [vmem:[#allocation2 + $0x6a0] sm:$0xff] %v3110
    %3367 = vst [vmem:[#allocation2 + $0x6a8] sm:$0xff] %v3111
    %3368 = vst [vmem:[#allocation2 + $0x6b0] sm:$0xff] %v3112
    %3369 = vst [vmem:[#allocation2 + $0x6b8] sm:$0xff] %v3113
    %3370 = vst [vmem:[#allocation2 + $0x6c0] sm:$0xff] %v3114
    %3371 = vst [vmem:[#allocation2 + $0x6c8] sm:$0xff] %v3115
    %3372 = vst [vmem:[#allocation2 + $0x6d0] sm:$0xff] %v3116
    %3373 = vst [vmem:[#allocation2 + $0x6d8] sm:$0xff] %v3117
    %3374 = vst [vmem:[#allocation2 + $0x6e0] sm:$0xff] %v3118
    %3375 = vst [vmem:[#allocation2 + $0x6e8] sm:$0xff] %v3119
    %3376 = vst [vmem:[#allocation2 + $0x6f0] sm:$0xff] %v3120
    %3377 = vst [vmem:[#allocation2 + $0x6f8] sm:$0xff] %v3121
    %3378 = vst [vmem:[#allocation2 + $0x700] sm:$0xff] %v3122
    %3379 = vst [vmem:[#allocation2 + $0x708] sm:$0xff] %v3123
    %3380 = vst [vmem:[#allocation2 + $0x710] sm:$0xff] %v3124
    %3381 = vst [vmem:[#allocation2 + $0x718] sm:$0xff] %v3125
    %3382 = vst [vmem:[#allocation2 + $0x720] sm:$0xff] %v3126
    %3383 = vst [vmem:[#allocation2 + $0x728] sm:$0xff] %v3127
    %3384 = vst [vmem:[#allocation2 + $0x730] sm:$0xff] %v3128
    %3385 = vst [vmem:[#allocation2 + $0x738] sm:$0xff] %v3129
    %3386 = vst [vmem:[#allocation2 + $0x740] sm:$0xff] %v3130
    %3387 = vst [vmem:[#allocation2 + $0x748] sm:$0xff] %v3131
    %3388 = vst [vmem:[#allocation2 + $0x750] sm:$0xff] %v3132
    %3389 = vst [vmem:[#allocation2 + $0x758] sm:$0xff] %v3133
    %3390 = vst [vmem:[#allocation2 + $0x760] sm:$0xff] %v3134
    %3391 = vst [vmem:[#allocation2 + $0x768] sm:$0xff] %v3135
    %3392 = vst [vmem:[#allocation2 + $0x770] sm:$0xff] %v3136
    %3393 = vst [vmem:[#allocation2 + $0x778] sm:$0xff] %v3137
    %3394 = vst [vmem:[#allocation2 + $0x780] sm:$0xff] %v3138
    %3395 = vst [vmem:[#allocation2 + $0x788] sm:$0xff] %v3139
    %3396 = vst [vmem:[#allocation2 + $0x790] sm:$0xff] %v3140
    %3397 = vst [vmem:[#allocation2 + $0x798] sm:$0xff] %v3141
    %3398 = vst [vmem:[#allocation2 + $0x7a0] sm:$0xff] %v3142
    %3399 = vst [vmem:[#allocation2 + $0x7a8] sm:$0xff] %v3143
    %3400 = vst [vmem:[#allocation2 + $0x7b0] sm:$0xff] %v3144
    %3401 = vst [vmem:[#allocation2 + $0x7b8] sm:$0xff] %v3145
    %3402 = vst [vmem:[#allocation2 + $0x7c0] sm:$0xff] %v3146
    %3403 = vst [vmem:[#allocation2 + $0x7c8] sm:$0xff] %v3147
    %3404 = vst [vmem:[#allocation2 + $0x7d0] sm:$0xff] %v3148
    %3405 = vst [vmem:[#allocation2 + $0x7d8] sm:$0xff] %v3149
    %3406 = vst [vmem:[#allocation2 + $0x7e0] sm:$0xff] %v3150
    %3407 = vst [vmem:[#allocation2 + $0x7e8] sm:$0xff] %v3151
    %3408 = vst [vmem:[#allocation2 + $0x7f0] sm:$0xff] %v3152
    %3409 = vst [vmem:[#allocation2 + $0x7f8] sm:$0xff] %v3153
    // Predicated region
    $region30: #{tpu_custom_call.1} parent=1 // pred_check
      %p3410 = pneg %p36
    $region31: #{tpu_custom_call.1} parent=1 // pred_check_branch
      %3412 = sbr.rel (%p3410) target = $region33
    $region32: #{tpu_custom_call.1} parent=1 // pred_region
      %v3413 = vld [vmem:[#allocation2] sm:$0xff]
      %v3414 = vld [vmem:[#allocation2 + $0x8] sm:$0xff]
      %v3415 = vld [vmem:[#allocation2 + $0x10] sm:$0xff]
      %v3416 = vld [vmem:[#allocation2 + $0x18] sm:$0xff]
      %v3417 = vld [vmem:[#allocation2 + $0x20] sm:$0xff]
      %v3418 = vld [vmem:[#allocation2 + $0x28] sm:$0xff]
      %v3419 = vld [vmem:[#allocation2 + $0x30] sm:$0xff]
      %v3420 = vld [vmem:[#allocation2 + $0x38] sm:$0xff]
      %v3421 = vld [vmem:[#allocation2 + $0x40] sm:$0xff]
      %v3422 = vld [vmem:[#allocation2 + $0x48] sm:$0xff]
      %v3423 = vld [vmem:[#allocation2 + $0x50] sm:$0xff]
      %v3424 = vld [vmem:[#allocation2 + $0x58] sm:$0xff]
      %v3425 = vld [vmem:[#allocation2 + $0x60] sm:$0xff]
      %v3426 = vld [vmem:[#allocation2 + $0x68] sm:$0xff]
      %v3427 = vld [vmem:[#allocation2 + $0x70] sm:$0xff]
      %v3428 = vld [vmem:[#allocation2 + $0x78] sm:$0xff]
      %v3429 = vld [vmem:[#allocation2 + $0x80] sm:$0xff]
      %v3430 = vld [vmem:[#allocation2 + $0x88] sm:$0xff]
      %v3431 = vld [vmem:[#allocation2 + $0x90] sm:$0xff]
      %v3432 = vld [vmem:[#allocation2 + $0x98] sm:$0xff]
      %v3433 = vld [vmem:[#allocation2 + $0xa0] sm:$0xff]
      %v3434 = vld [vmem:[#allocation2 + $0xa8] sm:$0xff]
      %v3435 = vld [vmem:[#allocation2 + $0xb0] sm:$0xff]
      %v3436 = vld [vmem:[#allocation2 + $0xb8] sm:$0xff]
      %v3437 = vld [vmem:[#allocation2 + $0xc0] sm:$0xff]
      %v3438 = vld [vmem:[#allocation2 + $0xc8] sm:$0xff]
      %v3439 = vld [vmem:[#allocation2 + $0xd0] sm:$0xff]
      %v3440 = vld [vmem:[#allocation2 + $0xd8] sm:$0xff]
      %v3441 = vld [vmem:[#allocation2 + $0xe0] sm:$0xff]
      %v3442 = vld [vmem:[#allocation2 + $0xe8] sm:$0xff]
      %v3443 = vld [vmem:[#allocation2 + $0xf0] sm:$0xff]
      %v3444 = vld [vmem:[#allocation2 + $0xf8] sm:$0xff]
      %v3445 = vld [vmem:[#allocation2 + $0x100] sm:$0xff]
      %v3446 = vld [vmem:[#allocation2 + $0x108] sm:$0xff]
      %v3447 = vld [vmem:[#allocation2 + $0x110] sm:$0xff]
      %v3448 = vld [vmem:[#allocation2 + $0x118] sm:$0xff]
      %v3449 = vld [vmem:[#allocation2 + $0x120] sm:$0xff]
      %v3450 = vld [vmem:[#allocation2 + $0x128] sm:$0xff]
      %v3451 = vld [vmem:[#allocation2 + $0x130] sm:$0xff]
      %v3452 = vld [vmem:[#allocation2 + $0x138] sm:$0xff]
      %v3453 = vld [vmem:[#allocation2 + $0x140] sm:$0xff]
      %v3454 = vld [vmem:[#allocation2 + $0x148] sm:$0xff]
      %v3455 = vld [vmem:[#allocation2 + $0x150] sm:$0xff]
      %v3456 = vld [vmem:[#allocation2 + $0x158] sm:$0xff]
      %v3457 = vld [vmem:[#allocation2 + $0x160] sm:$0xff]
      %v3458 = vld [vmem:[#allocation2 + $0x168] sm:$0xff]
      %v3459 = vld [vmem:[#allocation2 + $0x170] sm:$0xff]
      %v3460 = vld [vmem:[#allocation2 + $0x178] sm:$0xff]
      %v3461 = vld [vmem:[#allocation2 + $0x180] sm:$0xff]
      %v3462 = vld [vmem:[#allocation2 + $0x188] sm:$0xff]
      %v3463 = vld [vmem:[#allocation2 + $0x190] sm:$0xff]
      %v3464 = vld [vmem:[#allocation2 + $0x198] sm:$0xff]
      %v3465 = vld [vmem:[#allocation2 + $0x1a0] sm:$0xff]
      %v3466 = vld [vmem:[#allocation2 + $0x1a8] sm:$0xff]
      %v3467 = vld [vmem:[#allocation2 + $0x1b0] sm:$0xff]
      %v3468 = vld [vmem:[#allocation2 + $0x1b8] sm:$0xff]
      %v3469 = vld [vmem:[#allocation2 + $0x1c0] sm:$0xff]
      %v3470 = vld [vmem:[#allocation2 + $0x1c8] sm:$0xff]
      %v3471 = vld [vmem:[#allocation2 + $0x1d0] sm:$0xff]
      %v3472 = vld [vmem:[#allocation2 + $0x1d8] sm:$0xff]
      %v3473 = vld [vmem:[#allocation2 + $0x1e0] sm:$0xff]
      %v3474 = vld [vmem:[#allocation2 + $0x1e8] sm:$0xff]
      %v3475 = vld [vmem:[#allocation2 + $0x1f0] sm:$0xff]
      %v3476 = vld [vmem:[#allocation2 + $0x1f8] sm:$0xff]
      %v3477 = vld [vmem:[#allocation2 + $0x200] sm:$0xff]
      %v3478 = vld [vmem:[#allocation2 + $0x208] sm:$0xff]
      %v3479 = vld [vmem:[#allocation2 + $0x210] sm:$0xff]
      %v3480 = vld [vmem:[#allocation2 + $0x218] sm:$0xff]
      %v3481 = vld [vmem:[#allocation2 + $0x220] sm:$0xff]
      %v3482 = vld [vmem:[#allocation2 + $0x228] sm:$0xff]
      %v3483 = vld [vmem:[#allocation2 + $0x230] sm:$0xff]
      %v3484 = vld [vmem:[#allocation2 + $0x238] sm:$0xff]
      %v3485 = vld [vmem:[#allocation2 + $0x240] sm:$0xff]
      %v3486 = vld [vmem:[#allocation2 + $0x248] sm:$0xff]
      %v3487 = vld [vmem:[#allocation2 + $0x250] sm:$0xff]
      %v3488 = vld [vmem:[#allocation2 + $0x258] sm:$0xff]
      %v3489 = vld [vmem:[#allocation2 + $0x260] sm:$0xff]
      %v3490 = vld [vmem:[#allocation2 + $0x268] sm:$0xff]
      %v3491 = vld [vmem:[#allocation2 + $0x270] sm:$0xff]
      %v3492 = vld [vmem:[#allocation2 + $0x278] sm:$0xff]
      %v3493 = vld [vmem:[#allocation2 + $0x280] sm:$0xff]
      %v3494 = vld [vmem:[#allocation2 + $0x288] sm:$0xff]
      %v3495 = vld [vmem:[#allocation2 + $0x290] sm:$0xff]
      %v3496 = vld [vmem:[#allocation2 + $0x298] sm:$0xff]
      %v3497 = vld [vmem:[#allocation2 + $0x2a0] sm:$0xff]
      %v3498 = vld [vmem:[#allocation2 + $0x2a8] sm:$0xff]
      %v3499 = vld [vmem:[#allocation2 + $0x2b0] sm:$0xff]
      %v3500 = vld [vmem:[#allocation2 + $0x2b8] sm:$0xff]
      %v3501 = vld [vmem:[#allocation2 + $0x2c0] sm:$0xff]
      %v3502 = vld [vmem:[#allocation2 + $0x2c8] sm:$0xff]
      %v3503 = vld [vmem:[#allocation2 + $0x2d0] sm:$0xff]
      %v3504 = vld [vmem:[#allocation2 + $0x2d8] sm:$0xff]
      %v3505 = vld [vmem:[#allocation2 + $0x2e0] sm:$0xff]
      %v3506 = vld [vmem:[#allocation2 + $0x2e8] sm:$0xff]
      %v3507 = vld [vmem:[#allocation2 + $0x2f0] sm:$0xff]
      %v3508 = vld [vmem:[#allocation2 + $0x2f8] sm:$0xff]
      %v3509 = vld [vmem:[#allocation2 + $0x300] sm:$0xff]
      %v3510 = vld [vmem:[#allocation2 + $0x308] sm:$0xff]
      %v3511 = vld [vmem:[#allocation2 + $0x310] sm:$0xff]
      %v3512 = vld [vmem:[#allocation2 + $0x318] sm:$0xff]
      %v3513 = vld [vmem:[#allocation2 + $0x320] sm:$0xff]
      %v3514 = vld [vmem:[#allocation2 + $0x328] sm:$0xff]
      %v3515 = vld [vmem:[#allocation2 + $0x330] sm:$0xff]
      %v3516 = vld [vmem:[#allocation2 + $0x338] sm:$0xff]
      %v3517 = vld [vmem:[#allocation2 + $0x340] sm:$0xff]
      %v3518 = vld [vmem:[#allocation2 + $0x348] sm:$0xff]
      %v3519 = vld [vmem:[#allocation2 + $0x350] sm:$0xff]
      %v3520 = vld [vmem:[#allocation2 + $0x358] sm:$0xff]
      %v3521 = vld [vmem:[#allocation2 + $0x360] sm:$0xff]
      %v3522 = vld [vmem:[#allocation2 + $0x368] sm:$0xff]
      %v3523 = vld [vmem:[#allocation2 + $0x370] sm:$0xff]
      %v3524 = vld [vmem:[#allocation2 + $0x378] sm:$0xff]
      %v3525 = vld [vmem:[#allocation2 + $0x380] sm:$0xff]
      %v3526 = vld [vmem:[#allocation2 + $0x388] sm:$0xff]
      %v3527 = vld [vmem:[#allocation2 + $0x390] sm:$0xff]
      %v3528 = vld [vmem:[#allocation2 + $0x398] sm:$0xff]
      %v3529 = vld [vmem:[#allocation2 + $0x3a0] sm:$0xff]
      %v3530 = vld [vmem:[#allocation2 + $0x3a8] sm:$0xff]
      %v3531 = vld [vmem:[#allocation2 + $0x3b0] sm:$0xff]
      %v3532 = vld [vmem:[#allocation2 + $0x3b8] sm:$0xff]
      %v3533 = vld [vmem:[#allocation2 + $0x3c0] sm:$0xff]
      %v3534 = vld [vmem:[#allocation2 + $0x3c8] sm:$0xff]
      %v3535 = vld [vmem:[#allocation2 + $0x3d0] sm:$0xff]
      %v3536 = vld [vmem:[#allocation2 + $0x3d8] sm:$0xff]
      %v3537 = vld [vmem:[#allocation2 + $0x3e0] sm:$0xff]
      %v3538 = vld [vmem:[#allocation2 + $0x3e8] sm:$0xff]
      %v3539 = vld [vmem:[#allocation2 + $0x3f0] sm:$0xff]
      %v3540 = vld [vmem:[#allocation2 + $0x3f8] sm:$0xff]
      %v3541 = vld [vmem:[#allocation2 + $0x400] sm:$0xff]
      %v3542 = vld [vmem:[#allocation2 + $0x408] sm:$0xff]
      %v3543 = vld [vmem:[#allocation2 + $0x410] sm:$0xff]
      %v3544 = vld [vmem:[#allocation2 + $0x418] sm:$0xff]
      %v3545 = vld [vmem:[#allocation2 + $0x420] sm:$0xff]
      %v3546 = vld [vmem:[#allocation2 + $0x428] sm:$0xff]
      %v3547 = vld [vmem:[#allocation2 + $0x430] sm:$0xff]
      %v3548 = vld [vmem:[#allocation2 + $0x438] sm:$0xff]
      %v3549 = vld [vmem:[#allocation2 + $0x440] sm:$0xff]
      %v3550 = vld [vmem:[#allocation2 + $0x448] sm:$0xff]
      %v3551 = vld [vmem:[#allocation2 + $0x450] sm:$0xff]
      %v3552 = vld [vmem:[#allocation2 + $0x458] sm:$0xff]
      %v3553 = vld [vmem:[#allocation2 + $0x460] sm:$0xff]
      %v3554 = vld [vmem:[#allocation2 + $0x468] sm:$0xff]
      %v3555 = vld [vmem:[#allocation2 + $0x470] sm:$0xff]
      %v3556 = vld [vmem:[#allocation2 + $0x478] sm:$0xff]
      %v3557 = vld [vmem:[#allocation2 + $0x480] sm:$0xff]
      %v3558 = vld [vmem:[#allocation2 + $0x488] sm:$0xff]
      %v3559 = vld [vmem:[#allocation2 + $0x490] sm:$0xff]
      %v3560 = vld [vmem:[#allocation2 + $0x498] sm:$0xff]
      %v3561 = vld [vmem:[#allocation2 + $0x4a0] sm:$0xff]
      %v3562 = vld [vmem:[#allocation2 + $0x4a8] sm:$0xff]
      %v3563 = vld [vmem:[#allocation2 + $0x4b0] sm:$0xff]
      %v3564 = vld [vmem:[#allocation2 + $0x4b8] sm:$0xff]
      %v3565 = vld [vmem:[#allocation2 + $0x4c0] sm:$0xff]
      %v3566 = vld [vmem:[#allocation2 + $0x4c8] sm:$0xff]
      %v3567 = vld [vmem:[#allocation2 + $0x4d0] sm:$0xff]
      %v3568 = vld [vmem:[#allocation2 + $0x4d8] sm:$0xff]
      %v3569 = vld [vmem:[#allocation2 + $0x4e0] sm:$0xff]
      %v3570 = vld [vmem:[#allocation2 + $0x4e8] sm:$0xff]
      %v3571 = vld [vmem:[#allocation2 + $0x4f0] sm:$0xff]
      %v3572 = vld [vmem:[#allocation2 + $0x4f8] sm:$0xff]
      %v3573 = vld [vmem:[#allocation2 + $0x500] sm:$0xff]
      %v3574 = vld [vmem:[#allocation2 + $0x508] sm:$0xff]
      %v3575 = vld [vmem:[#allocation2 + $0x510] sm:$0xff]
      %v3576 = vld [vmem:[#allocation2 + $0x518] sm:$0xff]
      %v3577 = vld [vmem:[#allocation2 + $0x520] sm:$0xff]
      %v3578 = vld [vmem:[#allocation2 + $0x528] sm:$0xff]
      %v3579 = vld [vmem:[#allocation2 + $0x530] sm:$0xff]
      %v3580 = vld [vmem:[#allocation2 + $0x538] sm:$0xff]
      %v3581 = vld [vmem:[#allocation2 + $0x540] sm:$0xff]
      %v3582 = vld [vmem:[#allocation2 + $0x548] sm:$0xff]
      %v3583 = vld [vmem:[#allocation2 + $0x550] sm:$0xff]
      %v3584 = vld [vmem:[#allocation2 + $0x558] sm:$0xff]
      %v3585 = vld [vmem:[#allocation2 + $0x560] sm:$0xff]
      %v3586 = vld [vmem:[#allocation2 + $0x568] sm:$0xff]
      %v3587 = vld [vmem:[#allocation2 + $0x570] sm:$0xff]
      %v3588 = vld [vmem:[#allocation2 + $0x578] sm:$0xff]
      %v3589 = vld [vmem:[#allocation2 + $0x580] sm:$0xff]
      %v3590 = vld [vmem:[#allocation2 + $0x588] sm:$0xff]
      %v3591 = vld [vmem:[#allocation2 + $0x590] sm:$0xff]
      %v3592 = vld [vmem:[#allocation2 + $0x598] sm:$0xff]
      %v3593 = vld [vmem:[#allocation2 + $0x5a0] sm:$0xff]
      %v3594 = vld [vmem:[#allocation2 + $0x5a8] sm:$0xff]
      %v3595 = vld [vmem:[#allocation2 + $0x5b0] sm:$0xff]
      %v3596 = vld [vmem:[#allocation2 + $0x5b8] sm:$0xff]
      %v3597 = vld [vmem:[#allocation2 + $0x5c0] sm:$0xff]
      %v3598 = vld [vmem:[#allocation2 + $0x5c8] sm:$0xff]
      %v3599 = vld [vmem:[#allocation2 + $0x5d0] sm:$0xff]
      %v3600 = vld [vmem:[#allocation2 + $0x5d8] sm:$0xff]
      %v3601 = vld [vmem:[#allocation2 + $0x5e0] sm:$0xff]
      %v3602 = vld [vmem:[#allocation2 + $0x5e8] sm:$0xff]
      %v3603 = vld [vmem:[#allocation2 + $0x5f0] sm:$0xff]
      %v3604 = vld [vmem:[#allocation2 + $0x5f8] sm:$0xff]
      %v3605 = vld [vmem:[#allocation2 + $0x600] sm:$0xff]
      %v3606 = vld [vmem:[#allocation2 + $0x608] sm:$0xff]
      %v3607 = vld [vmem:[#allocation2 + $0x610] sm:$0xff]
      %v3608 = vld [vmem:[#allocation2 + $0x618] sm:$0xff]
      %v3609 = vld [vmem:[#allocation2 + $0x620] sm:$0xff]
      %v3610 = vld [vmem:[#allocation2 + $0x628] sm:$0xff]
      %v3611 = vld [vmem:[#allocation2 + $0x630] sm:$0xff]
      %v3612 = vld [vmem:[#allocation2 + $0x638] sm:$0xff]
      %v3613 = vld [vmem:[#allocation2 + $0x640] sm:$0xff]
      %v3614 = vld [vmem:[#allocation2 + $0x648] sm:$0xff]
      %v3615 = vld [vmem:[#allocation2 + $0x650] sm:$0xff]
      %v3616 = vld [vmem:[#allocation2 + $0x658] sm:$0xff]
      %v3617 = vld [vmem:[#allocation2 + $0x660] sm:$0xff]
      %v3618 = vld [vmem:[#allocation2 + $0x668] sm:$0xff]
      %v3619 = vld [vmem:[#allocation2 + $0x670] sm:$0xff]
      %v3620 = vld [vmem:[#allocation2 + $0x678] sm:$0xff]
      %v3621 = vld [vmem:[#allocation2 + $0x680] sm:$0xff]
      %v3622 = vld [vmem:[#allocation2 + $0x688] sm:$0xff]
      %v3623 = vld [vmem:[#allocation2 + $0x690] sm:$0xff]
      %v3624 = vld [vmem:[#allocation2 + $0x698] sm:$0xff]
      %v3625 = vld [vmem:[#allocation2 + $0x6a0] sm:$0xff]
      %v3626 = vld [vmem:[#allocation2 + $0x6a8] sm:$0xff]
      %v3627 = vld [vmem:[#allocation2 + $0x6b0] sm:$0xff]
      %v3628 = vld [vmem:[#allocation2 + $0x6b8] sm:$0xff]
      %v3629 = vld [vmem:[#allocation2 + $0x6c0] sm:$0xff]
      %v3630 = vld [vmem:[#allocation2 + $0x6c8] sm:$0xff]
      %v3631 = vld [vmem:[#allocation2 + $0x6d0] sm:$0xff]
      %v3632 = vld [vmem:[#allocation2 + $0x6d8] sm:$0xff]
      %v3633 = vld [vmem:[#allocation2 + $0x6e0] sm:$0xff]
      %v3634 = vld [vmem:[#allocation2 + $0x6e8] sm:$0xff]
      %v3635 = vld [vmem:[#allocation2 + $0x6f0] sm:$0xff]
      %v3636 = vld [vmem:[#allocation2 + $0x6f8] sm:$0xff]
      %v3637 = vld [vmem:[#allocation2 + $0x700] sm:$0xff]
      %v3638 = vld [vmem:[#allocation2 + $0x708] sm:$0xff]
      %v3639 = vld [vmem:[#allocation2 + $0x710] sm:$0xff]
      %v3640 = vld [vmem:[#allocation2 + $0x718] sm:$0xff]
      %v3641 = vld [vmem:[#allocation2 + $0x720] sm:$0xff]
      %v3642 = vld [vmem:[#allocation2 + $0x728] sm:$0xff]
      %v3643 = vld [vmem:[#allocation2 + $0x730] sm:$0xff]
      %v3644 = vld [vmem:[#allocation2 + $0x738] sm:$0xff]
      %v3645 = vld [vmem:[#allocation2 + $0x740] sm:$0xff]
      %v3646 = vld [vmem:[#allocation2 + $0x748] sm:$0xff]
      %v3647 = vld [vmem:[#allocation2 + $0x750] sm:$0xff]
      %v3648 = vld [vmem:[#allocation2 + $0x758] sm:$0xff]
      %v3649 = vld [vmem:[#allocation2 + $0x760] sm:$0xff]
      %v3650 = vld [vmem:[#allocation2 + $0x768] sm:$0xff]
      %v3651 = vld [vmem:[#allocation2 + $0x770] sm:$0xff]
      %v3652 = vld [vmem:[#allocation2 + $0x778] sm:$0xff]
      %v3653 = vld [vmem:[#allocation2 + $0x780] sm:$0xff]
      %v3654 = vld [vmem:[#allocation2 + $0x788] sm:$0xff]
      %v3655 = vld [vmem:[#allocation2 + $0x790] sm:$0xff]
      %v3656 = vld [vmem:[#allocation2 + $0x798] sm:$0xff]
      %v3657 = vld [vmem:[#allocation2 + $0x7a0] sm:$0xff]
      %v3658 = vld [vmem:[#allocation2 + $0x7a8] sm:$0xff]
      %v3659 = vld [vmem:[#allocation2 + $0x7b0] sm:$0xff]
      %v3660 = vld [vmem:[#allocation2 + $0x7b8] sm:$0xff]
      %v3661 = vld [vmem:[#allocation2 + $0x7c0] sm:$0xff]
      %v3662 = vld [vmem:[#allocation2 + $0x7c8] sm:$0xff]
      %v3663 = vld [vmem:[#allocation2 + $0x7d0] sm:$0xff]
      %v3664 = vld [vmem:[#allocation2 + $0x7d8] sm:$0xff]
      %v3665 = vld [vmem:[#allocation2 + $0x7e0] sm:$0xff]
      %v3666 = vld [vmem:[#allocation2 + $0x7e8] sm:$0xff]
      %v3667 = vld [vmem:[#allocation2 + $0x7f0] sm:$0xff]
      %v3668 = vld [vmem:[#allocation2 + $0x7f8] sm:$0xff]
      %v3669 = vmul.f32 %v3413, 1.4285715
      %v3670 = vmul.f32 %v3414, 1.4285715
      %v3671 = vmul.f32 %v3415, 1.4285715
      %v3672 = vmul.f32 %v3416, 1.4285715
      %v3673 = vmul.f32 %v3417, 1.4285715
      %v3674 = vmul.f32 %v3418, 1.4285715
      %v3675 = vmul.f32 %v3419, 1.4285715
      %v3676 = vmul.f32 %v3420, 1.4285715
      %v3677 = vmul.f32 %v3421, 1.4285715
      %v3678 = vmul.f32 %v3422, 1.4285715
      %v3679 = vmul.f32 %v3423, 1.4285715
      %v3680 = vmul.f32 %v3424, 1.4285715
      %v3681 = vmul.f32 %v3425, 1.4285715
      %v3682 = vmul.f32 %v3426, 1.4285715
      %v3683 = vmul.f32 %v3427, 1.4285715
      %v3684 = vmul.f32 %v3428, 1.4285715
      %v3685 = vmul.f32 %v3429, 1.4285715
      %v3686 = vmul.f32 %v3430, 1.4285715
      %v3687 = vmul.f32 %v3431, 1.4285715
      %v3688 = vmul.f32 %v3432, 1.4285715
      %v3689 = vmul.f32 %v3433, 1.4285715
      %v3690 = vmul.f32 %v3434, 1.4285715
      %v3691 = vmul.f32 %v3435, 1.4285715
      %v3692 = vmul.f32 %v3436, 1.4285715
      %v3693 = vmul.f32 %v3437, 1.4285715
      %v3694 = vmul.f32 %v3438, 1.4285715
      %v3695 = vmul.f32 %v3439, 1.4285715
      %v3696 = vmul.f32 %v3440, 1.4285715
      %v3697 = vmul.f32 %v3441, 1.4285715
      %v3698 = vmul.f32 %v3442, 1.4285715
      %v3699 = vmul.f32 %v3443, 1.4285715
      %v3700 = vmul.f32 %v3444, 1.4285715
      %v3701 = vmul.f32 %v3445, 1.4285715
      %v3702 = vmul.f32 %v3446, 1.4285715
      %v3703 = vmul.f32 %v3447, 1.4285715
      %v3704 = vmul.f32 %v3448, 1.4285715
      %v3705 = vmul.f32 %v3449, 1.4285715
      %v3706 = vmul.f32 %v3450, 1.4285715
      %v3707 = vmul.f32 %v3451, 1.4285715
      %v3708 = vmul.f32 %v3452, 1.4285715
      %v3709 = vmul.f32 %v3453, 1.4285715
      %v3710 = vmul.f32 %v3454, 1.4285715
      %v3711 = vmul.f32 %v3455, 1.4285715
      %v3712 = vmul.f32 %v3456, 1.4285715
      %v3713 = vmul.f32 %v3457, 1.4285715
      %v3714 = vmul.f32 %v3458, 1.4285715
      %v3715 = vmul.f32 %v3459, 1.4285715
      %v3716 = vmul.f32 %v3460, 1.4285715
      %v3717 = vmul.f32 %v3461, 1.4285715
      %v3718 = vmul.f32 %v3462, 1.4285715
      %v3719 = vmul.f32 %v3463, 1.4285715
      %v3720 = vmul.f32 %v3464, 1.4285715
      %v3721 = vmul.f32 %v3465, 1.4285715
      %v3722 = vmul.f32 %v3466, 1.4285715
      %v3723 = vmul.f32 %v3467, 1.4285715
      %v3724 = vmul.f32 %v3468, 1.4285715
      %v3725 = vmul.f32 %v3469, 1.4285715
      %v3726 = vmul.f32 %v3470, 1.4285715
      %v3727 = vmul.f32 %v3471, 1.4285715
      %v3728 = vmul.f32 %v3472, 1.4285715
      %v3729 = vmul.f32 %v3473, 1.4285715
      %v3730 = vmul.f32 %v3474, 1.4285715
      %v3731 = vmul.f32 %v3475, 1.4285715
      %v3732 = vmul.f32 %v3476, 1.4285715
      %v3733 = vmul.f32 %v3477, 1.4285715
      %v3734 = vmul.f32 %v3478, 1.4285715
      %v3735 = vmul.f32 %v3479, 1.4285715
      %v3736 = vmul.f32 %v3480, 1.4285715
      %v3737 = vmul.f32 %v3481, 1.4285715
      %v3738 = vmul.f32 %v3482, 1.4285715
      %v3739 = vmul.f32 %v3483, 1.4285715
      %v3740 = vmul.f32 %v3484, 1.4285715
      %v3741 = vmul.f32 %v3485, 1.4285715
      %v3742 = vmul.f32 %v3486, 1.4285715
      %v3743 = vmul.f32 %v3487, 1.4285715
      %v3744 = vmul.f32 %v3488, 1.4285715
      %v3745 = vmul.f32 %v3489, 1.4285715
      %v3746 = vmul.f32 %v3490, 1.4285715
      %v3747 = vmul.f32 %v3491, 1.4285715
      %v3748 = vmul.f32 %v3492, 1.4285715
      %v3749 = vmul.f32 %v3493, 1.4285715
      %v3750 = vmul.f32 %v3494, 1.4285715
      %v3751 = vmul.f32 %v3495, 1.4285715
      %v3752 = vmul.f32 %v3496, 1.4285715
      %v3753 = vmul.f32 %v3497, 1.4285715
      %v3754 = vmul.f32 %v3498, 1.4285715
      %v3755 = vmul.f32 %v3499, 1.4285715
      %v3756 = vmul.f32 %v3500, 1.4285715
      %v3757 = vmul.f32 %v3501, 1.4285715
      %v3758 = vmul.f32 %v3502, 1.4285715
      %v3759 = vmul.f32 %v3503, 1.4285715
      %v3760 = vmul.f32 %v3504, 1.4285715
      %v3761 = vmul.f32 %v3505, 1.4285715
      %v3762 = vmul.f32 %v3506, 1.4285715
      %v3763 = vmul.f32 %v3507, 1.4285715
      %v3764 = vmul.f32 %v3508, 1.4285715
      %v3765 = vmul.f32 %v3509, 1.4285715
      %v3766 = vmul.f32 %v3510, 1.4285715
      %v3767 = vmul.f32 %v3511, 1.4285715
      %v3768 = vmul.f32 %v3512, 1.4285715
      %v3769 = vmul.f32 %v3513, 1.4285715
      %v3770 = vmul.f32 %v3514, 1.4285715
      %v3771 = vmul.f32 %v3515, 1.4285715
      %v3772 = vmul.f32 %v3516, 1.4285715
      %v3773 = vmul.f32 %v3517, 1.4285715
      %v3774 = vmul.f32 %v3518, 1.4285715
      %v3775 = vmul.f32 %v3519, 1.4285715
      %v3776 = vmul.f32 %v3520, 1.4285715
      %v3777 = vmul.f32 %v3521, 1.4285715
      %v3778 = vmul.f32 %v3522, 1.4285715
      %v3779 = vmul.f32 %v3523, 1.4285715
      %v3780 = vmul.f32 %v3524, 1.4285715
      %v3781 = vmul.f32 %v3525, 1.4285715
      %v3782 = vmul.f32 %v3526, 1.4285715
      %v3783 = vmul.f32 %v3527, 1.4285715
      %v3784 = vmul.f32 %v3528, 1.4285715
      %v3785 = vmul.f32 %v3529, 1.4285715
      %v3786 = vmul.f32 %v3530, 1.4285715
      %v3787 = vmul.f32 %v3531, 1.4285715
      %v3788 = vmul.f32 %v3532, 1.4285715
      %v3789 = vmul.f32 %v3533, 1.4285715
      %v3790 = vmul.f32 %v3534, 1.4285715
      %v3791 = vmul.f32 %v3535, 1.4285715
      %v3792 = vmul.f32 %v3536, 1.4285715
      %v3793 = vmul.f32 %v3537, 1.4285715
      %v3794 = vmul.f32 %v3538, 1.4285715
      %v3795 = vmul.f32 %v3539, 1.4285715
      %v3796 = vmul.f32 %v3540, 1.4285715
      %v3797 = vmul.f32 %v3541, 1.4285715
      %v3798 = vmul.f32 %v3542, 1.4285715
      %v3799 = vmul.f32 %v3543, 1.4285715
      %v3800 = vmul.f32 %v3544, 1.4285715
      %v3801 = vmul.f32 %v3545, 1.4285715
      %v3802 = vmul.f32 %v3546, 1.4285715
      %v3803 = vmul.f32 %v3547, 1.4285715
      %v3804 = vmul.f32 %v3548, 1.4285715
      %v3805 = vmul.f32 %v3549, 1.4285715
      %v3806 = vmul.f32 %v3550, 1.4285715
      %v3807 = vmul.f32 %v3551, 1.4285715
      %v3808 = vmul.f32 %v3552, 1.4285715
      %v3809 = vmul.f32 %v3553, 1.4285715
      %v3810 = vmul.f32 %v3554, 1.4285715
      %v3811 = vmul.f32 %v3555, 1.4285715
      %v3812 = vmul.f32 %v3556, 1.4285715
      %v3813 = vmul.f32 %v3557, 1.4285715
      %v3814 = vmul.f32 %v3558, 1.4285715
      %v3815 = vmul.f32 %v3559, 1.4285715
      %v3816 = vmul.f32 %v3560, 1.4285715
      %v3817 = vmul.f32 %v3561, 1.4285715
      %v3818 = vmul.f32 %v3562, 1.4285715
      %v3819 = vmul.f32 %v3563, 1.4285715
      %v3820 = vmul.f32 %v3564, 1.4285715
      %v3821 = vmul.f32 %v3565, 1.4285715
      %v3822 = vmul.f32 %v3566, 1.4285715
      %v3823 = vmul.f32 %v3567, 1.4285715
      %v3824 = vmul.f32 %v3568, 1.4285715
      %v3825 = vmul.f32 %v3569, 1.4285715
      %v3826 = vmul.f32 %v3570, 1.4285715
      %v3827 = vmul.f32 %v3571, 1.4285715
      %v3828 = vmul.f32 %v3572, 1.4285715
      %v3829 = vmul.f32 %v3573, 1.4285715
      %v3830 = vmul.f32 %v3574, 1.4285715
      %v3831 = vmul.f32 %v3575, 1.4285715
      %v3832 = vmul.f32 %v3576, 1.4285715
      %v3833 = vmul.f32 %v3577, 1.4285715
      %v3834 = vmul.f32 %v3578, 1.4285715
      %v3835 = vmul.f32 %v3579, 1.4285715
      %v3836 = vmul.f32 %v3580, 1.4285715
      %v3837 = vmul.f32 %v3581, 1.4285715
      %v3838 = vmul.f32 %v3582, 1.4285715
      %v3839 = vmul.f32 %v3583, 1.4285715
      %v3840 = vmul.f32 %v3584, 1.4285715
      %v3841 = vmul.f32 %v3585, 1.4285715
      %v3842 = vmul.f32 %v3586, 1.4285715
      %v3843 = vmul.f32 %v3587, 1.4285715
      %v3844 = vmul.f32 %v3588, 1.4285715
      %v3845 = vmul.f32 %v3589, 1.4285715
      %v3846 = vmul.f32 %v3590, 1.4285715
      %v3847 = vmul.f32 %v3591, 1.4285715
      %v3848 = vmul.f32 %v3592, 1.4285715
      %v3849 = vmul.f32 %v3593, 1.4285715
      %v3850 = vmul.f32 %v3594, 1.4285715
      %v3851 = vmul.f32 %v3595, 1.4285715
      %v3852 = vmul.f32 %v3596, 1.4285715
      %v3853 = vmul.f32 %v3597, 1.4285715
      %v3854 = vmul.f32 %v3598, 1.4285715
      %v3855 = vmul.f32 %v3599, 1.4285715
      %v3856 = vmul.f32 %v3600, 1.4285715
      %v3857 = vmul.f32 %v3601, 1.4285715
      %v3858 = vmul.f32 %v3602, 1.4285715
      %v3859 = vmul.f32 %v3603, 1.4285715
      %v3860 = vmul.f32 %v3604, 1.4285715
      %v3861 = vmul.f32 %v3605, 1.4285715
      %v3862 = vmul.f32 %v3606, 1.4285715
      %v3863 = vmul.f32 %v3607, 1.4285715
      %v3864 = vmul.f32 %v3608, 1.4285715
      %v3865 = vmul.f32 %v3609, 1.4285715
      %v3866 = vmul.f32 %v3610, 1.4285715
      %v3867 = vmul.f32 %v3611, 1.4285715
      %v3868 = vmul.f32 %v3612, 1.4285715
      %v3869 = vmul.f32 %v3613, 1.4285715
      %v3870 = vmul.f32 %v3614, 1.4285715
      %v3871 = vmul.f32 %v3615, 1.4285715
      %v3872 = vmul.f32 %v3616, 1.4285715
      %v3873 = vmul.f32 %v3617, 1.4285715
      %v3874 = vmul.f32 %v3618, 1.4285715
      %v3875 = vmul.f32 %v3619, 1.4285715
      %v3876 = vmul.f32 %v3620, 1.4285715
      %v3877 = vmul.f32 %v3621, 1.4285715
      %v3878 = vmul.f32 %v3622, 1.4285715
      %v3879 = vmul.f32 %v3623, 1.4285715
      %v3880 = vmul.f32 %v3624, 1.4285715
      %v3881 = vmul.f32 %v3625, 1.4285715
      %v3882 = vmul.f32 %v3626, 1.4285715
      %v3883 = vmul.f32 %v3627, 1.4285715
      %v3884 = vmul.f32 %v3628, 1.4285715
      %v3885 = vmul.f32 %v3629, 1.4285715
      %v3886 = vmul.f32 %v3630, 1.4285715
      %v3887 = vmul.f32 %v3631, 1.4285715
      %v3888 = vmul.f32 %v3632, 1.4285715
      %v3889 = vmul.f32 %v3633, 1.4285715
      %v3890 = vmul.f32 %v3634, 1.4285715
      %v3891 = vmul.f32 %v3635, 1.4285715
      %v3892 = vmul.f32 %v3636, 1.4285715
      %v3893 = vmul.f32 %v3637, 1.4285715
      %v3894 = vmul.f32 %v3638, 1.4285715
      %v3895 = vmul.f32 %v3639, 1.4285715
      %v3896 = vmul.f32 %v3640, 1.4285715
      %v3897 = vmul.f32 %v3641, 1.4285715
      %v3898 = vmul.f32 %v3642, 1.4285715
      %v3899 = vmul.f32 %v3643, 1.4285715
      %v3900 = vmul.f32 %v3644, 1.4285715
      %v3901 = vmul.f32 %v3645, 1.4285715
      %v3902 = vmul.f32 %v3646, 1.4285715
      %v3903 = vmul.f32 %v3647, 1.4285715
      %v3904 = vmul.f32 %v3648, 1.4285715
      %v3905 = vmul.f32 %v3649, 1.4285715
      %v3906 = vmul.f32 %v3650, 1.4285715
      %v3907 = vmul.f32 %v3651, 1.4285715
      %v3908 = vmul.f32 %v3652, 1.4285715
      %v3909 = vmul.f32 %v3653, 1.4285715
      %v3910 = vmul.f32 %v3654, 1.4285715
      %v3911 = vmul.f32 %v3655, 1.4285715
      %v3912 = vmul.f32 %v3656, 1.4285715
      %v3913 = vmul.f32 %v3657, 1.4285715
      %v3914 = vmul.f32 %v3658, 1.4285715
      %v3915 = vmul.f32 %v3659, 1.4285715
      %v3916 = vmul.f32 %v3660, 1.4285715
      %v3917 = vmul.f32 %v3661, 1.4285715
      %v3918 = vmul.f32 %v3662, 1.4285715
      %v3919 = vmul.f32 %v3663, 1.4285715
      %v3920 = vmul.f32 %v3664, 1.4285715
      %v3921 = vmul.f32 %v3665, 1.4285715
      %v3922 = vmul.f32 %v3666, 1.4285715
      %v3923 = vmul.f32 %v3667, 1.4285715
      %v3924 = vmul.f32 %v3668, 1.4285715
      %vm3925 = vcmp.ge.f32.partialorder %v3669, 0.0
      %vm3926 = vcmp.ge.f32.partialorder %v3670, 0.0
      %vm3927 = vcmp.ge.f32.partialorder %v3671, 0.0
      %vm3928 = vcmp.ge.f32.partialorder %v3672, 0.0
      %vm3929 = vcmp.ge.f32.partialorder %v3673, 0.0
      %vm3930 = vcmp.ge.f32.partialorder %v3674, 0.0
      %vm3931 = vcmp.ge.f32.partialorder %v3675, 0.0
      %vm3932 = vcmp.ge.f32.partialorder %v3676, 0.0
      %vm3933 = vcmp.ge.f32.partialorder %v3677, 0.0
      %vm3934 = vcmp.ge.f32.partialorder %v3678, 0.0
      %vm3935 = vcmp.ge.f32.partialorder %v3679, 0.0
      %vm3936 = vcmp.ge.f32.partialorder %v3680, 0.0
      %vm3937 = vcmp.ge.f32.partialorder %v3681, 0.0
      %vm3938 = vcmp.ge.f32.partialorder %v3682, 0.0
      %vm3939 = vcmp.ge.f32.partialorder %v3683, 0.0
      %vm3940 = vcmp.ge.f32.partialorder %v3684, 0.0
      %vm3941 = vcmp.ge.f32.partialorder %v3685, 0.0
      %vm3942 = vcmp.ge.f32.partialorder %v3686, 0.0
      %vm3943 = vcmp.ge.f32.partialorder %v3687, 0.0
      %vm3944 = vcmp.ge.f32.partialorder %v3688, 0.0
      %vm3945 = vcmp.ge.f32.partialorder %v3689, 0.0
      %vm3946 = vcmp.ge.f32.partialorder %v3690, 0.0
      %vm3947 = vcmp.ge.f32.partialorder %v3691, 0.0
      %vm3948 = vcmp.ge.f32.partialorder %v3692, 0.0
      %vm3949 = vcmp.ge.f32.partialorder %v3693, 0.0
      %vm3950 = vcmp.ge.f32.partialorder %v3694, 0.0
      %vm3951 = vcmp.ge.f32.partialorder %v3695, 0.0
      %vm3952 = vcmp.ge.f32.partialorder %v3696, 0.0
      %vm3953 = vcmp.ge.f32.partialorder %v3697, 0.0
      %vm3954 = vcmp.ge.f32.partialorder %v3698, 0.0
      %vm3955 = vcmp.ge.f32.partialorder %v3699, 0.0
      %vm3956 = vcmp.ge.f32.partialorder %v3700, 0.0
      %vm3957 = vcmp.ge.f32.partialorder %v3701, 0.0
      %vm3958 = vcmp.ge.f32.partialorder %v3702, 0.0
      %vm3959 = vcmp.ge.f32.partialorder %v3703, 0.0
      %vm3960 = vcmp.ge.f32.partialorder %v3704, 0.0
      %vm3961 = vcmp.ge.f32.partialorder %v3705, 0.0
      %vm3962 = vcmp.ge.f32.partialorder %v3706, 0.0
      %vm3963 = vcmp.ge.f32.partialorder %v3707, 0.0
      %vm3964 = vcmp.ge.f32.partialorder %v3708, 0.0
      %vm3965 = vcmp.ge.f32.partialorder %v3709, 0.0
      %vm3966 = vcmp.ge.f32.partialorder %v3710, 0.0
      %vm3967 = vcmp.ge.f32.partialorder %v3711, 0.0
      %vm3968 = vcmp.ge.f32.partialorder %v3712, 0.0
      %vm3969 = vcmp.ge.f32.partialorder %v3713, 0.0
      %vm3970 = vcmp.ge.f32.partialorder %v3714, 0.0
      %vm3971 = vcmp.ge.f32.partialorder %v3715, 0.0
      %vm3972 = vcmp.ge.f32.partialorder %v3716, 0.0
      %vm3973 = vcmp.ge.f32.partialorder %v3717, 0.0
      %vm3974 = vcmp.ge.f32.partialorder %v3718, 0.0
      %vm3975 = vcmp.ge.f32.partialorder %v3719, 0.0
      %vm3976 = vcmp.ge.f32.partialorder %v3720, 0.0
      %vm3977 = vcmp.ge.f32.partialorder %v3721, 0.0
      %vm3978 = vcmp.ge.f32.partialorder %v3722, 0.0
      %vm3979 = vcmp.ge.f32.partialorder %v3723, 0.0
      %vm3980 = vcmp.ge.f32.partialorder %v3724, 0.0
      %vm3981 = vcmp.ge.f32.partialorder %v3725, 0.0
      %vm3982 = vcmp.ge.f32.partialorder %v3726, 0.0
      %vm3983 = vcmp.ge.f32.partialorder %v3727, 0.0
      %vm3984 = vcmp.ge.f32.partialorder %v3728, 0.0
      %vm3985 = vcmp.ge.f32.partialorder %v3729, 0.0
      %vm3986 = vcmp.ge.f32.partialorder %v3730, 0.0
      %vm3987 = vcmp.ge.f32.partialorder %v3731, 0.0
      %vm3988 = vcmp.ge.f32.partialorder %v3732, 0.0
      %vm3989 = vcmp.ge.f32.partialorder %v3733, 0.0
      %vm3990 = vcmp.ge.f32.partialorder %v3734, 0.0
      %vm3991 = vcmp.ge.f32.partialorder %v3735, 0.0
      %vm3992 = vcmp.ge.f32.partialorder %v3736, 0.0
      %vm3993 = vcmp.ge.f32.partialorder %v3737, 0.0
      %vm3994 = vcmp.ge.f32.partialorder %v3738, 0.0
      %vm3995 = vcmp.ge.f32.partialorder %v3739, 0.0
      %vm3996 = vcmp.ge.f32.partialorder %v3740, 0.0
      %vm3997 = vcmp.ge.f32.partialorder %v3741, 0.0
      %vm3998 = vcmp.ge.f32.partialorder %v3742, 0.0
      %vm3999 = vcmp.ge.f32.partialorder %v3743, 0.0
      %vm4000 = vcmp.ge.f32.partialorder %v3744, 0.0
      %vm4001 = vcmp.ge.f32.partialorder %v3745, 0.0
      %vm4002 = vcmp.ge.f32.partialorder %v3746, 0.0
      %vm4003 = vcmp.ge.f32.partialorder %v3747, 0.0
      %vm4004 = vcmp.ge.f32.partialorder %v3748, 0.0
      %vm4005 = vcmp.ge.f32.partialorder %v3749, 0.0
      %vm4006 = vcmp.ge.f32.partialorder %v3750, 0.0
      %vm4007 = vcmp.ge.f32.partialorder %v3751, 0.0
      %vm4008 = vcmp.ge.f32.partialorder %v3752, 0.0
      %vm4009 = vcmp.ge.f32.partialorder %v3753, 0.0
      %vm4010 = vcmp.ge.f32.partialorder %v3754, 0.0
      %vm4011 = vcmp.ge.f32.partialorder %v3755, 0.0
      %vm4012 = vcmp.ge.f32.partialorder %v3756, 0.0
      %vm4013 = vcmp.ge.f32.partialorder %v3757, 0.0
      %vm4014 = vcmp.ge.f32.partialorder %v3758, 0.0
      %vm4015 = vcmp.ge.f32.partialorder %v3759, 0.0
      %vm4016 = vcmp.ge.f32.partialorder %v3760, 0.0
      %vm4017 = vcmp.ge.f32.partialorder %v3761, 0.0
      %vm4018 = vcmp.ge.f32.partialorder %v3762, 0.0
      %vm4019 = vcmp.ge.f32.partialorder %v3763, 0.0
      %vm4020 = vcmp.ge.f32.partialorder %v3764, 0.0
      %vm4021 = vcmp.ge.f32.partialorder %v3765, 0.0
      %vm4022 = vcmp.ge.f32.partialorder %v3766, 0.0
      %vm4023 = vcmp.ge.f32.partialorder %v3767, 0.0
      %vm4024 = vcmp.ge.f32.partialorder %v3768, 0.0
      %vm4025 = vcmp.ge.f32.partialorder %v3769, 0.0
      %vm4026 = vcmp.ge.f32.partialorder %v3770, 0.0
      %vm4027 = vcmp.ge.f32.partialorder %v3771, 0.0
      %vm4028 = vcmp.ge.f32.partialorder %v3772, 0.0
      %vm4029 = vcmp.ge.f32.partialorder %v3773, 0.0
      %vm4030 = vcmp.ge.f32.partialorder %v3774, 0.0
      %vm4031 = vcmp.ge.f32.partialorder %v3775, 0.0
      %vm4032 = vcmp.ge.f32.partialorder %v3776, 0.0
      %vm4033 = vcmp.ge.f32.partialorder %v3777, 0.0
      %vm4034 = vcmp.ge.f32.partialorder %v3778, 0.0
      %vm4035 = vcmp.ge.f32.partialorder %v3779, 0.0
      %vm4036 = vcmp.ge.f32.partialorder %v3780, 0.0
      %vm4037 = vcmp.ge.f32.partialorder %v3781, 0.0
      %vm4038 = vcmp.ge.f32.partialorder %v3782, 0.0
      %vm4039 = vcmp.ge.f32.partialorder %v3783, 0.0
      %vm4040 = vcmp.ge.f32.partialorder %v3784, 0.0
      %vm4041 = vcmp.ge.f32.partialorder %v3785, 0.0
      %vm4042 = vcmp.ge.f32.partialorder %v3786, 0.0
      %vm4043 = vcmp.ge.f32.partialorder %v3787, 0.0
      %vm4044 = vcmp.ge.f32.partialorder %v3788, 0.0
      %vm4045 = vcmp.ge.f32.partialorder %v3789, 0.0
      %vm4046 = vcmp.ge.f32.partialorder %v3790, 0.0
      %vm4047 = vcmp.ge.f32.partialorder %v3791, 0.0
      %vm4048 = vcmp.ge.f32.partialorder %v3792, 0.0
      %vm4049 = vcmp.ge.f32.partialorder %v3793, 0.0
      %vm4050 = vcmp.ge.f32.partialorder %v3794, 0.0
      %vm4051 = vcmp.ge.f32.partialorder %v3795, 0.0
      %vm4052 = vcmp.ge.f32.partialorder %v3796, 0.0
      %vm4053 = vcmp.ge.f32.partialorder %v3797, 0.0
      %vm4054 = vcmp.ge.f32.partialorder %v3798, 0.0
      %vm4055 = vcmp.ge.f32.partialorder %v3799, 0.0
      %vm4056 = vcmp.ge.f32.partialorder %v3800, 0.0
      %vm4057 = vcmp.ge.f32.partialorder %v3801, 0.0
      %vm4058 = vcmp.ge.f32.partialorder %v3802, 0.0
      %vm4059 = vcmp.ge.f32.partialorder %v3803, 0.0
      %vm4060 = vcmp.ge.f32.partialorder %v3804, 0.0
      %vm4061 = vcmp.ge.f32.partialorder %v3805, 0.0
      %vm4062 = vcmp.ge.f32.partialorder %v3806, 0.0
      %vm4063 = vcmp.ge.f32.partialorder %v3807, 0.0
      %vm4064 = vcmp.ge.f32.partialorder %v3808, 0.0
      %vm4065 = vcmp.ge.f32.partialorder %v3809, 0.0
      %vm4066 = vcmp.ge.f32.partialorder %v3810, 0.0
      %vm4067 = vcmp.ge.f32.partialorder %v3811, 0.0
      %vm4068 = vcmp.ge.f32.partialorder %v3812, 0.0
      %vm4069 = vcmp.ge.f32.partialorder %v3813, 0.0
      %vm4070 = vcmp.ge.f32.partialorder %v3814, 0.0
      %vm4071 = vcmp.ge.f32.partialorder %v3815, 0.0
      %vm4072 = vcmp.ge.f32.partialorder %v3816, 0.0
      %vm4073 = vcmp.ge.f32.partialorder %v3817, 0.0
      %vm4074 = vcmp.ge.f32.partialorder %v3818, 0.0
      %vm4075 = vcmp.ge.f32.partialorder %v3819, 0.0
      %vm4076 = vcmp.ge.f32.partialorder %v3820, 0.0
      %vm4077 = vcmp.ge.f32.partialorder %v3821, 0.0
      %vm4078 = vcmp.ge.f32.partialorder %v3822, 0.0
      %vm4079 = vcmp.ge.f32.partialorder %v3823, 0.0
      %vm4080 = vcmp.ge.f32.partialorder %v3824, 0.0
      %vm4081 = vcmp.ge.f32.partialorder %v3825, 0.0
      %vm4082 = vcmp.ge.f32.partialorder %v3826, 0.0
      %vm4083 = vcmp.ge.f32.partialorder %v3827, 0.0
      %vm4084 = vcmp.ge.f32.partialorder %v3828, 0.0
      %vm4085 = vcmp.ge.f32.partialorder %v3829, 0.0
      %vm4086 = vcmp.ge.f32.partialorder %v3830, 0.0
      %vm4087 = vcmp.ge.f32.partialorder %v3831, 0.0
      %vm4088 = vcmp.ge.f32.partialorder %v3832, 0.0
      %vm4089 = vcmp.ge.f32.partialorder %v3833, 0.0
      %vm4090 = vcmp.ge.f32.partialorder %v3834, 0.0
      %vm4091 = vcmp.ge.f32.partialorder %v3835, 0.0
      %vm4092 = vcmp.ge.f32.partialorder %v3836, 0.0
      %vm4093 = vcmp.ge.f32.partialorder %v3837, 0.0
      %vm4094 = vcmp.ge.f32.partialorder %v3838, 0.0
      %vm4095 = vcmp.ge.f32.partialorder %v3839, 0.0
      %vm4096 = vcmp.ge.f32.partialorder %v3840, 0.0
      %vm4097 = vcmp.ge.f32.partialorder %v3841, 0.0
      %vm4098 = vcmp.ge.f32.partialorder %v3842, 0.0
      %vm4099 = vcmp.ge.f32.partialorder %v3843, 0.0
      %vm4100 = vcmp.ge.f32.partialorder %v3844, 0.0
      %vm4101 = vcmp.ge.f32.partialorder %v3845, 0.0
      %vm4102 = vcmp.ge.f32.partialorder %v3846, 0.0
      %vm4103 = vcmp.ge.f32.partialorder %v3847, 0.0
      %vm4104 = vcmp.ge.f32.partialorder %v3848, 0.0
      %vm4105 = vcmp.ge.f32.partialorder %v3849, 0.0
      %vm4106 = vcmp.ge.f32.partialorder %v3850, 0.0
      %vm4107 = vcmp.ge.f32.partialorder %v3851, 0.0
      %vm4108 = vcmp.ge.f32.partialorder %v3852, 0.0
      %vm4109 = vcmp.ge.f32.partialorder %v3853, 0.0
      %vm4110 = vcmp.ge.f32.partialorder %v3854, 0.0
      %vm4111 = vcmp.ge.f32.partialorder %v3855, 0.0
      %vm4112 = vcmp.ge.f32.partialorder %v3856, 0.0
      %vm4113 = vcmp.ge.f32.partialorder %v3857, 0.0
      %vm4114 = vcmp.ge.f32.partialorder %v3858, 0.0
      %vm4115 = vcmp.ge.f32.partialorder %v3859, 0.0
      %vm4116 = vcmp.ge.f32.partialorder %v3860, 0.0
      %vm4117 = vcmp.ge.f32.partialorder %v3861, 0.0
      %vm4118 = vcmp.ge.f32.partialorder %v3862, 0.0
      %vm4119 = vcmp.ge.f32.partialorder %v3863, 0.0
      %vm4120 = vcmp.ge.f32.partialorder %v3864, 0.0
      %vm4121 = vcmp.ge.f32.partialorder %v3865, 0.0
      %vm4122 = vcmp.ge.f32.partialorder %v3866, 0.0
      %vm4123 = vcmp.ge.f32.partialorder %v3867, 0.0
      %vm4124 = vcmp.ge.f32.partialorder %v3868, 0.0
      %vm4125 = vcmp.ge.f32.partialorder %v3869, 0.0
      %vm4126 = vcmp.ge.f32.partialorder %v3870, 0.0
      %vm4127 = vcmp.ge.f32.partialorder %v3871, 0.0
      %vm4128 = vcmp.ge.f32.partialorder %v3872, 0.0
      %vm4129 = vcmp.ge.f32.partialorder %v3873, 0.0
      %vm4130 = vcmp.ge.f32.partialorder %v3874, 0.0
      %vm4131 = vcmp.ge.f32.partialorder %v3875, 0.0
      %vm4132 = vcmp.ge.f32.partialorder %v3876, 0.0
      %vm4133 = vcmp.ge.f32.partialorder %v3877, 0.0
      %vm4134 = vcmp.ge.f32.partialorder %v3878, 0.0
      %vm4135 = vcmp.ge.f32.partialorder %v3879, 0.0
      %vm4136 = vcmp.ge.f32.partialorder %v3880, 0.0
      %vm4137 = vcmp.ge.f32.partialorder %v3881, 0.0
      %vm4138 = vcmp.ge.f32.partialorder %v3882, 0.0
      %vm4139 = vcmp.ge.f32.partialorder %v3883, 0.0
      %vm4140 = vcmp.ge.f32.partialorder %v3884, 0.0
      %vm4141 = vcmp.ge.f32.partialorder %v3885, 0.0
      %vm4142 = vcmp.ge.f32.partialorder %v3886, 0.0
      %vm4143 = vcmp.ge.f32.partialorder %v3887, 0.0
      %vm4144 = vcmp.ge.f32.partialorder %v3888, 0.0
      %vm4145 = vcmp.ge.f32.partialorder %v3889, 0.0
      %vm4146 = vcmp.ge.f32.partialorder %v3890, 0.0
      %vm4147 = vcmp.ge.f32.partialorder %v3891, 0.0
      %vm4148 = vcmp.ge.f32.partialorder %v3892, 0.0
      %vm4149 = vcmp.ge.f32.partialorder %v3893, 0.0
      %vm4150 = vcmp.ge.f32.partialorder %v3894, 0.0
      %vm4151 = vcmp.ge.f32.partialorder %v3895, 0.0
      %vm4152 = vcmp.ge.f32.partialorder %v3896, 0.0
      %vm4153 = vcmp.ge.f32.partialorder %v3897, 0.0
      %vm4154 = vcmp.ge.f32.partialorder %v3898, 0.0
      %vm4155 = vcmp.ge.f32.partialorder %v3899, 0.0
      %vm4156 = vcmp.ge.f32.partialorder %v3900, 0.0
      %vm4157 = vcmp.ge.f32.partialorder %v3901, 0.0
      %vm4158 = vcmp.ge.f32.partialorder %v3902, 0.0
      %vm4159 = vcmp.ge.f32.partialorder %v3903, 0.0
      %vm4160 = vcmp.ge.f32.partialorder %v3904, 0.0
      %vm4161 = vcmp.ge.f32.partialorder %v3905, 0.0
      %vm4162 = vcmp.ge.f32.partialorder %v3906, 0.0
      %vm4163 = vcmp.ge.f32.partialorder %v3907, 0.0
      %vm4164 = vcmp.ge.f32.partialorder %v3908, 0.0
      %vm4165 = vcmp.ge.f32.partialorder %v3909, 0.0
      %vm4166 = vcmp.ge.f32.partialorder %v3910, 0.0
      %vm4167 = vcmp.ge.f32.partialorder %v3911, 0.0
      %vm4168 = vcmp.ge.f32.partialorder %v3912, 0.0
      %vm4169 = vcmp.ge.f32.partialorder %v3913, 0.0
      %vm4170 = vcmp.ge.f32.partialorder %v3914, 0.0
      %vm4171 = vcmp.ge.f32.partialorder %v3915, 0.0
      %vm4172 = vcmp.ge.f32.partialorder %v3916, 0.0
      %vm4173 = vcmp.ge.f32.partialorder %v3917, 0.0
      %vm4174 = vcmp.ge.f32.partialorder %v3918, 0.0
      %vm4175 = vcmp.ge.f32.partialorder %v3919, 0.0
      %vm4176 = vcmp.ge.f32.partialorder %v3920, 0.0
      %vm4177 = vcmp.ge.f32.partialorder %v3921, 0.0
      %vm4178 = vcmp.ge.f32.partialorder %v3922, 0.0
      %vm4179 = vcmp.ge.f32.partialorder %v3923, 0.0
      %vm4180 = vcmp.ge.f32.partialorder %v3924, 0.0
      %v4181 = vmul.f32 %v3669, 0.2
      %v4182 = vmul.f32 %v3670, 0.2
      %v4183 = vmul.f32 %v3671, 0.2
      %v4184 = vmul.f32 %v3672, 0.2
      %v4185 = vmul.f32 %v3673, 0.2
      %v4186 = vmul.f32 %v3674, 0.2
      %v4187 = vmul.f32 %v3675, 0.2
      %v4188 = vmul.f32 %v3676, 0.2
      %v4189 = vmul.f32 %v3677, 0.2
      %v4190 = vmul.f32 %v3678, 0.2
      %v4191 = vmul.f32 %v3679, 0.2
      %v4192 = vmul.f32 %v3680, 0.2
      %v4193 = vmul.f32 %v3681, 0.2
      %v4194 = vmul.f32 %v3682, 0.2
      %v4195 = vmul.f32 %v3683, 0.2
      %v4196 = vmul.f32 %v3684, 0.2
      %v4197 = vmul.f32 %v3685, 0.2
      %v4198 = vmul.f32 %v3686, 0.2
      %v4199 = vmul.f32 %v3687, 0.2
      %v4200 = vmul.f32 %v3688, 0.2
      %v4201 = vmul.f32 %v3689, 0.2
      %v4202 = vmul.f32 %v3690, 0.2
      %v4203 = vmul.f32 %v3691, 0.2
      %v4204 = vmul.f32 %v3692, 0.2
      %v4205 = vmul.f32 %v3693, 0.2
      %v4206 = vmul.f32 %v3694, 0.2
      %v4207 = vmul.f32 %v3695, 0.2
      %v4208 = vmul.f32 %v3696, 0.2
      %v4209 = vmul.f32 %v3697, 0.2
      %v4210 = vmul.f32 %v3698, 0.2
      %v4211 = vmul.f32 %v3699, 0.2
      %v4212 = vmul.f32 %v3700, 0.2
      %v4213 = vmul.f32 %v3701, 0.2
      %v4214 = vmul.f32 %v3702, 0.2
      %v4215 = vmul.f32 %v3703, 0.2
      %v4216 = vmul.f32 %v3704, 0.2
      %v4217 = vmul.f32 %v3705, 0.2
      %v4218 = vmul.f32 %v3706, 0.2
      %v4219 = vmul.f32 %v3707, 0.2
      %v4220 = vmul.f32 %v3708, 0.2
      %v4221 = vmul.f32 %v3709, 0.2
      %v4222 = vmul.f32 %v3710, 0.2
      %v4223 = vmul.f32 %v3711, 0.2
      %v4224 = vmul.f32 %v3712, 0.2
      %v4225 = vmul.f32 %v3713, 0.2
      %v4226 = vmul.f32 %v3714, 0.2
      %v4227 = vmul.f32 %v3715, 0.2
      %v4228 = vmul.f32 %v3716, 0.2
      %v4229 = vmul.f32 %v3717, 0.2
      %v4230 = vmul.f32 %v3718, 0.2
      %v4231 = vmul.f32 %v3719, 0.2
      %v4232 = vmul.f32 %v3720, 0.2
      %v4233 = vmul.f32 %v3721, 0.2
      %v4234 = vmul.f32 %v3722, 0.2
      %v4235 = vmul.f32 %v3723, 0.2
      %v4236 = vmul.f32 %v3724, 0.2
      %v4237 = vmul.f32 %v3725, 0.2
      %v4238 = vmul.f32 %v3726, 0.2
      %v4239 = vmul.f32 %v3727, 0.2
      %v4240 = vmul.f32 %v3728, 0.2
      %v4241 = vmul.f32 %v3729, 0.2
      %v4242 = vmul.f32 %v3730, 0.2
      %v4243 = vmul.f32 %v3731, 0.2
      %v4244 = vmul.f32 %v3732, 0.2
      %v4245 = vmul.f32 %v3733, 0.2
      %v4246 = vmul.f32 %v3734, 0.2
      %v4247 = vmul.f32 %v3735, 0.2
      %v4248 = vmul.f32 %v3736, 0.2
      %v4249 = vmul.f32 %v3737, 0.2
      %v4250 = vmul.f32 %v3738, 0.2
      %v4251 = vmul.f32 %v3739, 0.2
      %v4252 = vmul.f32 %v3740, 0.2
      %v4253 = vmul.f32 %v3741, 0.2
      %v4254 = vmul.f32 %v3742, 0.2
      %v4255 = vmul.f32 %v3743, 0.2
      %v4256 = vmul.f32 %v3744, 0.2
      %v4257 = vmul.f32 %v3745, 0.2
      %v4258 = vmul.f32 %v3746, 0.2
      %v4259 = vmul.f32 %v3747, 0.2
      %v4260 = vmul.f32 %v3748, 0.2
      %v4261 = vmul.f32 %v3749, 0.2
      %v4262 = vmul.f32 %v3750, 0.2
      %v4263 = vmul.f32 %v3751, 0.2
      %v4264 = vmul.f32 %v3752, 0.2
      %v4265 = vmul.f32 %v3753, 0.2
      %v4266 = vmul.f32 %v3754, 0.2
      %v4267 = vmul.f32 %v3755, 0.2
      %v4268 = vmul.f32 %v3756, 0.2
      %v4269 = vmul.f32 %v3757, 0.2
      %v4270 = vmul.f32 %v3758, 0.2
      %v4271 = vmul.f32 %v3759, 0.2
      %v4272 = vmul.f32 %v3760, 0.2
      %v4273 = vmul.f32 %v3761, 0.2
      %v4274 = vmul.f32 %v3762, 0.2
      %v4275 = vmul.f32 %v3763, 0.2
      %v4276 = vmul.f32 %v3764, 0.2
      %v4277 = vmul.f32 %v3765, 0.2
      %v4278 = vmul.f32 %v3766, 0.2
      %v4279 = vmul.f32 %v3767, 0.2
      %v4280 = vmul.f32 %v3768, 0.2
      %v4281 = vmul.f32 %v3769, 0.2
      %v4282 = vmul.f32 %v3770, 0.2
      %v4283 = vmul.f32 %v3771, 0.2
      %v4284 = vmul.f32 %v3772, 0.2
      %v4285 = vmul.f32 %v3773, 0.2
      %v4286 = vmul.f32 %v3774, 0.2
      %v4287 = vmul.f32 %v3775, 0.2
      %v4288 = vmul.f32 %v3776, 0.2
      %v4289 = vmul.f32 %v3777, 0.2
      %v4290 = vmul.f32 %v3778, 0.2
      %v4291 = vmul.f32 %v3779, 0.2
      %v4292 = vmul.f32 %v3780, 0.2
      %v4293 = vmul.f32 %v3781, 0.2
      %v4294 = vmul.f32 %v3782, 0.2
      %v4295 = vmul.f32 %v3783, 0.2
      %v4296 = vmul.f32 %v3784, 0.2
      %v4297 = vmul.f32 %v3785, 0.2
      %v4298 = vmul.f32 %v3786, 0.2
      %v4299 = vmul.f32 %v3787, 0.2
      %v4300 = vmul.f32 %v3788, 0.2
      %v4301 = vmul.f32 %v3789, 0.2
      %v4302 = vmul.f32 %v3790, 0.2
      %v4303 = vmul.f32 %v3791, 0.2
      %v4304 = vmul.f32 %v3792, 0.2
      %v4305 = vmul.f32 %v3793, 0.2
      %v4306 = vmul.f32 %v3794, 0.2
      %v4307 = vmul.f32 %v3795, 0.2
      %v4308 = vmul.f32 %v3796, 0.2
      %v4309 = vmul.f32 %v3797, 0.2
      %v4310 = vmul.f32 %v3798, 0.2
      %v4311 = vmul.f32 %v3799, 0.2
      %v4312 = vmul.f32 %v3800, 0.2
      %v4313 = vmul.f32 %v3801, 0.2
      %v4314 = vmul.f32 %v3802, 0.2
      %v4315 = vmul.f32 %v3803, 0.2
      %v4316 = vmul.f32 %v3804, 0.2
      %v4317 = vmul.f32 %v3805, 0.2
      %v4318 = vmul.f32 %v3806, 0.2
      %v4319 = vmul.f32 %v3807, 0.2
      %v4320 = vmul.f32 %v3808, 0.2
      %v4321 = vmul.f32 %v3809, 0.2
      %v4322 = vmul.f32 %v3810, 0.2
      %v4323 = vmul.f32 %v3811, 0.2
      %v4324 = vmul.f32 %v3812, 0.2
      %v4325 = vmul.f32 %v3813, 0.2
      %v4326 = vmul.f32 %v3814, 0.2
      %v4327 = vmul.f32 %v3815, 0.2
      %v4328 = vmul.f32 %v3816, 0.2
      %v4329 = vmul.f32 %v3817, 0.2
      %v4330 = vmul.f32 %v3818, 0.2
      %v4331 = vmul.f32 %v3819, 0.2
      %v4332 = vmul.f32 %v3820, 0.2
      %v4333 = vmul.f32 %v3821, 0.2
      %v4334 = vmul.f32 %v3822, 0.2
      %v4335 = vmul.f32 %v3823, 0.2
      %v4336 = vmul.f32 %v3824, 0.2
      %v4337 = vmul.f32 %v3825, 0.2
      %v4338 = vmul.f32 %v3826, 0.2
      %v4339 = vmul.f32 %v3827, 0.2
      %v4340 = vmul.f32 %v3828, 0.2
      %v4341 = vmul.f32 %v3829, 0.2
      %v4342 = vmul.f32 %v3830, 0.2
      %v4343 = vmul.f32 %v3831, 0.2
      %v4344 = vmul.f32 %v3832, 0.2
      %v4345 = vmul.f32 %v3833, 0.2
      %v4346 = vmul.f32 %v3834, 0.2
      %v4347 = vmul.f32 %v3835, 0.2
      %v4348 = vmul.f32 %v3836, 0.2
      %v4349 = vmul.f32 %v3837, 0.2
      %v4350 = vmul.f32 %v3838, 0.2
      %v4351 = vmul.f32 %v3839, 0.2
      %v4352 = vmul.f32 %v3840, 0.2
      %v4353 = vmul.f32 %v3841, 0.2
      %v4354 = vmul.f32 %v3842, 0.2
      %v4355 = vmul.f32 %v3843, 0.2
      %v4356 = vmul.f32 %v3844, 0.2
      %v4357 = vmul.f32 %v3845, 0.2
      %v4358 = vmul.f32 %v3846, 0.2
      %v4359 = vmul.f32 %v3847, 0.2
      %v4360 = vmul.f32 %v3848, 0.2
      %v4361 = vmul.f32 %v3849, 0.2
      %v4362 = vmul.f32 %v3850, 0.2
      %v4363 = vmul.f32 %v3851, 0.2
      %v4364 = vmul.f32 %v3852, 0.2
      %v4365 = vmul.f32 %v3853, 0.2
      %v4366 = vmul.f32 %v3854, 0.2
      %v4367 = vmul.f32 %v3855, 0.2
      %v4368 = vmul.f32 %v3856, 0.2
      %v4369 = vmul.f32 %v3857, 0.2
      %v4370 = vmul.f32 %v3858, 0.2
      %v4371 = vmul.f32 %v3859, 0.2
      %v4372 = vmul.f32 %v3860, 0.2
      %v4373 = vmul.f32 %v3861, 0.2
      %v4374 = vmul.f32 %v3862, 0.2
      %v4375 = vmul.f32 %v3863, 0.2
      %v4376 = vmul.f32 %v3864, 0.2
      %v4377 = vmul.f32 %v3865, 0.2
      %v4378 = vmul.f32 %v3866, 0.2
      %v4379 = vmul.f32 %v3867, 0.2
      %v4380 = vmul.f32 %v3868, 0.2
      %v4381 = vmul.f32 %v3869, 0.2
      %v4382 = vmul.f32 %v3870, 0.2
      %v4383 = vmul.f32 %v3871, 0.2
      %v4384 = vmul.f32 %v3872, 0.2
      %v4385 = vmul.f32 %v3873, 0.2
      %v4386 = vmul.f32 %v3874, 0.2
      %v4387 = vmul.f32 %v3875, 0.2
      %v4388 = vmul.f32 %v3876, 0.2
      %v4389 = vmul.f32 %v3877, 0.2
      %v4390 = vmul.f32 %v3878, 0.2
      %v4391 = vmul.f32 %v3879, 0.2
      %v4392 = vmul.f32 %v3880, 0.2
      %v4393 = vmul.f32 %v3881, 0.2
      %v4394 = vmul.f32 %v3882, 0.2
      %v4395 = vmul.f32 %v3883, 0.2
      %v4396 = vmul.f32 %v3884, 0.2
      %v4397 = vmul.f32 %v3885, 0.2
      %v4398 = vmul.f32 %v3886, 0.2
      %v4399 = vmul.f32 %v3887, 0.2
      %v4400 = vmul.f32 %v3888, 0.2
      %v4401 = vmul.f32 %v3889, 0.2
      %v4402 = vmul.f32 %v3890, 0.2
      %v4403 = vmul.f32 %v3891, 0.2
      %v4404 = vmul.f32 %v3892, 0.2
      %v4405 = vmul.f32 %v3893, 0.2
      %v4406 = vmul.f32 %v3894, 0.2
      %v4407 = vmul.f32 %v3895, 0.2
      %v4408 = vmul.f32 %v3896, 0.2
      %v4409 = vmul.f32 %v3897, 0.2
      %v4410 = vmul.f32 %v3898, 0.2
      %v4411 = vmul.f32 %v3899, 0.2
      %v4412 = vmul.f32 %v3900, 0.2
      %v4413 = vmul.f32 %v3901, 0.2
      %v4414 = vmul.f32 %v3902, 0.2
      %v4415 = vmul.f32 %v3903, 0.2
      %v4416 = vmul.f32 %v3904, 0.2
      %v4417 = vmul.f32 %v3905, 0.2
      %v4418 = vmul.f32 %v3906, 0.2
      %v4419 = vmul.f32 %v3907, 0.2
      %v4420 = vmul.f32 %v3908, 0.2
      %v4421 = vmul.f32 %v3909, 0.2
      %v4422 = vmul.f32 %v3910, 0.2
      %v4423 = vmul.f32 %v3911, 0.2
      %v4424 = vmul.f32 %v3912, 0.2
      %v4425 = vmul.f32 %v3913, 0.2
      %v4426 = vmul.f32 %v3914, 0.2
      %v4427 = vmul.f32 %v3915, 0.2
      %v4428 = vmul.f32 %v3916, 0.2
      %v4429 = vmul.f32 %v3917, 0.2
      %v4430 = vmul.f32 %v3918, 0.2
      %v4431 = vmul.f32 %v3919, 0.2
      %v4432 = vmul.f32 %v3920, 0.2
      %v4433 = vmul.f32 %v3921, 0.2
      %v4434 = vmul.f32 %v3922, 0.2
      %v4435 = vmul.f32 %v3923, 0.2
      %v4436 = vmul.f32 %v3924, 0.2
      %v4437 = vsel %vm3925, %v3669, %v4181
      %v4438 = vsel %vm3926, %v3670, %v4182
      %v4439 = vsel %vm3927, %v3671, %v4183
      %v4440 = vsel %vm3928, %v3672, %v4184
      %v4441 = vsel %vm3929, %v3673, %v4185
      %v4442 = vsel %vm3930, %v3674, %v4186
      %v4443 = vsel %vm3931, %v3675, %v4187
      %v4444 = vsel %vm3932, %v3676, %v4188
      %v4445 = vsel %vm3933, %v3677, %v4189
      %v4446 = vsel %vm3934, %v3678, %v4190
      %v4447 = vsel %vm3935, %v3679, %v4191
      %v4448 = vsel %vm3936, %v3680, %v4192
      %v4449 = vsel %vm3937, %v3681, %v4193
      %v4450 = vsel %vm3938, %v3682, %v4194
      %v4451 = vsel %vm3939, %v3683, %v4195
      %v4452 = vsel %vm3940, %v3684, %v4196
      %v4453 = vsel %vm3941, %v3685, %v4197
      %v4454 = vsel %vm3942, %v3686, %v4198
      %v4455 = vsel %vm3943, %v3687, %v4199
      %v4456 = vsel %vm3944, %v3688, %v4200
      %v4457 = vsel %vm3945, %v3689, %v4201
      %v4458 = vsel %vm3946, %v3690, %v4202
      %v4459 = vsel %vm3947, %v3691, %v4203
      %v4460 = vsel %vm3948, %v3692, %v4204
      %v4461 = vsel %vm3949, %v3693, %v4205
      %v4462 = vsel %vm3950, %v3694, %v4206
      %v4463 = vsel %vm3951, %v3695, %v4207
      %v4464 = vsel %vm3952, %v3696, %v4208
      %v4465 = vsel %vm3953, %v3697, %v4209
      %v4466 = vsel %vm3954, %v3698, %v4210
      %v4467 = vsel %vm3955, %v3699, %v4211
      %v4468 = vsel %vm3956, %v3700, %v4212
      %v4469 = vsel %vm3957, %v3701, %v4213
      %v4470 = vsel %vm3958, %v3702, %v4214
      %v4471 = vsel %vm3959, %v3703, %v4215
      %v4472 = vsel %vm3960, %v3704, %v4216
      %v4473 = vsel %vm3961, %v3705, %v4217
      %v4474 = vsel %vm3962, %v3706, %v4218
      %v4475 = vsel %vm3963, %v3707, %v4219
      %v4476 = vsel %vm3964, %v3708, %v4220
      %v4477 = vsel %vm3965, %v3709, %v4221
      %v4478 = vsel %vm3966, %v3710, %v4222
      %v4479 = vsel %vm3967, %v3711, %v4223
      %v4480 = vsel %vm3968, %v3712, %v4224
      %v4481 = vsel %vm3969, %v3713, %v4225
      %v4482 = vsel %vm3970, %v3714, %v4226
      %v4483 = vsel %vm3971, %v3715, %v4227
      %v4484 = vsel %vm3972, %v3716, %v4228
      %v4485 = vsel %vm3973, %v3717, %v4229
      %v4486 = vsel %vm3974, %v3718, %v4230
      %v4487 = vsel %vm3975, %v3719, %v4231
      %v4488 = vsel %vm3976, %v3720, %v4232
      %v4489 = vsel %vm3977, %v3721, %v4233
      %v4490 = vsel %vm3978, %v3722, %v4234
      %v4491 = vsel %vm3979, %v3723, %v4235
      %v4492 = vsel %vm3980, %v3724, %v4236
      %v4493 = vsel %vm3981, %v3725, %v4237
      %v4494 = vsel %vm3982, %v3726, %v4238
      %v4495 = vsel %vm3983, %v3727, %v4239
      %v4496 = vsel %vm3984, %v3728, %v4240
      %v4497 = vsel %vm3985, %v3729, %v4241
      %v4498 = vsel %vm3986, %v3730, %v4242
      %v4499 = vsel %vm3987, %v3731, %v4243
      %v4500 = vsel %vm3988, %v3732, %v4244
      %v4501 = vsel %vm3989, %v3733, %v4245
      %v4502 = vsel %vm3990, %v3734, %v4246
      %v4503 = vsel %vm3991, %v3735, %v4247
      %v4504 = vsel %vm3992, %v3736, %v4248
      %v4505 = vsel %vm3993, %v3737, %v4249
      %v4506 = vsel %vm3994, %v3738, %v4250
      %v4507 = vsel %vm3995, %v3739, %v4251
      %v4508 = vsel %vm3996, %v3740, %v4252
      %v4509 = vsel %vm3997, %v3741, %v4253
      %v4510 = vsel %vm3998, %v3742, %v4254
      %v4511 = vsel %vm3999, %v3743, %v4255
      %v4512 = vsel %vm4000, %v3744, %v4256
      %v4513 = vsel %vm4001, %v3745, %v4257
      %v4514 = vsel %vm4002, %v3746, %v4258
      %v4515 = vsel %vm4003, %v3747, %v4259
      %v4516 = vsel %vm4004, %v3748, %v4260
      %v4517 = vsel %vm4005, %v3749, %v4261
      %v4518 = vsel %vm4006, %v3750, %v4262
      %v4519 = vsel %vm4007, %v3751, %v4263
      %v4520 = vsel %vm4008, %v3752, %v4264
      %v4521 = vsel %vm4009, %v3753, %v4265
      %v4522 = vsel %vm4010, %v3754, %v4266
      %v4523 = vsel %vm4011, %v3755, %v4267
      %v4524 = vsel %vm4012, %v3756, %v4268
      %v4525 = vsel %vm4013, %v3757, %v4269
      %v4526 = vsel %vm4014, %v3758, %v4270
      %v4527 = vsel %vm4015, %v3759, %v4271
      %v4528 = vsel %vm4016, %v3760, %v4272
      %v4529 = vsel %vm4017, %v3761, %v4273
      %v4530 = vsel %vm4018, %v3762, %v4274
      %v4531 = vsel %vm4019, %v3763, %v4275
      %v4532 = vsel %vm4020, %v3764, %v4276
      %v4533 = vsel %vm4021, %v3765, %v4277
      %v4534 = vsel %vm4022, %v3766, %v4278
      %v4535 = vsel %vm4023, %v3767, %v4279
      %v4536 = vsel %vm4024, %v3768, %v4280
      %v4537 = vsel %vm4025, %v3769, %v4281
      %v4538 = vsel %vm4026, %v3770, %v4282
      %v4539 = vsel %vm4027, %v3771, %v4283
      %v4540 = vsel %vm4028, %v3772, %v4284
      %v4541 = vsel %vm4029, %v3773, %v4285
      %v4542 = vsel %vm4030, %v3774, %v4286
      %v4543 = vsel %vm4031, %v3775, %v4287
      %v4544 = vsel %vm4032, %v3776, %v4288
      %v4545 = vsel %vm4033, %v3777, %v4289
      %v4546 = vsel %vm4034, %v3778, %v4290
      %v4547 = vsel %vm4035, %v3779, %v4291
      %v4548 = vsel %vm4036, %v3780, %v4292
      %v4549 = vsel %vm4037, %v3781, %v4293
      %v4550 = vsel %vm4038, %v3782, %v4294
      %v4551 = vsel %vm4039, %v3783, %v4295
      %v4552 = vsel %vm4040, %v3784, %v4296
      %v4553 = vsel %vm4041, %v3785, %v4297
      %v4554 = vsel %vm4042, %v3786, %v4298
      %v4555 = vsel %vm4043, %v3787, %v4299
      %v4556 = vsel %vm4044, %v3788, %v4300
      %v4557 = vsel %vm4045, %v3789, %v4301
      %v4558 = vsel %vm4046, %v3790, %v4302
      %v4559 = vsel %vm4047, %v3791, %v4303
      %v4560 = vsel %vm4048, %v3792, %v4304
      %v4561 = vsel %vm4049, %v3793, %v4305
      %v4562 = vsel %vm4050, %v3794, %v4306
      %v4563 = vsel %vm4051, %v3795, %v4307
      %v4564 = vsel %vm4052, %v3796, %v4308
      %v4565 = vsel %vm4053, %v3797, %v4309
      %v4566 = vsel %vm4054, %v3798, %v4310
      %v4567 = vsel %vm4055, %v3799, %v4311
      %v4568 = vsel %vm4056, %v3800, %v4312
      %v4569 = vsel %vm4057, %v3801, %v4313
      %v4570 = vsel %vm4058, %v3802, %v4314
      %v4571 = vsel %vm4059, %v3803, %v4315
      %v4572 = vsel %vm4060, %v3804, %v4316
      %v4573 = vsel %vm4061, %v3805, %v4317
      %v4574 = vsel %vm4062, %v3806, %v4318
      %v4575 = vsel %vm4063, %v3807, %v4319
      %v4576 = vsel %vm4064, %v3808, %v4320
      %v4577 = vsel %vm4065, %v3809, %v4321
      %v4578 = vsel %vm4066, %v3810, %v4322
      %v4579 = vsel %vm4067, %v3811, %v4323
      %v4580 = vsel %vm4068, %v3812, %v4324
      %v4581 = vsel %vm4069, %v3813, %v4325
      %v4582 = vsel %vm4070, %v3814, %v4326
      %v4583 = vsel %vm4071, %v3815, %v4327
      %v4584 = vsel %vm4072, %v3816, %v4328
      %v4585 = vsel %vm4073, %v3817, %v4329
      %v4586 = vsel %vm4074, %v3818, %v4330
      %v4587 = vsel %vm4075, %v3819, %v4331
      %v4588 = vsel %vm4076, %v3820, %v4332
      %v4589 = vsel %vm4077, %v3821, %v4333
      %v4590 = vsel %vm4078, %v3822, %v4334
      %v4591 = vsel %vm4079, %v3823, %v4335
      %v4592 = vsel %vm4080, %v3824, %v4336
      %v4593 = vsel %vm4081, %v3825, %v4337
      %v4594 = vsel %vm4082, %v3826, %v4338
      %v4595 = vsel %vm4083, %v3827, %v4339
      %v4596 = vsel %vm4084, %v3828, %v4340
      %v4597 = vsel %vm4085, %v3829, %v4341
      %v4598 = vsel %vm4086, %v3830, %v4342
      %v4599 = vsel %vm4087, %v3831, %v4343
      %v4600 = vsel %vm4088, %v3832, %v4344
      %v4601 = vsel %vm4089, %v3833, %v4345
      %v4602 = vsel %vm4090, %v3834, %v4346
      %v4603 = vsel %vm4091, %v3835, %v4347
      %v4604 = vsel %vm4092, %v3836, %v4348
      %v4605 = vsel %vm4093, %v3837, %v4349
      %v4606 = vsel %vm4094, %v3838, %v4350
      %v4607 = vsel %vm4095, %v3839, %v4351
      %v4608 = vsel %vm4096, %v3840, %v4352
      %v4609 = vsel %vm4097, %v3841, %v4353
      %v4610 = vsel %vm4098, %v3842, %v4354
      %v4611 = vsel %vm4099, %v3843, %v4355
      %v4612 = vsel %vm4100, %v3844, %v4356
      %v4613 = vsel %vm4101, %v3845, %v4357
      %v4614 = vsel %vm4102, %v3846, %v4358
      %v4615 = vsel %vm4103, %v3847, %v4359
      %v4616 = vsel %vm4104, %v3848, %v4360
      %v4617 = vsel %vm4105, %v3849, %v4361
      %v4618 = vsel %vm4106, %v3850, %v4362
      %v4619 = vsel %vm4107, %v3851, %v4363
      %v4620 = vsel %vm4108, %v3852, %v4364
      %v4621 = vsel %vm4109, %v3853, %v4365
      %v4622 = vsel %vm4110, %v3854, %v4366
      %v4623 = vsel %vm4111, %v3855, %v4367
      %v4624 = vsel %vm4112, %v3856, %v4368
      %v4625 = vsel %vm4113, %v3857, %v4369
      %v4626 = vsel %vm4114, %v3858, %v4370
      %v4627 = vsel %vm4115, %v3859, %v4371
      %v4628 = vsel %vm4116, %v3860, %v4372
      %v4629 = vsel %vm4117, %v3861, %v4373
      %v4630 = vsel %vm4118, %v3862, %v4374
      %v4631 = vsel %vm4119, %v3863, %v4375
      %v4632 = vsel %vm4120, %v3864, %v4376
      %v4633 = vsel %vm4121, %v3865, %v4377
      %v4634 = vsel %vm4122, %v3866, %v4378
      %v4635 = vsel %vm4123, %v3867, %v4379
      %v4636 = vsel %vm4124, %v3868, %v4380
      %v4637 = vsel %vm4125, %v3869, %v4381
      %v4638 = vsel %vm4126, %v3870, %v4382
      %v4639 = vsel %vm4127, %v3871, %v4383
      %v4640 = vsel %vm4128, %v3872, %v4384
      %v4641 = vsel %vm4129, %v3873, %v4385
      %v4642 = vsel %vm4130, %v3874, %v4386
      %v4643 = vsel %vm4131, %v3875, %v4387
      %v4644 = vsel %vm4132, %v3876, %v4388
      %v4645 = vsel %vm4133, %v3877, %v4389
      %v4646 = vsel %vm4134, %v3878, %v4390
      %v4647 = vsel %vm4135, %v3879, %v4391
      %v4648 = vsel %vm4136, %v3880, %v4392
      %v4649 = vsel %vm4137, %v3881, %v4393
      %v4650 = vsel %vm4138, %v3882, %v4394
      %v4651 = vsel %vm4139, %v3883, %v4395
      %v4652 = vsel %vm4140, %v3884, %v4396
      %v4653 = vsel %vm4141, %v3885, %v4397
      %v4654 = vsel %vm4142, %v3886, %v4398
      %v4655 = vsel %vm4143, %v3887, %v4399
      %v4656 = vsel %vm4144, %v3888, %v4400
      %v4657 = vsel %vm4145, %v3889, %v4401
      %v4658 = vsel %vm4146, %v3890, %v4402
      %v4659 = vsel %vm4147, %v3891, %v4403
      %v4660 = vsel %vm4148, %v3892, %v4404
      %v4661 = vsel %vm4149, %v3893, %v4405
      %v4662 = vsel %vm4150, %v3894, %v4406
      %v4663 = vsel %vm4151, %v3895, %v4407
      %v4664 = vsel %vm4152, %v3896, %v4408
      %v4665 = vsel %vm4153, %v3897, %v4409
      %v4666 = vsel %vm4154, %v3898, %v4410
      %v4667 = vsel %vm4155, %v3899, %v4411
      %v4668 = vsel %vm4156, %v3900, %v4412
      %v4669 = vsel %vm4157, %v3901, %v4413
      %v4670 = vsel %vm4158, %v3902, %v4414
      %v4671 = vsel %vm4159, %v3903, %v4415
      %v4672 = vsel %vm4160, %v3904, %v4416
      %v4673 = vsel %vm4161, %v3905, %v4417
      %v4674 = vsel %vm4162, %v3906, %v4418
      %v4675 = vsel %vm4163, %v3907, %v4419
      %v4676 = vsel %vm4164, %v3908, %v4420
      %v4677 = vsel %vm4165, %v3909, %v4421
      %v4678 = vsel %vm4166, %v3910, %v4422
      %v4679 = vsel %vm4167, %v3911, %v4423
      %v4680 = vsel %vm4168, %v3912, %v4424
      %v4681 = vsel %vm4169, %v3913, %v4425
      %v4682 = vsel %vm4170, %v3914, %v4426
      %v4683 = vsel %vm4171, %v3915, %v4427
      %v4684 = vsel %vm4172, %v3916, %v4428
      %v4685 = vsel %vm4173, %v3917, %v4429
      %v4686 = vsel %vm4174, %v3918, %v4430
      %v4687 = vsel %vm4175, %v3919, %v4431
      %v4688 = vsel %vm4176, %v3920, %v4432
      %v4689 = vsel %vm4177, %v3921, %v4433
      %v4690 = vsel %vm4178, %v3922, %v4434
      %v4691 = vsel %vm4179, %v3923, %v4435
      %v4692 = vsel %vm4180, %v3924, %v4436
      %v4693 = vld [vmem:[#allocation3] sm:$0xff]
      %v4694 = vld [vmem:[#allocation3 + $0x8] sm:$0xff]
      %v4695 = vld [vmem:[#allocation3 + $0x10] sm:$0xff]
      %v4696 = vld [vmem:[#allocation3 + $0x18] sm:$0xff]
      %v4697 = vld [vmem:[#allocation3 + $0x20] sm:$0xff]
      %v4698 = vld [vmem:[#allocation3 + $0x28] sm:$0xff]
      %v4699 = vld [vmem:[#allocation3 + $0x30] sm:$0xff]
      %v4700 = vld [vmem:[#allocation3 + $0x38] sm:$0xff]
      %v4701 = vld [vmem:[#allocation3 + $0x40] sm:$0xff]
      %v4702 = vld [vmem:[#allocation3 + $0x48] sm:$0xff]
      %v4703 = vld [vmem:[#allocation3 + $0x50] sm:$0xff]
      %v4704 = vld [vmem:[#allocation3 + $0x58] sm:$0xff]
      %v4705 = vld [vmem:[#allocation3 + $0x60] sm:$0xff]
      %v4706 = vld [vmem:[#allocation3 + $0x68] sm:$0xff]
      %v4707 = vld [vmem:[#allocation3 + $0x70] sm:$0xff]
      %v4708 = vld [vmem:[#allocation3 + $0x78] sm:$0xff]
      %v4709 = vld [vmem:[#allocation3 + $0x80] sm:$0xff]
      %v4710 = vld [vmem:[#allocation3 + $0x88] sm:$0xff]
      %v4711 = vld [vmem:[#allocation3 + $0x90] sm:$0xff]
      %v4712 = vld [vmem:[#allocation3 + $0x98] sm:$0xff]
      %v4713 = vld [vmem:[#allocation3 + $0xa0] sm:$0xff]
      %v4714 = vld [vmem:[#allocation3 + $0xa8] sm:$0xff]
      %v4715 = vld [vmem:[#allocation3 + $0xb0] sm:$0xff]
      %v4716 = vld [vmem:[#allocation3 + $0xb8] sm:$0xff]
      %v4717 = vld [vmem:[#allocation3 + $0xc0] sm:$0xff]
      %v4718 = vld [vmem:[#allocation3 + $0xc8] sm:$0xff]
      %v4719 = vld [vmem:[#allocation3 + $0xd0] sm:$0xff]
      %v4720 = vld [vmem:[#allocation3 + $0xd8] sm:$0xff]
      %v4721 = vld [vmem:[#allocation3 + $0xe0] sm:$0xff]
      %v4722 = vld [vmem:[#allocation3 + $0xe8] sm:$0xff]
      %v4723 = vld [vmem:[#allocation3 + $0xf0] sm:$0xff]
      %v4724 = vld [vmem:[#allocation3 + $0xf8] sm:$0xff]
      %v4725 = vld [vmem:[#allocation3 + $0x100] sm:$0xff]
      %v4726 = vld [vmem:[#allocation3 + $0x108] sm:$0xff]
      %v4727 = vld [vmem:[#allocation3 + $0x110] sm:$0xff]
      %v4728 = vld [vmem:[#allocation3 + $0x118] sm:$0xff]
      %v4729 = vld [vmem:[#allocation3 + $0x120] sm:$0xff]
      %v4730 = vld [vmem:[#allocation3 + $0x128] sm:$0xff]
      %v4731 = vld [vmem:[#allocation3 + $0x130] sm:$0xff]
      %v4732 = vld [vmem:[#allocation3 + $0x138] sm:$0xff]
      %v4733 = vld [vmem:[#allocation3 + $0x140] sm:$0xff]
      %v4734 = vld [vmem:[#allocation3 + $0x148] sm:$0xff]
      %v4735 = vld [vmem:[#allocation3 + $0x150] sm:$0xff]
      %v4736 = vld [vmem:[#allocation3 + $0x158] sm:$0xff]
      %v4737 = vld [vmem:[#allocation3 + $0x160] sm:$0xff]
      %v4738 = vld [vmem:[#allocation3 + $0x168] sm:$0xff]
      %v4739 = vld [vmem:[#allocation3 + $0x170] sm:$0xff]
      %v4740 = vld [vmem:[#allocation3 + $0x178] sm:$0xff]
      %v4741 = vld [vmem:[#allocation3 + $0x180] sm:$0xff]
      %v4742 = vld [vmem:[#allocation3 + $0x188] sm:$0xff]
      %v4743 = vld [vmem:[#allocation3 + $0x190] sm:$0xff]
      %v4744 = vld [vmem:[#allocation3 + $0x198] sm:$0xff]
      %v4745 = vld [vmem:[#allocation3 + $0x1a0] sm:$0xff]
      %v4746 = vld [vmem:[#allocation3 + $0x1a8] sm:$0xff]
      %v4747 = vld [vmem:[#allocation3 + $0x1b0] sm:$0xff]
      %v4748 = vld [vmem:[#allocation3 + $0x1b8] sm:$0xff]
      %v4749 = vld [vmem:[#allocation3 + $0x1c0] sm:$0xff]
      %v4750 = vld [vmem:[#allocation3 + $0x1c8] sm:$0xff]
      %v4751 = vld [vmem:[#allocation3 + $0x1d0] sm:$0xff]
      %v4752 = vld [vmem:[#allocation3 + $0x1d8] sm:$0xff]
      %v4753 = vld [vmem:[#allocation3 + $0x1e0] sm:$0xff]
      %v4754 = vld [vmem:[#allocation3 + $0x1e8] sm:$0xff]
      %v4755 = vld [vmem:[#allocation3 + $0x1f0] sm:$0xff]
      %v4756 = vld [vmem:[#allocation3 + $0x1f8] sm:$0xff]
      %v4757 = vld [vmem:[#allocation3 + $0x200] sm:$0xff]
      %v4758 = vld [vmem:[#allocation3 + $0x208] sm:$0xff]
      %v4759 = vld [vmem:[#allocation3 + $0x210] sm:$0xff]
      %v4760 = vld [vmem:[#allocation3 + $0x218] sm:$0xff]
      %v4761 = vld [vmem:[#allocation3 + $0x220] sm:$0xff]
      %v4762 = vld [vmem:[#allocation3 + $0x228] sm:$0xff]
      %v4763 = vld [vmem:[#allocation3 + $0x230] sm:$0xff]
      %v4764 = vld [vmem:[#allocation3 + $0x238] sm:$0xff]
      %v4765 = vld [vmem:[#allocation3 + $0x240] sm:$0xff]
      %v4766 = vld [vmem:[#allocation3 + $0x248] sm:$0xff]
      %v4767 = vld [vmem:[#allocation3 + $0x250] sm:$0xff]
      %v4768 = vld [vmem:[#allocation3 + $0x258] sm:$0xff]
      %v4769 = vld [vmem:[#allocation3 + $0x260] sm:$0xff]
      %v4770 = vld [vmem:[#allocation3 + $0x268] sm:$0xff]
      %v4771 = vld [vmem:[#allocation3 + $0x270] sm:$0xff]
      %v4772 = vld [vmem:[#allocation3 + $0x278] sm:$0xff]
      %v4773 = vld [vmem:[#allocation3 + $0x280] sm:$0xff]
      %v4774 = vld [vmem:[#allocation3 + $0x288] sm:$0xff]
      %v4775 = vld [vmem:[#allocation3 + $0x290] sm:$0xff]
      %v4776 = vld [vmem:[#allocation3 + $0x298] sm:$0xff]
      %v4777 = vld [vmem:[#allocation3 + $0x2a0] sm:$0xff]
      %v4778 = vld [vmem:[#allocation3 + $0x2a8] sm:$0xff]
      %v4779 = vld [vmem:[#allocation3 + $0x2b0] sm:$0xff]
      %v4780 = vld [vmem:[#allocation3 + $0x2b8] sm:$0xff]
      %v4781 = vld [vmem:[#allocation3 + $0x2c0] sm:$0xff]
      %v4782 = vld [vmem:[#allocation3 + $0x2c8] sm:$0xff]
      %v4783 = vld [vmem:[#allocation3 + $0x2d0] sm:$0xff]
      %v4784 = vld [vmem:[#allocation3 + $0x2d8] sm:$0xff]
      %v4785 = vld [vmem:[#allocation3 + $0x2e0] sm:$0xff]
      %v4786 = vld [vmem:[#allocation3 + $0x2e8] sm:$0xff]
      %v4787 = vld [vmem:[#allocation3 + $0x2f0] sm:$0xff]
      %v4788 = vld [vmem:[#allocation3 + $0x2f8] sm:$0xff]
      %v4789 = vld [vmem:[#allocation3 + $0x300] sm:$0xff]
      %v4790 = vld [vmem:[#allocation3 + $0x308] sm:$0xff]
      %v4791 = vld [vmem:[#allocation3 + $0x310] sm:$0xff]
      %v4792 = vld [vmem:[#allocation3 + $0x318] sm:$0xff]
      %v4793 = vld [vmem:[#allocation3 + $0x320] sm:$0xff]
      %v4794 = vld [vmem:[#allocation3 + $0x328] sm:$0xff]
      %v4795 = vld [vmem:[#allocation3 + $0x330] sm:$0xff]
      %v4796 = vld [vmem:[#allocation3 + $0x338] sm:$0xff]
      %v4797 = vld [vmem:[#allocation3 + $0x340] sm:$0xff]
      %v4798 = vld [vmem:[#allocation3 + $0x348] sm:$0xff]
      %v4799 = vld [vmem:[#allocation3 + $0x350] sm:$0xff]
      %v4800 = vld [vmem:[#allocation3 + $0x358] sm:$0xff]
      %v4801 = vld [vmem:[#allocation3 + $0x360] sm:$0xff]
      %v4802 = vld [vmem:[#allocation3 + $0x368] sm:$0xff]
      %v4803 = vld [vmem:[#allocation3 + $0x370] sm:$0xff]
      %v4804 = vld [vmem:[#allocation3 + $0x378] sm:$0xff]
      %v4805 = vld [vmem:[#allocation3 + $0x380] sm:$0xff]
      %v4806 = vld [vmem:[#allocation3 + $0x388] sm:$0xff]
      %v4807 = vld [vmem:[#allocation3 + $0x390] sm:$0xff]
      %v4808 = vld [vmem:[#allocation3 + $0x398] sm:$0xff]
      %v4809 = vld [vmem:[#allocation3 + $0x3a0] sm:$0xff]
      %v4810 = vld [vmem:[#allocation3 + $0x3a8] sm:$0xff]
      %v4811 = vld [vmem:[#allocation3 + $0x3b0] sm:$0xff]
      %v4812 = vld [vmem:[#allocation3 + $0x3b8] sm:$0xff]
      %v4813 = vld [vmem:[#allocation3 + $0x3c0] sm:$0xff]
      %v4814 = vld [vmem:[#allocation3 + $0x3c8] sm:$0xff]
      %v4815 = vld [vmem:[#allocation3 + $0x3d0] sm:$0xff]
      %v4816 = vld [vmem:[#allocation3 + $0x3d8] sm:$0xff]
      %v4817 = vld [vmem:[#allocation3 + $0x3e0] sm:$0xff]
      %v4818 = vld [vmem:[#allocation3 + $0x3e8] sm:$0xff]
      %v4819 = vld [vmem:[#allocation3 + $0x3f0] sm:$0xff]
      %v4820 = vld [vmem:[#allocation3 + $0x3f8] sm:$0xff]
      %v4821 = vld [vmem:[#allocation3 + $0x400] sm:$0xff]
      %v4822 = vld [vmem:[#allocation3 + $0x408] sm:$0xff]
      %v4823 = vld [vmem:[#allocation3 + $0x410] sm:$0xff]
      %v4824 = vld [vmem:[#allocation3 + $0x418] sm:$0xff]
      %v4825 = vld [vmem:[#allocation3 + $0x420] sm:$0xff]
      %v4826 = vld [vmem:[#allocation3 + $0x428] sm:$0xff]
      %v4827 = vld [vmem:[#allocation3 + $0x430] sm:$0xff]
      %v4828 = vld [vmem:[#allocation3 + $0x438] sm:$0xff]
      %v4829 = vld [vmem:[#allocation3 + $0x440] sm:$0xff]
      %v4830 = vld [vmem:[#allocation3 + $0x448] sm:$0xff]
      %v4831 = vld [vmem:[#allocation3 + $0x450] sm:$0xff]
      %v4832 = vld [vmem:[#allocation3 + $0x458] sm:$0xff]
      %v4833 = vld [vmem:[#allocation3 + $0x460] sm:$0xff]
      %v4834 = vld [vmem:[#allocation3 + $0x468] sm:$0xff]
      %v4835 = vld [vmem:[#allocation3 + $0x470] sm:$0xff]
      %v4836 = vld [vmem:[#allocation3 + $0x478] sm:$0xff]
      %v4837 = vld [vmem:[#allocation3 + $0x480] sm:$0xff]
      %v4838 = vld [vmem:[#allocation3 + $0x488] sm:$0xff]
      %v4839 = vld [vmem:[#allocation3 + $0x490] sm:$0xff]
      %v4840 = vld [vmem:[#allocation3 + $0x498] sm:$0xff]
      %v4841 = vld [vmem:[#allocation3 + $0x4a0] sm:$0xff]
      %v4842 = vld [vmem:[#allocation3 + $0x4a8] sm:$0xff]
      %v4843 = vld [vmem:[#allocation3 + $0x4b0] sm:$0xff]
      %v4844 = vld [vmem:[#allocation3 + $0x4b8] sm:$0xff]
      %v4845 = vld [vmem:[#allocation3 + $0x4c0] sm:$0xff]
      %v4846 = vld [vmem:[#allocation3 + $0x4c8] sm:$0xff]
      %v4847 = vld [vmem:[#allocation3 + $0x4d0] sm:$0xff]
      %v4848 = vld [vmem:[#allocation3 + $0x4d8] sm:$0xff]
      %v4849 = vld [vmem:[#allocation3 + $0x4e0] sm:$0xff]
      %v4850 = vld [vmem:[#allocation3 + $0x4e8] sm:$0xff]
      %v4851 = vld [vmem:[#allocation3 + $0x4f0] sm:$0xff]
      %v4852 = vld [vmem:[#allocation3 + $0x4f8] sm:$0xff]
      %v4853 = vld [vmem:[#allocation3 + $0x500] sm:$0xff]
      %v4854 = vld [vmem:[#allocation3 + $0x508] sm:$0xff]
      %v4855 = vld [vmem:[#allocation3 + $0x510] sm:$0xff]
      %v4856 = vld [vmem:[#allocation3 + $0x518] sm:$0xff]
      %v4857 = vld [vmem:[#allocation3 + $0x520] sm:$0xff]
      %v4858 = vld [vmem:[#allocation3 + $0x528] sm:$0xff]
      %v4859 = vld [vmem:[#allocation3 + $0x530] sm:$0xff]
      %v4860 = vld [vmem:[#allocation3 + $0x538] sm:$0xff]
      %v4861 = vld [vmem:[#allocation3 + $0x540] sm:$0xff]
      %v4862 = vld [vmem:[#allocation3 + $0x548] sm:$0xff]
      %v4863 = vld [vmem:[#allocation3 + $0x550] sm:$0xff]
      %v4864 = vld [vmem:[#allocation3 + $0x558] sm:$0xff]
      %v4865 = vld [vmem:[#allocation3 + $0x560] sm:$0xff]
      %v4866 = vld [vmem:[#allocation3 + $0x568] sm:$0xff]
      %v4867 = vld [vmem:[#allocation3 + $0x570] sm:$0xff]
      %v4868 = vld [vmem:[#allocation3 + $0x578] sm:$0xff]
      %v4869 = vld [vmem:[#allocation3 + $0x580] sm:$0xff]
      %v4870 = vld [vmem:[#allocation3 + $0x588] sm:$0xff]
      %v4871 = vld [vmem:[#allocation3 + $0x590] sm:$0xff]
      %v4872 = vld [vmem:[#allocation3 + $0x598] sm:$0xff]
      %v4873 = vld [vmem:[#allocation3 + $0x5a0] sm:$0xff]
      %v4874 = vld [vmem:[#allocation3 + $0x5a8] sm:$0xff]
      %v4875 = vld [vmem:[#allocation3 + $0x5b0] sm:$0xff]
      %v4876 = vld [vmem:[#allocation3 + $0x5b8] sm:$0xff]
      %v4877 = vld [vmem:[#allocation3 + $0x5c0] sm:$0xff]
      %v4878 = vld [vmem:[#allocation3 + $0x5c8] sm:$0xff]
      %v4879 = vld [vmem:[#allocation3 + $0x5d0] sm:$0xff]
      %v4880 = vld [vmem:[#allocation3 + $0x5d8] sm:$0xff]
      %v4881 = vld [vmem:[#allocation3 + $0x5e0] sm:$0xff]
      %v4882 = vld [vmem:[#allocation3 + $0x5e8] sm:$0xff]
      %v4883 = vld [vmem:[#allocation3 + $0x5f0] sm:$0xff]
      %v4884 = vld [vmem:[#allocation3 + $0x5f8] sm:$0xff]
      %v4885 = vld [vmem:[#allocation3 + $0x600] sm:$0xff]
      %v4886 = vld [vmem:[#allocation3 + $0x608] sm:$0xff]
      %v4887 = vld [vmem:[#allocation3 + $0x610] sm:$0xff]
      %v4888 = vld [vmem:[#allocation3 + $0x618] sm:$0xff]
      %v4889 = vld [vmem:[#allocation3 + $0x620] sm:$0xff]
      %v4890 = vld [vmem:[#allocation3 + $0x628] sm:$0xff]
      %v4891 = vld [vmem:[#allocation3 + $0x630] sm:$0xff]
      %v4892 = vld [vmem:[#allocation3 + $0x638] sm:$0xff]
      %v4893 = vld [vmem:[#allocation3 + $0x640] sm:$0xff]
      %v4894 = vld [vmem:[#allocation3 + $0x648] sm:$0xff]
      %v4895 = vld [vmem:[#allocation3 + $0x650] sm:$0xff]
      %v4896 = vld [vmem:[#allocation3 + $0x658] sm:$0xff]
      %v4897 = vld [vmem:[#allocation3 + $0x660] sm:$0xff]
      %v4898 = vld [vmem:[#allocation3 + $0x668] sm:$0xff]
      %v4899 = vld [vmem:[#allocation3 + $0x670] sm:$0xff]
      %v4900 = vld [vmem:[#allocation3 + $0x678] sm:$0xff]
      %v4901 = vld [vmem:[#allocation3 + $0x680] sm:$0xff]
      %v4902 = vld [vmem:[#allocation3 + $0x688] sm:$0xff]
      %v4903 = vld [vmem:[#allocation3 + $0x690] sm:$0xff]
      %v4904 = vld [vmem:[#allocation3 + $0x698] sm:$0xff]
      %v4905 = vld [vmem:[#allocation3 + $0x6a0] sm:$0xff]
      %v4906 = vld [vmem:[#allocation3 + $0x6a8] sm:$0xff]
      %v4907 = vld [vmem:[#allocation3 + $0x6b0] sm:$0xff]
      %v4908 = vld [vmem:[#allocation3 + $0x6b8] sm:$0xff]
      %v4909 = vld [vmem:[#allocation3 + $0x6c0] sm:$0xff]
      %v4910 = vld [vmem:[#allocation3 + $0x6c8] sm:$0xff]
      %v4911 = vld [vmem:[#allocation3 + $0x6d0] sm:$0xff]
      %v4912 = vld [vmem:[#allocation3 + $0x6d8] sm:$0xff]
      %v4913 = vld [vmem:[#allocation3 + $0x6e0] sm:$0xff]
      %v4914 = vld [vmem:[#allocation3 + $0x6e8] sm:$0xff]
      %v4915 = vld [vmem:[#allocation3 + $0x6f0] sm:$0xff]
      %v4916 = vld [vmem:[#allocation3 + $0x6f8] sm:$0xff]
      %v4917 = vld [vmem:[#allocation3 + $0x700] sm:$0xff]
      %v4918 = vld [vmem:[#allocation3 + $0x708] sm:$0xff]
      %v4919 = vld [vmem:[#allocation3 + $0x710] sm:$0xff]
      %v4920 = vld [vmem:[#allocation3 + $0x718] sm:$0xff]
      %v4921 = vld [vmem:[#allocation3 + $0x720] sm:$0xff]
      %v4922 = vld [vmem:[#allocation3 + $0x728] sm:$0xff]
      %v4923 = vld [vmem:[#allocation3 + $0x730] sm:$0xff]
      %v4924 = vld [vmem:[#allocation3 + $0x738] sm:$0xff]
      %v4925 = vld [vmem:[#allocation3 + $0x740] sm:$0xff]
      %v4926 = vld [vmem:[#allocation3 + $0x748] sm:$0xff]
      %v4927 = vld [vmem:[#allocation3 + $0x750] sm:$0xff]
      %v4928 = vld [vmem:[#allocation3 + $0x758] sm:$0xff]
      %v4929 = vld [vmem:[#allocation3 + $0x760] sm:$0xff]
      %v4930 = vld [vmem:[#allocation3 + $0x768] sm:$0xff]
      %v4931 = vld [vmem:[#allocation3 + $0x770] sm:$0xff]
      %v4932 = vld [vmem:[#allocation3 + $0x778] sm:$0xff]
      %v4933 = vld [vmem:[#allocation3 + $0x780] sm:$0xff]
      %v4934 = vld [vmem:[#allocation3 + $0x788] sm:$0xff]
      %v4935 = vld [vmem:[#allocation3 + $0x790] sm:$0xff]
      %v4936 = vld [vmem:[#allocation3 + $0x798] sm:$0xff]
      %v4937 = vld [vmem:[#allocation3 + $0x7a0] sm:$0xff]
      %v4938 = vld [vmem:[#allocation3 + $0x7a8] sm:$0xff]
      %v4939 = vld [vmem:[#allocation3 + $0x7b0] sm:$0xff]
      %v4940 = vld [vmem:[#allocation3 + $0x7b8] sm:$0xff]
      %v4941 = vld [vmem:[#allocation3 + $0x7c0] sm:$0xff]
      %v4942 = vld [vmem:[#allocation3 + $0x7c8] sm:$0xff]
      %v4943 = vld [vmem:[#allocation3 + $0x7d0] sm:$0xff]
      %v4944 = vld [vmem:[#allocation3 + $0x7d8] sm:$0xff]
      %v4945 = vld [vmem:[#allocation3 + $0x7e0] sm:$0xff]
      %v4946 = vld [vmem:[#allocation3 + $0x7e8] sm:$0xff]
      %v4947 = vld [vmem:[#allocation3 + $0x7f0] sm:$0xff]
      %v4948 = vld [vmem:[#allocation3 + $0x7f8] sm:$0xff]
      %vm4949 = vcmp.ge.u32.totalorder %v4693, 1288490188
      %vm4950 = vcmp.ge.u32.totalorder %v4694, 1288490188
      %vm4951 = vcmp.ge.u32.totalorder %v4695, 1288490188
      %vm4952 = vcmp.ge.u32.totalorder %v4696, 1288490188
      %vm4953 = vcmp.ge.u32.totalorder %v4697, 1288490188
      %vm4954 = vcmp.ge.u32.totalorder %v4698, 1288490188
      %vm4955 = vcmp.ge.u32.totalorder %v4699, 1288490188
      %vm4956 = vcmp.ge.u32.totalorder %v4700, 1288490188
      %vm4957 = vcmp.ge.u32.totalorder %v4701, 1288490188
      %vm4958 = vcmp.ge.u32.totalorder %v4702, 1288490188
      %vm4959 = vcmp.ge.u32.totalorder %v4703, 1288490188
      %vm4960 = vcmp.ge.u32.totalorder %v4704, 1288490188
      %vm4961 = vcmp.ge.u32.totalorder %v4705, 1288490188
      %vm4962 = vcmp.ge.u32.totalorder %v4706, 1288490188
      %vm4963 = vcmp.ge.u32.totalorder %v4707, 1288490188
      %vm4964 = vcmp.ge.u32.totalorder %v4708, 1288490188
      %vm4965 = vcmp.ge.u32.totalorder %v4709, 1288490188
      %vm4966 = vcmp.ge.u32.totalorder %v4710, 1288490188
      %vm4967 = vcmp.ge.u32.totalorder %v4711, 1288490188
      %vm4968 = vcmp.ge.u32.totalorder %v4712, 1288490188
      %vm4969 = vcmp.ge.u32.totalorder %v4713, 1288490188
      %vm4970 = vcmp.ge.u32.totalorder %v4714, 1288490188
      %vm4971 = vcmp.ge.u32.totalorder %v4715, 1288490188
      %vm4972 = vcmp.ge.u32.totalorder %v4716, 1288490188
      %vm4973 = vcmp.ge.u32.totalorder %v4717, 1288490188
      %vm4974 = vcmp.ge.u32.totalorder %v4718, 1288490188
      %vm4975 = vcmp.ge.u32.totalorder %v4719, 1288490188
      %vm4976 = vcmp.ge.u32.totalorder %v4720, 1288490188
      %vm4977 = vcmp.ge.u32.totalorder %v4721, 1288490188
      %vm4978 = vcmp.ge.u32.totalorder %v4722, 1288490188
      %vm4979 = vcmp.ge.u32.totalorder %v4723, 1288490188
      %vm4980 = vcmp.ge.u32.totalorder %v4724, 1288490188
      %vm4981 = vcmp.ge.u32.totalorder %v4725, 1288490188
      %vm4982 = vcmp.ge.u32.totalorder %v4726, 1288490188
      %vm4983 = vcmp.ge.u32.totalorder %v4727, 1288490188
      %vm4984 = vcmp.ge.u32.totalorder %v4728, 1288490188
      %vm4985 = vcmp.ge.u32.totalorder %v4729, 1288490188
      %vm4986 = vcmp.ge.u32.totalorder %v4730, 1288490188
      %vm4987 = vcmp.ge.u32.totalorder %v4731, 1288490188
      %vm4988 = vcmp.ge.u32.totalorder %v4732, 1288490188
      %vm4989 = vcmp.ge.u32.totalorder %v4733, 1288490188
      %vm4990 = vcmp.ge.u32.totalorder %v4734, 1288490188
      %vm4991 = vcmp.ge.u32.totalorder %v4735, 1288490188
      %vm4992 = vcmp.ge.u32.totalorder %v4736, 1288490188
      %vm4993 = vcmp.ge.u32.totalorder %v4737, 1288490188
      %vm4994 = vcmp.ge.u32.totalorder %v4738, 1288490188
      %vm4995 = vcmp.ge.u32.totalorder %v4739, 1288490188
      %vm4996 = vcmp.ge.u32.totalorder %v4740, 1288490188
      %vm4997 = vcmp.ge.u32.totalorder %v4741, 1288490188
      %vm4998 = vcmp.ge.u32.totalorder %v4742, 1288490188
      %vm4999 = vcmp.ge.u32.totalorder %v4743, 1288490188
      %vm5000 = vcmp.ge.u32.totalorder %v4744, 1288490188
      %vm5001 = vcmp.ge.u32.totalorder %v4745, 1288490188
      %vm5002 = vcmp.ge.u32.totalorder %v4746, 1288490188
      %vm5003 = vcmp.ge.u32.totalorder %v4747, 1288490188
      %vm5004 = vcmp.ge.u32.totalorder %v4748, 1288490188
      %vm5005 = vcmp.ge.u32.totalorder %v4749, 1288490188
      %vm5006 = vcmp.ge.u32.totalorder %v4750, 1288490188
      %vm5007 = vcmp.ge.u32.totalorder %v4751, 1288490188
      %vm5008 = vcmp.ge.u32.totalorder %v4752, 1288490188
      %vm5009 = vcmp.ge.u32.totalorder %v4753, 1288490188
      %vm5010 = vcmp.ge.u32.totalorder %v4754, 1288490188
      %vm5011 = vcmp.ge.u32.totalorder %v4755, 1288490188
      %vm5012 = vcmp.ge.u32.totalorder %v4756, 1288490188
      %vm5013 = vcmp.ge.u32.totalorder %v4757, 1288490188
      %vm5014 = vcmp.ge.u32.totalorder %v4758, 1288490188
      %vm5015 = vcmp.ge.u32.totalorder %v4759, 1288490188
      %vm5016 = vcmp.ge.u32.totalorder %v4760, 1288490188
      %vm5017 = vcmp.ge.u32.totalorder %v4761, 1288490188
      %vm5018 = vcmp.ge.u32.totalorder %v4762, 1288490188
      %vm5019 = vcmp.ge.u32.totalorder %v4763, 1288490188
      %vm5020 = vcmp.ge.u32.totalorder %v4764, 1288490188
      %vm5021 = vcmp.ge.u32.totalorder %v4765, 1288490188
      %vm5022 = vcmp.ge.u32.totalorder %v4766, 1288490188
      %vm5023 = vcmp.ge.u32.totalorder %v4767, 1288490188
      %vm5024 = vcmp.ge.u32.totalorder %v4768, 1288490188
      %vm5025 = vcmp.ge.u32.totalorder %v4769, 1288490188
      %vm5026 = vcmp.ge.u32.totalorder %v4770, 1288490188
      %vm5027 = vcmp.ge.u32.totalorder %v4771, 1288490188
      %vm5028 = vcmp.ge.u32.totalorder %v4772, 1288490188
      %vm5029 = vcmp.ge.u32.totalorder %v4773, 1288490188
      %vm5030 = vcmp.ge.u32.totalorder %v4774, 1288490188
      %vm5031 = vcmp.ge.u32.totalorder %v4775, 1288490188
      %vm5032 = vcmp.ge.u32.totalorder %v4776, 1288490188
      %vm5033 = vcmp.ge.u32.totalorder %v4777, 1288490188
      %vm5034 = vcmp.ge.u32.totalorder %v4778, 1288490188
      %vm5035 = vcmp.ge.u32.totalorder %v4779, 1288490188
      %vm5036 = vcmp.ge.u32.totalorder %v4780, 1288490188
      %vm5037 = vcmp.ge.u32.totalorder %v4781, 1288490188
      %vm5038 = vcmp.ge.u32.totalorder %v4782, 1288490188
      %vm5039 = vcmp.ge.u32.totalorder %v4783, 1288490188
      %vm5040 = vcmp.ge.u32.totalorder %v4784, 1288490188
      %vm5041 = vcmp.ge.u32.totalorder %v4785, 1288490188
      %vm5042 = vcmp.ge.u32.totalorder %v4786, 1288490188
      %vm5043 = vcmp.ge.u32.totalorder %v4787, 1288490188
      %vm5044 = vcmp.ge.u32.totalorder %v4788, 1288490188
      %vm5045 = vcmp.ge.u32.totalorder %v4789, 1288490188
      %vm5046 = vcmp.ge.u32.totalorder %v4790, 1288490188
      %vm5047 = vcmp.ge.u32.totalorder %v4791, 1288490188
      %vm5048 = vcmp.ge.u32.totalorder %v4792, 1288490188
      %vm5049 = vcmp.ge.u32.totalorder %v4793, 1288490188
      %vm5050 = vcmp.ge.u32.totalorder %v4794, 1288490188
      %vm5051 = vcmp.ge.u32.totalorder %v4795, 1288490188
      %vm5052 = vcmp.ge.u32.totalorder %v4796, 1288490188
      %vm5053 = vcmp.ge.u32.totalorder %v4797, 1288490188
      %vm5054 = vcmp.ge.u32.totalorder %v4798, 1288490188
      %vm5055 = vcmp.ge.u32.totalorder %v4799, 1288490188
      %vm5056 = vcmp.ge.u32.totalorder %v4800, 1288490188
      %vm5057 = vcmp.ge.u32.totalorder %v4801, 1288490188
      %vm5058 = vcmp.ge.u32.totalorder %v4802, 1288490188
      %vm5059 = vcmp.ge.u32.totalorder %v4803, 1288490188
      %vm5060 = vcmp.ge.u32.totalorder %v4804, 1288490188
      %vm5061 = vcmp.ge.u32.totalorder %v4805, 1288490188
      %vm5062 = vcmp.ge.u32.totalorder %v4806, 1288490188
      %vm5063 = vcmp.ge.u32.totalorder %v4807, 1288490188
      %vm5064 = vcmp.ge.u32.totalorder %v4808, 1288490188
      %vm5065 = vcmp.ge.u32.totalorder %v4809, 1288490188
      %vm5066 = vcmp.ge.u32.totalorder %v4810, 1288490188
      %vm5067 = vcmp.ge.u32.totalorder %v4811, 1288490188
      %vm5068 = vcmp.ge.u32.totalorder %v4812, 1288490188
      %vm5069 = vcmp.ge.u32.totalorder %v4813, 1288490188
      %vm5070 = vcmp.ge.u32.totalorder %v4814, 1288490188
      %vm5071 = vcmp.ge.u32.totalorder %v4815, 1288490188
      %vm5072 = vcmp.ge.u32.totalorder %v4816, 1288490188
      %vm5073 = vcmp.ge.u32.totalorder %v4817, 1288490188
      %vm5074 = vcmp.ge.u32.totalorder %v4818, 1288490188
      %vm5075 = vcmp.ge.u32.totalorder %v4819, 1288490188
      %vm5076 = vcmp.ge.u32.totalorder %v4820, 1288490188
      %vm5077 = vcmp.ge.u32.totalorder %v4821, 1288490188
      %vm5078 = vcmp.ge.u32.totalorder %v4822, 1288490188
      %vm5079 = vcmp.ge.u32.totalorder %v4823, 1288490188
      %vm5080 = vcmp.ge.u32.totalorder %v4824, 1288490188
      %vm5081 = vcmp.ge.u32.totalorder %v4825, 1288490188
      %vm5082 = vcmp.ge.u32.totalorder %v4826, 1288490188
      %vm5083 = vcmp.ge.u32.totalorder %v4827, 1288490188
      %vm5084 = vcmp.ge.u32.totalorder %v4828, 1288490188
      %vm5085 = vcmp.ge.u32.totalorder %v4829, 1288490188
      %vm5086 = vcmp.ge.u32.totalorder %v4830, 1288490188
      %vm5087 = vcmp.ge.u32.totalorder %v4831, 1288490188
      %vm5088 = vcmp.ge.u32.totalorder %v4832, 1288490188
      %vm5089 = vcmp.ge.u32.totalorder %v4833, 1288490188
      %vm5090 = vcmp.ge.u32.totalorder %v4834, 1288490188
      %vm5091 = vcmp.ge.u32.totalorder %v4835, 1288490188
      %vm5092 = vcmp.ge.u32.totalorder %v4836, 1288490188
      %vm5093 = vcmp.ge.u32.totalorder %v4837, 1288490188
      %vm5094 = vcmp.ge.u32.totalorder %v4838, 1288490188
      %vm5095 = vcmp.ge.u32.totalorder %v4839, 1288490188
      %vm5096 = vcmp.ge.u32.totalorder %v4840, 1288490188
      %vm5097 = vcmp.ge.u32.totalorder %v4841, 1288490188
      %vm5098 = vcmp.ge.u32.totalorder %v4842, 1288490188
      %vm5099 = vcmp.ge.u32.totalorder %v4843, 1288490188
      %vm5100 = vcmp.ge.u32.totalorder %v4844, 1288490188
      %vm5101 = vcmp.ge.u32.totalorder %v4845, 1288490188
      %vm5102 = vcmp.ge.u32.totalorder %v4846, 1288490188
      %vm5103 = vcmp.ge.u32.totalorder %v4847, 1288490188
      %vm5104 = vcmp.ge.u32.totalorder %v4848, 1288490188
      %vm5105 = vcmp.ge.u32.totalorder %v4849, 1288490188
      %vm5106 = vcmp.ge.u32.totalorder %v4850, 1288490188
      %vm5107 = vcmp.ge.u32.totalorder %v4851, 1288490188
      %vm5108 = vcmp.ge.u32.totalorder %v4852, 1288490188
      %vm5109 = vcmp.ge.u32.totalorder %v4853, 1288490188
      %vm5110 = vcmp.ge.u32.totalorder %v4854, 1288490188
      %vm5111 = vcmp.ge.u32.totalorder %v4855, 1288490188
      %vm5112 = vcmp.ge.u32.totalorder %v4856, 1288490188
      %vm5113 = vcmp.ge.u32.totalorder %v4857, 1288490188
      %vm5114 = vcmp.ge.u32.totalorder %v4858, 1288490188
      %vm5115 = vcmp.ge.u32.totalorder %v4859, 1288490188
      %vm5116 = vcmp.ge.u32.totalorder %v4860, 1288490188
      %vm5117 = vcmp.ge.u32.totalorder %v4861, 1288490188
      %vm5118 = vcmp.ge.u32.totalorder %v4862, 1288490188
      %vm5119 = vcmp.ge.u32.totalorder %v4863, 1288490188
      %vm5120 = vcmp.ge.u32.totalorder %v4864, 1288490188
      %vm5121 = vcmp.ge.u32.totalorder %v4865, 1288490188
      %vm5122 = vcmp.ge.u32.totalorder %v4866, 1288490188
      %vm5123 = vcmp.ge.u32.totalorder %v4867, 1288490188
      %vm5124 = vcmp.ge.u32.totalorder %v4868, 1288490188
      %vm5125 = vcmp.ge.u32.totalorder %v4869, 1288490188
      %vm5126 = vcmp.ge.u32.totalorder %v4870, 1288490188
      %vm5127 = vcmp.ge.u32.totalorder %v4871, 1288490188
      %vm5128 = vcmp.ge.u32.totalorder %v4872, 1288490188
      %vm5129 = vcmp.ge.u32.totalorder %v4873, 1288490188
      %vm5130 = vcmp.ge.u32.totalorder %v4874, 1288490188
      %vm5131 = vcmp.ge.u32.totalorder %v4875, 1288490188
      %vm5132 = vcmp.ge.u32.totalorder %v4876, 1288490188
      %vm5133 = vcmp.ge.u32.totalorder %v4877, 1288490188
      %vm5134 = vcmp.ge.u32.totalorder %v4878, 1288490188
      %vm5135 = vcmp.ge.u32.totalorder %v4879, 1288490188
      %vm5136 = vcmp.ge.u32.totalorder %v4880, 1288490188
      %vm5137 = vcmp.ge.u32.totalorder %v4881, 1288490188
      %vm5138 = vcmp.ge.u32.totalorder %v4882, 1288490188
      %vm5139 = vcmp.ge.u32.totalorder %v4883, 1288490188
      %vm5140 = vcmp.ge.u32.totalorder %v4884, 1288490188
      %vm5141 = vcmp.ge.u32.totalorder %v4885, 1288490188
      %vm5142 = vcmp.ge.u32.totalorder %v4886, 1288490188
      %vm5143 = vcmp.ge.u32.totalorder %v4887, 1288490188
      %vm5144 = vcmp.ge.u32.totalorder %v4888, 1288490188
      %vm5145 = vcmp.ge.u32.totalorder %v4889, 1288490188
      %vm5146 = vcmp.ge.u32.totalorder %v4890, 1288490188
      %vm5147 = vcmp.ge.u32.totalorder %v4891, 1288490188
      %vm5148 = vcmp.ge.u32.totalorder %v4892, 1288490188
      %vm5149 = vcmp.ge.u32.totalorder %v4893, 1288490188
      %vm5150 = vcmp.ge.u32.totalorder %v4894, 1288490188
      %vm5151 = vcmp.ge.u32.totalorder %v4895, 1288490188
      %vm5152 = vcmp.ge.u32.totalorder %v4896, 1288490188
      %vm5153 = vcmp.ge.u32.totalorder %v4897, 1288490188
      %vm5154 = vcmp.ge.u32.totalorder %v4898, 1288490188
      %vm5155 = vcmp.ge.u32.totalorder %v4899, 1288490188
      %vm5156 = vcmp.ge.u32.totalorder %v4900, 1288490188
      %vm5157 = vcmp.ge.u32.totalorder %v4901, 1288490188
      %vm5158 = vcmp.ge.u32.totalorder %v4902, 1288490188
      %vm5159 = vcmp.ge.u32.totalorder %v4903, 1288490188
      %vm5160 = vcmp.ge.u32.totalorder %v4904, 1288490188
      %vm5161 = vcmp.ge.u32.totalorder %v4905, 1288490188
      %vm5162 = vcmp.ge.u32.totalorder %v4906, 1288490188
      %vm5163 = vcmp.ge.u32.totalorder %v4907, 1288490188
      %vm5164 = vcmp.ge.u32.totalorder %v4908, 1288490188
      %vm5165 = vcmp.ge.u32.totalorder %v4909, 1288490188
      %vm5166 = vcmp.ge.u32.totalorder %v4910, 1288490188
      %vm5167 = vcmp.ge.u32.totalorder %v4911, 1288490188
      %vm5168 = vcmp.ge.u32.totalorder %v4912, 1288490188
      %vm5169 = vcmp.ge.u32.totalorder %v4913, 1288490188
      %vm5170 = vcmp.ge.u32.totalorder %v4914, 1288490188
      %vm5171 = vcmp.ge.u32.totalorder %v4915, 1288490188
      %vm5172 = vcmp.ge.u32.totalorder %v4916, 1288490188
      %vm5173 = vcmp.ge.u32.totalorder %v4917, 1288490188
      %vm5174 = vcmp.ge.u32.totalorder %v4918, 1288490188
      %vm5175 = vcmp.ge.u32.totalorder %v4919, 1288490188
      %vm5176 = vcmp.ge.u32.totalorder %v4920, 1288490188
      %vm5177 = vcmp.ge.u32.totalorder %v4921, 1288490188
      %vm5178 = vcmp.ge.u32.totalorder %v4922, 1288490188
      %vm5179 = vcmp.ge.u32.totalorder %v4923, 1288490188
      %vm5180 = vcmp.ge.u32.totalorder %v4924, 1288490188
      %vm5181 = vcmp.ge.u32.totalorder %v4925, 1288490188
      %vm5182 = vcmp.ge.u32.totalorder %v4926, 1288490188
      %vm5183 = vcmp.ge.u32.totalorder %v4927, 1288490188
      %vm5184 = vcmp.ge.u32.totalorder %v4928, 1288490188
      %vm5185 = vcmp.ge.u32.totalorder %v4929, 1288490188
      %vm5186 = vcmp.ge.u32.totalorder %v4930, 1288490188
      %vm5187 = vcmp.ge.u32.totalorder %v4931, 1288490188
      %vm5188 = vcmp.ge.u32.totalorder %v4932, 1288490188
      %vm5189 = vcmp.ge.u32.totalorder %v4933, 1288490188
      %vm5190 = vcmp.ge.u32.totalorder %v4934, 1288490188
      %vm5191 = vcmp.ge.u32.totalorder %v4935, 1288490188
      %vm5192 = vcmp.ge.u32.totalorder %v4936, 1288490188
      %vm5193 = vcmp.ge.u32.totalorder %v4937, 1288490188
      %vm5194 = vcmp.ge.u32.totalorder %v4938, 1288490188
      %vm5195 = vcmp.ge.u32.totalorder %v4939, 1288490188
      %vm5196 = vcmp.ge.u32.totalorder %v4940, 1288490188
      %vm5197 = vcmp.ge.u32.totalorder %v4941, 1288490188
      %vm5198 = vcmp.ge.u32.totalorder %v4942, 1288490188
      %vm5199 = vcmp.ge.u32.totalorder %v4943, 1288490188
      %vm5200 = vcmp.ge.u32.totalorder %v4944, 1288490188
      %vm5201 = vcmp.ge.u32.totalorder %v4945, 1288490188
      %vm5202 = vcmp.ge.u32.totalorder %v4946, 1288490188
      %vm5203 = vcmp.ge.u32.totalorder %v4947, 1288490188
      %vm5204 = vcmp.ge.u32.totalorder %v4948, 1288490188
      %v5205 = vsel %vm4949, %v4437, 0.0
      %v5206 = vsel %vm4950, %v4438, 0.0
      %v5207 = vsel %vm4951, %v4439, 0.0
      %v5208 = vsel %vm4952, %v4440, 0.0
      %v5209 = vsel %vm4953, %v4441, 0.0
      %v5210 = vsel %vm4954, %v4442, 0.0
      %v5211 = vsel %vm4955, %v4443, 0.0
      %v5212 = vsel %vm4956, %v4444, 0.0
      %v5213 = vsel %vm4957, %v4445, 0.0
      %v5214 = vsel %vm4958, %v4446, 0.0
      %v5215 = vsel %vm4959, %v4447, 0.0
      %v5216 = vsel %vm4960, %v4448, 0.0
      %v5217 = vsel %vm4961, %v4449, 0.0
      %v5218 = vsel %vm4962, %v4450, 0.0
      %v5219 = vsel %vm4963, %v4451, 0.0
      %v5220 = vsel %vm4964, %v4452, 0.0
      %v5221 = vsel %vm4965, %v4453, 0.0
      %v5222 = vsel %vm4966, %v4454, 0.0
      %v5223 = vsel %vm4967, %v4455, 0.0
      %v5224 = vsel %vm4968, %v4456, 0.0
      %v5225 = vsel %vm4969, %v4457, 0.0
      %v5226 = vsel %vm4970, %v4458, 0.0
      %v5227 = vsel %vm4971, %v4459, 0.0
      %v5228 = vsel %vm4972, %v4460, 0.0
      %v5229 = vsel %vm4973, %v4461, 0.0
      %v5230 = vsel %vm4974, %v4462, 0.0
      %v5231 = vsel %vm4975, %v4463, 0.0
      %v5232 = vsel %vm4976, %v4464, 0.0
      %v5233 = vsel %vm4977, %v4465, 0.0
      %v5234 = vsel %vm4978, %v4466, 0.0
      %v5235 = vsel %vm4979, %v4467, 0.0
      %v5236 = vsel %vm4980, %v4468, 0.0
      %v5237 = vsel %vm4981, %v4469, 0.0
      %v5238 = vsel %vm4982, %v4470, 0.0
      %v5239 = vsel %vm4983, %v4471, 0.0
      %v5240 = vsel %vm4984, %v4472, 0.0
      %v5241 = vsel %vm4985, %v4473, 0.0
      %v5242 = vsel %vm4986, %v4474, 0.0
      %v5243 = vsel %vm4987, %v4475, 0.0
      %v5244 = vsel %vm4988, %v4476, 0.0
      %v5245 = vsel %vm4989, %v4477, 0.0
      %v5246 = vsel %vm4990, %v4478, 0.0
      %v5247 = vsel %vm4991, %v4479, 0.0
      %v5248 = vsel %vm4992, %v4480, 0.0
      %v5249 = vsel %vm4993, %v4481, 0.0
      %v5250 = vsel %vm4994, %v4482, 0.0
      %v5251 = vsel %vm4995, %v4483, 0.0
      %v5252 = vsel %vm4996, %v4484, 0.0
      %v5253 = vsel %vm4997, %v4485, 0.0
      %v5254 = vsel %vm4998, %v4486, 0.0
      %v5255 = vsel %vm4999, %v4487, 0.0
      %v5256 = vsel %vm5000, %v4488, 0.0
      %v5257 = vsel %vm5001, %v4489, 0.0
      %v5258 = vsel %vm5002, %v4490, 0.0
      %v5259 = vsel %vm5003, %v4491, 0.0
      %v5260 = vsel %vm5004, %v4492, 0.0
      %v5261 = vsel %vm5005, %v4493, 0.0
      %v5262 = vsel %vm5006, %v4494, 0.0
      %v5263 = vsel %vm5007, %v4495, 0.0
      %v5264 = vsel %vm5008, %v4496, 0.0
      %v5265 = vsel %vm5009, %v4497, 0.0
      %v5266 = vsel %vm5010, %v4498, 0.0
      %v5267 = vsel %vm5011, %v4499, 0.0
      %v5268 = vsel %vm5012, %v4500, 0.0
      %v5269 = vsel %vm5013, %v4501, 0.0
      %v5270 = vsel %vm5014, %v4502, 0.0
      %v5271 = vsel %vm5015, %v4503, 0.0
      %v5272 = vsel %vm5016, %v4504, 0.0
      %v5273 = vsel %vm5017, %v4505, 0.0
      %v5274 = vsel %vm5018, %v4506, 0.0
      %v5275 = vsel %vm5019, %v4507, 0.0
      %v5276 = vsel %vm5020, %v4508, 0.0
      %v5277 = vsel %vm5021, %v4509, 0.0
      %v5278 = vsel %vm5022, %v4510, 0.0
      %v5279 = vsel %vm5023, %v4511, 0.0
      %v5280 = vsel %vm5024, %v4512, 0.0
      %v5281 = vsel %vm5025, %v4513, 0.0
      %v5282 = vsel %vm5026, %v4514, 0.0
      %v5283 = vsel %vm5027, %v4515, 0.0
      %v5284 = vsel %vm5028, %v4516, 0.0
      %v5285 = vsel %vm5029, %v4517, 0.0
      %v5286 = vsel %vm5030, %v4518, 0.0
      %v5287 = vsel %vm5031, %v4519, 0.0
      %v5288 = vsel %vm5032, %v4520, 0.0
      %v5289 = vsel %vm5033, %v4521, 0.0
      %v5290 = vsel %vm5034, %v4522, 0.0
      %v5291 = vsel %vm5035, %v4523, 0.0
      %v5292 = vsel %vm5036, %v4524, 0.0
      %v5293 = vsel %vm5037, %v4525, 0.0
      %v5294 = vsel %vm5038, %v4526, 0.0
      %v5295 = vsel %vm5039, %v4527, 0.0
      %v5296 = vsel %vm5040, %v4528, 0.0
      %v5297 = vsel %vm5041, %v4529, 0.0
      %v5298 = vsel %vm5042, %v4530, 0.0
      %v5299 = vsel %vm5043, %v4531, 0.0
      %v5300 = vsel %vm5044, %v4532, 0.0
      %v5301 = vsel %vm5045, %v4533, 0.0
      %v5302 = vsel %vm5046, %v4534, 0.0
      %v5303 = vsel %vm5047, %v4535, 0.0
      %v5304 = vsel %vm5048, %v4536, 0.0
      %v5305 = vsel %vm5049, %v4537, 0.0
      %v5306 = vsel %vm5050, %v4538, 0.0
      %v5307 = vsel %vm5051, %v4539, 0.0
      %v5308 = vsel %vm5052, %v4540, 0.0
      %v5309 = vsel %vm5053, %v4541, 0.0
      %v5310 = vsel %vm5054, %v4542, 0.0
      %v5311 = vsel %vm5055, %v4543, 0.0
      %v5312 = vsel %vm5056, %v4544, 0.0
      %v5313 = vsel %vm5057, %v4545, 0.0
      %v5314 = vsel %vm5058, %v4546, 0.0
      %v5315 = vsel %vm5059, %v4547, 0.0
      %v5316 = vsel %vm5060, %v4548, 0.0
      %v5317 = vsel %vm5061, %v4549, 0.0
      %v5318 = vsel %vm5062, %v4550, 0.0
      %v5319 = vsel %vm5063, %v4551, 0.0
      %v5320 = vsel %vm5064, %v4552, 0.0
      %v5321 = vsel %vm5065, %v4553, 0.0
      %v5322 = vsel %vm5066, %v4554, 0.0
      %v5323 = vsel %vm5067, %v4555, 0.0
      %v5324 = vsel %vm5068, %v4556, 0.0
      %v5325 = vsel %vm5069, %v4557, 0.0
      %v5326 = vsel %vm5070, %v4558, 0.0
      %v5327 = vsel %vm5071, %v4559, 0.0
      %v5328 = vsel %vm5072, %v4560, 0.0
      %v5329 = vsel %vm5073, %v4561, 0.0
      %v5330 = vsel %vm5074, %v4562, 0.0
      %v5331 = vsel %vm5075, %v4563, 0.0
      %v5332 = vsel %vm5076, %v4564, 0.0
      %v5333 = vsel %vm5077, %v4565, 0.0
      %v5334 = vsel %vm5078, %v4566, 0.0
      %v5335 = vsel %vm5079, %v4567, 0.0
      %v5336 = vsel %vm5080, %v4568, 0.0
      %v5337 = vsel %vm5081, %v4569, 0.0
      %v5338 = vsel %vm5082, %v4570, 0.0
      %v5339 = vsel %vm5083, %v4571, 0.0
      %v5340 = vsel %vm5084, %v4572, 0.0
      %v5341 = vsel %vm5085, %v4573, 0.0
      %v5342 = vsel %vm5086, %v4574, 0.0
      %v5343 = vsel %vm5087, %v4575, 0.0
      %v5344 = vsel %vm5088, %v4576, 0.0
      %v5345 = vsel %vm5089, %v4577, 0.0
      %v5346 = vsel %vm5090, %v4578, 0.0
      %v5347 = vsel %vm5091, %v4579, 0.0
      %v5348 = vsel %vm5092, %v4580, 0.0
      %v5349 = vsel %vm5093, %v4581, 0.0
      %v5350 = vsel %vm5094, %v4582, 0.0
      %v5351 = vsel %vm5095, %v4583, 0.0
      %v5352 = vsel %vm5096, %v4584, 0.0
      %v5353 = vsel %vm5097, %v4585, 0.0
      %v5354 = vsel %vm5098, %v4586, 0.0
      %v5355 = vsel %vm5099, %v4587, 0.0
      %v5356 = vsel %vm5100, %v4588, 0.0
      %v5357 = vsel %vm5101, %v4589, 0.0
      %v5358 = vsel %vm5102, %v4590, 0.0
      %v5359 = vsel %vm5103, %v4591, 0.0
      %v5360 = vsel %vm5104, %v4592, 0.0
      %v5361 = vsel %vm5105, %v4593, 0.0
      %v5362 = vsel %vm5106, %v4594, 0.0
      %v5363 = vsel %vm5107, %v4595, 0.0
      %v5364 = vsel %vm5108, %v4596, 0.0
      %v5365 = vsel %vm5109, %v4597, 0.0
      %v5366 = vsel %vm5110, %v4598, 0.0
      %v5367 = vsel %vm5111, %v4599, 0.0
      %v5368 = vsel %vm5112, %v4600, 0.0
      %v5369 = vsel %vm5113, %v4601, 0.0
      %v5370 = vsel %vm5114, %v4602, 0.0
      %v5371 = vsel %vm5115, %v4603, 0.0
      %v5372 = vsel %vm5116, %v4604, 0.0
      %v5373 = vsel %vm5117, %v4605, 0.0
      %v5374 = vsel %vm5118, %v4606, 0.0
      %v5375 = vsel %vm5119, %v4607, 0.0
      %v5376 = vsel %vm5120, %v4608, 0.0
      %v5377 = vsel %vm5121, %v4609, 0.0
      %v5378 = vsel %vm5122, %v4610, 0.0
      %v5379 = vsel %vm5123, %v4611, 0.0
      %v5380 = vsel %vm5124, %v4612, 0.0
      %v5381 = vsel %vm5125, %v4613, 0.0
      %v5382 = vsel %vm5126, %v4614, 0.0
      %v5383 = vsel %vm5127, %v4615, 0.0
      %v5384 = vsel %vm5128, %v4616, 0.0
      %v5385 = vsel %vm5129, %v4617, 0.0
      %v5386 = vsel %vm5130, %v4618, 0.0
      %v5387 = vsel %vm5131, %v4619, 0.0
      %v5388 = vsel %vm5132, %v4620, 0.0
      %v5389 = vsel %vm5133, %v4621, 0.0
      %v5390 = vsel %vm5134, %v4622, 0.0
      %v5391 = vsel %vm5135, %v4623, 0.0
      %v5392 = vsel %vm5136, %v4624, 0.0
      %v5393 = vsel %vm5137, %v4625, 0.0
      %v5394 = vsel %vm5138, %v4626, 0.0
      %v5395 = vsel %vm5139, %v4627, 0.0
      %v5396 = vsel %vm5140, %v4628, 0.0
      %v5397 = vsel %vm5141, %v4629, 0.0
      %v5398 = vsel %vm5142, %v4630, 0.0
      %v5399 = vsel %vm5143, %v4631, 0.0
      %v5400 = vsel %vm5144, %v4632, 0.0
      %v5401 = vsel %vm5145, %v4633, 0.0
      %v5402 = vsel %vm5146, %v4634, 0.0
      %v5403 = vsel %vm5147, %v4635, 0.0
      %v5404 = vsel %vm5148, %v4636, 0.0
      %v5405 = vsel %vm5149, %v4637, 0.0
      %v5406 = vsel %vm5150, %v4638, 0.0
      %v5407 = vsel %vm5151, %v4639, 0.0
      %v5408 = vsel %vm5152, %v4640, 0.0
      %v5409 = vsel %vm5153, %v4641, 0.0
      %v5410 = vsel %vm5154, %v4642, 0.0
      %v5411 = vsel %vm5155, %v4643, 0.0
      %v5412 = vsel %vm5156, %v4644, 0.0
      %v5413 = vsel %vm5157, %v4645, 0.0
      %v5414 = vsel %vm5158, %v4646, 0.0
      %v5415 = vsel %vm5159, %v4647, 0.0
      %v5416 = vsel %vm5160, %v4648, 0.0
      %v5417 = vsel %vm5161, %v4649, 0.0
      %v5418 = vsel %vm5162, %v4650, 0.0
      %v5419 = vsel %vm5163, %v4651, 0.0
      %v5420 = vsel %vm5164, %v4652, 0.0
      %v5421 = vsel %vm5165, %v4653, 0.0
      %v5422 = vsel %vm5166, %v4654, 0.0
      %v5423 = vsel %vm5167, %v4655, 0.0
      %v5424 = vsel %vm5168, %v4656, 0.0
      %v5425 = vsel %vm5169, %v4657, 0.0
      %v5426 = vsel %vm5170, %v4658, 0.0
      %v5427 = vsel %vm5171, %v4659, 0.0
      %v5428 = vsel %vm5172, %v4660, 0.0
      %v5429 = vsel %vm5173, %v4661, 0.0
      %v5430 = vsel %vm5174, %v4662, 0.0
      %v5431 = vsel %vm5175, %v4663, 0.0
      %v5432 = vsel %vm5176, %v4664, 0.0
      %v5433 = vsel %vm5177, %v4665, 0.0
      %v5434 = vsel %vm5178, %v4666, 0.0
      %v5435 = vsel %vm5179, %v4667, 0.0
      %v5436 = vsel %vm5180, %v4668, 0.0
      %v5437 = vsel %vm5181, %v4669, 0.0
      %v5438 = vsel %vm5182, %v4670, 0.0
      %v5439 = vsel %vm5183, %v4671, 0.0
      %v5440 = vsel %vm5184, %v4672, 0.0
      %v5441 = vsel %vm5185, %v4673, 0.0
      %v5442 = vsel %vm5186, %v4674, 0.0
      %v5443 = vsel %vm5187, %v4675, 0.0
      %v5444 = vsel %vm5188, %v4676, 0.0
      %v5445 = vsel %vm5189, %v4677, 0.0
      %v5446 = vsel %vm5190, %v4678, 0.0
      %v5447 = vsel %vm5191, %v4679, 0.0
      %v5448 = vsel %vm5192, %v4680, 0.0
      %v5449 = vsel %vm5193, %v4681, 0.0
      %v5450 = vsel %vm5194, %v4682, 0.0
      %v5451 = vsel %vm5195, %v4683, 0.0
      %v5452 = vsel %vm5196, %v4684, 0.0
      %v5453 = vsel %vm5197, %v4685, 0.0
      %v5454 = vsel %vm5198, %v4686, 0.0
      %v5455 = vsel %vm5199, %v4687, 0.0
      %v5456 = vsel %vm5200, %v4688, 0.0
      %v5457 = vsel %vm5201, %v4689, 0.0
      %v5458 = vsel %vm5202, %v4690, 0.0
      %v5459 = vsel %vm5203, %v4691, 0.0
      %v5460 = vsel %vm5204, %v4692, 0.0
      %v5461 = vpack.c.bf16 %v5206, %v5205
      %v5462 = vpack.c.bf16 %v5208, %v5207
      %v5463 = vpack.c.bf16 %v5210, %v5209
      %v5464 = vpack.c.bf16 %v5212, %v5211
      %v5465 = vpack.c.bf16 %v5214, %v5213
      %v5466 = vpack.c.bf16 %v5216, %v5215
      %v5467 = vpack.c.bf16 %v5218, %v5217
      %v5468 = vpack.c.bf16 %v5220, %v5219
      %v5469 = vpack.c.bf16 %v5222, %v5221
      %v5470 = vpack.c.bf16 %v5224, %v5223
      %v5471 = vpack.c.bf16 %v5226, %v5225
      %v5472 = vpack.c.bf16 %v5228, %v5227
      %v5473 = vpack.c.bf16 %v5230, %v5229
      %v5474 = vpack.c.bf16 %v5232, %v5231
      %v5475 = vpack.c.bf16 %v5234, %v5233
      %v5476 = vpack.c.bf16 %v5236, %v5235
      %v5477 = vpack.c.bf16 %v5238, %v5237
      %v5478 = vpack.c.bf16 %v5240, %v5239
      %v5479 = vpack.c.bf16 %v5242, %v5241
      %v5480 = vpack.c.bf16 %v5244, %v5243
      %v5481 = vpack.c.bf16 %v5246, %v5245
      %v5482 = vpack.c.bf16 %v5248, %v5247
      %v5483 = vpack.c.bf16 %v5250, %v5249
      %v5484 = vpack.c.bf16 %v5252, %v5251
      %v5485 = vpack.c.bf16 %v5254, %v5253
      %v5486 = vpack.c.bf16 %v5256, %v5255
      %v5487 = vpack.c.bf16 %v5258, %v5257
      %v5488 = vpack.c.bf16 %v5260, %v5259
      %v5489 = vpack.c.bf16 %v5262, %v5261
      %v5490 = vpack.c.bf16 %v5264, %v5263
      %v5491 = vpack.c.bf16 %v5266, %v5265
      %v5492 = vpack.c.bf16 %v5268, %v5267
      %v5493 = vpack.c.bf16 %v5270, %v5269
      %v5494 = vpack.c.bf16 %v5272, %v5271
      %v5495 = vpack.c.bf16 %v5274, %v5273
      %v5496 = vpack.c.bf16 %v5276, %v5275
      %v5497 = vpack.c.bf16 %v5278, %v5277
      %v5498 = vpack.c.bf16 %v5280, %v5279
      %v5499 = vpack.c.bf16 %v5282, %v5281
      %v5500 = vpack.c.bf16 %v5284, %v5283
      %v5501 = vpack.c.bf16 %v5286, %v5285
      %v5502 = vpack.c.bf16 %v5288, %v5287
      %v5503 = vpack.c.bf16 %v5290, %v5289
      %v5504 = vpack.c.bf16 %v5292, %v5291
      %v5505 = vpack.c.bf16 %v5294, %v5293
      %v5506 = vpack.c.bf16 %v5296, %v5295
      %v5507 = vpack.c.bf16 %v5298, %v5297
      %v5508 = vpack.c.bf16 %v5300, %v5299
      %v5509 = vpack.c.bf16 %v5302, %v5301
      %v5510 = vpack.c.bf16 %v5304, %v5303
      %v5511 = vpack.c.bf16 %v5306, %v5305
      %v5512 = vpack.c.bf16 %v5308, %v5307
      %v5513 = vpack.c.bf16 %v5310, %v5309
      %v5514 = vpack.c.bf16 %v5312, %v5311
      %v5515 = vpack.c.bf16 %v5314, %v5313
      %v5516 = vpack.c.bf16 %v5316, %v5315
      %v5517 = vpack.c.bf16 %v5318, %v5317
      %v5518 = vpack.c.bf16 %v5320, %v5319
      %v5519 = vpack.c.bf16 %v5322, %v5321
      %v5520 = vpack.c.bf16 %v5324, %v5323
      %v5521 = vpack.c.bf16 %v5326, %v5325
      %v5522 = vpack.c.bf16 %v5328, %v5327
      %v5523 = vpack.c.bf16 %v5330, %v5329
      %v5524 = vpack.c.bf16 %v5332, %v5331
      %v5525 = vpack.c.bf16 %v5334, %v5333
      %v5526 = vpack.c.bf16 %v5336, %v5335
      %v5527 = vpack.c.bf16 %v5338, %v5337
      %v5528 = vpack.c.bf16 %v5340, %v5339
      %v5529 = vpack.c.bf16 %v5342, %v5341
      %v5530 = vpack.c.bf16 %v5344, %v5343
      %v5531 = vpack.c.bf16 %v5346, %v5345
      %v5532 = vpack.c.bf16 %v5348, %v5347
      %v5533 = vpack.c.bf16 %v5350, %v5349
      %v5534 = vpack.c.bf16 %v5352, %v5351
      %v5535 = vpack.c.bf16 %v5354, %v5353
      %v5536 = vpack.c.bf16 %v5356, %v5355
      %v5537 = vpack.c.bf16 %v5358, %v5357
      %v5538 = vpack.c.bf16 %v5360, %v5359
      %v5539 = vpack.c.bf16 %v5362, %v5361
      %v5540 = vpack.c.bf16 %v5364, %v5363
      %v5541 = vpack.c.bf16 %v5366, %v5365
      %v5542 = vpack.c.bf16 %v5368, %v5367
      %v5543 = vpack.c.bf16 %v5370, %v5369
      %v5544 = vpack.c.bf16 %v5372, %v5371
      %v5545 = vpack.c.bf16 %v5374, %v5373
      %v5546 = vpack.c.bf16 %v5376, %v5375
      %v5547 = vpack.c.bf16 %v5378, %v5377
      %v5548 = vpack.c.bf16 %v5380, %v5379
      %v5549 = vpack.c.bf16 %v5382, %v5381
      %v5550 = vpack.c.bf16 %v5384, %v5383
      %v5551 = vpack.c.bf16 %v5386, %v5385
      %v5552 = vpack.c.bf16 %v5388, %v5387
      %v5553 = vpack.c.bf16 %v5390, %v5389
      %v5554 = vpack.c.bf16 %v5392, %v5391
      %v5555 = vpack.c.bf16 %v5394, %v5393
      %v5556 = vpack.c.bf16 %v5396, %v5395
      %v5557 = vpack.c.bf16 %v5398, %v5397
      %v5558 = vpack.c.bf16 %v5400, %v5399
      %v5559 = vpack.c.bf16 %v5402, %v5401
      %v5560 = vpack.c.bf16 %v5404, %v5403
      %v5561 = vpack.c.bf16 %v5406, %v5405
      %v5562 = vpack.c.bf16 %v5408, %v5407
      %v5563 = vpack.c.bf16 %v5410, %v5409
      %v5564 = vpack.c.bf16 %v5412, %v5411
      %v5565 = vpack.c.bf16 %v5414, %v5413
      %v5566 = vpack.c.bf16 %v5416, %v5415
      %v5567 = vpack.c.bf16 %v5418, %v5417
      %v5568 = vpack.c.bf16 %v5420, %v5419
      %v5569 = vpack.c.bf16 %v5422, %v5421
      %v5570 = vpack.c.bf16 %v5424, %v5423
      %v5571 = vpack.c.bf16 %v5426, %v5425
      %v5572 = vpack.c.bf16 %v5428, %v5427
      %v5573 = vpack.c.bf16 %v5430, %v5429
      %v5574 = vpack.c.bf16 %v5432, %v5431
      %v5575 = vpack.c.bf16 %v5434, %v5433
      %v5576 = vpack.c.bf16 %v5436, %v5435
      %v5577 = vpack.c.bf16 %v5438, %v5437
      %v5578 = vpack.c.bf16 %v5440, %v5439
      %v5579 = vpack.c.bf16 %v5442, %v5441
      %v5580 = vpack.c.bf16 %v5444, %v5443
      %v5581 = vpack.c.bf16 %v5446, %v5445
      %v5582 = vpack.c.bf16 %v5448, %v5447
      %v5583 = vpack.c.bf16 %v5450, %v5449
      %v5584 = vpack.c.bf16 %v5452, %v5451
      %v5585 = vpack.c.bf16 %v5454, %v5453
      %v5586 = vpack.c.bf16 %v5456, %v5455
      %v5587 = vpack.c.bf16 %v5458, %v5457
      %v5588 = vpack.c.bf16 %v5460, %v5459
      %v5717 = vunpack.c.l.b16 %v5461
      %v5718 = vunpack.c.h.b16 %v5461
      %v5719 = vunpack.c.l.b16 %v5462
      %v5720 = vunpack.c.h.b16 %v5462
      %v5721 = vunpack.c.l.b16 %v5463
      %v5722 = vunpack.c.h.b16 %v5463
      %v5723 = vunpack.c.l.b16 %v5464
      %v5724 = vunpack.c.h.b16 %v5464
      %v5725 = vunpack.c.l.b16 %v5465
      %v5726 = vunpack.c.h.b16 %v5465
      %v5727 = vunpack.c.l.b16 %v5466
      %v5728 = vunpack.c.h.b16 %v5466
      %v5729 = vunpack.c.l.b16 %v5467
      %v5730 = vunpack.c.h.b16 %v5467
      %v5731 = vunpack.c.l.b16 %v5468
      %v5732 = vunpack.c.h.b16 %v5468
      %v5733 = vunpack.c.l.b16 %v5469
      %v5734 = vunpack.c.h.b16 %v5469
      %v5735 = vunpack.c.l.b16 %v5470
      %v5736 = vunpack.c.h.b16 %v5470
      %v5737 = vunpack.c.l.b16 %v5471
      %v5738 = vunpack.c.h.b16 %v5471
      %v5739 = vunpack.c.l.b16 %v5472
      %v5740 = vunpack.c.h.b16 %v5472
      %v5741 = vunpack.c.l.b16 %v5473
      %v5742 = vunpack.c.h.b16 %v5473
      %v5743 = vunpack.c.l.b16 %v5474
      %v5744 = vunpack.c.h.b16 %v5474
      %v5745 = vunpack.c.l.b16 %v5475
      %v5746 = vunpack.c.h.b16 %v5475
      %v5747 = vunpack.c.l.b16 %v5476
      %v5748 = vunpack.c.h.b16 %v5476
      %v5749 = vunpack.c.l.b16 %v5477
      %v5750 = vunpack.c.h.b16 %v5477
      %v5751 = vunpack.c.l.b16 %v5478
      %v5752 = vunpack.c.h.b16 %v5478
      %v5753 = vunpack.c.l.b16 %v5479
      %v5754 = vunpack.c.h.b16 %v5479
      %v5755 = vunpack.c.l.b16 %v5480
      %v5756 = vunpack.c.h.b16 %v5480
      %v5757 = vunpack.c.l.b16 %v5481
      %v5758 = vunpack.c.h.b16 %v5481
      %v5759 = vunpack.c.l.b16 %v5482
      %v5760 = vunpack.c.h.b16 %v5482
      %v5761 = vunpack.c.l.b16 %v5483
      %v5762 = vunpack.c.h.b16 %v5483
      %v5763 = vunpack.c.l.b16 %v5484
      %v5764 = vunpack.c.h.b16 %v5484
      %v5765 = vunpack.c.l.b16 %v5485
      %v5766 = vunpack.c.h.b16 %v5485
      %v5767 = vunpack.c.l.b16 %v5486
      %v5768 = vunpack.c.h.b16 %v5486
      %v5769 = vunpack.c.l.b16 %v5487
      %v5770 = vunpack.c.h.b16 %v5487
      %v5771 = vunpack.c.l.b16 %v5488
      %v5772 = vunpack.c.h.b16 %v5488
      %v5773 = vunpack.c.l.b16 %v5489
      %v5774 = vunpack.c.h.b16 %v5489
      %v5775 = vunpack.c.l.b16 %v5490
      %v5776 = vunpack.c.h.b16 %v5490
      %v5777 = vunpack.c.l.b16 %v5491
      %v5778 = vunpack.c.h.b16 %v5491
      %v5779 = vunpack.c.l.b16 %v5492
      %v5780 = vunpack.c.h.b16 %v5492
      %v5781 = vunpack.c.l.b16 %v5493
      %v5782 = vunpack.c.h.b16 %v5493
      %v5783 = vunpack.c.l.b16 %v5494
      %v5784 = vunpack.c.h.b16 %v5494
      %v5785 = vunpack.c.l.b16 %v5495
      %v5786 = vunpack.c.h.b16 %v5495
      %v5787 = vunpack.c.l.b16 %v5496
      %v5788 = vunpack.c.h.b16 %v5496
      %v5789 = vunpack.c.l.b16 %v5497
      %v5790 = vunpack.c.h.b16 %v5497
      %v5791 = vunpack.c.l.b16 %v5498
      %v5792 = vunpack.c.h.b16 %v5498
      %v5793 = vunpack.c.l.b16 %v5499
      %v5794 = vunpack.c.h.b16 %v5499
      %v5795 = vunpack.c.l.b16 %v5500
      %v5796 = vunpack.c.h.b16 %v5500
      %v5797 = vunpack.c.l.b16 %v5501
      %v5798 = vunpack.c.h.b16 %v5501
      %v5799 = vunpack.c.l.b16 %v5502
      %v5800 = vunpack.c.h.b16 %v5502
      %v5801 = vunpack.c.l.b16 %v5503
      %v5802 = vunpack.c.h.b16 %v5503
      %v5803 = vunpack.c.l.b16 %v5504
      %v5804 = vunpack.c.h.b16 %v5504
      %v5805 = vunpack.c.l.b16 %v5505
      %v5806 = vunpack.c.h.b16 %v5505
      %v5807 = vunpack.c.l.b16 %v5506
      %v5808 = vunpack.c.h.b16 %v5506
      %v5809 = vunpack.c.l.b16 %v5507
      %v5810 = vunpack.c.h.b16 %v5507
      %v5811 = vunpack.c.l.b16 %v5508
      %v5812 = vunpack.c.h.b16 %v5508
      %v5813 = vunpack.c.l.b16 %v5509
      %v5814 = vunpack.c.h.b16 %v5509
      %v5815 = vunpack.c.l.b16 %v5510
      %v5816 = vunpack.c.h.b16 %v5510
      %v5817 = vunpack.c.l.b16 %v5511
      %v5818 = vunpack.c.h.b16 %v5511
      %v5819 = vunpack.c.l.b16 %v5512
      %v5820 = vunpack.c.h.b16 %v5512
      %v5821 = vunpack.c.l.b16 %v5513
      %v5822 = vunpack.c.h.b16 %v5513
      %v5823 = vunpack.c.l.b16 %v5514
      %v5824 = vunpack.c.h.b16 %v5514
      %v5825 = vunpack.c.l.b16 %v5515
      %v5826 = vunpack.c.h.b16 %v5515
      %v5827 = vunpack.c.l.b16 %v5516
      %v5828 = vunpack.c.h.b16 %v5516
      %v5829 = vunpack.c.l.b16 %v5517
      %v5830 = vunpack.c.h.b16 %v5517
      %v5831 = vunpack.c.l.b16 %v5518
      %v5832 = vunpack.c.h.b16 %v5518
      %v5833 = vunpack.c.l.b16 %v5519
      %v5834 = vunpack.c.h.b16 %v5519
      %v5835 = vunpack.c.l.b16 %v5520
      %v5836 = vunpack.c.h.b16 %v5520
      %v5837 = vunpack.c.l.b16 %v5521
      %v5838 = vunpack.c.h.b16 %v5521
      %v5839 = vunpack.c.l.b16 %v5522
      %v5840 = vunpack.c.h.b16 %v5522
      %v5841 = vunpack.c.l.b16 %v5523
      %v5842 = vunpack.c.h.b16 %v5523
      %v5843 = vunpack.c.l.b16 %v5524
      %v5844 = vunpack.c.h.b16 %v5524
      %v5845 = vunpack.c.l.b16 %v5525
      %v5846 = vunpack.c.h.b16 %v5525
      %v5847 = vunpack.c.l.b16 %v5526
      %v5848 = vunpack.c.h.b16 %v5526
      %v5849 = vunpack.c.l.b16 %v5527
      %v5850 = vunpack.c.h.b16 %v5527
      %v5851 = vunpack.c.l.b16 %v5528
      %v5852 = vunpack.c.h.b16 %v5528
      %v5853 = vunpack.c.l.b16 %v5529
      %v5854 = vunpack.c.h.b16 %v5529
      %v5855 = vunpack.c.l.b16 %v5530
      %v5856 = vunpack.c.h.b16 %v5530
      %v5857 = vunpack.c.l.b16 %v5531
      %v5858 = vunpack.c.h.b16 %v5531
      %v5859 = vunpack.c.l.b16 %v5532
      %v5860 = vunpack.c.h.b16 %v5532
      %v5861 = vunpack.c.l.b16 %v5533
      %v5862 = vunpack.c.h.b16 %v5533
      %v5863 = vunpack.c.l.b16 %v5534
      %v5864 = vunpack.c.h.b16 %v5534
      %v5865 = vunpack.c.l.b16 %v5535
      %v5866 = vunpack.c.h.b16 %v5535
      %v5867 = vunpack.c.l.b16 %v5536
      %v5868 = vunpack.c.h.b16 %v5536
      %v5869 = vunpack.c.l.b16 %v5537
      %v5870 = vunpack.c.h.b16 %v5537
      %v5871 = vunpack.c.l.b16 %v5538
      %v5872 = vunpack.c.h.b16 %v5538
      %v5873 = vunpack.c.l.b16 %v5539
      %v5874 = vunpack.c.h.b16 %v5539
      %v5875 = vunpack.c.l.b16 %v5540
      %v5876 = vunpack.c.h.b16 %v5540
      %v5877 = vunpack.c.l.b16 %v5541
      %v5878 = vunpack.c.h.b16 %v5541
      %v5879 = vunpack.c.l.b16 %v5542
      %v5880 = vunpack.c.h.b16 %v5542
      %v5881 = vunpack.c.l.b16 %v5543
      %v5882 = vunpack.c.h.b16 %v5543
      %v5883 = vunpack.c.l.b16 %v5544
      %v5884 = vunpack.c.h.b16 %v5544
      %v5885 = vunpack.c.l.b16 %v5545
      %v5886 = vunpack.c.h.b16 %v5545
      %v5887 = vunpack.c.l.b16 %v5546
      %v5888 = vunpack.c.h.b16 %v5546
      %v5889 = vunpack.c.l.b16 %v5547
      %v5890 = vunpack.c.h.b16 %v5547
      %v5891 = vunpack.c.l.b16 %v5548
      %v5892 = vunpack.c.h.b16 %v5548
      %v5893 = vunpack.c.l.b16 %v5549
      %v5894 = vunpack.c.h.b16 %v5549
      %v5895 = vunpack.c.l.b16 %v5550
      %v5896 = vunpack.c.h.b16 %v5550
      %v5897 = vunpack.c.l.b16 %v5551
      %v5898 = vunpack.c.h.b16 %v5551
      %v5899 = vunpack.c.l.b16 %v5552
      %v5900 = vunpack.c.h.b16 %v5552
      %v5901 = vunpack.c.l.b16 %v5553
      %v5902 = vunpack.c.h.b16 %v5553
      %v5903 = vunpack.c.l.b16 %v5554
      %v5904 = vunpack.c.h.b16 %v5554
      %v5905 = vunpack.c.l.b16 %v5555
      %v5906 = vunpack.c.h.b16 %v5555
      %v5907 = vunpack.c.l.b16 %v5556
      %v5908 = vunpack.c.h.b16 %v5556
      %v5909 = vunpack.c.l.b16 %v5557
      %v5910 = vunpack.c.h.b16 %v5557
      %v5911 = vunpack.c.l.b16 %v5558
      %v5912 = vunpack.c.h.b16 %v5558
      %v5913 = vunpack.c.l.b16 %v5559
      %v5914 = vunpack.c.h.b16 %v5559
      %v5915 = vunpack.c.l.b16 %v5560
      %v5916 = vunpack.c.h.b16 %v5560
      %v5917 = vunpack.c.l.b16 %v5561
      %v5918 = vunpack.c.h.b16 %v5561
      %v5919 = vunpack.c.l.b16 %v5562
      %v5920 = vunpack.c.h.b16 %v5562
      %v5921 = vunpack.c.l.b16 %v5563
      %v5922 = vunpack.c.h.b16 %v5563
      %v5923 = vunpack.c.l.b16 %v5564
      %v5924 = vunpack.c.h.b16 %v5564
      %v5925 = vunpack.c.l.b16 %v5565
      %v5926 = vunpack.c.h.b16 %v5565
      %v5927 = vunpack.c.l.b16 %v5566
      %v5928 = vunpack.c.h.b16 %v5566
      %v5929 = vunpack.c.l.b16 %v5567
      %v5930 = vunpack.c.h.b16 %v5567
      %v5931 = vunpack.c.l.b16 %v5568
      %v5932 = vunpack.c.h.b16 %v5568
      %v5933 = vunpack.c.l.b16 %v5569
      %v5934 = vunpack.c.h.b16 %v5569
      %v5935 = vunpack.c.l.b16 %v5570
      %v5936 = vunpack.c.h.b16 %v5570
      %v5937 = vunpack.c.l.b16 %v5571
      %v5938 = vunpack.c.h.b16 %v5571
      %v5939 = vunpack.c.l.b16 %v5572
      %v5940 = vunpack.c.h.b16 %v5572
      %v5941 = vunpack.c.l.b16 %v5573
      %v5942 = vunpack.c.h.b16 %v5573
      %v5943 = vunpack.c.l.b16 %v5574
      %v5944 = vunpack.c.h.b16 %v5574
      %v5945 = vunpack.c.l.b16 %v5575
      %v5946 = vunpack.c.h.b16 %v5575
      %v5947 = vunpack.c.l.b16 %v5576
      %v5948 = vunpack.c.h.b16 %v5576
      %v5949 = vunpack.c.l.b16 %v5577
      %v5950 = vunpack.c.h.b16 %v5577
      %v5951 = vunpack.c.l.b16 %v5578
      %v5952 = vunpack.c.h.b16 %v5578
      %v5953 = vunpack.c.l.b16 %v5579
      %v5954 = vunpack.c.h.b16 %v5579
      %v5955 = vunpack.c.l.b16 %v5580
      %v5956 = vunpack.c.h.b16 %v5580
      %v5957 = vunpack.c.l.b16 %v5581
      %v5958 = vunpack.c.h.b16 %v5581
      %v5959 = vunpack.c.l.b16 %v5582
      %v5960 = vunpack.c.h.b16 %v5582
      %v5961 = vunpack.c.l.b16 %v5583
      %v5962 = vunpack.c.h.b16 %v5583
      %v5963 = vunpack.c.l.b16 %v5584
      %v5964 = vunpack.c.h.b16 %v5584
      %v5965 = vunpack.c.l.b16 %v5585
      %v5966 = vunpack.c.h.b16 %v5585
      %v5967 = vunpack.c.l.b16 %v5586
      %v5968 = vunpack.c.h.b16 %v5586
      %v5969 = vunpack.c.l.b16 %v5587
      %v5970 = vunpack.c.h.b16 %v5587
      %v5971 = vunpack.c.l.b16 %v5588
      %v5972 = vunpack.c.h.b16 %v5588
      %v5973 = vpack.c.b16 %v5717, %v5717
      %v5974 = vpack.c.b16 %v5718, %v5718
      %v5975 = vpack.c.b16 %v5719, %v5719
      %v5976 = vpack.c.b16 %v5720, %v5720
      %v5977 = vpack.c.b16 %v5721, %v5721
      %v5978 = vpack.c.b16 %v5722, %v5722
      %v5979 = vpack.c.b16 %v5723, %v5723
      %v5980 = vpack.c.b16 %v5724, %v5724
      %v5981 = vpack.c.b16 %v5725, %v5725
      %v5982 = vpack.c.b16 %v5726, %v5726
      %v5983 = vpack.c.b16 %v5727, %v5727
      %v5984 = vpack.c.b16 %v5728, %v5728
      %v5985 = vpack.c.b16 %v5729, %v5729
      %v5986 = vpack.c.b16 %v5730, %v5730
      %v5987 = vpack.c.b16 %v5731, %v5731
      %v5988 = vpack.c.b16 %v5732, %v5732
      %v5989 = vpack.c.b16 %v5733, %v5733
      %v5990 = vpack.c.b16 %v5734, %v5734
      %v5991 = vpack.c.b16 %v5735, %v5735
      %v5992 = vpack.c.b16 %v5736, %v5736
      %v5993 = vpack.c.b16 %v5737, %v5737
      %v5994 = vpack.c.b16 %v5738, %v5738
      %v5995 = vpack.c.b16 %v5739, %v5739
      %v5996 = vpack.c.b16 %v5740, %v5740
      %v5997 = vpack.c.b16 %v5741, %v5741
      %v5998 = vpack.c.b16 %v5742, %v5742
      %v5999 = vpack.c.b16 %v5743, %v5743
      %v6000 = vpack.c.b16 %v5744, %v5744
      %v6001 = vpack.c.b16 %v5745, %v5745
      %v6002 = vpack.c.b16 %v5746, %v5746
      %v6003 = vpack.c.b16 %v5747, %v5747
      %v6004 = vpack.c.b16 %v5748, %v5748
      %v6005 = vpack.c.b16 %v5749, %v5749
      %v6006 = vpack.c.b16 %v5750, %v5750
      %v6007 = vpack.c.b16 %v5751, %v5751
      %v6008 = vpack.c.b16 %v5752, %v5752
      %v6009 = vpack.c.b16 %v5753, %v5753
      %v6010 = vpack.c.b16 %v5754, %v5754
      %v6011 = vpack.c.b16 %v5755, %v5755
      %v6012 = vpack.c.b16 %v5756, %v5756
      %v6013 = vpack.c.b16 %v5757, %v5757
      %v6014 = vpack.c.b16 %v5758, %v5758
      %v6015 = vpack.c.b16 %v5759, %v5759
      %v6016 = vpack.c.b16 %v5760, %v5760
      %v6017 = vpack.c.b16 %v5761, %v5761
      %v6018 = vpack.c.b16 %v5762, %v5762
      %v6019 = vpack.c.b16 %v5763, %v5763
      %v6020 = vpack.c.b16 %v5764, %v5764
      %v6021 = vpack.c.b16 %v5765, %v5765
      %v6022 = vpack.c.b16 %v5766, %v5766
      %v6023 = vpack.c.b16 %v5767, %v5767
      %v6024 = vpack.c.b16 %v5768, %v5768
      %v6025 = vpack.c.b16 %v5769, %v5769
      %v6026 = vpack.c.b16 %v5770, %v5770
      %v6027 = vpack.c.b16 %v5771, %v5771
      %v6028 = vpack.c.b16 %v5772, %v5772
      %v6029 = vpack.c.b16 %v5773, %v5773
      %v6030 = vpack.c.b16 %v5774, %v5774
      %v6031 = vpack.c.b16 %v5775, %v5775
      %v6032 = vpack.c.b16 %v5776, %v5776
      %v6033 = vpack.c.b16 %v5777, %v5777
      %v6034 = vpack.c.b16 %v5778, %v5778
      %v6035 = vpack.c.b16 %v5779, %v5779
      %v6036 = vpack.c.b16 %v5780, %v5780
      %v6037 = vpack.c.b16 %v5781, %v5781
      %v6038 = vpack.c.b16 %v5782, %v5782
      %v6039 = vpack.c.b16 %v5783, %v5783
      %v6040 = vpack.c.b16 %v5784, %v5784
      %v6041 = vpack.c.b16 %v5785, %v5785
      %v6042 = vpack.c.b16 %v5786, %v5786
      %v6043 = vpack.c.b16 %v5787, %v5787
      %v6044 = vpack.c.b16 %v5788, %v5788
      %v6045 = vpack.c.b16 %v5789, %v5789
      %v6046 = vpack.c.b16 %v5790, %v5790
      %v6047 = vpack.c.b16 %v5791, %v5791
      %v6048 = vpack.c.b16 %v5792, %v5792
      %v6049 = vpack.c.b16 %v5793, %v5793
      %v6050 = vpack.c.b16 %v5794, %v5794
      %v6051 = vpack.c.b16 %v5795, %v5795
      %v6052 = vpack.c.b16 %v5796, %v5796
      %v6053 = vpack.c.b16 %v5797, %v5797
      %v6054 = vpack.c.b16 %v5798, %v5798
      %v6055 = vpack.c.b16 %v5799, %v5799
      %v6056 = vpack.c.b16 %v5800, %v5800
      %v6057 = vpack.c.b16 %v5801, %v5801
      %v6058 = vpack.c.b16 %v5802, %v5802
      %v6059 = vpack.c.b16 %v5803, %v5803
      %v6060 = vpack.c.b16 %v5804, %v5804
      %v6061 = vpack.c.b16 %v5805, %v5805
      %v6062 = vpack.c.b16 %v5806, %v5806
      %v6063 = vpack.c.b16 %v5807, %v5807
      %v6064 = vpack.c.b16 %v5808, %v5808
      %v6065 = vpack.c.b16 %v5809, %v5809
      %v6066 = vpack.c.b16 %v5810, %v5810
      %v6067 = vpack.c.b16 %v5811, %v5811
      %v6068 = vpack.c.b16 %v5812, %v5812
      %v6069 = vpack.c.b16 %v5813, %v5813
      %v6070 = vpack.c.b16 %v5814, %v5814
      %v6071 = vpack.c.b16 %v5815, %v5815
      %v6072 = vpack.c.b16 %v5816, %v5816
      %v6073 = vpack.c.b16 %v5817, %v5817
      %v6074 = vpack.c.b16 %v5818, %v5818
      %v6075 = vpack.c.b16 %v5819, %v5819
      %v6076 = vpack.c.b16 %v5820, %v5820
      %v6077 = vpack.c.b16 %v5821, %v5821
      %v6078 = vpack.c.b16 %v5822, %v5822
      %v6079 = vpack.c.b16 %v5823, %v5823
      %v6080 = vpack.c.b16 %v5824, %v5824
      %v6081 = vpack.c.b16 %v5825, %v5825
      %v6082 = vpack.c.b16 %v5826, %v5826
      %v6083 = vpack.c.b16 %v5827, %v5827
      %v6084 = vpack.c.b16 %v5828, %v5828
      %v6085 = vpack.c.b16 %v5829, %v5829
      %v6086 = vpack.c.b16 %v5830, %v5830
      %v6087 = vpack.c.b16 %v5831, %v5831
      %v6088 = vpack.c.b16 %v5832, %v5832
      %v6089 = vpack.c.b16 %v5833, %v5833
      %v6090 = vpack.c.b16 %v5834, %v5834
      %v6091 = vpack.c.b16 %v5835, %v5835
      %v6092 = vpack.c.b16 %v5836, %v5836
      %v6093 = vpack.c.b16 %v5837, %v5837
      %v6094 = vpack.c.b16 %v5838, %v5838
      %v6095 = vpack.c.b16 %v5839, %v5839
      %v6096 = vpack.c.b16 %v5840, %v5840
      %v6097 = vpack.c.b16 %v5841, %v5841
      %v6098 = vpack.c.b16 %v5842, %v5842
      %v6099 = vpack.c.b16 %v5843, %v5843
      %v6100 = vpack.c.b16 %v5844, %v5844
      %v6101 = vpack.c.b16 %v5845, %v5845
      %v6102 = vpack.c.b16 %v5846, %v5846
      %v6103 = vpack.c.b16 %v5847, %v5847
      %v6104 = vpack.c.b16 %v5848, %v5848
      %v6105 = vpack.c.b16 %v5849, %v5849
      %v6106 = vpack.c.b16 %v5850, %v5850
      %v6107 = vpack.c.b16 %v5851, %v5851
      %v6108 = vpack.c.b16 %v5852, %v5852
      %v6109 = vpack.c.b16 %v5853, %v5853
      %v6110 = vpack.c.b16 %v5854, %v5854
      %v6111 = vpack.c.b16 %v5855, %v5855
      %v6112 = vpack.c.b16 %v5856, %v5856
      %v6113 = vpack.c.b16 %v5857, %v5857
      %v6114 = vpack.c.b16 %v5858, %v5858
      %v6115 = vpack.c.b16 %v5859, %v5859
      %v6116 = vpack.c.b16 %v5860, %v5860
      %v6117 = vpack.c.b16 %v5861, %v5861
      %v6118 = vpack.c.b16 %v5862, %v5862
      %v6119 = vpack.c.b16 %v5863, %v5863
      %v6120 = vpack.c.b16 %v5864, %v5864
      %v6121 = vpack.c.b16 %v5865, %v5865
      %v6122 = vpack.c.b16 %v5866, %v5866
      %v6123 = vpack.c.b16 %v5867, %v5867
      %v6124 = vpack.c.b16 %v5868, %v5868
      %v6125 = vpack.c.b16 %v5869, %v5869
      %v6126 = vpack.c.b16 %v5870, %v5870
      %v6127 = vpack.c.b16 %v5871, %v5871
      %v6128 = vpack.c.b16 %v5872, %v5872
      %v6129 = vpack.c.b16 %v5873, %v5873
      %v6130 = vpack.c.b16 %v5874, %v5874
      %v6131 = vpack.c.b16 %v5875, %v5875
      %v6132 = vpack.c.b16 %v5876, %v5876
      %v6133 = vpack.c.b16 %v5877, %v5877
      %v6134 = vpack.c.b16 %v5878, %v5878
      %v6135 = vpack.c.b16 %v5879, %v5879
      %v6136 = vpack.c.b16 %v5880, %v5880
      %v6137 = vpack.c.b16 %v5881, %v5881
      %v6138 = vpack.c.b16 %v5882, %v5882
      %v6139 = vpack.c.b16 %v5883, %v5883
      %v6140 = vpack.c.b16 %v5884, %v5884
      %v6141 = vpack.c.b16 %v5885, %v5885
      %v6142 = vpack.c.b16 %v5886, %v5886
      %v6143 = vpack.c.b16 %v5887, %v5887
      %v6144 = vpack.c.b16 %v5888, %v5888
      %v6145 = vpack.c.b16 %v5889, %v5889
      %v6146 = vpack.c.b16 %v5890, %v5890
      %v6147 = vpack.c.b16 %v5891, %v5891
      %v6148 = vpack.c.b16 %v5892, %v5892
      %v6149 = vpack.c.b16 %v5893, %v5893
      %v6150 = vpack.c.b16 %v5894, %v5894
      %v6151 = vpack.c.b16 %v5895, %v5895
      %v6152 = vpack.c.b16 %v5896, %v5896
      %v6153 = vpack.c.b16 %v5897, %v5897
      %v6154 = vpack.c.b16 %v5898, %v5898
      %v6155 = vpack.c.b16 %v5899, %v5899
      %v6156 = vpack.c.b16 %v5900, %v5900
      %v6157 = vpack.c.b16 %v5901, %v5901
      %v6158 = vpack.c.b16 %v5902, %v5902
      %v6159 = vpack.c.b16 %v5903, %v5903
      %v6160 = vpack.c.b16 %v5904, %v5904
      %v6161 = vpack.c.b16 %v5905, %v5905
      %v6162 = vpack.c.b16 %v5906, %v5906
      %v6163 = vpack.c.b16 %v5907, %v5907
      %v6164 = vpack.c.b16 %v5908, %v5908
      %v6165 = vpack.c.b16 %v5909, %v5909
      %v6166 = vpack.c.b16 %v5910, %v5910
      %v6167 = vpack.c.b16 %v5911, %v5911
      %v6168 = vpack.c.b16 %v5912, %v5912
      %v6169 = vpack.c.b16 %v5913, %v5913
      %v6170 = vpack.c.b16 %v5914, %v5914
      %v6171 = vpack.c.b16 %v5915, %v5915
      %v6172 = vpack.c.b16 %v5916, %v5916
      %v6173 = vpack.c.b16 %v5917, %v5917
      %v6174 = vpack.c.b16 %v5918, %v5918
      %v6175 = vpack.c.b16 %v5919, %v5919
      %v6176 = vpack.c.b16 %v5920, %v5920
      %v6177 = vpack.c.b16 %v5921, %v5921
      %v6178 = vpack.c.b16 %v5922, %v5922
      %v6179 = vpack.c.b16 %v5923, %v5923
      %v6180 = vpack.c.b16 %v5924, %v5924
      %v6181 = vpack.c.b16 %v5925, %v5925
      %v6182 = vpack.c.b16 %v5926, %v5926
      %v6183 = vpack.c.b16 %v5927, %v5927
      %v6184 = vpack.c.b16 %v5928, %v5928
      %v6185 = vpack.c.b16 %v5929, %v5929
      %v6186 = vpack.c.b16 %v5930, %v5930
      %v6187 = vpack.c.b16 %v5931, %v5931
      %v6188 = vpack.c.b16 %v5932, %v5932
      %v6189 = vpack.c.b16 %v5933, %v5933
      %v6190 = vpack.c.b16 %v5934, %v5934
      %v6191 = vpack.c.b16 %v5935, %v5935
      %v6192 = vpack.c.b16 %v5936, %v5936
      %v6193 = vpack.c.b16 %v5937, %v5937
      %v6194 = vpack.c.b16 %v5938, %v5938
      %v6195 = vpack.c.b16 %v5939, %v5939
      %v6196 = vpack.c.b16 %v5940, %v5940
      %v6197 = vpack.c.b16 %v5941, %v5941
      %v6198 = vpack.c.b16 %v5942, %v5942
      %v6199 = vpack.c.b16 %v5943, %v5943
      %v6200 = vpack.c.b16 %v5944, %v5944
      %v6201 = vpack.c.b16 %v5945, %v5945
      %v6202 = vpack.c.b16 %v5946, %v5946
      %v6203 = vpack.c.b16 %v5947, %v5947
      %v6204 = vpack.c.b16 %v5948, %v5948
      %v6205 = vpack.c.b16 %v5949, %v5949
      %v6206 = vpack.c.b16 %v5950, %v5950
      %v6207 = vpack.c.b16 %v5951, %v5951
      %v6208 = vpack.c.b16 %v5952, %v5952
      %v6209 = vpack.c.b16 %v5953, %v5953
      %v6210 = vpack.c.b16 %v5954, %v5954
      %v6211 = vpack.c.b16 %v5955, %v5955
      %v6212 = vpack.c.b16 %v5956, %v5956
      %v6213 = vpack.c.b16 %v5957, %v5957
      %v6214 = vpack.c.b16 %v5958, %v5958
      %v6215 = vpack.c.b16 %v5959, %v5959
      %v6216 = vpack.c.b16 %v5960, %v5960
      %v6217 = vpack.c.b16 %v5961, %v5961
      %v6218 = vpack.c.b16 %v5962, %v5962
      %v6219 = vpack.c.b16 %v5963, %v5963
      %v6220 = vpack.c.b16 %v5964, %v5964
      %v6221 = vpack.c.b16 %v5965, %v5965
      %v6222 = vpack.c.b16 %v5966, %v5966
      %v6223 = vpack.c.b16 %v5967, %v5967
      %v6224 = vpack.c.b16 %v5968, %v5968
      %v6225 = vpack.c.b16 %v5969, %v5969
      %v6226 = vpack.c.b16 %v5970, %v5970
      %v6227 = vpack.c.b16 %v5971, %v5971
      %v6228 = vpack.c.b16 %v5972, %v5972
      %6485 = vst [vmem:[#allocation6] sm:$0xf] %v5973
      %6486 = vst [vmem:[#allocation6 + $0x4] sm:$0xf] %v5974
      %6487 = vst [vmem:[#allocation6 + $0x8] sm:$0xf] %v5975
      %6488 = vst [vmem:[#allocation6 + $0xc] sm:$0xf] %v5976
      %6489 = vst [vmem:[#allocation6 + $0x10] sm:$0xf] %v5977
      %6490 = vst [vmem:[#allocation6 + $0x14] sm:$0xf] %v5978
      %6491 = vst [vmem:[#allocation6 + $0x18] sm:$0xf] %v5979
      %6492 = vst [vmem:[#allocation6 + $0x1c] sm:$0xf] %v5980
      %6493 = vst [vmem:[#allocation6 + $0x20] sm:$0xf] %v5981
      %6494 = vst [vmem:[#allocation6 + $0x24] sm:$0xf] %v5982
      %6495 = vst [vmem:[#allocation6 + $0x28] sm:$0xf] %v5983
      %6496 = vst [vmem:[#allocation6 + $0x2c] sm:$0xf] %v5984
      %6497 = vst [vmem:[#allocation6 + $0x30] sm:$0xf] %v5985
      %6498 = vst [vmem:[#allocation6 + $0x34] sm:$0xf] %v5986
      %6499 = vst [vmem:[#allocation6 + $0x38] sm:$0xf] %v5987
      %6500 = vst [vmem:[#allocation6 + $0x3c] sm:$0xf] %v5988
      %6501 = vst [vmem:[#allocation6 + $0x40] sm:$0xf] %v5989
      %6502 = vst [vmem:[#allocation6 + $0x44] sm:$0xf] %v5990
      %6503 = vst [vmem:[#allocation6 + $0x48] sm:$0xf] %v5991
      %6504 = vst [vmem:[#allocation6 + $0x4c] sm:$0xf] %v5992
      %6505 = vst [vmem:[#allocation6 + $0x50] sm:$0xf] %v5993
      %6506 = vst [vmem:[#allocation6 + $0x54] sm:$0xf] %v5994
      %6507 = vst [vmem:[#allocation6 + $0x58] sm:$0xf] %v5995
      %6508 = vst [vmem:[#allocation6 + $0x5c] sm:$0xf] %v5996
      %6509 = vst [vmem:[#allocation6 + $0x60] sm:$0xf] %v5997
      %6510 = vst [vmem:[#allocation6 + $0x64] sm:$0xf] %v5998
      %6511 = vst [vmem:[#allocation6 + $0x68] sm:$0xf] %v5999
      %6512 = vst [vmem:[#allocation6 + $0x6c] sm:$0xf] %v6000
      %6513 = vst [vmem:[#allocation6 + $0x70] sm:$0xf] %v6001
      %6514 = vst [vmem:[#allocation6 + $0x74] sm:$0xf] %v6002
      %6515 = vst [vmem:[#allocation6 + $0x78] sm:$0xf] %v6003
      %6516 = vst [vmem:[#allocation6 + $0x7c] sm:$0xf] %v6004
      %6517 = vst [vmem:[#allocation6 + $0x80] sm:$0xf] %v6005
      %6518 = vst [vmem:[#allocation6 + $0x84] sm:$0xf] %v6006
      %6519 = vst [vmem:[#allocation6 + $0x88] sm:$0xf] %v6007
      %6520 = vst [vmem:[#allocation6 + $0x8c] sm:$0xf] %v6008
      %6521 = vst [vmem:[#allocation6 + $0x90] sm:$0xf] %v6009
      %6522 = vst [vmem:[#allocation6 + $0x94] sm:$0xf] %v6010
      %6523 = vst [vmem:[#allocation6 + $0x98] sm:$0xf] %v6011
      %6524 = vst [vmem:[#allocation6 + $0x9c] sm:$0xf] %v6012
      %6525 = vst [vmem:[#allocation6 + $0xa0] sm:$0xf] %v6013
      %6526 = vst [vmem:[#allocation6 + $0xa4] sm:$0xf] %v6014
      %6527 = vst [vmem:[#allocation6 + $0xa8] sm:$0xf] %v6015
      %6528 = vst [vmem:[#allocation6 + $0xac] sm:$0xf] %v6016
      %6529 = vst [vmem:[#allocation6 + $0xb0] sm:$0xf] %v6017
      %6530 = vst [vmem:[#allocation6 + $0xb4] sm:$0xf] %v6018
      %6531 = vst [vmem:[#allocation6 + $0xb8] sm:$0xf] %v6019
      %6532 = vst [vmem:[#allocation6 + $0xbc] sm:$0xf] %v6020
      %6533 = vst [vmem:[#allocation6 + $0xc0] sm:$0xf] %v6021
      %6534 = vst [vmem:[#allocation6 + $0xc4] sm:$0xf] %v6022
      %6535 = vst [vmem:[#allocation6 + $0xc8] sm:$0xf] %v6023
      %6536 = vst [vmem:[#allocation6 + $0xcc] sm:$0xf] %v6024
      %6537 = vst [vmem:[#allocation6 + $0xd0] sm:$0xf] %v6025
      %6538 = vst [vmem:[#allocation6 + $0xd4] sm:$0xf] %v6026
      %6539 = vst [vmem:[#allocation6 + $0xd8] sm:$0xf] %v6027
      %6540 = vst [vmem:[#allocation6 + $0xdc] sm:$0xf] %v6028
      %6541 = vst [vmem:[#allocation6 + $0xe0] sm:$0xf] %v6029
      %6542 = vst [vmem:[#allocation6 + $0xe4] sm:$0xf] %v6030
      %6543 = vst [vmem:[#allocation6 + $0xe8] sm:$0xf] %v6031
      %6544 = vst [vmem:[#allocation6 + $0xec] sm:$0xf] %v6032
      %6545 = vst [vmem:[#allocation6 + $0xf0] sm:$0xf] %v6033
      %6546 = vst [vmem:[#allocation6 + $0xf4] sm:$0xf] %v6034
      %6547 = vst [vmem:[#allocation6 + $0xf8] sm:$0xf] %v6035
      %6548 = vst [vmem:[#allocation6 + $0xfc] sm:$0xf] %v6036
      %6549 = vst [vmem:[#allocation6 + $0x100] sm:$0xf] %v6037
      %6550 = vst [vmem:[#allocation6 + $0x104] sm:$0xf] %v6038
      %6551 = vst [vmem:[#allocation6 + $0x108] sm:$0xf] %v6039
      %6552 = vst [vmem:[#allocation6 + $0x10c] sm:$0xf] %v6040
      %6553 = vst [vmem:[#allocation6 + $0x110] sm:$0xf] %v6041
      %6554 = vst [vmem:[#allocation6 + $0x114] sm:$0xf] %v6042
      %6555 = vst [vmem:[#allocation6 + $0x118] sm:$0xf] %v6043
      %6556 = vst [vmem:[#allocation6 + $0x11c] sm:$0xf] %v6044
      %6557 = vst [vmem:[#allocation6 + $0x120] sm:$0xf] %v6045
      %6558 = vst [vmem:[#allocation6 + $0x124] sm:$0xf] %v6046
      %6559 = vst [vmem:[#allocation6 + $0x128] sm:$0xf] %v6047
      %6560 = vst [vmem:[#allocation6 + $0x12c] sm:$0xf] %v6048
      %6561 = vst [vmem:[#allocation6 + $0x130] sm:$0xf] %v6049
      %6562 = vst [vmem:[#allocation6 + $0x134] sm:$0xf] %v6050
      %6563 = vst [vmem:[#allocation6 + $0x138] sm:$0xf] %v6051
      %6564 = vst [vmem:[#allocation6 + $0x13c] sm:$0xf] %v6052
      %6565 = vst [vmem:[#allocation6 + $0x140] sm:$0xf] %v6053
      %6566 = vst [vmem:[#allocation6 + $0x144] sm:$0xf] %v6054
      %6567 = vst [vmem:[#allocation6 + $0x148] sm:$0xf] %v6055
      %6568 = vst [vmem:[#allocation6 + $0x14c] sm:$0xf] %v6056
      %6569 = vst [vmem:[#allocation6 + $0x150] sm:$0xf] %v6057
      %6570 = vst [vmem:[#allocation6 + $0x154] sm:$0xf] %v6058
      %6571 = vst [vmem:[#allocation6 + $0x158] sm:$0xf] %v6059
      %6572 = vst [vmem:[#allocation6 + $0x15c] sm:$0xf] %v6060
      %6573 = vst [vmem:[#allocation6 + $0x160] sm:$0xf] %v6061
      %6574 = vst [vmem:[#allocation6 + $0x164] sm:$0xf] %v6062
      %6575 = vst [vmem:[#allocation6 + $0x168] sm:$0xf] %v6063
      %6576 = vst [vmem:[#allocation6 + $0x16c] sm:$0xf] %v6064
      %6577 = vst [vmem:[#allocation6 + $0x170] sm:$0xf] %v6065
      %6578 = vst [vmem:[#allocation6 + $0x174] sm:$0xf] %v6066
      %6579 = vst [vmem:[#allocation6 + $0x178] sm:$0xf] %v6067
      %6580 = vst [vmem:[#allocation6 + $0x17c] sm:$0xf] %v6068
      %6581 = vst [vmem:[#allocation6 + $0x180] sm:$0xf] %v6069
      %6582 = vst [vmem:[#allocation6 + $0x184] sm:$0xf] %v6070
      %6583 = vst [vmem:[#allocation6 + $0x188] sm:$0xf] %v6071
      %6584 = vst [vmem:[#allocation6 + $0x18c] sm:$0xf] %v6072
      %6585 = vst [vmem:[#allocation6 + $0x190] sm:$0xf] %v6073
      %6586 = vst [vmem:[#allocation6 + $0x194] sm:$0xf] %v6074
      %6587 = vst [vmem:[#allocation6 + $0x198] sm:$0xf] %v6075
      %6588 = vst [vmem:[#allocation6 + $0x19c] sm:$0xf] %v6076
      %6589 = vst [vmem:[#allocation6 + $0x1a0] sm:$0xf] %v6077
      %6590 = vst [vmem:[#allocation6 + $0x1a4] sm:$0xf] %v6078
      %6591 = vst [vmem:[#allocation6 + $0x1a8] sm:$0xf] %v6079
      %6592 = vst [vmem:[#allocation6 + $0x1ac] sm:$0xf] %v6080
      %6593 = vst [vmem:[#allocation6 + $0x1b0] sm:$0xf] %v6081
      %6594 = vst [vmem:[#allocation6 + $0x1b4] sm:$0xf] %v6082
      %6595 = vst [vmem:[#allocation6 + $0x1b8] sm:$0xf] %v6083
      %6596 = vst [vmem:[#allocation6 + $0x1bc] sm:$0xf] %v6084
      %6597 = vst [vmem:[#allocation6 + $0x1c0] sm:$0xf] %v6085
      %6598 = vst [vmem:[#allocation6 + $0x1c4] sm:$0xf] %v6086
      %6599 = vst [vmem:[#allocation6 + $0x1c8] sm:$0xf] %v6087
      %6600 = vst [vmem:[#allocation6 + $0x1cc] sm:$0xf] %v6088
      %6601 = vst [vmem:[#allocation6 + $0x1d0] sm:$0xf] %v6089
      %6602 = vst [vmem:[#allocation6 + $0x1d4] sm:$0xf] %v6090
      %6603 = vst [vmem:[#allocation6 + $0x1d8] sm:$0xf] %v6091
      %6604 = vst [vmem:[#allocation6 + $0x1dc] sm:$0xf] %v6092
      %6605 = vst [vmem:[#allocation6 + $0x1e0] sm:$0xf] %v6093
      %6606 = vst [vmem:[#allocation6 + $0x1e4] sm:$0xf] %v6094
      %6607 = vst [vmem:[#allocation6 + $0x1e8] sm:$0xf] %v6095
      %6608 = vst [vmem:[#allocation6 + $0x1ec] sm:$0xf] %v6096
      %6609 = vst [vmem:[#allocation6 + $0x1f0] sm:$0xf] %v6097
      %6610 = vst [vmem:[#allocation6 + $0x1f4] sm:$0xf] %v6098
      %6611 = vst [vmem:[#allocation6 + $0x1f8] sm:$0xf] %v6099
      %6612 = vst [vmem:[#allocation6 + $0x1fc] sm:$0xf] %v6100
      %6613 = vst [vmem:[#allocation6 + $0x200] sm:$0xf] %v6101
      %6614 = vst [vmem:[#allocation6 + $0x204] sm:$0xf] %v6102
      %6615 = vst [vmem:[#allocation6 + $0x208] sm:$0xf] %v6103
      %6616 = vst [vmem:[#allocation6 + $0x20c] sm:$0xf] %v6104
      %6617 = vst [vmem:[#allocation6 + $0x210] sm:$0xf] %v6105
      %6618 = vst [vmem:[#allocation6 + $0x214] sm:$0xf] %v6106
      %6619 = vst [vmem:[#allocation6 + $0x218] sm:$0xf] %v6107
      %6620 = vst [vmem:[#allocation6 + $0x21c] sm:$0xf] %v6108
      %6621 = vst [vmem:[#allocation6 + $0x220] sm:$0xf] %v6109
      %6622 = vst [vmem:[#allocation6 + $0x224] sm:$0xf] %v6110
      %6623 = vst [vmem:[#allocation6 + $0x228] sm:$0xf] %v6111
      %6624 = vst [vmem:[#allocation6 + $0x22c] sm:$0xf] %v6112
      %6625 = vst [vmem:[#allocation6 + $0x230] sm:$0xf] %v6113
      %6626 = vst [vmem:[#allocation6 + $0x234] sm:$0xf] %v6114
      %6627 = vst [vmem:[#allocation6 + $0x238] sm:$0xf] %v6115
      %6628 = vst [vmem:[#allocation6 + $0x23c] sm:$0xf] %v6116
      %6629 = vst [vmem:[#allocation6 + $0x240] sm:$0xf] %v6117
      %6630 = vst [vmem:[#allocation6 + $0x244] sm:$0xf] %v6118
      %6631 = vst [vmem:[#allocation6 + $0x248] sm:$0xf] %v6119
      %6632 = vst [vmem:[#allocation6 + $0x24c] sm:$0xf] %v6120
      %6633 = vst [vmem:[#allocation6 + $0x250] sm:$0xf] %v6121
      %6634 = vst [vmem:[#allocation6 + $0x254] sm:$0xf] %v6122
      %6635 = vst [vmem:[#allocation6 + $0x258] sm:$0xf] %v6123
      %6636 = vst [vmem:[#allocation6 + $0x25c] sm:$0xf] %v6124
      %6637 = vst [vmem:[#allocation6 + $0x260] sm:$0xf] %v6125
      %6638 = vst [vmem:[#allocation6 + $0x264] sm:$0xf] %v6126
      %6639 = vst [vmem:[#allocation6 + $0x268] sm:$0xf] %v6127
      %6640 = vst [vmem:[#allocation6 + $0x26c] sm:$0xf] %v6128
      %6641 = vst [vmem:[#allocation6 + $0x270] sm:$0xf] %v6129
      %6642 = vst [vmem:[#allocation6 + $0x274] sm:$0xf] %v6130
      %6643 = vst [vmem:[#allocation6 + $0x278] sm:$0xf] %v6131
      %6644 = vst [vmem:[#allocation6 + $0x27c] sm:$0xf] %v6132
      %6645 = vst [vmem:[#allocation6 + $0x280] sm:$0xf] %v6133
      %6646 = vst [vmem:[#allocation6 + $0x284] sm:$0xf] %v6134
      %6647 = vst [vmem:[#allocation6 + $0x288] sm:$0xf] %v6135
      %6648 = vst [vmem:[#allocation6 + $0x28c] sm:$0xf] %v6136
      %6649 = vst [vmem:[#allocation6 + $0x290] sm:$0xf] %v6137
      %6650 = vst [vmem:[#allocation6 + $0x294] sm:$0xf] %v6138
      %6651 = vst [vmem:[#allocation6 + $0x298] sm:$0xf] %v6139
      %6652 = vst [vmem:[#allocation6 + $0x29c] sm:$0xf] %v6140
      %6653 = vst [vmem:[#allocation6 + $0x2a0] sm:$0xf] %v6141
      %6654 = vst [vmem:[#allocation6 + $0x2a4] sm:$0xf] %v6142
      %6655 = vst [vmem:[#allocation6 + $0x2a8] sm:$0xf] %v6143
      %6656 = vst [vmem:[#allocation6 + $0x2ac] sm:$0xf] %v6144
      %6657 = vst [vmem:[#allocation6 + $0x2b0] sm:$0xf] %v6145
      %6658 = vst [vmem:[#allocation6 + $0x2b4] sm:$0xf] %v6146
      %6659 = vst [vmem:[#allocation6 + $0x2b8] sm:$0xf] %v6147
      %6660 = vst [vmem:[#allocation6 + $0x2bc] sm:$0xf] %v6148
      %6661 = vst [vmem:[#allocation6 + $0x2c0] sm:$0xf] %v6149
      %6662 = vst [vmem:[#allocation6 + $0x2c4] sm:$0xf] %v6150
      %6663 = vst [vmem:[#allocation6 + $0x2c8] sm:$0xf] %v6151
      %6664 = vst [vmem:[#allocation6 + $0x2cc] sm:$0xf] %v6152
      %6665 = vst [vmem:[#allocation6 + $0x2d0] sm:$0xf] %v6153
      %6666 = vst [vmem:[#allocation6 + $0x2d4] sm:$0xf] %v6154
      %6667 = vst [vmem:[#allocation6 + $0x2d8] sm:$0xf] %v6155
      %6668 = vst [vmem:[#allocation6 + $0x2dc] sm:$0xf] %v6156
      %6669 = vst [vmem:[#allocation6 + $0x2e0] sm:$0xf] %v6157
      %6670 = vst [vmem:[#allocation6 + $0x2e4] sm:$0xf] %v6158
      %6671 = vst [vmem:[#allocation6 + $0x2e8] sm:$0xf] %v6159
      %6672 = vst [vmem:[#allocation6 + $0x2ec] sm:$0xf] %v6160
      %6673 = vst [vmem:[#allocation6 + $0x2f0] sm:$0xf] %v6161
      %6674 = vst [vmem:[#allocation6 + $0x2f4] sm:$0xf] %v6162
      %6675 = vst [vmem:[#allocation6 + $0x2f8] sm:$0xf] %v6163
      %6676 = vst [vmem:[#allocation6 + $0x2fc] sm:$0xf] %v6164
      %6677 = vst [vmem:[#allocation6 + $0x300] sm:$0xf] %v6165
      %6678 = vst [vmem:[#allocation6 + $0x304] sm:$0xf] %v6166
      %6679 = vst [vmem:[#allocation6 + $0x308] sm:$0xf] %v6167
      %6680 = vst [vmem:[#allocation6 + $0x30c] sm:$0xf] %v6168
      %6681 = vst [vmem:[#allocation6 + $0x310] sm:$0xf] %v6169
      %6682 = vst [vmem:[#allocation6 + $0x314] sm:$0xf] %v6170
      %6683 = vst [vmem:[#allocation6 + $0x318] sm:$0xf] %v6171
      %6684 = vst [vmem:[#allocation6 + $0x31c] sm:$0xf] %v6172
      %6685 = vst [vmem:[#allocation6 + $0x320] sm:$0xf] %v6173
      %6686 = vst [vmem:[#allocation6 + $0x324] sm:$0xf] %v6174
      %6687 = vst [vmem:[#allocation6 + $0x328] sm:$0xf] %v6175
      %6688 = vst [vmem:[#allocation6 + $0x32c] sm:$0xf] %v6176
      %6689 = vst [vmem:[#allocation6 + $0x330] sm:$0xf] %v6177
      %6690 = vst [vmem:[#allocation6 + $0x334] sm:$0xf] %v6178
      %6691 = vst [vmem:[#allocation6 + $0x338] sm:$0xf] %v6179
      %6692 = vst [vmem:[#allocation6 + $0x33c] sm:$0xf] %v6180
      %6693 = vst [vmem:[#allocation6 + $0x340] sm:$0xf] %v6181
      %6694 = vst [vmem:[#allocation6 + $0x344] sm:$0xf] %v6182
      %6695 = vst [vmem:[#allocation6 + $0x348] sm:$0xf] %v6183
      %6696 = vst [vmem:[#allocation6 + $0x34c] sm:$0xf] %v6184
      %6697 = vst [vmem:[#allocation6 + $0x350] sm:$0xf] %v6185
      %6698 = vst [vmem:[#allocation6 + $0x354] sm:$0xf] %v6186
      %6699 = vst [vmem:[#allocation6 + $0x358] sm:$0xf] %v6187
      %6700 = vst [vmem:[#allocation6 + $0x35c] sm:$0xf] %v6188
      %6701 = vst [vmem:[#allocation6 + $0x360] sm:$0xf] %v6189
      %6702 = vst [vmem:[#allocation6 + $0x364] sm:$0xf] %v6190
      %6703 = vst [vmem:[#allocation6 + $0x368] sm:$0xf] %v6191
      %6704 = vst [vmem:[#allocation6 + $0x36c] sm:$0xf] %v6192
      %6705 = vst [vmem:[#allocation6 + $0x370] sm:$0xf] %v6193
      %6706 = vst [vmem:[#allocation6 + $0x374] sm:$0xf] %v6194
      %6707 = vst [vmem:[#allocation6 + $0x378] sm:$0xf] %v6195
      %6708 = vst [vmem:[#allocation6 + $0x37c] sm:$0xf] %v6196
      %6709 = vst [vmem:[#allocation6 + $0x380] sm:$0xf] %v6197
      %6710 = vst [vmem:[#allocation6 + $0x384] sm:$0xf] %v6198
      %6711 = vst [vmem:[#allocation6 + $0x388] sm:$0xf] %v6199
      %6712 = vst [vmem:[#allocation6 + $0x38c] sm:$0xf] %v6200
      %6713 = vst [vmem:[#allocation6 + $0x390] sm:$0xf] %v6201
      %6714 = vst [vmem:[#allocation6 + $0x394] sm:$0xf] %v6202
      %6715 = vst [vmem:[#allocation6 + $0x398] sm:$0xf] %v6203
      %6716 = vst [vmem:[#allocation6 + $0x39c] sm:$0xf] %v6204
      %6717 = vst [vmem:[#allocation6 + $0x3a0] sm:$0xf] %v6205
      %6718 = vst [vmem:[#allocation6 + $0x3a4] sm:$0xf] %v6206
      %6719 = vst [vmem:[#allocation6 + $0x3a8] sm:$0xf] %v6207
      %6720 = vst [vmem:[#allocation6 + $0x3ac] sm:$0xf] %v6208
      %6721 = vst [vmem:[#allocation6 + $0x3b0] sm:$0xf] %v6209
      %6722 = vst [vmem:[#allocation6 + $0x3b4] sm:$0xf] %v6210
      %6723 = vst [vmem:[#allocation6 + $0x3b8] sm:$0xf] %v6211
      %6724 = vst [vmem:[#allocation6 + $0x3bc] sm:$0xf] %v6212
      %6725 = vst [vmem:[#allocation6 + $0x3c0] sm:$0xf] %v6213
      %6726 = vst [vmem:[#allocation6 + $0x3c4] sm:$0xf] %v6214
      %6727 = vst [vmem:[#allocation6 + $0x3c8] sm:$0xf] %v6215
      %6728 = vst [vmem:[#allocation6 + $0x3cc] sm:$0xf] %v6216
      %6729 = vst [vmem:[#allocation6 + $0x3d0] sm:$0xf] %v6217
      %6730 = vst [vmem:[#allocation6 + $0x3d4] sm:$0xf] %v6218
      %6731 = vst [vmem:[#allocation6 + $0x3d8] sm:$0xf] %v6219
      %6732 = vst [vmem:[#allocation6 + $0x3dc] sm:$0xf] %v6220
      %6733 = vst [vmem:[#allocation6 + $0x3e0] sm:$0xf] %v6221
      %6734 = vst [vmem:[#allocation6 + $0x3e4] sm:$0xf] %v6222
      %6735 = vst [vmem:[#allocation6 + $0x3e8] sm:$0xf] %v6223
      %6736 = vst [vmem:[#allocation6 + $0x3ec] sm:$0xf] %v6224
      %6737 = vst [vmem:[#allocation6 + $0x3f0] sm:$0xf] %v6225
      %6738 = vst [vmem:[#allocation6 + $0x3f4] sm:$0xf] %v6226
      %6739 = vst [vmem:[#allocation6 + $0x3f8] sm:$0xf] %v6227
      %6740 = vst [vmem:[#allocation6 + $0x3fc] sm:$0xf] %v6228
    $region33: #{tpu_custom_call.1} parent=1 // pred_fallthru
      _
    // Predicated region
    $region34: #{tpu_custom_call.1} parent=1 // pred_check
      _
    $region35: #{tpu_custom_call.1} parent=1 // pred_check_branch
      %6742 = sbr.rel (0) target = $region37
    $region36: #{tpu_custom_call.1} parent=1 // pred_region
      %s6744 = ssub.s32 16384, 16384
      %6745 = vsyncadd [#allocation5], %s6744
      %s6746 = sshll.u32 [#allocation6], 4
      %s6747 = int_to_ptr.vmem [resolvable:$true] %s6746
      %6752 = dma.vmem_to_hbm [thread:$0]  %s6747, 16384, %s5, [#allocation5], 64, 64, 4
    $region37: #{tpu_custom_call.1} parent=1 // pred_fallthru
      _
    // Predicated region
    $region38: #{tpu_custom_call.1} parent=1 // pred_check
      _
    $region39: #{tpu_custom_call.1} parent=1 // pred_check_branch
      %6754 = sbr.rel (0) target = $region41
    $region40: #{tpu_custom_call.1} parent=1 // pred_region
      %6755 = dma.done [#allocation5], 16384
    $region41: #{tpu_custom_call.1} parent=1 // pred_fallthru
      _
    %6756 = vsyncpa [#allocation4], 1
    %6757 = vsyncpa [#allocation5], 1

</llo_original>
